<compile_context>
chip_gen: v7x
topology: tpu7x:2x2x1
jax: 0.10.0
libtpu: 0.0.40
codegen_flags: <defaults>
</compile_context>

<pallas_src>
import functools

import jax
import jax.numpy as jnp
from jax.experimental import pallas as pl
from jax.experimental.pallas import tpu as pltpu

LANE = 128  # TPU lane width


def basic_block_kernel(xpad_ref, w1_ref, b1_ref, w2_ref, b2_ref, out_ref,
                       mid_ref, *, th):
    # xpad_ref: (1, H+2, W+2, Cp) f32  zero-padded input (spatial halo + channel pad)
    # w*_ref  : (3, 3*Cp, Cp)     bf16 BN-scale-folded weights; row kh holds
    #                             [w[kh,kw=0]; w[kh,kw=1]; w[kh,kw=2]] stacked on K
    # b*_ref  : (1, Cp)           f32  folded BN shift
    # out_ref : (1, H, W, Cp)     f32
    # mid_ref : (H+2, W+2, Cp)    bf16 VMEM scratch (padded conv1 output)
    H, W, Cp = out_ref.shape[1], out_ref.shape[2], out_ref.shape[3]
    M = th * W
    nrow = H // th

    b1 = b1_ref[...]  # (1, Cp) f32
    b2 = b2_ref[...]

    # Zero only the 1-pixel halo of the staging buffer; the interior is fully
    # rewritten below.  Cheap (4 small stores) and safe under any grid order /
    # megacore sharding because it is redone every grid step.
    mid_ref[0:1, :, :] = jnp.zeros((1, W + 2, Cp), mid_ref.dtype)
    mid_ref[H + 1:H + 2, :, :] = jnp.zeros((1, W + 2, Cp), mid_ref.dtype)
    mid_ref[:, 0:1, :] = jnp.zeros((H + 2, 1, Cp), mid_ref.dtype)
    mid_ref[:, W + 1:W + 2, :] = jnp.zeros((H + 2, 1, Cp), mid_ref.dtype)

    def read_xpad(row0, kw):
        # bf16 operand for the MXU; residual path reads f32 separately.
        return xpad_ref[0, row0:row0 + th, kw:kw + W, :].astype(jnp.bfloat16)

    def read_mid(row0, kw):
        return mid_ref[row0:row0 + th, kw:kw + W, :]  # already bf16

    def conv_rowgroup(read, w_ref, h0):
        # 3x3 conv for output rows [h0, h0+th): 3 MXU matmuls with K = 3*Cp.
        acc = jnp.zeros((M, Cp), jnp.float32)
        for kh in range(3):
            taps = [read(h0 + kh, kw).reshape(M, Cp) for kw in range(3)]
            patch = jnp.concatenate(taps, axis=-1)          # (M, 3*Cp) bf16
            acc += jnp.dot(patch, w_ref[kh],                # (3*Cp, Cp) bf16
                           preferred_element_type=jnp.float32)
        return acc

    # ---- conv1 (+ folded bn1) + relu, staged into the padded mid buffer ----
    for r in range(nrow):
        h0 = r * th
        acc1 = conv_rowgroup(read_xpad, w1_ref, h0)
        out1 = jnp.maximum(acc1 + b1, 0.0)
        mid_ref[1 + h0:1 + h0 + th, 1:1 + W, :] = (
            out1.reshape(th, W, Cp).astype(mid_ref.dtype))

    # ---- conv2 (+ folded bn2) + residual add + relu ----
    for r in range(nrow):
        h0 = r * th
        acc2 = conv_rowgroup(read_mid, w2_ref, h0)
        identity = xpad_ref[0, 1 + h0:1 + h0 + th, 1:1 + W, :].reshape(M, Cp)
        out2 = jnp.maximum(acc2 + b2 + identity, 0.0)
        out_ref[0, h0:h0 + th, :, :] = (
            out2.reshape(th, W, Cp).astype(out_ref.dtype))


def _fold_conv_bn(w, gamma, beta, mean, var, Cp, eps=1e-5):
    # Fold eval-mode BN scale into the conv weight; return K-fused bf16 weight
    # of shape (3, 3*Cp, Cp) plus the f32 shift (1, Cp).
    C = w.shape[0]
    scale = gamma / jnp.sqrt(var + eps)              # (C,)
    shift = beta - mean * scale                      # (C,)
    w_f = w * scale[:, None, None, None]             # (Cout, Cin, 3, 3)
    w_k = jnp.transpose(w_f, (2, 3, 1, 0))           # (3, 3, Cin, Cout)
    w_k = jnp.pad(w_k, ((0, 0), (0, 0), (0, Cp - C), (0, Cp - C)))
    w_k = w_k.reshape(3, 3 * Cp, Cp).astype(jnp.bfloat16)
    b_k = jnp.pad(shift, (0, Cp - C)).reshape(1, Cp).astype(jnp.float32)
    return w_k, b_k


def _pick_row_tile(H, W, target_m=128):
    th = max(1, min(H, target_m // max(W, 1)))
    while H % th:
        th -= 1
    return th


@jax.jit
def basic_block_pallas(x_nchw, w1, g1, be1, m1, v1, w2, g2, be2, m2, v2):
    N, C, H, W = x_nchw.shape
    assert w1.shape[0] == w1.shape[1] == C and w2.shape[0] == w2.shape[1] == C, (
        "identity BasicBlock requires in_channels == out_channels")
    Cp = -(-C // LANE) * LANE  # channels padded to a lane multiple (lane-dense)

    # NCHW -> NHWC, single pad op: spatial halo of 1 + channel pad.
    x_nhwc = jnp.transpose(x_nchw, (0, 2, 3, 1)).astype(jnp.float32)
    xpad = jnp.pad(x_nhwc, ((0, 0), (1, 1), (1, 1), (0, Cp - C)))

    w1_k, b1_k = _fold_conv_bn(w1, g1, be1, m1, v1, Cp)
    w2_k, b2_k = _fold_conv_bn(w2, g2, be2, m2, v2, Cp)

    th = _pick_row_tile(H, W)
    kernel = functools.partial(basic_block_kernel, th=th)

    out_nhwc = pl.pallas_call(
        kernel,
        out_shape=jax.ShapeDtypeStruct((N, H, W, Cp), jnp.float32),
        grid_spec=pltpu.PrefetchScalarGridSpec(
            num_scalar_prefetch=0,
            grid=(N,),
            in_specs=[
                pl.BlockSpec((1, H + 2, W + 2, Cp), lambda n: (n, 0, 0, 0)),
                pl.BlockSpec((3, 3 * Cp, Cp), lambda n: (0, 0, 0)),
                pl.BlockSpec((1, Cp), lambda n: (0, 0)),
                pl.BlockSpec((3, 3 * Cp, Cp), lambda n: (0, 0, 0)),
                pl.BlockSpec((1, Cp), lambda n: (0, 0)),
            ],
            out_specs=pl.BlockSpec((1, H, W, Cp), lambda n: (n, 0, 0, 0)),
            scratch_shapes=[pltpu.VMEM((H + 2, W + 2, Cp), jnp.bfloat16)],
        ),
        compiler_params=pltpu.CompilerParams(
            dimension_semantics=("parallel",),
            vmem_limit_bytes=32 * 1024 * 1024,
        ),
    )(xpad, w1_k, b1_k, w2_k, b2_k)

    # Drop channel padding, NHWC -> NCHW to match PyTorch output convention.
    return jnp.transpose(out_nhwc[:, :, :, :C], (0, 3, 1, 2))


def reference_basic_block(x, w1, g1, be1, m1, v1, w2, g2, be2, m2, v2):
    # Pure-JAX NCHW reference for validation.
    def conv(x_, w_):
        return jax.lax.conv_general_dilated(
            x_, w_, window_strides=(1, 1), padding=((1, 1), (1, 1)),
            dimension_numbers=("NCHW", "OIHW", "NCHW"))

    def bn(x_, g, b, m, v, eps=1e-5):
        s = g / jnp.sqrt(v + eps)
        return x_ * s[None, :, None, None] + (b - m * s)[None, :, None, None]

    out = jax.nn.relu(bn(conv(x, w1), g1, be1, m1, v1))
    out = bn(conv(out, w2), g2, be2, m2, v2)
    return jax.nn.relu(out + x)


if __name__ == "__main__":
    key = jax.random.PRNGKey(0)
    N, C, H, W = 2, 4, 16, 16  # in_channels == out_channels, stride=1

    ks = jax.random.split(key, 8)
    x = jax.random.normal(ks[0], (N, C, H, W), jnp.float32)

    # conv weights (Cout, Cin, 3, 3), no bias
    w1 = jax.random.normal(ks[1], (C, C, 3, 3), jnp.float32) * 0.1
    w2 = jax.random.normal(ks[2], (C, C, 3, 3), jnp.float32) * 0.1

    # BatchNorm params / running stats (eval mode), deterministic
    g1 = 1.0 + 0.1 * jax.random.normal(ks[3], (C,), jnp.float32)
    be1 = 0.1 * jax.random.normal(ks[4], (C,), jnp.float32)
    m1 = 0.05 * jnp.arange(C, dtype=jnp.float32)
    v1 = 1.0 + 0.1 * jnp.arange(C, dtype=jnp.float32)

    g2 = 1.0 + 0.1 * jax.random.normal(ks[5], (C,), jnp.float32)
    be2 = 0.1 * jax.random.normal(ks[6], (C,), jnp.float32)
    m2 = -0.05 * jnp.arange(C, dtype=jnp.float32)
    v2 = 1.0 + 0.05 * jnp.arange(C, dtype=jnp.float32)

    out = basic_block_pallas(x, w1, g1, be1, m1, v1, w2, g2, be2, m2, v2)
    out = jax.block_until_ready(out)

    ref = reference_basic_block(x, w1, g1, be1, m1, v1, w2, g2, be2, m2, v2)
    assert out.shape == (N, C, H, W)
    # bf16 MXU operands + bf16 staged intermediate -> bf16-level tolerance.
    assert jnp.allclose(out, ref, atol=2e-2, rtol=2e-2), "mismatch vs JAX reference"

    print("KERNEL_OK")
</pallas_src>

<mosaic_0001>
module attributes {stable_mosaic.version = 11 : i64} {
  func.func @basic_block_kernel(%arg0: i32, %arg1: memref<1x18x18x128xf32, #tpu.memory_space<vmem>>, %arg2: memref<3x384x128xbf16, #tpu.memory_space<vmem>>, %arg3: memref<1x128xf32, #tpu.memory_space<vmem>>, %arg4: memref<3x384x128xbf16, #tpu.memory_space<vmem>>, %arg5: memref<1x128xf32, #tpu.memory_space<vmem>>, %arg6: memref<1x16x16x128xf32, #tpu.memory_space<vmem>>, %arg7: memref<18x18x128xbf16, #tpu.memory_space<vmem>>) attributes {dimension_semantics = [#tpu.dimension_semantics<parallel>], iteration_bounds = array<i64: 2>, scalar_prefetch = 0 : i64, scratch_operands = 1 : i64, tpu.core_type = #tpu.core_type<tc>, window_params = [{transform_indices = @transform_0, window_bounds = array<i64: 1, 18, 18, 128>}, {pipeline_mode = #tpu.pipeline_mode<synchronous>, transform_indices = @transform_1, window_bounds = array<i64: 3, 384, 128>}, {pipeline_mode = #tpu.pipeline_mode<synchronous>, transform_indices = @transform_2, window_bounds = array<i64: 1, 128>}, {pipeline_mode = #tpu.pipeline_mode<synchronous>, transform_indices = @transform_3, window_bounds = array<i64: 3, 384, 128>}, {pipeline_mode = #tpu.pipeline_mode<synchronous>, transform_indices = @transform_4, window_bounds = array<i64: 1, 128>}, {transform_indices = @transform_5, window_bounds = array<i64: 1, 16, 16, 128>}]} {
    %c0 = arith.constant 0 : index
    %c0_0 = arith.constant 0 : index
    %0 = vector.load %arg3[%c0, %c0_0] : memref<1x128xf32, #tpu.memory_space<vmem>>, vector<1x128xf32>
    %c0_1 = arith.constant 0 : index
    %c0_2 = arith.constant 0 : index
    %1 = vector.load %arg5[%c0_1, %c0_2] : memref<1x128xf32, #tpu.memory_space<vmem>>, vector<1x128xf32>
    %cst = arith.constant 0.000000e+00 : bf16
    %2 = vector.broadcast %cst : bf16 to vector<1x18x128xbf16>
    %c0_3 = arith.constant 0 : index
    %c0_4 = arith.constant 0 : index
    %c0_5 = arith.constant 0 : index
    %3 = vector.load %arg7[%c0_3, %c0_4, %c0_5] : memref<18x18x128xbf16, #tpu.memory_space<vmem>>, vector<1x18x128xbf16>
    tpu.vector_store %arg7[%c0_3, %c0_4, %c0_5], %2 {strides = array<i32>} : memref<18x18x128xbf16, #tpu.memory_space<vmem>>, vector<1x18x128xbf16>,
    %cst_6 = arith.constant 0.000000e+00 : bf16
    %4 = vector.broadcast %cst_6 : bf16 to vector<1x18x128xbf16>
    %c17 = arith.constant 17 : index
    %c0_7 = arith.constant 0 : index
    %c0_8 = arith.constant 0 : index
    %5 = vector.load %arg7[%c17, %c0_7, %c0_8] : memref<18x18x128xbf16, #tpu.memory_space<vmem>>, vector<1x18x128xbf16>
    tpu.vector_store %arg7[%c17, %c0_7, %c0_8], %4 {strides = array<i32>} : memref<18x18x128xbf16, #tpu.memory_space<vmem>>, vector<1x18x128xbf16>,
    %cst_9 = arith.constant 0.000000e+00 : bf16
    %6 = vector.broadcast %cst_9 : bf16 to vector<18x1x128xbf16>
    %c0_10 = arith.constant 0 : index
    %c0_11 = arith.constant 0 : index
    %c0_12 = arith.constant 0 : index
    %7 = vector.load %arg7[%c0_10, %c0_11, %c0_12] : memref<18x18x128xbf16, #tpu.memory_space<vmem>>, vector<18x1x128xbf16>
    tpu.vector_store %arg7[%c0_10, %c0_11, %c0_12], %6 {strides = array<i32>} : memref<18x18x128xbf16, #tpu.memory_space<vmem>>, vector<18x1x128xbf16>,
    %cst_13 = arith.constant 0.000000e+00 : bf16
    %8 = vector.broadcast %cst_13 : bf16 to vector<18x1x128xbf16>
    %c0_14 = arith.constant 0 : index
    %c17_15 = arith.constant 17 : index
    %c0_16 = arith.constant 0 : index
    %9 = vector.load %arg7[%c0_14, %c17_15, %c0_16] : memref<18x18x128xbf16, #tpu.memory_space<vmem>>, vector<18x1x128xbf16>
    tpu.vector_store %arg7[%c0_14, %c17_15, %c0_16], %8 {strides = array<i32>} : memref<18x18x128xbf16, #tpu.memory_space<vmem>>, vector<18x1x128xbf16>,
    %cst_17 = arith.constant 0.000000e+00 : f32
    %10 = vector.broadcast %cst_17 : f32 to vector<128x128xf32>
    %c0_18 = arith.constant 0 : index
    %c0_19 = arith.constant 0 : index
    %c0_20 = arith.constant 0 : index
    %c0_21 = arith.constant 0 : index
    %11 = vector.load %arg1[%c0_18, %c0_19, %c0_20, %c0_21] : memref<1x18x18x128xf32, #tpu.memory_space<vmem>>, vector<1x8x16x128xf32>
    %12 = vector.shape_cast %11 : vector<1x8x16x128xf32> to vector<8x16x128xf32>
    %13 = arith.truncf %12 : vector<8x16x128xf32> to vector<8x16x128xbf16>
    %14 = vector.shape_cast %13 : vector<8x16x128xbf16> to vector<128x128xbf16>
    %c0_22 = arith.constant 0 : index
    %c0_23 = arith.constant 0 : index
    %c1 = arith.constant 1 : index
    %c0_24 = arith.constant 0 : index
    %15 = vector.load %arg1[%c0_22, %c0_23, %c1, %c0_24] : memref<1x18x18x128xf32, #tpu.memory_space<vmem>>, vector<1x8x16x128xf32>
    %16 = vector.shape_cast %15 : vector<1x8x16x128xf32> to vector<8x16x128xf32>
    %17 = arith.truncf %16 : vector<8x16x128xf32> to vector<8x16x128xbf16>
    %18 = vector.shape_cast %17 : vector<8x16x128xbf16> to vector<128x128xbf16>
    %c0_25 = arith.constant 0 : index
    %c0_26 = arith.constant 0 : index
    %c2 = arith.constant 2 : index
    %c0_27 = arith.constant 0 : index
    %19 = vector.load %arg1[%c0_25, %c0_26, %c2, %c0_27] : memref<1x18x18x128xf32, #tpu.memory_space<vmem>>, vector<1x8x16x128xf32>
    %20 = vector.shape_cast %19 : vector<1x8x16x128xf32> to vector<8x16x128xf32>
    %21 = arith.truncf %20 : vector<8x16x128xf32> to vector<8x16x128xbf16>
    %22 = vector.shape_cast %21 : vector<8x16x128xbf16> to vector<128x128xbf16>
    %23 = tpu.concatenate %14, %18, %22 in 1 : vector<128x128xbf16>, vector<128x128xbf16>, vector<128x128xbf16> -> vector<128x384xbf16>
    %c0_28 = arith.constant 0 : index
    %c0_29 = arith.constant 0 : index
    %c0_30 = arith.constant 0 : index
    %24 = vector.load %arg2[%c0_28, %c0_29, %c0_30] : memref<3x384x128xbf16, #tpu.memory_space<vmem>>, vector<1x384x128xbf16>
    %25 = vector.shape_cast %24 : vector<1x384x128xbf16> to vector<384x128xbf16>
    %cst_31 = arith.constant dense<0.000000e+00> : vector<128x128xf32>
    %26 = tpu.matmul %23, %25, %cst_31 {dimension_numbers = #tpu.dot_dimension_numbers<[1], [0], [0], [1], [0, 0, 1, 1], [], []>} : vector<128x384xbf16>, vector<384x128xbf16>, vector<128x128xf32> -> vector<128x128xf32>
    %27 = arith.addf %10, %26 : vector<128x128xf32>
    %c0_32 = arith.constant 0 : index
    %c1_33 = arith.constant 1 : index
    %c0_34 = arith.constant 0 : index
    %c0_35 = arith.constant 0 : index
    %28 = vector.load %arg1[%c0_32, %c1_33, %c0_34, %c0_35] : memref<1x18x18x128xf32, #tpu.memory_space<vmem>>, vector<1x8x16x128xf32>
    %29 = vector.shape_cast %28 : vector<1x8x16x128xf32> to vector<8x16x128xf32>
    %30 = arith.truncf %29 : vector<8x16x128xf32> to vector<8x16x128xbf16>
    %31 = vector.shape_cast %30 : vector<8x16x128xbf16> to vector<128x128xbf16>
    %c0_36 = arith.constant 0 : index
    %c1_37 = arith.constant 1 : index
    %c1_38 = arith.constant 1 : index
    %c0_39 = arith.constant 0 : index
    %32 = vector.load %arg1[%c0_36, %c1_37, %c1_38, %c0_39] : memref<1x18x18x128xf32, #tpu.memory_space<vmem>>, vector<1x8x16x128xf32>
    %33 = vector.shape_cast %32 : vector<1x8x16x128xf32> to vector<8x16x128xf32>
    %34 = arith.truncf %33 : vector<8x16x128xf32> to vector<8x16x128xbf16>
    %35 = vector.shape_cast %34 : vector<8x16x128xbf16> to vector<128x128xbf16>
    %c0_40 = arith.constant 0 : index
    %c1_41 = arith.constant 1 : index
    %c2_42 = arith.constant 2 : index
    %c0_43 = arith.constant 0 : index
    %36 = vector.load %arg1[%c0_40, %c1_41, %c2_42, %c0_43] : memref<1x18x18x128xf32, #tpu.memory_space<vmem>>, vector<1x8x16x128xf32>
    %37 = vector.shape_cast %36 : vector<1x8x16x128xf32> to vector<8x16x128xf32>
    %38 = arith.truncf %37 : vector<8x16x128xf32> to vector<8x16x128xbf16>
    %39 = vector.shape_cast %38 : vector<8x16x128xbf16> to vector<128x128xbf16>
    %40 = tpu.concatenate %31, %35, %39 in 1 : vector<128x128xbf16>, vector<128x128xbf16>, vector<128x128xbf16> -> vector<128x384xbf16>
    %c1_44 = arith.constant 1 : index
    %c0_45 = arith.constant 0 : index
    %c0_46 = arith.constant 0 : index
    %41 = vector.load %arg2[%c1_44, %c0_45, %c0_46] : memref<3x384x128xbf16, #tpu.memory_space<vmem>>, vector<1x384x128xbf16>
    %42 = vector.shape_cast %41 : vector<1x384x128xbf16> to vector<384x128xbf16>
    %cst_47 = arith.constant dense<0.000000e+00> : vector<128x128xf32>
    %43 = tpu.matmul %40, %42, %cst_47 {dimension_numbers = #tpu.dot_dimension_numbers<[1], [0], [0], [1], [0, 0, 1, 1], [], []>} : vector<128x384xbf16>, vector<384x128xbf16>, vector<128x128xf32> -> vector<128x128xf32>
    %44 = arith.addf %27, %43 : vector<128x128xf32>
    %c0_48 = arith.constant 0 : index
    %c2_49 = arith.constant 2 : index
    %c0_50 = arith.constant 0 : index
    %c0_51 = arith.constant 0 : index
    %45 = vector.load %arg1[%c0_48, %c2_49, %c0_50, %c0_51] : memref<1x18x18x128xf32, #tpu.memory_space<vmem>>, vector<1x8x16x128xf32>
    %46 = vector.shape_cast %45 : vector<1x8x16x128xf32> to vector<8x16x128xf32>
    %47 = arith.truncf %46 : vector<8x16x128xf32> to vector<8x16x128xbf16>
    %48 = vector.shape_cast %47 : vector<8x16x128xbf16> to vector<128x128xbf16>
    %c0_52 = arith.constant 0 : index
    %c2_53 = arith.constant 2 : index
    %c1_54 = arith.constant 1 : index
    %c0_55 = arith.constant 0 : index
    %49 = vector.load %arg1[%c0_52, %c2_53, %c1_54, %c0_55] : memref<1x18x18x128xf32, #tpu.memory_space<vmem>>, vector<1x8x16x128xf32>
    %50 = vector.shape_cast %49 : vector<1x8x16x128xf32> to vector<8x16x128xf32>
    %51 = arith.truncf %50 : vector<8x16x128xf32> to vector<8x16x128xbf16>
    %52 = vector.shape_cast %51 : vector<8x16x128xbf16> to vector<128x128xbf16>
    %c0_56 = arith.constant 0 : index
    %c2_57 = arith.constant 2 : index
    %c2_58 = arith.constant 2 : index
    %c0_59 = arith.constant 0 : index
    %53 = vector.load %arg1[%c0_56, %c2_57, %c2_58, %c0_59] : memref<1x18x18x128xf32, #tpu.memory_space<vmem>>, vector<1x8x16x128xf32>
    %54 = vector.shape_cast %53 : vector<1x8x16x128xf32> to vector<8x16x128xf32>
    %55 = arith.truncf %54 : vector<8x16x128xf32> to vector<8x16x128xbf16>
    %56 = vector.shape_cast %55 : vector<8x16x128xbf16> to vector<128x128xbf16>
    %57 = tpu.concatenate %48, %52, %56 in 1 : vector<128x128xbf16>, vector<128x128xbf16>, vector<128x128xbf16> -> vector<128x384xbf16>
    %c2_60 = arith.constant 2 : index
    %c0_61 = arith.constant 0 : index
    %c0_62 = arith.constant 0 : index
    %58 = vector.load %arg2[%c2_60, %c0_61, %c0_62] : memref<3x384x128xbf16, #tpu.memory_space<vmem>>, vector<1x384x128xbf16>
    %59 = vector.shape_cast %58 : vector<1x384x128xbf16> to vector<384x128xbf16>
    %cst_63 = arith.constant dense<0.000000e+00> : vector<128x128xf32>
    %60 = tpu.matmul %57, %59, %cst_63 {dimension_numbers = #tpu.dot_dimension_numbers<[1], [0], [0], [1], [0, 0, 1, 1], [], []>} : vector<128x384xbf16>, vector<384x128xbf16>, vector<128x128xf32> -> vector<128x128xf32>
    %61 = arith.addf %44, %60 : vector<128x128xf32>
    %62 = vector.broadcast %0 : vector<1x128xf32> to vector<128x128xf32>
    %63 = arith.addf %61, %62 : vector<128x128xf32>
    %cst_64 = arith.constant 0.000000e+00 : f32
    %64 = vector.broadcast %cst_64 : f32 to vector<128x128xf32>
    %65 = arith.maximumf %63, %64 : vector<128x128xf32>
    %66 = vector.shape_cast %65 : vector<128x128xf32> to vector<8x16x128xf32>
    %67 = arith.truncf %66 : vector<8x16x128xf32> to vector<8x16x128xbf16>
    %c1_65 = arith.constant 1 : index
    %c1_66 = arith.constant 1 : index
    %c0_67 = arith.constant 0 : index
    %68 = vector.load %arg7[%c1_65, %c1_66, %c0_67] : memref<18x18x128xbf16, #tpu.memory_space<vmem>>, vector<8x16x128xbf16>
    tpu.vector_store %arg7[%c1_65, %c1_66, %c0_67], %67 {strides = array<i32>} : memref<18x18x128xbf16, #tpu.memory_space<vmem>>, vector<8x16x128xbf16>,
    %cst_68 = arith.constant 0.000000e+00 : f32
    %69 = vector.broadcast %cst_68 : f32 to vector<128x128xf32>
    %c0_69 = arith.constant 0 : index
    %c8 = arith.constant 8 : index
    %c0_70 = arith.constant 0 : index
    %c0_71 = arith.constant 0 : index
    %70 = vector.load %arg1[%c0_69, %c8, %c0_70, %c0_71] : memref<1x18x18x128xf32, #tpu.memory_space<vmem>>, vector<1x8x16x128xf32>
    %71 = vector.shape_cast %70 : vector<1x8x16x128xf32> to vector<8x16x128xf32>
    %72 = arith.truncf %71 : vector<8x16x128xf32> to vector<8x16x128xbf16>
    %73 = vector.shape_cast %72 : vector<8x16x128xbf16> to vector<128x128xbf16>
    %c0_72 = arith.constant 0 : index
    %c8_73 = arith.constant 8 : index
    %c1_74 = arith.constant 1 : index
    %c0_75 = arith.constant 0 : index
    %74 = vector.load %arg1[%c0_72, %c8_73, %c1_74, %c0_75] : memref<1x18x18x128xf32, #tpu.memory_space<vmem>>, vector<1x8x16x128xf32>
    %75 = vector.shape_cast %74 : vector<1x8x16x128xf32> to vector<8x16x128xf32>
    %76 = arith.truncf %75 : vector<8x16x128xf32> to vector<8x16x128xbf16>
    %77 = vector.shape_cast %76 : vector<8x16x128xbf16> to vector<128x128xbf16>
    %c0_76 = arith.constant 0 : index
    %c8_77 = arith.constant 8 : index
    %c2_78 = arith.constant 2 : index
    %c0_79 = arith.constant 0 : index
    %78 = vector.load %arg1[%c0_76, %c8_77, %c2_78, %c0_79] : memref<1x18x18x128xf32, #tpu.memory_space<vmem>>, vector<1x8x16x128xf32>
    %79 = vector.shape_cast %78 : vector<1x8x16x128xf32> to vector<8x16x128xf32>
    %80 = arith.truncf %79 : vector<8x16x128xf32> to vector<8x16x128xbf16>
    %81 = vector.shape_cast %80 : vector<8x16x128xbf16> to vector<128x128xbf16>
    %82 = tpu.concatenate %73, %77, %81 in 1 : vector<128x128xbf16>, vector<128x128xbf16>, vector<128x128xbf16> -> vector<128x384xbf16>
    %c0_80 = arith.constant 0 : index
    %c0_81 = arith.constant 0 : index
    %c0_82 = arith.constant 0 : index
    %83 = vector.load %arg2[%c0_80, %c0_81, %c0_82] : memref<3x384x128xbf16, #tpu.memory_space<vmem>>, vector<1x384x128xbf16>
    %84 = vector.shape_cast %83 : vector<1x384x128xbf16> to vector<384x128xbf16>
    %cst_83 = arith.constant dense<0.000000e+00> : vector<128x128xf32>
    %85 = tpu.matmul %82, %84, %cst_83 {dimension_numbers = #tpu.dot_dimension_numbers<[1], [0], [0], [1], [0, 0, 1, 1], [], []>} : vector<128x384xbf16>, vector<384x128xbf16>, vector<128x128xf32> -> vector<128x128xf32>
    %86 = arith.addf %69, %85 : vector<128x128xf32>
    %c0_84 = arith.constant 0 : index
    %c9 = arith.constant 9 : index
    %c0_85 = arith.constant 0 : index
    %c0_86 = arith.constant 0 : index
    %87 = vector.load %arg1[%c0_84, %c9, %c0_85, %c0_86] : memref<1x18x18x128xf32, #tpu.memory_space<vmem>>, vector<1x8x16x128xf32>
    %88 = vector.shape_cast %87 : vector<1x8x16x128xf32> to vector<8x16x128xf32>
    %89 = arith.truncf %88 : vector<8x16x128xf32> to vector<8x16x128xbf16>
    %90 = vector.shape_cast %89 : vector<8x16x128xbf16> to vector<128x128xbf16>
    %c0_87 = arith.constant 0 : index
    %c9_88 = arith.constant 9 : index
    %c1_89 = arith.constant 1 : index
    %c0_90 = arith.constant 0 : index
    %91 = vector.load %arg1[%c0_87, %c9_88, %c1_89, %c0_90] : memref<1x18x18x128xf32, #tpu.memory_space<vmem>>, vector<1x8x16x128xf32>
    %92 = vector.shape_cast %91 : vector<1x8x16x128xf32> to vector<8x16x128xf32>
    %93 = arith.truncf %92 : vector<8x16x128xf32> to vector<8x16x128xbf16>
    %94 = vector.shape_cast %93 : vector<8x16x128xbf16> to vector<128x128xbf16>
    %c0_91 = arith.constant 0 : index
    %c9_92 = arith.constant 9 : index
    %c2_93 = arith.constant 2 : index
    %c0_94 = arith.constant 0 : index
    %95 = vector.load %arg1[%c0_91, %c9_92, %c2_93, %c0_94] : memref<1x18x18x128xf32, #tpu.memory_space<vmem>>, vector<1x8x16x128xf32>
    %96 = vector.shape_cast %95 : vector<1x8x16x128xf32> to vector<8x16x128xf32>
    %97 = arith.truncf %96 : vector<8x16x128xf32> to vector<8x16x128xbf16>
    %98 = vector.shape_cast %97 : vector<8x16x128xbf16> to vector<128x128xbf16>
    %99 = tpu.concatenate %90, %94, %98 in 1 : vector<128x128xbf16>, vector<128x128xbf16>, vector<128x128xbf16> -> vector<128x384xbf16>
    %c1_95 = arith.constant 1 : index
    %c0_96 = arith.constant 0 : index
    %c0_97 = arith.constant 0 : index
    %100 = vector.load %arg2[%c1_95, %c0_96, %c0_97] : memref<3x384x128xbf16, #tpu.memory_space<vmem>>, vector<1x384x128xbf16>
    %101 = vector.shape_cast %100 : vector<1x384x128xbf16> to vector<384x128xbf16>
    %cst_98 = arith.constant dense<0.000000e+00> : vector<128x128xf32>
    %102 = tpu.matmul %99, %101, %cst_98 {dimension_numbers = #tpu.dot_dimension_numbers<[1], [0], [0], [1], [0, 0, 1, 1], [], []>} : vector<128x384xbf16>, vector<384x128xbf16>, vector<128x128xf32> -> vector<128x128xf32>
    %103 = arith.addf %86, %102 : vector<128x128xf32>
    %c0_99 = arith.constant 0 : index
    %c10 = arith.constant 10 : index
    %c0_100 = arith.constant 0 : index
    %c0_101 = arith.constant 0 : index
    %104 = vector.load %arg1[%c0_99, %c10, %c0_100, %c0_101] : memref<1x18x18x128xf32, #tpu.memory_space<vmem>>, vector<1x8x16x128xf32>
    %105 = vector.shape_cast %104 : vector<1x8x16x128xf32> to vector<8x16x128xf32>
    %106 = arith.truncf %105 : vector<8x16x128xf32> to vector<8x16x128xbf16>
    %107 = vector.shape_cast %106 : vector<8x16x128xbf16> to vector<128x128xbf16>
    %c0_102 = arith.constant 0 : index
    %c10_103 = arith.constant 10 : index
    %c1_104 = arith.constant 1 : index
    %c0_105 = arith.constant 0 : index
    %108 = vector.load %arg1[%c0_102, %c10_103, %c1_104, %c0_105] : memref<1x18x18x128xf32, #tpu.memory_space<vmem>>, vector<1x8x16x128xf32>
    %109 = vector.shape_cast %108 : vector<1x8x16x128xf32> to vector<8x16x128xf32>
    %110 = arith.truncf %109 : vector<8x16x128xf32> to vector<8x16x128xbf16>
    %111 = vector.shape_cast %110 : vector<8x16x128xbf16> to vector<128x128xbf16>
    %c0_106 = arith.constant 0 : index
    %c10_107 = arith.constant 10 : index
    %c2_108 = arith.constant 2 : index
    %c0_109 = arith.constant 0 : index
    %112 = vector.load %arg1[%c0_106, %c10_107, %c2_108, %c0_109] : memref<1x18x18x128xf32, #tpu.memory_space<vmem>>, vector<1x8x16x128xf32>
    %113 = vector.shape_cast %112 : vector<1x8x16x128xf32> to vector<8x16x128xf32>
    %114 = arith.truncf %113 : vector<8x16x128xf32> to vector<8x16x128xbf16>
    %115 = vector.shape_cast %114 : vector<8x16x128xbf16> to vector<128x128xbf16>
    %116 = tpu.concatenate %107, %111, %115 in 1 : vector<128x128xbf16>, vector<128x128xbf16>, vector<128x128xbf16> -> vector<128x384xbf16>
    %c2_110 = arith.constant 2 : index
    %c0_111 = arith.constant 0 : index
    %c0_112 = arith.constant 0 : index
    %117 = vector.load %arg2[%c2_110, %c0_111, %c0_112] : memref<3x384x128xbf16, #tpu.memory_space<vmem>>, vector<1x384x128xbf16>
    %118 = vector.shape_cast %117 : vector<1x384x128xbf16> to vector<384x128xbf16>
    %cst_113 = arith.constant dense<0.000000e+00> : vector<128x128xf32>
    %119 = tpu.matmul %116, %118, %cst_113 {dimension_numbers = #tpu.dot_dimension_numbers<[1], [0], [0], [1], [0, 0, 1, 1], [], []>} : vector<128x384xbf16>, vector<384x128xbf16>, vector<128x128xf32> -> vector<128x128xf32>
    %120 = arith.addf %103, %119 : vector<128x128xf32>
    %121 = vector.broadcast %0 : vector<1x128xf32> to vector<128x128xf32>
    %122 = arith.addf %120, %121 : vector<128x128xf32>
    %cst_114 = arith.constant 0.000000e+00 : f32
    %123 = vector.broadcast %cst_114 : f32 to vector<128x128xf32>
    %124 = arith.maximumf %122, %123 : vector<128x128xf32>
    %125 = vector.shape_cast %124 : vector<128x128xf32> to vector<8x16x128xf32>
    %126 = arith.truncf %125 : vector<8x16x128xf32> to vector<8x16x128xbf16>
    %c9_115 = arith.constant 9 : index
    %c1_116 = arith.constant 1 : index
    %c0_117 = arith.constant 0 : index
    %127 = vector.load %arg7[%c9_115, %c1_116, %c0_117] : memref<18x18x128xbf16, #tpu.memory_space<vmem>>, vector<8x16x128xbf16>
    tpu.vector_store %arg7[%c9_115, %c1_116, %c0_117], %126 {strides = array<i32>} : memref<18x18x128xbf16, #tpu.memory_space<vmem>>, vector<8x16x128xbf16>,
    %cst_118 = arith.constant 0.000000e+00 : f32
    %128 = vector.broadcast %cst_118 : f32 to vector<128x128xf32>
    %c0_119 = arith.constant 0 : index
    %c0_120 = arith.constant 0 : index
    %c0_121 = arith.constant 0 : index
    %129 = vector.load %arg7[%c0_119, %c0_120, %c0_121] : memref<18x18x128xbf16, #tpu.memory_space<vmem>>, vector<8x16x128xbf16>
    %130 = vector.shape_cast %129 : vector<8x16x128xbf16> to vector<128x128xbf16>
    %c0_122 = arith.constant 0 : index
    %c1_123 = arith.constant 1 : index
    %c0_124 = arith.constant 0 : index
    %131 = vector.load %arg7[%c0_122, %c1_123, %c0_124] : memref<18x18x128xbf16, #tpu.memory_space<vmem>>, vector<8x16x128xbf16>
    %132 = vector.shape_cast %131 : vector<8x16x128xbf16> to vector<128x128xbf16>
    %c0_125 = arith.constant 0 : index
    %c2_126 = arith.constant 2 : index
    %c0_127 = arith.constant 0 : index
    %133 = vector.load %arg7[%c0_125, %c2_126, %c0_127] : memref<18x18x128xbf16, #tpu.memory_space<vmem>>, vector<8x16x128xbf16>
    %134 = vector.shape_cast %133 : vector<8x16x128xbf16> to vector<128x128xbf16>
    %135 = tpu.concatenate %130, %132, %134 in 1 : vector<128x128xbf16>, vector<128x128xbf16>, vector<128x128xbf16> -> vector<128x384xbf16>
    %c0_128 = arith.constant 0 : index
    %c0_129 = arith.constant 0 : index
    %c0_130 = arith.constant 0 : index
    %136 = vector.load %arg4[%c0_128, %c0_129, %c0_130] : memref<3x384x128xbf16, #tpu.memory_space<vmem>>, vector<1x384x128xbf16>
    %137 = vector.shape_cast %136 : vector<1x384x128xbf16> to vector<384x128xbf16>
    %cst_131 = arith.constant dense<0.000000e+00> : vector<128x128xf32>
    %138 = tpu.matmul %135, %137, %cst_131 {dimension_numbers = #tpu.dot_dimension_numbers<[1], [0], [0], [1], [0, 0, 1, 1], [], []>} : vector<128x384xbf16>, vector<384x128xbf16>, vector<128x128xf32> -> vector<128x128xf32>
    %139 = arith.addf %128, %138 : vector<128x128xf32>
    %c1_132 = arith.constant 1 : index
    %c0_133 = arith.constant 0 : index
    %c0_134 = arith.constant 0 : index
    %140 = vector.load %arg7[%c1_132, %c0_133, %c0_134] : memref<18x18x128xbf16, #tpu.memory_space<vmem>>, vector<8x16x128xbf16>
    %141 = vector.shape_cast %140 : vector<8x16x128xbf16> to vector<128x128xbf16>
    %c1_135 = arith.constant 1 : index
    %c1_136 = arith.constant 1 : index
    %c0_137 = arith.constant 0 : index
    %142 = vector.load %arg7[%c1_135, %c1_136, %c0_137] : memref<18x18x128xbf16, #tpu.memory_space<vmem>>, vector<8x16x128xbf16>
    %143 = vector.shape_cast %142 : vector<8x16x128xbf16> to vector<128x128xbf16>
    %c1_138 = arith.constant 1 : index
    %c2_139 = arith.constant 2 : index
    %c0_140 = arith.constant 0 : index
    %144 = vector.load %arg7[%c1_138, %c2_139, %c0_140] : memref<18x18x128xbf16, #tpu.memory_space<vmem>>, vector<8x16x128xbf16>
    %145 = vector.shape_cast %144 : vector<8x16x128xbf16> to vector<128x128xbf16>
    %146 = tpu.concatenate %141, %143, %145 in 1 : vector<128x128xbf16>, vector<128x128xbf16>, vector<128x128xbf16> -> vector<128x384xbf16>
    %c1_141 = arith.constant 1 : index
    %c0_142 = arith.constant 0 : index
    %c0_143 = arith.constant 0 : index
    %147 = vector.load %arg4[%c1_141, %c0_142, %c0_143] : memref<3x384x128xbf16, #tpu.memory_space<vmem>>, vector<1x384x128xbf16>
    %148 = vector.shape_cast %147 : vector<1x384x128xbf16> to vector<384x128xbf16>
    %cst_144 = arith.constant dense<0.000000e+00> : vector<128x128xf32>
    %149 = tpu.matmul %146, %148, %cst_144 {dimension_numbers = #tpu.dot_dimension_numbers<[1], [0], [0], [1], [0, 0, 1, 1], [], []>} : vector<128x384xbf16>, vector<384x128xbf16>, vector<128x128xf32> -> vector<128x128xf32>
    %150 = arith.addf %139, %149 : vector<128x128xf32>
    %c2_145 = arith.constant 2 : index
    %c0_146 = arith.constant 0 : index
    %c0_147 = arith.constant 0 : index
    %151 = vector.load %arg7[%c2_145, %c0_146, %c0_147] : memref<18x18x128xbf16, #tpu.memory_space<vmem>>, vector<8x16x128xbf16>
    %152 = vector.shape_cast %151 : vector<8x16x128xbf16> to vector<128x128xbf16>
    %c2_148 = arith.constant 2 : index
    %c1_149 = arith.constant 1 : index
    %c0_150 = arith.constant 0 : index
    %153 = vector.load %arg7[%c2_148, %c1_149, %c0_150] : memref<18x18x128xbf16, #tpu.memory_space<vmem>>, vector<8x16x128xbf16>
    %154 = vector.shape_cast %153 : vector<8x16x128xbf16> to vector<128x128xbf16>
    %c2_151 = arith.constant 2 : index
    %c2_152 = arith.constant 2 : index
    %c0_153 = arith.constant 0 : index
    %155 = vector.load %arg7[%c2_151, %c2_152, %c0_153] : memref<18x18x128xbf16, #tpu.memory_space<vmem>>, vector<8x16x128xbf16>
    %156 = vector.shape_cast %155 : vector<8x16x128xbf16> to vector<128x128xbf16>
    %157 = tpu.concatenate %152, %154, %156 in 1 : vector<128x128xbf16>, vector<128x128xbf16>, vector<128x128xbf16> -> vector<128x384xbf16>
    %c2_154 = arith.constant 2 : index
    %c0_155 = arith.constant 0 : index
    %c0_156 = arith.constant 0 : index
    %158 = vector.load %arg4[%c2_154, %c0_155, %c0_156] : memref<3x384x128xbf16, #tpu.memory_space<vmem>>, vector<1x384x128xbf16>
    %159 = vector.shape_cast %158 : vector<1x384x128xbf16> to vector<384x128xbf16>
    %cst_157 = arith.constant dense<0.000000e+00> : vector<128x128xf32>
    %160 = tpu.matmul %157, %159, %cst_157 {dimension_numbers = #tpu.dot_dimension_numbers<[1], [0], [0], [1], [0, 0, 1, 1], [], []>} : vector<128x384xbf16>, vector<384x128xbf16>, vector<128x128xf32> -> vector<128x128xf32>
    %161 = arith.addf %150, %160 : vector<128x128xf32>
    %c0_158 = arith.constant 0 : index
    %c1_159 = arith.constant 1 : index
    %c1_160 = arith.constant 1 : index
    %c0_161 = arith.constant 0 : index
    %162 = vector.load %arg1[%c0_158, %c1_159, %c1_160, %c0_161] : memref<1x18x18x128xf32, #tpu.memory_space<vmem>>, vector<1x8x16x128xf32>
    %163 = vector.shape_cast %162 : vector<1x8x16x128xf32> to vector<8x16x128xf32>
    %164 = vector.shape_cast %163 : vector<8x16x128xf32> to vector<128x128xf32>
    %165 = vector.broadcast %1 : vector<1x128xf32> to vector<128x128xf32>
    %166 = arith.addf %161, %165 : vector<128x128xf32>
    %167 = arith.addf %166, %164 : vector<128x128xf32>
    %cst_162 = arith.constant 0.000000e+00 : f32
    %168 = vector.broadcast %cst_162 : f32 to vector<128x128xf32>
    %169 = arith.maximumf %167, %168 : vector<128x128xf32>
    %170 = vector.shape_cast %169 : vector<128x128xf32> to vector<8x16x128xf32>
    %c0_163 = arith.constant 0 : index
    %c0_164 = arith.constant 0 : index
    %c0_165 = arith.constant 0 : index
    %c0_166 = arith.constant 0 : index
    %171 = vector.load %arg6[%c0_163, %c0_164, %c0_165, %c0_166] : memref<1x16x16x128xf32, #tpu.memory_space<vmem>>, vector<1x8x16x128xf32>
    %172 = vector.shape_cast %171 : vector<1x8x16x128xf32> to vector<8x16x128xf32>
    %173 = vector.shape_cast %170 : vector<8x16x128xf32> to vector<1x8x16x128xf32>
    tpu.vector_store %arg6[%c0_163, %c0_164, %c0_165, %c0_166], %173 {strides = array<i32>} : memref<1x16x16x128xf32, #tpu.memory_space<vmem>>, vector<1x8x16x128xf32>,
    %cst_167 = arith.constant 0.000000e+00 : f32
    %174 = vector.broadcast %cst_167 : f32 to vector<128x128xf32>
    %c8_168 = arith.constant 8 : index
    %c0_169 = arith.constant 0 : index
    %c0_170 = arith.constant 0 : index
    %175 = vector.load %arg7[%c8_168, %c0_169, %c0_170] : memref<18x18x128xbf16, #tpu.memory_space<vmem>>, vector<8x16x128xbf16>
    %176 = vector.shape_cast %175 : vector<8x16x128xbf16> to vector<128x128xbf16>
    %c8_171 = arith.constant 8 : index
    %c1_172 = arith.constant 1 : index
    %c0_173 = arith.constant 0 : index
    %177 = vector.load %arg7[%c8_171, %c1_172, %c0_173] : memref<18x18x128xbf16, #tpu.memory_space<vmem>>, vector<8x16x128xbf16>
    %178 = vector.shape_cast %177 : vector<8x16x128xbf16> to vector<128x128xbf16>
    %c8_174 = arith.constant 8 : index
    %c2_175 = arith.constant 2 : index
    %c0_176 = arith.constant 0 : index
    %179 = vector.load %arg7[%c8_174, %c2_175, %c0_176] : memref<18x18x128xbf16, #tpu.memory_space<vmem>>, vector<8x16x128xbf16>
    %180 = vector.shape_cast %179 : vector<8x16x128xbf16> to vector<128x128xbf16>
    %181 = tpu.concatenate %176, %178, %180 in 1 : vector<128x128xbf16>, vector<128x128xbf16>, vector<128x128xbf16> -> vector<128x384xbf16>
    %c0_177 = arith.constant 0 : index
    %c0_178 = arith.constant 0 : index
    %c0_179 = arith.constant 0 : index
    %182 = vector.load %arg4[%c0_177, %c0_178, %c0_179] : memref<3x384x128xbf16, #tpu.memory_space<vmem>>, vector<1x384x128xbf16>
    %183 = vector.shape_cast %182 : vector<1x384x128xbf16> to vector<384x128xbf16>
    %cst_180 = arith.constant dense<0.000000e+00> : vector<128x128xf32>
    %184 = tpu.matmul %181, %183, %cst_180 {dimension_numbers = #tpu.dot_dimension_numbers<[1], [0], [0], [1], [0, 0, 1, 1], [], []>} : vector<128x384xbf16>, vector<384x128xbf16>, vector<128x128xf32> -> vector<128x128xf32>
    %185 = arith.addf %174, %184 : vector<128x128xf32>
    %c9_181 = arith.constant 9 : index
    %c0_182 = arith.constant 0 : index
    %c0_183 = arith.constant 0 : index
    %186 = vector.load %arg7[%c9_181, %c0_182, %c0_183] : memref<18x18x128xbf16, #tpu.memory_space<vmem>>, vector<8x16x128xbf16>
    %187 = vector.shape_cast %186 : vector<8x16x128xbf16> to vector<128x128xbf16>
    %c9_184 = arith.constant 9 : index
    %c1_185 = arith.constant 1 : index
    %c0_186 = arith.constant 0 : index
    %188 = vector.load %arg7[%c9_184, %c1_185, %c0_186] : memref<18x18x128xbf16, #tpu.memory_space<vmem>>, vector<8x16x128xbf16>
    %189 = vector.shape_cast %188 : vector<8x16x128xbf16> to vector<128x128xbf16>
    %c9_187 = arith.constant 9 : index
    %c2_188 = arith.constant 2 : index
    %c0_189 = arith.constant 0 : index
    %190 = vector.load %arg7[%c9_187, %c2_188, %c0_189] : memref<18x18x128xbf16, #tpu.memory_space<vmem>>, vector<8x16x128xbf16>
    %191 = vector.shape_cast %190 : vector<8x16x128xbf16> to vector<128x128xbf16>
    %192 = tpu.concatenate %187, %189, %191 in 1 : vector<128x128xbf16>, vector<128x128xbf16>, vector<128x128xbf16> -> vector<128x384xbf16>
    %c1_190 = arith.constant 1 : index
    %c0_191 = arith.constant 0 : index
    %c0_192 = arith.constant 0 : index
    %193 = vector.load %arg4[%c1_190, %c0_191, %c0_192] : memref<3x384x128xbf16, #tpu.memory_space<vmem>>, vector<1x384x128xbf16>
    %194 = vector.shape_cast %193 : vector<1x384x128xbf16> to vector<384x128xbf16>
    %cst_193 = arith.constant dense<0.000000e+00> : vector<128x128xf32>
    %195 = tpu.matmul %192, %194, %cst_193 {dimension_numbers = #tpu.dot_dimension_numbers<[1], [0], [0], [1], [0, 0, 1, 1], [], []>} : vector<128x384xbf16>, vector<384x128xbf16>, vector<128x128xf32> -> vector<128x128xf32>
    %196 = arith.addf %185, %195 : vector<128x128xf32>
    %c10_194 = arith.constant 10 : index
    %c0_195 = arith.constant 0 : index
    %c0_196 = arith.constant 0 : index
    %197 = vector.load %arg7[%c10_194, %c0_195, %c0_196] : memref<18x18x128xbf16, #tpu.memory_space<vmem>>, vector<8x16x128xbf16>
    %198 = vector.shape_cast %197 : vector<8x16x128xbf16> to vector<128x128xbf16>
    %c10_197 = arith.constant 10 : index
    %c1_198 = arith.constant 1 : index
    %c0_199 = arith.constant 0 : index
    %199 = vector.load %arg7[%c10_197, %c1_198, %c0_199] : memref<18x18x128xbf16, #tpu.memory_space<vmem>>, vector<8x16x128xbf16>
    %200 = vector.shape_cast %199 : vector<8x16x128xbf16> to vector<128x128xbf16>
    %c10_200 = arith.constant 10 : index
    %c2_201 = arith.constant 2 : index
    %c0_202 = arith.constant 0 : index
    %201 = vector.load %arg7[%c10_200, %c2_201, %c0_202] : memref<18x18x128xbf16, #tpu.memory_space<vmem>>, vector<8x16x128xbf16>
    %202 = vector.shape_cast %201 : vector<8x16x128xbf16> to vector<128x128xbf16>
    %203 = tpu.concatenate %198, %200, %202 in 1 : vector<128x128xbf16>, vector<128x128xbf16>, vector<128x128xbf16> -> vector<128x384xbf16>
    %c2_203 = arith.constant 2 : index
    %c0_204 = arith.constant 0 : index
    %c0_205 = arith.constant 0 : index
    %204 = vector.load %arg4[%c2_203, %c0_204, %c0_205] : memref<3x384x128xbf16, #tpu.memory_space<vmem>>, vector<1x384x128xbf16>
    %205 = vector.shape_cast %204 : vector<1x384x128xbf16> to vector<384x128xbf16>
    %cst_206 = arith.constant dense<0.000000e+00> : vector<128x128xf32>
    %206 = tpu.matmul %203, %205, %cst_206 {dimension_numbers = #tpu.dot_dimension_numbers<[1], [0], [0], [1], [0, 0, 1, 1], [], []>} : vector<128x384xbf16>, vector<384x128xbf16>, vector<128x128xf32> -> vector<128x128xf32>
    %207 = arith.addf %196, %206 : vector<128x128xf32>
    %c0_207 = arith.constant 0 : index
    %c9_208 = arith.constant 9 : index
    %c1_209 = arith.constant 1 : index
    %c0_210 = arith.constant 0 : index
    %208 = vector.load %arg1[%c0_207, %c9_208, %c1_209, %c0_210] : memref<1x18x18x128xf32, #tpu.memory_space<vmem>>, vector<1x8x16x128xf32>
    %209 = vector.shape_cast %208 : vector<1x8x16x128xf32> to vector<8x16x128xf32>
    %210 = vector.shape_cast %209 : vector<8x16x128xf32> to vector<128x128xf32>
    %211 = vector.broadcast %1 : vector<1x128xf32> to vector<128x128xf32>
    %212 = arith.addf %207, %211 : vector<128x128xf32>
    %213 = arith.addf %212, %210 : vector<128x128xf32>
    %cst_211 = arith.constant 0.000000e+00 : f32
    %214 = vector.broadcast %cst_211 : f32 to vector<128x128xf32>
    %215 = arith.maximumf %213, %214 : vector<128x128xf32>
    %216 = vector.shape_cast %215 : vector<128x128xf32> to vector<8x16x128xf32>
    %c0_212 = arith.constant 0 : index
    %c8_213 = arith.constant 8 : index
    %c0_214 = arith.constant 0 : index
    %c0_215 = arith.constant 0 : index
    %217 = vector.load %arg6[%c0_212, %c8_213, %c0_214, %c0_215] : memref<1x16x16x128xf32, #tpu.memory_space<vmem>>, vector<1x8x16x128xf32>
    %218 = vector.shape_cast %217 : vector<1x8x16x128xf32> to vector<8x16x128xf32>
    %219 = vector.shape_cast %216 : vector<8x16x128xf32> to vector<1x8x16x128xf32>
    tpu.vector_store %arg6[%c0_212, %c8_213, %c0_214, %c0_215], %219 {strides = array<i32>} : memref<1x16x16x128xf32, #tpu.memory_space<vmem>>, vector<1x8x16x128xf32>,
    return
  }
  func.func @transform_0(%arg0: i32) -> (i32, i32, i32, i32) {
    %c0_i32 = arith.constant 0 : i32
    %c0_i32_0 = arith.constant 0 : i32
    %c0_i32_1 = arith.constant 0 : i32
    %c0_i32_2 = arith.constant 0 : i32
    return %arg0, %c0_i32, %c0_i32_0, %c0_i32_1 : i32, i32, i32, i32
  }
  func.func @transform_1(%arg0: i32) -> (i32, i32, i32) {
    %c0_i32 = arith.constant 0 : i32
    %c0_i32_0 = arith.constant 0 : i32
    %c0_i32_1 = arith.constant 0 : i32
    %c0_i32_2 = arith.constant 0 : i32
    return %c0_i32, %c0_i32_0, %c0_i32_1 : i32, i32, i32
  }
  func.func @transform_2(%arg0: i32) -> (i32, i32) {
    %c0_i32 = arith.constant 0 : i32
    %c0_i32_0 = arith.constant 0 : i32
    %c0_i32_1 = arith.constant 0 : i32
    return %c0_i32, %c0_i32_0 : i32, i32
  }
  func.func @transform_3(%arg0: i32) -> (i32, i32, i32) {
    %c0_i32 = arith.constant 0 : i32
    %c0_i32_0 = arith.constant 0 : i32
    %c0_i32_1 = arith.constant 0 : i32
    %c0_i32_2 = arith.constant 0 : i32
    return %c0_i32, %c0_i32_0, %c0_i32_1 : i32, i32, i32
  }
  func.func @transform_4(%arg0: i32) -> (i32, i32) {
    %c0_i32 = arith.constant 0 : i32
    %c0_i32_0 = arith.constant 0 : i32
    %c0_i32_1 = arith.constant 0 : i32
    return %c0_i32, %c0_i32_0 : i32, i32
  }
  func.func @transform_5(%arg0: i32) -> (i32, i32, i32, i32) {
    %c0_i32 = arith.constant 0 : i32
    %c0_i32_0 = arith.constant 0 : i32
    %c0_i32_1 = arith.constant 0 : i32
    %c0_i32_2 = arith.constant 0 : i32
    return %arg0, %c0_i32, %c0_i32_0, %c0_i32_1 : i32, i32, i32, i32
  }
}

</mosaic_0001>

<llo_original>
// kernel: basic_block_pallas.1
$region0: #{basic_block_pallas.1}
  #allocation0 [shape = 'u32[]', space=smem, size = 0x4, offset = 0x4, fixed_abs, tag = 'smem constant byte address 0x4 - core index']
  #allocation1 [shape = 'u32[144,128]{1,0:T(1,128)}', space=vmem, size = 0x12000, scoped, tag = 'internal scratch']
  #allocation2 [shape = 'bf16[18,18,128]{2,1,0:T(8,128)(2,1)}', space=vmem, size = 0x1b000, scoped, tag = 'scratch operand']
  %s0 = inlined_call_operand.vmem [shape: f32[2,18,18,128], index: 0, kind: input, shape index: {}]
  %s1 = inlined_call_operand.vmem [shape: bf16[3,384,128], index: 1, kind: input, shape index: {}]
  %s2 = inlined_call_operand.vmem [shape: f32[1,128], index: 2, kind: input, shape index: {}]
  %s3 = inlined_call_operand.vmem [shape: bf16[3,384,128], index: 3, kind: input, shape index: {}]
  %s4 = inlined_call_operand.vmem [shape: f32[1,128], index: 4, kind: input, shape index: {}]
  %s5 = inlined_call_operand.vmem [shape: f32[2,16,16,128], index: 5, kind: output, shape index: {}]
  %s6 = sld [smem:[#allocation0]]
  $region53: #{basic_block_pallas.1} parent=0
    _
  %s8 = ssub.s32 1, %s6
  %s9 = scalar_select 0, %s8, %s6
  loop: start=0, step=1, limit=4
  $region2: #{basic_block_pallas.1} parent=0 // loop_pre_header
    _
  $region3: #{basic_block_pallas.1} parent=0 // loop_header
    %s11 = sphi 0, %s15
    %p12 = scmp.ge.s32.totalorder %s11, 4
    %s21 = sphi 0, %s23
    %s24 = sphi 0, %s21
    %s25 = sphi 0, %s24
    %s41 = sphi 0, %s25
    %s45 = sphi 0, %s45
    %s47 = sphi 0, %s45
    %s48 = sphi 0, %s47
    %s62 = sphi 0, %s48
    %s66 = sphi 0, %s66
    %s68 = sphi 0, %s66
    %s69 = sphi 0, %s68
    %s83 = sphi 0, %s69
    %s87 = sphi 0, %s87
    %s89 = sphi 0, %s87
    %s90 = sphi 0, %s89
    %s104 = sphi 0, %s90
    %s108 = sphi 0, %s108
    %s110 = sphi 0, %s108
    %s111 = sphi 0, %s110
    %s125 = sphi 0, %s111
    %s131 = sphi 0, %s133
    %s134 = sphi 0, %s131
    %s135 = sphi 0, %s134
    %s151 = sphi 0, %s135
  $region4: #{basic_block_pallas.1} parent=0 // loop_header_branch
    %14 = sbr.rel (%p12) target = $region8
  $region5: #{basic_block_pallas.1} parent=0 // loop_body
    %s16 = ssub.s32 %s11, 1
    %s17 = ssub.s32 %s11, 2
    %s18 = sadd.s32 %s11, 1
    %s19 = ssub.s32 %s11, %s18
    %p20 = scmp.eq.s32.totalorder %s19, 0
    %s22 = sadd.s32 %s21, 1
    %s23 = scalar_select %p20, %s21, %s22
    %p26 = pneg %p20
    %p27 = scmp.eq.s32.totalorder %s11, 1
    %p28 = por %p26, %p27
    %p29 = scmp.ne.s32.totalorder %s21, %s24
    %p30 = scmp.eq.s32.totalorder %s11, 0
    %p31 = por %p29, %p30
    %p32 = scmp.ne.s32.totalorder %s21, %s24
    %p33 = scmp.eq.s32.totalorder %s16, 1
    %p34 = por %p32, %p33
    %p35 = scmp.ne.s32.totalorder %s24, %s25
    %p36 = scmp.eq.s32.totalorder %s16, 0
    %p37 = por %p35, %p36
    %p38 = scmp.ne.s32.totalorder %s24, %s25
    %p39 = scmp.eq.s32.totalorder %s17, 1
    %p40 = por %p38, %p39
    %p42 = scmp.ne.s32.totalorder %s25, %s41
    %p43 = scmp.eq.s32.totalorder %s17, 0
    %p44 = por %p42, %p43
    %s46 = sadd.s32 %s45, 1
    %p49 = scmp.eq.s32.totalorder %s11, 1
    %p50 = scmp.ne.s32.totalorder %s45, %s47
    %p51 = scmp.eq.s32.totalorder %s11, 0
    %p52 = por %p50, %p51
    %p53 = scmp.ne.s32.totalorder %s45, %s47
    %p54 = scmp.eq.s32.totalorder %s16, 1
    %p55 = por %p53, %p54
    %p56 = scmp.ne.s32.totalorder %s47, %s48
    %p57 = scmp.eq.s32.totalorder %s16, 0
    %p58 = por %p56, %p57
    %p59 = scmp.ne.s32.totalorder %s47, %s48
    %p60 = scmp.eq.s32.totalorder %s17, 1
    %p61 = por %p59, %p60
    %p63 = scmp.ne.s32.totalorder %s48, %s62
    %p64 = scmp.eq.s32.totalorder %s17, 0
    %p65 = por %p63, %p64
    %s67 = sadd.s32 %s66, 1
    %p70 = scmp.eq.s32.totalorder %s11, 1
    %p71 = scmp.ne.s32.totalorder %s66, %s68
    %p72 = scmp.eq.s32.totalorder %s11, 0
    %p73 = por %p71, %p72
    %p74 = scmp.ne.s32.totalorder %s66, %s68
    %p75 = scmp.eq.s32.totalorder %s16, 1
    %p76 = por %p74, %p75
    %p77 = scmp.ne.s32.totalorder %s68, %s69
    %p78 = scmp.eq.s32.totalorder %s16, 0
    %p79 = por %p77, %p78
    %p80 = scmp.ne.s32.totalorder %s68, %s69
    %p81 = scmp.eq.s32.totalorder %s17, 1
    %p82 = por %p80, %p81
    %p84 = scmp.ne.s32.totalorder %s69, %s83
    %p85 = scmp.eq.s32.totalorder %s17, 0
    %p86 = por %p84, %p85
    %s88 = sadd.s32 %s87, 1
    %p91 = scmp.eq.s32.totalorder %s11, 1
    %p92 = scmp.ne.s32.totalorder %s87, %s89
    %p93 = scmp.eq.s32.totalorder %s11, 0
    %p94 = por %p92, %p93
    %p95 = scmp.ne.s32.totalorder %s87, %s89
    %p96 = scmp.eq.s32.totalorder %s16, 1
    %p97 = por %p95, %p96
    %p98 = scmp.ne.s32.totalorder %s89, %s90
    %p99 = scmp.eq.s32.totalorder %s16, 0
    %p100 = por %p98, %p99
    %p101 = scmp.ne.s32.totalorder %s89, %s90
    %p102 = scmp.eq.s32.totalorder %s17, 1
    %p103 = por %p101, %p102
    %p105 = scmp.ne.s32.totalorder %s90, %s104
    %p106 = scmp.eq.s32.totalorder %s17, 0
    %p107 = por %p105, %p106
    %s109 = sadd.s32 %s108, 1
    %p112 = scmp.eq.s32.totalorder %s11, 1
    %p113 = scmp.ne.s32.totalorder %s108, %s110
    %p114 = scmp.eq.s32.totalorder %s11, 0
    %p115 = por %p113, %p114
    %p116 = scmp.ne.s32.totalorder %s108, %s110
    %p117 = scmp.eq.s32.totalorder %s16, 1
    %p118 = por %p116, %p117
    %p119 = scmp.ne.s32.totalorder %s110, %s111
    %p120 = scmp.eq.s32.totalorder %s16, 0
    %p121 = por %p119, %p120
    %p122 = scmp.ne.s32.totalorder %s110, %s111
    %p123 = scmp.eq.s32.totalorder %s17, 1
    %p124 = por %p122, %p123
    %p126 = scmp.ne.s32.totalorder %s111, %s125
    %p127 = scmp.eq.s32.totalorder %s17, 0
    %p128 = por %p126, %p127
    %s129 = ssub.s32 %s11, %s18
    %p130 = scmp.eq.s32.totalorder %s129, 0
    %s132 = sadd.s32 %s131, 1
    %s133 = scalar_select %p130, %s131, %s132
    %p136 = pneg %p130
    %p137 = scmp.eq.s32.totalorder %s11, 1
    %p138 = por %p136, %p137
    %p139 = scmp.ne.s32.totalorder %s131, %s134
    %p140 = scmp.eq.s32.totalorder %s11, 0
    %p141 = por %p139, %p140
    %p142 = scmp.ne.s32.totalorder %s131, %s134
    %p143 = scmp.eq.s32.totalorder %s16, 1
    %p144 = por %p142, %p143
    %p145 = scmp.ne.s32.totalorder %s134, %s135
    %p146 = scmp.eq.s32.totalorder %s16, 0
    %p147 = por %p145, %p146
    %p148 = scmp.ne.s32.totalorder %s134, %s135
    %p149 = scmp.eq.s32.totalorder %s17, 1
    %p150 = por %p148, %p149
    %p152 = scmp.ne.s32.totalorder %s135, %s151
    %p153 = scmp.eq.s32.totalorder %s17, 0
    %p154 = por %p152, %p153
    %p155 = scmp.le.s32.totalorder 1, %s11
    %p156 = scmp.lt.s32.totalorder %s11, 3
    %p157 = pnand %p155, %p156
    %p158 = pneg %p157
    // Predicated region
    $region9: #{basic_block_pallas.1} parent=5 // pred_check
      _
    $region10: #{basic_block_pallas.1} parent=5 // pred_check_branch
      %160 = sbr.rel (%p157) target = $region12
    $region11: #{basic_block_pallas.1} parent=5 // pred_region
      %s161 = ssub.s32 %s11, 1
      // Predicated region
      $region13: #{basic_block_pallas.1} parent=11 // pred_check
        %p162 = pneg %p58
      $region14: #{basic_block_pallas.1} parent=11 // pred_check_branch
        %164 = sbr.rel (%p162) target = $region16
      $region15: #{basic_block_pallas.1} parent=11 // pred_region
        _
      $region16: #{basic_block_pallas.1} parent=11 // pred_fallthru
        _
      // Predicated region
      $region17: #{basic_block_pallas.1} parent=11 // pred_check
        %p165 = pneg %p79
      $region18: #{basic_block_pallas.1} parent=11 // pred_check_branch
        %167 = sbr.rel (%p165) target = $region20
      $region19: #{basic_block_pallas.1} parent=11 // pred_region
        _
      $region20: #{basic_block_pallas.1} parent=11 // pred_fallthru
        _
      // Predicated region
      $region21: #{basic_block_pallas.1} parent=11 // pred_check
        %p168 = pneg %p100
      $region22: #{basic_block_pallas.1} parent=11 // pred_check_branch
        %170 = sbr.rel (%p168) target = $region24
      $region23: #{basic_block_pallas.1} parent=11 // pred_region
        _
      $region24: #{basic_block_pallas.1} parent=11 // pred_fallthru
        _
      // Predicated region
      $region25: #{basic_block_pallas.1} parent=11 // pred_check
        %p171 = pneg %p121
      $region26: #{basic_block_pallas.1} parent=11 // pred_check_branch
        %173 = sbr.rel (%p171) target = $region28
      $region27: #{basic_block_pallas.1} parent=11 // pred_region
        _
      $region28: #{basic_block_pallas.1} parent=11 // pred_fallthru
        _
    $region12: #{basic_block_pallas.1} parent=5 // pred_fallthru
      _
    %p174 = scmp.lt.s32.totalorder %s11, 2
    // Predicated region
    $region29: #{basic_block_pallas.1} parent=5 // pred_check
      %p175 = pneg %p174
    $region30: #{basic_block_pallas.1} parent=5 // pred_check_branch
      %177 = sbr.rel (%p175) target = $region32
    $region31: #{basic_block_pallas.1} parent=5 // pred_region
      // Predicated region
      $region33: #{basic_block_pallas.1} parent=31 // pred_check
        %p178 = pneg %p31
      $region34: #{basic_block_pallas.1} parent=31 // pred_check_branch
        %180 = sbr.rel (%p178) target = $region36
      $region35: #{basic_block_pallas.1} parent=31 // pred_region
        %p181 = scmp.lt.s32.totalorder %s11, 1
        %s182 = scalar_select %p181, %s11, 1
        %s183 = smul.addr %s182, 54
        %s184 = smul.addr %s183, 8
        %s185 = scalar_lea.vmem %s0, %s184
      $region36: #{basic_block_pallas.1} parent=31 // pred_fallthru
        _
    $region32: #{basic_block_pallas.1} parent=5 // pred_fallthru
      _
    %p186 = scmp.le.s32.totalorder 1, %s11
    %p187 = scmp.lt.s32.totalorder %s11, 3
    %p188 = pnand %p186, %p187
    %p189 = pneg %p188
    // Predicated region
    $region37: #{basic_block_pallas.1} parent=5 // pred_check
      _
    $region38: #{basic_block_pallas.1} parent=5 // pred_check_branch
      %191 = sbr.rel (%p188) target = $region40
    $region39: #{basic_block_pallas.1} parent=5 // pred_region
      %s192 = ssub.s32 %s11, 1
      %p193 = scmp.lt.s32.totalorder %s16, 1
      %s194 = scalar_select %p193, %s16, 1
      %s195 = smul.addr %s194, 54
      %s196 = smul.addr %s195, 8
      %s197 = scalar_lea.vmem %s0, %s196
      %p198 = pneg %p37
      %p199 = pneg %p34
      %p200 = pneg %p58
      %p201 = pneg %p55
      %p202 = pneg %p79
      %p203 = pneg %p76
      %p204 = pneg %p100
      %p205 = pneg %p97
      %p206 = pneg %p121
      %p207 = pneg %p118
      %p208 = pneg %p147
      %p209 = pneg %p144
      %p210 = scmp.lt.s32.totalorder %s16, 1
      %s211 = scalar_select %p210, %s16, 1
      %s212 = smul.addr %s211, 32
      %s213 = smul.addr %s212, 8
      %s214 = scalar_lea.vmem %s5, %s213
      %p215 = scmp.lt.s32.totalorder %s16, 1
      %s216 = scalar_select %p215, %s16, 1
      %s217 = smul.addr %s216, 54
      %s218 = smul.addr %s217, 8
      %s219 = scalar_lea.vmem %s0, %s218
      %p220 = scmp.lt.s32.totalorder %s16, 1
      %s221 = scalar_select %p220, %s16, 1
      %s222 = smul.addr %s221, 32
      %s223 = smul.addr %s222, 8
      %s224 = scalar_lea.vmem %s5, %s223
      %v226 = vld [vmem:[%s2] sm:$0x1]
      %v227 = vld [vmem:[%s4] sm:$0x1]
      %228 = vst [vmem:[#allocation2] sm:$0xf] 0
      %229 = vst [vmem:[#allocation2 + $0x4] sm:$0xf] 0
      %230 = vst [vmem:[#allocation2 + $0x8] sm:$0x1] 0
      %s231 = scalar_lea.vmem [#allocation2], 204
      %232 = vst [vmem:[%s231] sm:$0xf] 0
      %233 = vst [vmem:[%s231 + $0x4] sm:$0xf] 0
      %234 = vst [vmem:[%s231 + $0x8] sm:$0x1] 0
      %vm235 = vcmask 1040384
      %vm236 = vsmask.f32 256
      %vm237 = vmand %vm235, %vm236
      %v238 = vld [vmem:[#allocation2] sm:$0x1]
      %v239 = vsel %vm237, 0, %v238
      %240 = vst [vmem:[#allocation2] sm:$0x1] %v239
      %v241 = vld [vmem:[#allocation2 + $0xc] sm:$0x1]
      %v242 = vsel %vm237, 0, %v241
      %243 = vst [vmem:[#allocation2 + $0xc] sm:$0x1] %v242
      %v244 = vld [vmem:[#allocation2 + $0x18] sm:$0x1]
      %v245 = vsel %vm237, 0, %v244
      %246 = vst [vmem:[#allocation2 + $0x18] sm:$0x1] %v245
      %v247 = vld [vmem:[#allocation2 + $0x24] sm:$0x1]
      %v248 = vsel %vm237, 0, %v247
      %249 = vst [vmem:[#allocation2 + $0x24] sm:$0x1] %v248
      %v250 = vld [vmem:[#allocation2 + $0x30] sm:$0x1]
      %v251 = vsel %vm237, 0, %v250
      %252 = vst [vmem:[#allocation2 + $0x30] sm:$0x1] %v251
      %v253 = vld [vmem:[#allocation2 + $0x3c] sm:$0x1]
      %v254 = vsel %vm237, 0, %v253
      %255 = vst [vmem:[#allocation2 + $0x3c] sm:$0x1] %v254
      %v256 = vld [vmem:[#allocation2 + $0x48] sm:$0x1]
      %v257 = vsel %vm237, 0, %v256
      %258 = vst [vmem:[#allocation2 + $0x48] sm:$0x1] %v257
      %v259 = vld [vmem:[#allocation2 + $0x54] sm:$0x1]
      %v260 = vsel %vm237, 0, %v259
      %261 = vst [vmem:[#allocation2 + $0x54] sm:$0x1] %v260
      %v262 = vld [vmem:[#allocation2 + $0x60] sm:$0x1]
      %v263 = vsel %vm237, 0, %v262
      %264 = vst [vmem:[#allocation2 + $0x60] sm:$0x1] %v263
      %v265 = vld [vmem:[#allocation2 + $0x6c] sm:$0x1]
      %v266 = vsel %vm237, 0, %v265
      %267 = vst [vmem:[#allocation2 + $0x6c] sm:$0x1] %v266
      %v268 = vld [vmem:[#allocation2 + $0x78] sm:$0x1]
      %v269 = vsel %vm237, 0, %v268
      %270 = vst [vmem:[#allocation2 + $0x78] sm:$0x1] %v269
      %v271 = vld [vmem:[#allocation2 + $0x84] sm:$0x1]
      %v272 = vsel %vm237, 0, %v271
      %273 = vst [vmem:[#allocation2 + $0x84] sm:$0x1] %v272
      %v274 = vld [vmem:[#allocation2 + $0x90] sm:$0x1]
      %v275 = vsel %vm237, 0, %v274
      %276 = vst [vmem:[#allocation2 + $0x90] sm:$0x1] %v275
      %v277 = vld [vmem:[#allocation2 + $0x9c] sm:$0x1]
      %v278 = vsel %vm237, 0, %v277
      %279 = vst [vmem:[#allocation2 + $0x9c] sm:$0x1] %v278
      %v280 = vld [vmem:[#allocation2 + $0xa8] sm:$0x1]
      %v281 = vsel %vm237, 0, %v280
      %282 = vst [vmem:[#allocation2 + $0xa8] sm:$0x1] %v281
      %v283 = vld [vmem:[#allocation2 + $0xb4] sm:$0x1]
      %v284 = vsel %vm237, 0, %v283
      %285 = vst [vmem:[#allocation2 + $0xb4] sm:$0x1] %v284
      %v286 = vld [vmem:[#allocation2 + $0xc0] sm:$0x1]
      %v287 = vsel %vm237, 0, %v286
      %288 = vst [vmem:[#allocation2 + $0xc0] sm:$0x1] %v287
      %v289 = vld [vmem:[#allocation2 + $0xcc] sm:$0x1]
      %v290 = vsel %vm237, 0, %v289
      %291 = vst [vmem:[#allocation2 + $0xcc] sm:$0x1] %v290
      %vm292 = vsmask.f32 7938
      %vm293 = vmand %vm235, %vm292
      %v294 = vld [vmem:[#allocation2 + $0x8] sm:$0x1]
      %v295 = vsel %vm293, 0, %v294
      %296 = vst [vmem:[#allocation2 + $0x8] sm:$0x1] %v295
      %v297 = vld [vmem:[#allocation2 + $0x14] sm:$0x1]
      %v298 = vsel %vm293, 0, %v297
      %299 = vst [vmem:[#allocation2 + $0x14] sm:$0x1] %v298
      %v300 = vld [vmem:[#allocation2 + $0x20] sm:$0x1]
      %v301 = vsel %vm293, 0, %v300
      %302 = vst [vmem:[#allocation2 + $0x20] sm:$0x1] %v301
      %v303 = vld [vmem:[#allocation2 + $0x2c] sm:$0x1]
      %v304 = vsel %vm293, 0, %v303
      %305 = vst [vmem:[#allocation2 + $0x2c] sm:$0x1] %v304
      %v306 = vld [vmem:[#allocation2 + $0x38] sm:$0x1]
      %v307 = vsel %vm293, 0, %v306
      %308 = vst [vmem:[#allocation2 + $0x38] sm:$0x1] %v307
      %v309 = vld [vmem:[#allocation2 + $0x44] sm:$0x1]
      %v310 = vsel %vm293, 0, %v309
      %311 = vst [vmem:[#allocation2 + $0x44] sm:$0x1] %v310
      %v312 = vld [vmem:[#allocation2 + $0x50] sm:$0x1]
      %v313 = vsel %vm293, 0, %v312
      %314 = vst [vmem:[#allocation2 + $0x50] sm:$0x1] %v313
      %v315 = vld [vmem:[#allocation2 + $0x5c] sm:$0x1]
      %v316 = vsel %vm293, 0, %v315
      %317 = vst [vmem:[#allocation2 + $0x5c] sm:$0x1] %v316
      %v318 = vld [vmem:[#allocation2 + $0x68] sm:$0x1]
      %v319 = vsel %vm293, 0, %v318
      %320 = vst [vmem:[#allocation2 + $0x68] sm:$0x1] %v319
      %v321 = vld [vmem:[#allocation2 + $0x74] sm:$0x1]
      %v322 = vsel %vm293, 0, %v321
      %323 = vst [vmem:[#allocation2 + $0x74] sm:$0x1] %v322
      %v324 = vld [vmem:[#allocation2 + $0x80] sm:$0x1]
      %v325 = vsel %vm293, 0, %v324
      %326 = vst [vmem:[#allocation2 + $0x80] sm:$0x1] %v325
      %v327 = vld [vmem:[#allocation2 + $0x8c] sm:$0x1]
      %v328 = vsel %vm293, 0, %v327
      %329 = vst [vmem:[#allocation2 + $0x8c] sm:$0x1] %v328
      %v330 = vld [vmem:[#allocation2 + $0x98] sm:$0x1]
      %v331 = vsel %vm293, 0, %v330
      %332 = vst [vmem:[#allocation2 + $0x98] sm:$0x1] %v331
      %v333 = vld [vmem:[#allocation2 + $0xa4] sm:$0x1]
      %v334 = vsel %vm293, 0, %v333
      %335 = vst [vmem:[#allocation2 + $0xa4] sm:$0x1] %v334
      %v336 = vld [vmem:[#allocation2 + $0xb0] sm:$0x1]
      %v337 = vsel %vm293, 0, %v336
      %338 = vst [vmem:[#allocation2 + $0xb0] sm:$0x1] %v337
      %v339 = vld [vmem:[#allocation2 + $0xbc] sm:$0x1]
      %v340 = vsel %vm293, 0, %v339
      %341 = vst [vmem:[#allocation2 + $0xbc] sm:$0x1] %v340
      %v342 = vld [vmem:[#allocation2 + $0xc8] sm:$0x1]
      %v343 = vsel %vm293, 0, %v342
      %344 = vst [vmem:[#allocation2 + $0xc8] sm:$0x1] %v343
      %v345 = vld [vmem:[#allocation2 + $0xd4] sm:$0x1]
      %v346 = vsel %vm293, 0, %v345
      %347 = vst [vmem:[#allocation2 + $0xd4] sm:$0x1] %v346
      %v348 = vld [vmem:[%s219] sm:$0xff]
      %v349 = vld [vmem:[%s219 + $0x8] sm:$0xff]
      %v350 = vld [vmem:[%s219 + $0x18] sm:$0xff]
      %v351 = vld [vmem:[%s219 + $0x20] sm:$0xff]
      %v352 = vld [vmem:[%s219 + $0x30] sm:$0xff]
      %v353 = vld [vmem:[%s219 + $0x38] sm:$0xff]
      %v354 = vld [vmem:[%s219 + $0x48] sm:$0xff]
      %v355 = vld [vmem:[%s219 + $0x50] sm:$0xff]
      %v356 = vld [vmem:[%s219 + $0x60] sm:$0xff]
      %v357 = vld [vmem:[%s219 + $0x68] sm:$0xff]
      %v358 = vld [vmem:[%s219 + $0x78] sm:$0xff]
      %v359 = vld [vmem:[%s219 + $0x80] sm:$0xff]
      %v360 = vld [vmem:[%s219 + $0x90] sm:$0xff]
      %v361 = vld [vmem:[%s219 + $0x98] sm:$0xff]
      %v362 = vld [vmem:[%s219 + $0xa8] sm:$0xff]
      %v363 = vld [vmem:[%s219 + $0xb0] sm:$0xff]
      %v364 = vpack.c.bf16 %v349, %v348
      %v365 = vpack.c.bf16 %v351, %v350
      %v366 = vpack.c.bf16 %v353, %v352
      %v367 = vpack.c.bf16 %v355, %v354
      %v368 = vpack.c.bf16 %v357, %v356
      %v369 = vpack.c.bf16 %v359, %v358
      %v370 = vpack.c.bf16 %v361, %v360
      %v371 = vpack.c.bf16 %v363, %v362
      %v372 = vld [vmem:[%s219 + $0x1] sm:$0xff]
      %v373 = vld [vmem:[%s219 + $0x9] sm:$0xff]
      %v374 = vld [vmem:[%s219 + $0x19] sm:$0xff]
      %v375 = vld [vmem:[%s219 + $0x21] sm:$0xff]
      %v376 = vld [vmem:[%s219 + $0x31] sm:$0xff]
      %v377 = vld [vmem:[%s219 + $0x39] sm:$0xff]
      %v378 = vld [vmem:[%s219 + $0x49] sm:$0xff]
      %v379 = vld [vmem:[%s219 + $0x51] sm:$0xff]
      %v380 = vld [vmem:[%s219 + $0x61] sm:$0xff]
      %v381 = vld [vmem:[%s219 + $0x69] sm:$0xff]
      %v382 = vld [vmem:[%s219 + $0x79] sm:$0xff]
      %v383 = vld [vmem:[%s219 + $0x81] sm:$0xff]
      %v384 = vld [vmem:[%s219 + $0x91] sm:$0xff]
      %v385 = vld [vmem:[%s219 + $0x99] sm:$0xff]
      %v386 = vld [vmem:[%s219 + $0xa9] sm:$0xff]
      %v387 = vld [vmem:[%s219 + $0xb1] sm:$0xff]
      %v388 = vpack.c.bf16 %v373, %v372
      %v389 = vpack.c.bf16 %v375, %v374
      %v390 = vpack.c.bf16 %v377, %v376
      %v391 = vpack.c.bf16 %v379, %v378
      %v392 = vpack.c.bf16 %v381, %v380
      %v393 = vpack.c.bf16 %v383, %v382
      %v394 = vpack.c.bf16 %v385, %v384
      %v395 = vpack.c.bf16 %v387, %v386
      %v396 = vld [vmem:[%s219 + $0x2] sm:$0xff]
      %v397 = vld [vmem:[%s219 + $0xa] sm:$0xff]
      %v398 = vld [vmem:[%s219 + $0x1a] sm:$0xff]
      %v399 = vld [vmem:[%s219 + $0x22] sm:$0xff]
      %v400 = vld [vmem:[%s219 + $0x32] sm:$0xff]
      %v401 = vld [vmem:[%s219 + $0x3a] sm:$0xff]
      %v402 = vld [vmem:[%s219 + $0x4a] sm:$0xff]
      %v403 = vld [vmem:[%s219 + $0x52] sm:$0xff]
      %v404 = vld [vmem:[%s219 + $0x62] sm:$0xff]
      %v405 = vld [vmem:[%s219 + $0x6a] sm:$0xff]
      %v406 = vld [vmem:[%s219 + $0x7a] sm:$0xff]
      %v407 = vld [vmem:[%s219 + $0x82] sm:$0xff]
      %v408 = vld [vmem:[%s219 + $0x92] sm:$0xff]
      %v409 = vld [vmem:[%s219 + $0x9a] sm:$0xff]
      %v410 = vld [vmem:[%s219 + $0xaa] sm:$0xff]
      %v411 = vld [vmem:[%s219 + $0xb2] sm:$0xff]
      %v412 = vpack.c.bf16 %v397, %v396
      %v413 = vpack.c.bf16 %v399, %v398
      %v414 = vpack.c.bf16 %v401, %v400
      %v415 = vpack.c.bf16 %v403, %v402
      %v416 = vpack.c.bf16 %v405, %v404
      %v417 = vpack.c.bf16 %v407, %v406
      %v418 = vpack.c.bf16 %v409, %v408
      %v419 = vpack.c.bf16 %v411, %v410
      %v420 = vld [vmem:[%s1] sm:$0xf]
      %v421 = vld [vmem:[%s1 + $0x4] sm:$0xf]
      %v422 = vld [vmem:[%s1 + $0x8] sm:$0xf]
      %v423 = vld [vmem:[%s1 + $0xc] sm:$0xf]
      %v424 = vld [vmem:[%s1 + $0x10] sm:$0xf]
      %v425 = vld [vmem:[%s1 + $0x14] sm:$0xf]
      %v426 = vld [vmem:[%s1 + $0x18] sm:$0xf]
      %v427 = vld [vmem:[%s1 + $0x1c] sm:$0xf]
      %v428 = vld [vmem:[%s1 + $0x20] sm:$0xf]
      %v429 = vld [vmem:[%s1 + $0x24] sm:$0xf]
      %v430 = vld [vmem:[%s1 + $0x28] sm:$0xf]
      %v431 = vld [vmem:[%s1 + $0x2c] sm:$0xf]
      %v432 = vld [vmem:[%s1 + $0x30] sm:$0xf]
      %v433 = vld [vmem:[%s1 + $0x34] sm:$0xf]
      %v434 = vld [vmem:[%s1 + $0x38] sm:$0xf]
      %v435 = vld [vmem:[%s1 + $0x3c] sm:$0xf]
      %v436 = vld [vmem:[%s1 + $0x40] sm:$0xf]
      %v437 = vld [vmem:[%s1 + $0x44] sm:$0xf]
      %v438 = vld [vmem:[%s1 + $0x48] sm:$0xf]
      %v439 = vld [vmem:[%s1 + $0x4c] sm:$0xf]
      %v440 = vld [vmem:[%s1 + $0x50] sm:$0xf]
      %v441 = vld [vmem:[%s1 + $0x54] sm:$0xf]
      %v442 = vld [vmem:[%s1 + $0x58] sm:$0xf]
      %v443 = vld [vmem:[%s1 + $0x5c] sm:$0xf]
      %v444 = vld [vmem:[%s1 + $0x60] sm:$0xf]
      %v445 = vld [vmem:[%s1 + $0x64] sm:$0xf]
      %v446 = vld [vmem:[%s1 + $0x68] sm:$0xf]
      %v447 = vld [vmem:[%s1 + $0x6c] sm:$0xf]
      %v448 = vld [vmem:[%s1 + $0x70] sm:$0xf]
      %v449 = vld [vmem:[%s1 + $0x74] sm:$0xf]
      %v450 = vld [vmem:[%s1 + $0x78] sm:$0xf]
      %v451 = vld [vmem:[%s1 + $0x7c] sm:$0xf]
      %v452 = vld [vmem:[%s1 + $0x80] sm:$0xf]
      %v453 = vld [vmem:[%s1 + $0x84] sm:$0xf]
      %v454 = vld [vmem:[%s1 + $0x88] sm:$0xf]
      %v455 = vld [vmem:[%s1 + $0x8c] sm:$0xf]
      %v456 = vld [vmem:[%s1 + $0x90] sm:$0xf]
      %v457 = vld [vmem:[%s1 + $0x94] sm:$0xf]
      %v458 = vld [vmem:[%s1 + $0x98] sm:$0xf]
      %v459 = vld [vmem:[%s1 + $0x9c] sm:$0xf]
      %v460 = vld [vmem:[%s1 + $0xa0] sm:$0xf]
      %v461 = vld [vmem:[%s1 + $0xa4] sm:$0xf]
      %v462 = vld [vmem:[%s1 + $0xa8] sm:$0xf]
      %v463 = vld [vmem:[%s1 + $0xac] sm:$0xf]
      %v464 = vld [vmem:[%s1 + $0xb0] sm:$0xf]
      %v465 = vld [vmem:[%s1 + $0xb4] sm:$0xf]
      %v466 = vld [vmem:[%s1 + $0xb8] sm:$0xf]
      %v467 = vld [vmem:[%s1 + $0xbc] sm:$0xf]
      %s468 = scalar_lea.vmem %s219, 24
      %v469 = vld [vmem:[%s468] sm:$0xff]
      %v470 = vld [vmem:[%s468 + $0x8] sm:$0xff]
      %v471 = vld [vmem:[%s468 + $0x18] sm:$0xff]
      %v472 = vld [vmem:[%s468 + $0x20] sm:$0xff]
      %v473 = vld [vmem:[%s468 + $0x30] sm:$0xff]
      %v474 = vld [vmem:[%s468 + $0x38] sm:$0xff]
      %v475 = vld [vmem:[%s468 + $0x48] sm:$0xff]
      %v476 = vld [vmem:[%s468 + $0x50] sm:$0xff]
      %v477 = vld [vmem:[%s468 + $0x60] sm:$0xff]
      %v478 = vld [vmem:[%s468 + $0x68] sm:$0xff]
      %v479 = vld [vmem:[%s468 + $0x78] sm:$0xff]
      %v480 = vld [vmem:[%s468 + $0x80] sm:$0xff]
      %v481 = vld [vmem:[%s468 + $0x90] sm:$0xff]
      %v482 = vld [vmem:[%s468 + $0x98] sm:$0xff]
      %v483 = vld [vmem:[%s468 + $0xa8] sm:$0xff]
      %v484 = vld [vmem:[%s468 + $0xb0] sm:$0xff]
      %v485 = vpack.c.bf16 %v470, %v469
      %v486 = vpack.c.bf16 %v472, %v471
      %v487 = vpack.c.bf16 %v474, %v473
      %v488 = vpack.c.bf16 %v476, %v475
      %v489 = vpack.c.bf16 %v478, %v477
      %v490 = vpack.c.bf16 %v480, %v479
      %v491 = vpack.c.bf16 %v482, %v481
      %v492 = vpack.c.bf16 %v484, %v483
      %v493 = vld [vmem:[%s468 + $0x1] sm:$0xff]
      %v494 = vld [vmem:[%s468 + $0x9] sm:$0xff]
      %v495 = vld [vmem:[%s468 + $0x19] sm:$0xff]
      %v496 = vld [vmem:[%s468 + $0x21] sm:$0xff]
      %v497 = vld [vmem:[%s468 + $0x31] sm:$0xff]
      %v498 = vld [vmem:[%s468 + $0x39] sm:$0xff]
      %v499 = vld [vmem:[%s468 + $0x49] sm:$0xff]
      %v500 = vld [vmem:[%s468 + $0x51] sm:$0xff]
      %v501 = vld [vmem:[%s468 + $0x61] sm:$0xff]
      %v502 = vld [vmem:[%s468 + $0x69] sm:$0xff]
      %v503 = vld [vmem:[%s468 + $0x79] sm:$0xff]
      %v504 = vld [vmem:[%s468 + $0x81] sm:$0xff]
      %v505 = vld [vmem:[%s468 + $0x91] sm:$0xff]
      %v506 = vld [vmem:[%s468 + $0x99] sm:$0xff]
      %v507 = vld [vmem:[%s468 + $0xa9] sm:$0xff]
      %v508 = vld [vmem:[%s468 + $0xb1] sm:$0xff]
      %v509 = vpack.c.bf16 %v494, %v493
      %v510 = vpack.c.bf16 %v496, %v495
      %v511 = vpack.c.bf16 %v498, %v497
      %v512 = vpack.c.bf16 %v500, %v499
      %v513 = vpack.c.bf16 %v502, %v501
      %v514 = vpack.c.bf16 %v504, %v503
      %v515 = vpack.c.bf16 %v506, %v505
      %v516 = vpack.c.bf16 %v508, %v507
      %v517 = vld [vmem:[%s468 + $0x2] sm:$0xff]
      %v518 = vld [vmem:[%s468 + $0xa] sm:$0xff]
      %v519 = vld [vmem:[%s468 + $0x1a] sm:$0xff]
      %v520 = vld [vmem:[%s468 + $0x22] sm:$0xff]
      %v521 = vld [vmem:[%s468 + $0x32] sm:$0xff]
      %v522 = vld [vmem:[%s468 + $0x3a] sm:$0xff]
      %v523 = vld [vmem:[%s468 + $0x4a] sm:$0xff]
      %v524 = vld [vmem:[%s468 + $0x52] sm:$0xff]
      %v525 = vld [vmem:[%s468 + $0x62] sm:$0xff]
      %v526 = vld [vmem:[%s468 + $0x6a] sm:$0xff]
      %v527 = vld [vmem:[%s468 + $0x7a] sm:$0xff]
      %v528 = vld [vmem:[%s468 + $0x82] sm:$0xff]
      %v529 = vld [vmem:[%s468 + $0x92] sm:$0xff]
      %v530 = vld [vmem:[%s468 + $0x9a] sm:$0xff]
      %v531 = vld [vmem:[%s468 + $0xaa] sm:$0xff]
      %v532 = vld [vmem:[%s468 + $0xb2] sm:$0xff]
      %v533 = vpack.c.bf16 %v518, %v517
      %v534 = vpack.c.bf16 %v520, %v519
      %v535 = vpack.c.bf16 %v522, %v521
      %v536 = vpack.c.bf16 %v524, %v523
      %v537 = vpack.c.bf16 %v526, %v525
      %v538 = vpack.c.bf16 %v528, %v527
      %v539 = vpack.c.bf16 %v530, %v529
      %v540 = vpack.c.bf16 %v532, %v531
      %s541 = scalar_lea.vmem %s1, 192
      %v542 = vld [vmem:[%s541] sm:$0xf]
      %v543 = vld [vmem:[%s541 + $0x4] sm:$0xf]
      %v544 = vld [vmem:[%s541 + $0x8] sm:$0xf]
      %v545 = vld [vmem:[%s541 + $0xc] sm:$0xf]
      %v546 = vld [vmem:[%s541 + $0x10] sm:$0xf]
      %v547 = vld [vmem:[%s541 + $0x14] sm:$0xf]
      %v548 = vld [vmem:[%s541 + $0x18] sm:$0xf]
      %v549 = vld [vmem:[%s541 + $0x1c] sm:$0xf]
      %v550 = vld [vmem:[%s541 + $0x20] sm:$0xf]
      %v551 = vld [vmem:[%s541 + $0x24] sm:$0xf]
      %v552 = vld [vmem:[%s541 + $0x28] sm:$0xf]
      %v553 = vld [vmem:[%s541 + $0x2c] sm:$0xf]
      %v554 = vld [vmem:[%s541 + $0x30] sm:$0xf]
      %v555 = vld [vmem:[%s541 + $0x34] sm:$0xf]
      %v556 = vld [vmem:[%s541 + $0x38] sm:$0xf]
      %v557 = vld [vmem:[%s541 + $0x3c] sm:$0xf]
      %v558 = vld [vmem:[%s541 + $0x40] sm:$0xf]
      %v559 = vld [vmem:[%s541 + $0x44] sm:$0xf]
      %v560 = vld [vmem:[%s541 + $0x48] sm:$0xf]
      %v561 = vld [vmem:[%s541 + $0x4c] sm:$0xf]
      %v562 = vld [vmem:[%s541 + $0x50] sm:$0xf]
      %v563 = vld [vmem:[%s541 + $0x54] sm:$0xf]
      %v564 = vld [vmem:[%s541 + $0x58] sm:$0xf]
      %v565 = vld [vmem:[%s541 + $0x5c] sm:$0xf]
      %v566 = vld [vmem:[%s541 + $0x60] sm:$0xf]
      %v567 = vld [vmem:[%s541 + $0x64] sm:$0xf]
      %v568 = vld [vmem:[%s541 + $0x68] sm:$0xf]
      %v569 = vld [vmem:[%s541 + $0x6c] sm:$0xf]
      %v570 = vld [vmem:[%s541 + $0x70] sm:$0xf]
      %v571 = vld [vmem:[%s541 + $0x74] sm:$0xf]
      %v572 = vld [vmem:[%s541 + $0x78] sm:$0xf]
      %v573 = vld [vmem:[%s541 + $0x7c] sm:$0xf]
      %v574 = vld [vmem:[%s541 + $0x80] sm:$0xf]
      %v575 = vld [vmem:[%s541 + $0x84] sm:$0xf]
      %v576 = vld [vmem:[%s541 + $0x88] sm:$0xf]
      %v577 = vld [vmem:[%s541 + $0x8c] sm:$0xf]
      %v578 = vld [vmem:[%s541 + $0x90] sm:$0xf]
      %v579 = vld [vmem:[%s541 + $0x94] sm:$0xf]
      %v580 = vld [vmem:[%s541 + $0x98] sm:$0xf]
      %v581 = vld [vmem:[%s541 + $0x9c] sm:$0xf]
      %v582 = vld [vmem:[%s541 + $0xa0] sm:$0xf]
      %v583 = vld [vmem:[%s541 + $0xa4] sm:$0xf]
      %v584 = vld [vmem:[%s541 + $0xa8] sm:$0xf]
      %v585 = vld [vmem:[%s541 + $0xac] sm:$0xf]
      %v586 = vld [vmem:[%s541 + $0xb0] sm:$0xf]
      %v587 = vld [vmem:[%s541 + $0xb4] sm:$0xf]
      %v588 = vld [vmem:[%s541 + $0xb8] sm:$0xf]
      %v589 = vld [vmem:[%s541 + $0xbc] sm:$0xf]
      %v638 = vunpack.c.l.b16 %v542
      %v639 = vunpack.c.l.b16 %v543
      %v640 = vunpack.c.l.b16 %v544
      %v641 = vunpack.c.l.b16 %v545
      %v642 = vunpack.c.l.b16 %v546
      %v643 = vunpack.c.l.b16 %v547
      %v644 = vunpack.c.l.b16 %v548
      %v645 = vunpack.c.l.b16 %v549
      %v646 = vunpack.c.l.b16 %v550
      %v647 = vunpack.c.l.b16 %v551
      %v648 = vunpack.c.l.b16 %v552
      %v649 = vunpack.c.l.b16 %v553
      %v650 = vunpack.c.l.b16 %v554
      %v651 = vunpack.c.l.b16 %v555
      %v652 = vunpack.c.l.b16 %v556
      %v653 = vunpack.c.l.b16 %v557
      %v654 = vunpack.c.l.b16 %v558
      %v655 = vunpack.c.l.b16 %v559
      %v656 = vunpack.c.l.b16 %v560
      %v657 = vunpack.c.l.b16 %v561
      %v658 = vunpack.c.l.b16 %v562
      %v659 = vunpack.c.l.b16 %v563
      %v660 = vunpack.c.l.b16 %v564
      %v661 = vunpack.c.l.b16 %v565
      %v662 = vunpack.c.l.b16 %v566
      %v663 = vunpack.c.l.b16 %v567
      %v664 = vunpack.c.l.b16 %v568
      %v665 = vunpack.c.l.b16 %v569
      %v666 = vunpack.c.l.b16 %v570
      %v667 = vunpack.c.l.b16 %v571
      %v668 = vunpack.c.l.b16 %v572
      %v669 = vunpack.c.l.b16 %v573
      %v670 = vunpack.c.l.b16 %v574
      %v671 = vunpack.c.l.b16 %v575
      %v672 = vunpack.c.l.b16 %v576
      %v673 = vunpack.c.l.b16 %v577
      %v674 = vunpack.c.l.b16 %v578
      %v675 = vunpack.c.l.b16 %v579
      %v676 = vunpack.c.l.b16 %v580
      %v677 = vunpack.c.l.b16 %v581
      %v678 = vunpack.c.l.b16 %v582
      %v679 = vunpack.c.l.b16 %v583
      %v680 = vunpack.c.l.b16 %v584
      %v681 = vunpack.c.l.b16 %v585
      %v682 = vunpack.c.l.b16 %v586
      %v683 = vunpack.c.l.b16 %v587
      %v684 = vunpack.c.l.b16 %v588
      %v685 = vunpack.c.l.b16 %v589
      %v686 = vpack.c.b16 %v639, %v638
      %v687 = vpack.c.b16 %v641, %v640
      %v688 = vpack.c.b16 %v643, %v642
      %v689 = vpack.c.b16 %v645, %v644
      %v690 = vpack.c.b16 %v647, %v646
      %v691 = vpack.c.b16 %v649, %v648
      %v692 = vpack.c.b16 %v651, %v650
      %v693 = vpack.c.b16 %v653, %v652
      %v694 = vpack.c.b16 %v655, %v654
      %v695 = vpack.c.b16 %v657, %v656
      %v696 = vpack.c.b16 %v659, %v658
      %v697 = vpack.c.b16 %v661, %v660
      %v698 = vpack.c.b16 %v663, %v662
      %v699 = vpack.c.b16 %v665, %v664
      %v700 = vpack.c.b16 %v667, %v666
      %v701 = vpack.c.b16 %v669, %v668
      %v702 = vpack.c.b16 %v671, %v670
      %v703 = vpack.c.b16 %v673, %v672
      %v704 = vpack.c.b16 %v675, %v674
      %v705 = vpack.c.b16 %v677, %v676
      %v706 = vpack.c.b16 %v679, %v678
      %v707 = vpack.c.b16 %v681, %v680
      %v708 = vpack.c.b16 %v683, %v682
      %v709 = vpack.c.b16 %v685, %v684
      %734 = vmatprep.subr.bf16.mxu0 0
      %735 = vmatpush1.bf16.msra.mxu0 %v686
      %736 = vmatprep.subr.bf16.mxu0 0
      %737 = vmatpush1.bf16.msra.mxu0 %v687
      %738 = vmatprep.subr.bf16.mxu0 0
      %739 = vmatpush1.bf16.msra.mxu0 %v688
      %740 = vmatprep.subr.bf16.mxu0 0
      %741 = vmatpush1.bf16.msra.mxu0 %v689
      %742 = vmatprep.subr.bf16.mxu0 0
      %743 = vmatpush1.bf16.msra.mxu0 %v690
      %744 = vmatprep.subr.bf16.mxu0 0
      %745 = vmatpush1.bf16.msra.mxu0 %v691
      %746 = vmatprep.subr.bf16.mxu0 0
      %747 = vmatpush1.bf16.msra.mxu0 %v692
      %748 = vmatprep.subr.bf16.mxu0 0
      %749 = vmatpush1.bf16.msra.mxu0 %v693
      %750 = vmatprep.subr.bf16.mxu0 0
      %751 = vmatpush1.bf16.msra.mxu0 %v694
      %752 = vmatprep.subr.bf16.mxu0 0
      %753 = vmatpush1.bf16.msra.mxu0 %v695
      %754 = vmatprep.subr.bf16.mxu0 0
      %755 = vmatpush1.bf16.msra.mxu0 %v696
      %756 = vmatprep.subr.bf16.mxu0 0
      %757 = vmatpush1.bf16.msra.mxu0 %v697
      %758 = vmatprep.subr.bf16.mxu0 0
      %759 = vmatpush1.bf16.msra.mxu0 %v698
      %760 = vmatprep.subr.bf16.mxu0 0
      %761 = vmatpush1.bf16.msra.mxu0 %v699
      %762 = vmatprep.subr.bf16.mxu0 0
      %763 = vmatpush1.bf16.msra.mxu0 %v700
      %764 = vmatprep.subr.bf16.mxu0 0
      %765 = vmatpush1.bf16.msra.mxu0 %v701
      %766 = vmatprep.mubr.bf16.mxu0 %v509
      %767 = vmatmul.mubr.bf16.gmra.mrb[0].mxu0 %v485
      %v768 = vpop.f32.mrb[0].mxu0
      %v769 = vadd.f32 0.0, %v768
      %v770 = vpop.f32.mrb[0].mxu0
      %v771 = vpop.f32.mrb[0].mxu0
      %v772 = vadd.f32 0.0, %v771
      %v773 = vpop.f32.mrb[0].mxu0
      %774 = vmatprep.mubr.bf16.mxu0 %v510
      %775 = vmatmul.mubr.bf16.gmra.mrb[0].mxu0 %v486
      %v776 = vpop.f32.mrb[0].mxu0
      %v777 = vadd.f32 0.0, %v776
      %v778 = vpop.f32.mrb[0].mxu0
      %v779 = vpop.f32.mrb[0].mxu0
      %v780 = vadd.f32 0.0, %v779
      %v781 = vpop.f32.mrb[0].mxu0
      %782 = vmatprep.mubr.bf16.mxu0 %v511
      %783 = vmatmul.mubr.bf16.gmra.mrb[0].mxu0 %v487
      %v784 = vpop.f32.mrb[0].mxu0
      %v785 = vadd.f32 0.0, %v784
      %v786 = vpop.f32.mrb[0].mxu0
      %v787 = vpop.f32.mrb[0].mxu0
      %v788 = vadd.f32 0.0, %v787
      %v789 = vpop.f32.mrb[0].mxu0
      %790 = vmatprep.mubr.bf16.mxu0 %v512
      %791 = vmatmul.mubr.bf16.gmra.mrb[0].mxu0 %v488
      %v792 = vpop.f32.mrb[0].mxu0
      %v793 = vadd.f32 0.0, %v792
      %v794 = vpop.f32.mrb[0].mxu0
      %v795 = vpop.f32.mrb[0].mxu0
      %v796 = vadd.f32 0.0, %v795
      %v797 = vpop.f32.mrb[0].mxu0
      %798 = vmatprep.mubr.bf16.mxu0 %v513
      %799 = vmatmul.mubr.bf16.gmra.mrb[0].mxu0 %v489
      %v800 = vpop.f32.mrb[0].mxu0
      %v801 = vadd.f32 0.0, %v800
      %v802 = vpop.f32.mrb[0].mxu0
      %v803 = vpop.f32.mrb[0].mxu0
      %v804 = vadd.f32 0.0, %v803
      %v805 = vpop.f32.mrb[0].mxu0
      %806 = vmatprep.mubr.bf16.mxu0 %v514
      %807 = vmatmul.mubr.bf16.gmra.mrb[0].mxu0 %v490
      %v808 = vpop.f32.mrb[0].mxu0
      %v809 = vadd.f32 0.0, %v808
      %v810 = vpop.f32.mrb[0].mxu0
      %v811 = vpop.f32.mrb[0].mxu0
      %v812 = vadd.f32 0.0, %v811
      %v813 = vpop.f32.mrb[0].mxu0
      %814 = vmatprep.mubr.bf16.mxu0 %v515
      %815 = vmatmul.mubr.bf16.gmra.mrb[0].mxu0 %v491
      %v816 = vpop.f32.mrb[0].mxu0
      %v817 = vadd.f32 0.0, %v816
      %v818 = vpop.f32.mrb[0].mxu0
      %v819 = vpop.f32.mrb[0].mxu0
      %v820 = vadd.f32 0.0, %v819
      %v821 = vpop.f32.mrb[0].mxu0
      %822 = vmatprep.mubr.bf16.mxu0 %v516
      %823 = vmatmul.mubr.bf16.gmra.mrb[0].mxu0 %v492
      %v824 = vpop.f32.mrb[0].mxu0
      %v825 = vadd.f32 0.0, %v824
      %v826 = vpop.f32.mrb[0].mxu0
      %v827 = vpop.f32.mrb[0].mxu0
      %v828 = vadd.f32 0.0, %v827
      %v829 = vpop.f32.mrb[0].mxu0
      %830 = vdwg.mxu0
      %831 = vmatprep.subr.bf16.mxu0 0
      %832 = vmatpush1.bf16.msra.mxu0 %v702
      %833 = vmatprep.subr.bf16.mxu0 0
      %834 = vmatpush1.bf16.msra.mxu0 %v703
      %835 = vmatprep.subr.bf16.mxu0 0
      %836 = vmatpush1.bf16.msra.mxu0 %v704
      %837 = vmatprep.subr.bf16.mxu0 0
      %838 = vmatpush1.bf16.msra.mxu0 %v705
      %839 = vmatprep.subr.bf16.mxu0 0
      %840 = vmatpush1.bf16.msra.mxu0 %v706
      %841 = vmatprep.subr.bf16.mxu0 0
      %842 = vmatpush1.bf16.msra.mxu0 %v707
      %843 = vmatprep.subr.bf16.mxu0 0
      %844 = vmatpush1.bf16.msra.mxu0 %v708
      %845 = vmatprep.subr.bf16.mxu0 0
      %846 = vmatpush1.bf16.msra.mxu0 %v709
      %847 = vmatprep.subr.bf16.mxu0 0
      %848 = vmatpush1.bf16.msra.mxu0 0
      %849 = vmatprep.subr.bf16.mxu0 0
      %850 = vmatpush1.bf16.msra.mxu0 0
      %851 = vmatprep.subr.bf16.mxu0 0
      %852 = vmatpush1.bf16.msra.mxu0 0
      %853 = vmatprep.subr.bf16.mxu0 0
      %854 = vmatpush1.bf16.msra.mxu0 0
      %855 = vmatprep.subr.bf16.mxu0 0
      %856 = vmatpush1.bf16.msra.mxu0 0
      %857 = vmatprep.subr.bf16.mxu0 0
      %858 = vmatpush1.bf16.msra.mxu0 0
      %859 = vmatprep.subr.bf16.mxu0 0
      %860 = vmatpush1.bf16.msra.mxu0 0
      %861 = vmatprep.subr.bf16.mxu0 0
      %862 = vmatpush1.bf16.msra.mxu0 0
      %863 = vmatprep.mubr.bf16.mxu0 0
      %864 = vmatmul.mubr.bf16.gmra.mrb[0].mxu0 %v533
      %v865 = vpop.f32.mrb[0].mxu0
      %v866 = vadd.f32 %v769, %v865
      %v867 = vpop.f32.mrb[0].mxu0
      %v868 = vpop.f32.mrb[0].mxu0
      %v869 = vadd.f32 %v772, %v868
      %v870 = vpop.f32.mrb[0].mxu0
      %871 = vmatprep.mubr.bf16.mxu0 0
      %872 = vmatmul.mubr.bf16.gmra.mrb[0].mxu0 %v534
      %v873 = vpop.f32.mrb[0].mxu0
      %v874 = vadd.f32 %v777, %v873
      %v875 = vpop.f32.mrb[0].mxu0
      %v876 = vpop.f32.mrb[0].mxu0
      %v877 = vadd.f32 %v780, %v876
      %v878 = vpop.f32.mrb[0].mxu0
      %879 = vmatprep.mubr.bf16.mxu0 0
      %880 = vmatmul.mubr.bf16.gmra.mrb[0].mxu0 %v535
      %v881 = vpop.f32.mrb[0].mxu0
      %v882 = vadd.f32 %v785, %v881
      %v883 = vpop.f32.mrb[0].mxu0
      %v884 = vpop.f32.mrb[0].mxu0
      %v885 = vadd.f32 %v788, %v884
      %v886 = vpop.f32.mrb[0].mxu0
      %887 = vmatprep.mubr.bf16.mxu0 0
      %888 = vmatmul.mubr.bf16.gmra.mrb[0].mxu0 %v536
      %v889 = vpop.f32.mrb[0].mxu0
      %v890 = vadd.f32 %v793, %v889
      %v891 = vpop.f32.mrb[0].mxu0
      %v892 = vpop.f32.mrb[0].mxu0
      %v893 = vadd.f32 %v796, %v892
      %v894 = vpop.f32.mrb[0].mxu0
      %895 = vmatprep.mubr.bf16.mxu0 0
      %896 = vmatmul.mubr.bf16.gmra.mrb[0].mxu0 %v537
      %v897 = vpop.f32.mrb[0].mxu0
      %v898 = vadd.f32 %v801, %v897
      %v899 = vpop.f32.mrb[0].mxu0
      %v900 = vpop.f32.mrb[0].mxu0
      %v901 = vadd.f32 %v804, %v900
      %v902 = vpop.f32.mrb[0].mxu0
      %903 = vmatprep.mubr.bf16.mxu0 0
      %904 = vmatmul.mubr.bf16.gmra.mrb[0].mxu0 %v538
      %v905 = vpop.f32.mrb[0].mxu0
      %v906 = vadd.f32 %v809, %v905
      %v907 = vpop.f32.mrb[0].mxu0
      %v908 = vpop.f32.mrb[0].mxu0
      %v909 = vadd.f32 %v812, %v908
      %v910 = vpop.f32.mrb[0].mxu0
      %911 = vmatprep.mubr.bf16.mxu0 0
      %912 = vmatmul.mubr.bf16.gmra.mrb[0].mxu0 %v539
      %v913 = vpop.f32.mrb[0].mxu0
      %v914 = vadd.f32 %v817, %v913
      %v915 = vpop.f32.mrb[0].mxu0
      %v916 = vpop.f32.mrb[0].mxu0
      %v917 = vadd.f32 %v820, %v916
      %v918 = vpop.f32.mrb[0].mxu0
      %919 = vmatprep.mubr.bf16.mxu0 0
      %920 = vmatmul.mubr.bf16.gmra.mrb[0].mxu0 %v540
      %v921 = vpop.f32.mrb[0].mxu0
      %v922 = vadd.f32 %v825, %v921
      %v923 = vpop.f32.mrb[0].mxu0
      %v924 = vpop.f32.mrb[0].mxu0
      %v925 = vadd.f32 %v828, %v924
      %v926 = vpop.f32.mrb[0].mxu0
      %927 = vdwg.mxu0
      %v976 = vunpack.c.l.b16 %v420
      %v977 = vunpack.c.l.b16 %v421
      %v978 = vunpack.c.l.b16 %v422
      %v979 = vunpack.c.l.b16 %v423
      %v980 = vunpack.c.l.b16 %v424
      %v981 = vunpack.c.l.b16 %v425
      %v982 = vunpack.c.l.b16 %v426
      %v983 = vunpack.c.l.b16 %v427
      %v984 = vunpack.c.l.b16 %v428
      %v985 = vunpack.c.l.b16 %v429
      %v986 = vunpack.c.l.b16 %v430
      %v987 = vunpack.c.l.b16 %v431
      %v988 = vunpack.c.l.b16 %v432
      %v989 = vunpack.c.l.b16 %v433
      %v990 = vunpack.c.l.b16 %v434
      %v991 = vunpack.c.l.b16 %v435
      %v992 = vunpack.c.l.b16 %v436
      %v993 = vunpack.c.l.b16 %v437
      %v994 = vunpack.c.l.b16 %v438
      %v995 = vunpack.c.l.b16 %v439
      %v996 = vunpack.c.l.b16 %v440
      %v997 = vunpack.c.l.b16 %v441
      %v998 = vunpack.c.l.b16 %v442
      %v999 = vunpack.c.l.b16 %v443
      %v1000 = vunpack.c.l.b16 %v444
      %v1001 = vunpack.c.l.b16 %v445
      %v1002 = vunpack.c.l.b16 %v446
      %v1003 = vunpack.c.l.b16 %v447
      %v1004 = vunpack.c.l.b16 %v448
      %v1005 = vunpack.c.l.b16 %v449
      %v1006 = vunpack.c.l.b16 %v450
      %v1007 = vunpack.c.l.b16 %v451
      %v1008 = vunpack.c.l.b16 %v452
      %v1009 = vunpack.c.l.b16 %v453
      %v1010 = vunpack.c.l.b16 %v454
      %v1011 = vunpack.c.l.b16 %v455
      %v1012 = vunpack.c.l.b16 %v456
      %v1013 = vunpack.c.l.b16 %v457
      %v1014 = vunpack.c.l.b16 %v458
      %v1015 = vunpack.c.l.b16 %v459
      %v1016 = vunpack.c.l.b16 %v460
      %v1017 = vunpack.c.l.b16 %v461
      %v1018 = vunpack.c.l.b16 %v462
      %v1019 = vunpack.c.l.b16 %v463
      %v1020 = vunpack.c.l.b16 %v464
      %v1021 = vunpack.c.l.b16 %v465
      %v1022 = vunpack.c.l.b16 %v466
      %v1023 = vunpack.c.l.b16 %v467
      %v1024 = vpack.c.b16 %v977, %v976
      %v1025 = vpack.c.b16 %v979, %v978
      %v1026 = vpack.c.b16 %v981, %v980
      %v1027 = vpack.c.b16 %v983, %v982
      %v1028 = vpack.c.b16 %v985, %v984
      %v1029 = vpack.c.b16 %v987, %v986
      %v1030 = vpack.c.b16 %v989, %v988
      %v1031 = vpack.c.b16 %v991, %v990
      %v1032 = vpack.c.b16 %v993, %v992
      %v1033 = vpack.c.b16 %v995, %v994
      %v1034 = vpack.c.b16 %v997, %v996
      %v1035 = vpack.c.b16 %v999, %v998
      %v1036 = vpack.c.b16 %v1001, %v1000
      %v1037 = vpack.c.b16 %v1003, %v1002
      %v1038 = vpack.c.b16 %v1005, %v1004
      %v1039 = vpack.c.b16 %v1007, %v1006
      %v1040 = vpack.c.b16 %v1009, %v1008
      %v1041 = vpack.c.b16 %v1011, %v1010
      %v1042 = vpack.c.b16 %v1013, %v1012
      %v1043 = vpack.c.b16 %v1015, %v1014
      %v1044 = vpack.c.b16 %v1017, %v1016
      %v1045 = vpack.c.b16 %v1019, %v1018
      %v1046 = vpack.c.b16 %v1021, %v1020
      %v1047 = vpack.c.b16 %v1023, %v1022
      %1072 = vmatprep.subr.bf16.mxu0 0
      %1073 = vmatpush1.bf16.msra.mxu0 %v1024
      %1074 = vmatprep.subr.bf16.mxu0 0
      %1075 = vmatpush1.bf16.msra.mxu0 %v1025
      %1076 = vmatprep.subr.bf16.mxu0 0
      %1077 = vmatpush1.bf16.msra.mxu0 %v1026
      %1078 = vmatprep.subr.bf16.mxu0 0
      %1079 = vmatpush1.bf16.msra.mxu0 %v1027
      %1080 = vmatprep.subr.bf16.mxu0 0
      %1081 = vmatpush1.bf16.msra.mxu0 %v1028
      %1082 = vmatprep.subr.bf16.mxu0 0
      %1083 = vmatpush1.bf16.msra.mxu0 %v1029
      %1084 = vmatprep.subr.bf16.mxu0 0
      %1085 = vmatpush1.bf16.msra.mxu0 %v1030
      %1086 = vmatprep.subr.bf16.mxu0 0
      %1087 = vmatpush1.bf16.msra.mxu0 %v1031
      %1088 = vmatprep.subr.bf16.mxu0 0
      %1089 = vmatpush1.bf16.msra.mxu0 %v1032
      %1090 = vmatprep.subr.bf16.mxu0 0
      %1091 = vmatpush1.bf16.msra.mxu0 %v1033
      %1092 = vmatprep.subr.bf16.mxu0 0
      %1093 = vmatpush1.bf16.msra.mxu0 %v1034
      %1094 = vmatprep.subr.bf16.mxu0 0
      %1095 = vmatpush1.bf16.msra.mxu0 %v1035
      %1096 = vmatprep.subr.bf16.mxu0 0
      %1097 = vmatpush1.bf16.msra.mxu0 %v1036
      %1098 = vmatprep.subr.bf16.mxu0 0
      %1099 = vmatpush1.bf16.msra.mxu0 %v1037
      %1100 = vmatprep.subr.bf16.mxu0 0
      %1101 = vmatpush1.bf16.msra.mxu0 %v1038
      %1102 = vmatprep.subr.bf16.mxu0 0
      %1103 = vmatpush1.bf16.msra.mxu0 %v1039
      %1104 = vmatprep.mubr.bf16.mxu0 %v388
      %1105 = vmatmul.mubr.bf16.gmra.mrb[0].mxu0 %v364
      %v1106 = vpop.f32.mrb[0].mxu0
      %v1107 = vadd.f32 %v866, %v1106
      %v1108 = vpop.f32.mrb[0].mxu0
      %v1109 = vpop.f32.mrb[0].mxu0
      %v1110 = vadd.f32 %v869, %v1109
      %v1111 = vpop.f32.mrb[0].mxu0
      %1112 = vmatprep.mubr.bf16.mxu0 %v389
      %1113 = vmatmul.mubr.bf16.gmra.mrb[0].mxu0 %v365
      %v1114 = vpop.f32.mrb[0].mxu0
      %v1115 = vadd.f32 %v874, %v1114
      %v1116 = vpop.f32.mrb[0].mxu0
      %v1117 = vpop.f32.mrb[0].mxu0
      %v1118 = vadd.f32 %v877, %v1117
      %v1119 = vpop.f32.mrb[0].mxu0
      %1120 = vmatprep.mubr.bf16.mxu0 %v390
      %1121 = vmatmul.mubr.bf16.gmra.mrb[0].mxu0 %v366
      %v1122 = vpop.f32.mrb[0].mxu0
      %v1123 = vadd.f32 %v882, %v1122
      %v1124 = vpop.f32.mrb[0].mxu0
      %v1125 = vpop.f32.mrb[0].mxu0
      %v1126 = vadd.f32 %v885, %v1125
      %v1127 = vpop.f32.mrb[0].mxu0
      %1128 = vmatprep.mubr.bf16.mxu0 %v391
      %1129 = vmatmul.mubr.bf16.gmra.mrb[0].mxu0 %v367
      %v1130 = vpop.f32.mrb[0].mxu0
      %v1131 = vadd.f32 %v890, %v1130
      %v1132 = vpop.f32.mrb[0].mxu0
      %v1133 = vpop.f32.mrb[0].mxu0
      %v1134 = vadd.f32 %v893, %v1133
      %v1135 = vpop.f32.mrb[0].mxu0
      %1136 = vmatprep.mubr.bf16.mxu0 %v392
      %1137 = vmatmul.mubr.bf16.gmra.mrb[0].mxu0 %v368
      %v1138 = vpop.f32.mrb[0].mxu0
      %v1139 = vadd.f32 %v898, %v1138
      %v1140 = vpop.f32.mrb[0].mxu0
      %v1141 = vpop.f32.mrb[0].mxu0
      %v1142 = vadd.f32 %v901, %v1141
      %v1143 = vpop.f32.mrb[0].mxu0
      %1144 = vmatprep.mubr.bf16.mxu0 %v393
      %1145 = vmatmul.mubr.bf16.gmra.mrb[0].mxu0 %v369
      %v1146 = vpop.f32.mrb[0].mxu0
      %v1147 = vadd.f32 %v906, %v1146
      %v1148 = vpop.f32.mrb[0].mxu0
      %v1149 = vpop.f32.mrb[0].mxu0
      %v1150 = vadd.f32 %v909, %v1149
      %v1151 = vpop.f32.mrb[0].mxu0
      %1152 = vmatprep.mubr.bf16.mxu0 %v394
      %1153 = vmatmul.mubr.bf16.gmra.mrb[0].mxu0 %v370
      %v1154 = vpop.f32.mrb[0].mxu0
      %v1155 = vadd.f32 %v914, %v1154
      %v1156 = vpop.f32.mrb[0].mxu0
      %v1157 = vpop.f32.mrb[0].mxu0
      %v1158 = vadd.f32 %v917, %v1157
      %v1159 = vpop.f32.mrb[0].mxu0
      %1160 = vmatprep.mubr.bf16.mxu0 %v395
      %1161 = vmatmul.mubr.bf16.gmra.mrb[0].mxu0 %v371
      %v1162 = vpop.f32.mrb[0].mxu0
      %v1163 = vadd.f32 %v922, %v1162
      %v1164 = vpop.f32.mrb[0].mxu0
      %v1165 = vpop.f32.mrb[0].mxu0
      %v1166 = vadd.f32 %v925, %v1165
      %v1167 = vpop.f32.mrb[0].mxu0
      %1168 = vdwg.mxu0
      %1169 = vmatprep.subr.bf16.mxu0 0
      %1170 = vmatpush1.bf16.msra.mxu0 %v1040
      %1171 = vmatprep.subr.bf16.mxu0 0
      %1172 = vmatpush1.bf16.msra.mxu0 %v1041
      %1173 = vmatprep.subr.bf16.mxu0 0
      %1174 = vmatpush1.bf16.msra.mxu0 %v1042
      %1175 = vmatprep.subr.bf16.mxu0 0
      %1176 = vmatpush1.bf16.msra.mxu0 %v1043
      %1177 = vmatprep.subr.bf16.mxu0 0
      %1178 = vmatpush1.bf16.msra.mxu0 %v1044
      %1179 = vmatprep.subr.bf16.mxu0 0
      %1180 = vmatpush1.bf16.msra.mxu0 %v1045
      %1181 = vmatprep.subr.bf16.mxu0 0
      %1182 = vmatpush1.bf16.msra.mxu0 %v1046
      %1183 = vmatprep.subr.bf16.mxu0 0
      %1184 = vmatpush1.bf16.msra.mxu0 %v1047
      %1185 = vmatprep.subr.bf16.mxu0 0
      %1186 = vmatpush1.bf16.msra.mxu0 0
      %1187 = vmatprep.subr.bf16.mxu0 0
      %1188 = vmatpush1.bf16.msra.mxu0 0
      %1189 = vmatprep.subr.bf16.mxu0 0
      %1190 = vmatpush1.bf16.msra.mxu0 0
      %1191 = vmatprep.subr.bf16.mxu0 0
      %1192 = vmatpush1.bf16.msra.mxu0 0
      %1193 = vmatprep.subr.bf16.mxu0 0
      %1194 = vmatpush1.bf16.msra.mxu0 0
      %1195 = vmatprep.subr.bf16.mxu0 0
      %1196 = vmatpush1.bf16.msra.mxu0 0
      %1197 = vmatprep.subr.bf16.mxu0 0
      %1198 = vmatpush1.bf16.msra.mxu0 0
      %1199 = vmatprep.subr.bf16.mxu0 0
      %1200 = vmatpush1.bf16.msra.mxu0 0
      %1201 = vmatprep.mubr.bf16.mxu0 0
      %1202 = vmatmul.mubr.bf16.gmra.mrb[0].mxu0 %v412
      %v1203 = vpop.f32.mrb[0].mxu0
      %v1204 = vadd.f32 %v1107, %v1203
      %v1205 = vpop.f32.mrb[0].mxu0
      %v1206 = vpop.f32.mrb[0].mxu0
      %v1207 = vadd.f32 %v1110, %v1206
      %v1208 = vpop.f32.mrb[0].mxu0
      %1209 = vmatprep.mubr.bf16.mxu0 0
      %1210 = vmatmul.mubr.bf16.gmra.mrb[0].mxu0 %v413
      %v1211 = vpop.f32.mrb[0].mxu0
      %v1212 = vadd.f32 %v1115, %v1211
      %v1213 = vpop.f32.mrb[0].mxu0
      %v1214 = vpop.f32.mrb[0].mxu0
      %v1215 = vadd.f32 %v1118, %v1214
      %v1216 = vpop.f32.mrb[0].mxu0
      %1217 = vmatprep.mubr.bf16.mxu0 0
      %1218 = vmatmul.mubr.bf16.gmra.mrb[0].mxu0 %v414
      %v1219 = vpop.f32.mrb[0].mxu0
      %v1220 = vadd.f32 %v1123, %v1219
      %v1221 = vpop.f32.mrb[0].mxu0
      %v1222 = vpop.f32.mrb[0].mxu0
      %v1223 = vadd.f32 %v1126, %v1222
      %v1224 = vpop.f32.mrb[0].mxu0
      %1225 = vmatprep.mubr.bf16.mxu0 0
      %1226 = vmatmul.mubr.bf16.gmra.mrb[0].mxu0 %v415
      %v1227 = vpop.f32.mrb[0].mxu0
      %v1228 = vadd.f32 %v1131, %v1227
      %v1229 = vpop.f32.mrb[0].mxu0
      %v1230 = vpop.f32.mrb[0].mxu0
      %v1231 = vadd.f32 %v1134, %v1230
      %v1232 = vpop.f32.mrb[0].mxu0
      %1233 = vmatprep.mubr.bf16.mxu0 0
      %1234 = vmatmul.mubr.bf16.gmra.mrb[0].mxu0 %v416
      %v1235 = vpop.f32.mrb[0].mxu0
      %v1236 = vadd.f32 %v1139, %v1235
      %v1237 = vpop.f32.mrb[0].mxu0
      %v1238 = vpop.f32.mrb[0].mxu0
      %v1239 = vadd.f32 %v1142, %v1238
      %v1240 = vpop.f32.mrb[0].mxu0
      %1241 = vmatprep.mubr.bf16.mxu0 0
      %1242 = vmatmul.mubr.bf16.gmra.mrb[0].mxu0 %v417
      %v1243 = vpop.f32.mrb[0].mxu0
      %v1244 = vadd.f32 %v1147, %v1243
      %v1245 = vpop.f32.mrb[0].mxu0
      %v1246 = vpop.f32.mrb[0].mxu0
      %v1247 = vadd.f32 %v1150, %v1246
      %v1248 = vpop.f32.mrb[0].mxu0
      %1249 = vmatprep.mubr.bf16.mxu0 0
      %1250 = vmatmul.mubr.bf16.gmra.mrb[0].mxu0 %v418
      %v1251 = vpop.f32.mrb[0].mxu0
      %v1252 = vadd.f32 %v1155, %v1251
      %v1253 = vpop.f32.mrb[0].mxu0
      %v1254 = vpop.f32.mrb[0].mxu0
      %v1255 = vadd.f32 %v1158, %v1254
      %v1256 = vpop.f32.mrb[0].mxu0
      %1257 = vmatprep.mubr.bf16.mxu0 0
      %1258 = vmatmul.mubr.bf16.gmra.mrb[0].mxu0 %v419
      %v1259 = vpop.f32.mrb[0].mxu0
      %v1260 = vadd.f32 %v1163, %v1259
      %v1261 = vpop.f32.mrb[0].mxu0
      %v1262 = vpop.f32.mrb[0].mxu0
      %v1263 = vadd.f32 %v1166, %v1262
      %v1264 = vpop.f32.mrb[0].mxu0
      %1265 = vdwg.mxu0
      %s1266 = scalar_lea.vmem %s219, 48
      %v1267 = vld [vmem:[%s1266] sm:$0xff]
      %v1268 = vld [vmem:[%s1266 + $0x8] sm:$0xff]
      %v1269 = vld [vmem:[%s1266 + $0x18] sm:$0xff]
      %v1270 = vld [vmem:[%s1266 + $0x20] sm:$0xff]
      %v1271 = vld [vmem:[%s1266 + $0x30] sm:$0xff]
      %v1272 = vld [vmem:[%s1266 + $0x38] sm:$0xff]
      %v1273 = vld [vmem:[%s1266 + $0x48] sm:$0xff]
      %v1274 = vld [vmem:[%s1266 + $0x50] sm:$0xff]
      %v1275 = vld [vmem:[%s1266 + $0x60] sm:$0xff]
      %v1276 = vld [vmem:[%s1266 + $0x68] sm:$0xff]
      %v1277 = vld [vmem:[%s1266 + $0x78] sm:$0xff]
      %v1278 = vld [vmem:[%s1266 + $0x80] sm:$0xff]
      %v1279 = vld [vmem:[%s1266 + $0x90] sm:$0xff]
      %v1280 = vld [vmem:[%s1266 + $0x98] sm:$0xff]
      %v1281 = vld [vmem:[%s1266 + $0xa8] sm:$0xff]
      %v1282 = vld [vmem:[%s1266 + $0xb0] sm:$0xff]
      %v1283 = vpack.c.bf16 %v1268, %v1267
      %v1284 = vpack.c.bf16 %v1270, %v1269
      %v1285 = vpack.c.bf16 %v1272, %v1271
      %v1286 = vpack.c.bf16 %v1274, %v1273
      %v1287 = vpack.c.bf16 %v1276, %v1275
      %v1288 = vpack.c.bf16 %v1278, %v1277
      %v1289 = vpack.c.bf16 %v1280, %v1279
      %v1290 = vpack.c.bf16 %v1282, %v1281
      %v1291 = vld [vmem:[%s1266 + $0x1] sm:$0xff]
      %v1292 = vld [vmem:[%s1266 + $0x9] sm:$0xff]
      %v1293 = vld [vmem:[%s1266 + $0x19] sm:$0xff]
      %v1294 = vld [vmem:[%s1266 + $0x21] sm:$0xff]
      %v1295 = vld [vmem:[%s1266 + $0x31] sm:$0xff]
      %v1296 = vld [vmem:[%s1266 + $0x39] sm:$0xff]
      %v1297 = vld [vmem:[%s1266 + $0x49] sm:$0xff]
      %v1298 = vld [vmem:[%s1266 + $0x51] sm:$0xff]
      %v1299 = vld [vmem:[%s1266 + $0x61] sm:$0xff]
      %v1300 = vld [vmem:[%s1266 + $0x69] sm:$0xff]
      %v1301 = vld [vmem:[%s1266 + $0x79] sm:$0xff]
      %v1302 = vld [vmem:[%s1266 + $0x81] sm:$0xff]
      %v1303 = vld [vmem:[%s1266 + $0x91] sm:$0xff]
      %v1304 = vld [vmem:[%s1266 + $0x99] sm:$0xff]
      %v1305 = vld [vmem:[%s1266 + $0xa9] sm:$0xff]
      %v1306 = vld [vmem:[%s1266 + $0xb1] sm:$0xff]
      %v1307 = vpack.c.bf16 %v1292, %v1291
      %v1308 = vpack.c.bf16 %v1294, %v1293
      %v1309 = vpack.c.bf16 %v1296, %v1295
      %v1310 = vpack.c.bf16 %v1298, %v1297
      %v1311 = vpack.c.bf16 %v1300, %v1299
      %v1312 = vpack.c.bf16 %v1302, %v1301
      %v1313 = vpack.c.bf16 %v1304, %v1303
      %v1314 = vpack.c.bf16 %v1306, %v1305
      %v1315 = vld [vmem:[%s1266 + $0x2] sm:$0xff]
      %v1316 = vld [vmem:[%s1266 + $0xa] sm:$0xff]
      %v1317 = vld [vmem:[%s1266 + $0x1a] sm:$0xff]
      %v1318 = vld [vmem:[%s1266 + $0x22] sm:$0xff]
      %v1319 = vld [vmem:[%s1266 + $0x32] sm:$0xff]
      %v1320 = vld [vmem:[%s1266 + $0x3a] sm:$0xff]
      %v1321 = vld [vmem:[%s1266 + $0x4a] sm:$0xff]
      %v1322 = vld [vmem:[%s1266 + $0x52] sm:$0xff]
      %v1323 = vld [vmem:[%s1266 + $0x62] sm:$0xff]
      %v1324 = vld [vmem:[%s1266 + $0x6a] sm:$0xff]
      %v1325 = vld [vmem:[%s1266 + $0x7a] sm:$0xff]
      %v1326 = vld [vmem:[%s1266 + $0x82] sm:$0xff]
      %v1327 = vld [vmem:[%s1266 + $0x92] sm:$0xff]
      %v1328 = vld [vmem:[%s1266 + $0x9a] sm:$0xff]
      %v1329 = vld [vmem:[%s1266 + $0xaa] sm:$0xff]
      %v1330 = vld [vmem:[%s1266 + $0xb2] sm:$0xff]
      %v1331 = vpack.c.bf16 %v1316, %v1315
      %v1332 = vpack.c.bf16 %v1318, %v1317
      %v1333 = vpack.c.bf16 %v1320, %v1319
      %v1334 = vpack.c.bf16 %v1322, %v1321
      %v1335 = vpack.c.bf16 %v1324, %v1323
      %v1336 = vpack.c.bf16 %v1326, %v1325
      %v1337 = vpack.c.bf16 %v1328, %v1327
      %v1338 = vpack.c.bf16 %v1330, %v1329
      %s1339 = scalar_lea.vmem %s1, 384
      %v1340 = vld [vmem:[%s1339] sm:$0xf]
      %v1341 = vld [vmem:[%s1339 + $0x4] sm:$0xf]
      %v1342 = vld [vmem:[%s1339 + $0x8] sm:$0xf]
      %v1343 = vld [vmem:[%s1339 + $0xc] sm:$0xf]
      %v1344 = vld [vmem:[%s1339 + $0x10] sm:$0xf]
      %v1345 = vld [vmem:[%s1339 + $0x14] sm:$0xf]
      %v1346 = vld [vmem:[%s1339 + $0x18] sm:$0xf]
      %v1347 = vld [vmem:[%s1339 + $0x1c] sm:$0xf]
      %v1348 = vld [vmem:[%s1339 + $0x20] sm:$0xf]
      %v1349 = vld [vmem:[%s1339 + $0x24] sm:$0xf]
      %v1350 = vld [vmem:[%s1339 + $0x28] sm:$0xf]
      %v1351 = vld [vmem:[%s1339 + $0x2c] sm:$0xf]
      %v1352 = vld [vmem:[%s1339 + $0x30] sm:$0xf]
      %v1353 = vld [vmem:[%s1339 + $0x34] sm:$0xf]
      %v1354 = vld [vmem:[%s1339 + $0x38] sm:$0xf]
      %v1355 = vld [vmem:[%s1339 + $0x3c] sm:$0xf]
      %v1356 = vld [vmem:[%s1339 + $0x40] sm:$0xf]
      %v1357 = vld [vmem:[%s1339 + $0x44] sm:$0xf]
      %v1358 = vld [vmem:[%s1339 + $0x48] sm:$0xf]
      %v1359 = vld [vmem:[%s1339 + $0x4c] sm:$0xf]
      %v1360 = vld [vmem:[%s1339 + $0x50] sm:$0xf]
      %v1361 = vld [vmem:[%s1339 + $0x54] sm:$0xf]
      %v1362 = vld [vmem:[%s1339 + $0x58] sm:$0xf]
      %v1363 = vld [vmem:[%s1339 + $0x5c] sm:$0xf]
      %v1364 = vld [vmem:[%s1339 + $0x60] sm:$0xf]
      %v1365 = vld [vmem:[%s1339 + $0x64] sm:$0xf]
      %v1366 = vld [vmem:[%s1339 + $0x68] sm:$0xf]
      %v1367 = vld [vmem:[%s1339 + $0x6c] sm:$0xf]
      %v1368 = vld [vmem:[%s1339 + $0x70] sm:$0xf]
      %v1369 = vld [vmem:[%s1339 + $0x74] sm:$0xf]
      %v1370 = vld [vmem:[%s1339 + $0x78] sm:$0xf]
      %v1371 = vld [vmem:[%s1339 + $0x7c] sm:$0xf]
      %v1372 = vld [vmem:[%s1339 + $0x80] sm:$0xf]
      %v1373 = vld [vmem:[%s1339 + $0x84] sm:$0xf]
      %v1374 = vld [vmem:[%s1339 + $0x88] sm:$0xf]
      %v1375 = vld [vmem:[%s1339 + $0x8c] sm:$0xf]
      %v1376 = vld [vmem:[%s1339 + $0x90] sm:$0xf]
      %v1377 = vld [vmem:[%s1339 + $0x94] sm:$0xf]
      %v1378 = vld [vmem:[%s1339 + $0x98] sm:$0xf]
      %v1379 = vld [vmem:[%s1339 + $0x9c] sm:$0xf]
      %v1380 = vld [vmem:[%s1339 + $0xa0] sm:$0xf]
      %v1381 = vld [vmem:[%s1339 + $0xa4] sm:$0xf]
      %v1382 = vld [vmem:[%s1339 + $0xa8] sm:$0xf]
      %v1383 = vld [vmem:[%s1339 + $0xac] sm:$0xf]
      %v1384 = vld [vmem:[%s1339 + $0xb0] sm:$0xf]
      %v1385 = vld [vmem:[%s1339 + $0xb4] sm:$0xf]
      %v1386 = vld [vmem:[%s1339 + $0xb8] sm:$0xf]
      %v1387 = vld [vmem:[%s1339 + $0xbc] sm:$0xf]
      %v1436 = vunpack.c.l.b16 %v1340
      %v1437 = vunpack.c.l.b16 %v1341
      %v1438 = vunpack.c.l.b16 %v1342
      %v1439 = vunpack.c.l.b16 %v1343
      %v1440 = vunpack.c.l.b16 %v1344
      %v1441 = vunpack.c.l.b16 %v1345
      %v1442 = vunpack.c.l.b16 %v1346
      %v1443 = vunpack.c.l.b16 %v1347
      %v1444 = vunpack.c.l.b16 %v1348
      %v1445 = vunpack.c.l.b16 %v1349
      %v1446 = vunpack.c.l.b16 %v1350
      %v1447 = vunpack.c.l.b16 %v1351
      %v1448 = vunpack.c.l.b16 %v1352
      %v1449 = vunpack.c.l.b16 %v1353
      %v1450 = vunpack.c.l.b16 %v1354
      %v1451 = vunpack.c.l.b16 %v1355
      %v1452 = vunpack.c.l.b16 %v1356
      %v1453 = vunpack.c.l.b16 %v1357
      %v1454 = vunpack.c.l.b16 %v1358
      %v1455 = vunpack.c.l.b16 %v1359
      %v1456 = vunpack.c.l.b16 %v1360
      %v1457 = vunpack.c.l.b16 %v1361
      %v1458 = vunpack.c.l.b16 %v1362
      %v1459 = vunpack.c.l.b16 %v1363
      %v1460 = vunpack.c.l.b16 %v1364
      %v1461 = vunpack.c.l.b16 %v1365
      %v1462 = vunpack.c.l.b16 %v1366
      %v1463 = vunpack.c.l.b16 %v1367
      %v1464 = vunpack.c.l.b16 %v1368
      %v1465 = vunpack.c.l.b16 %v1369
      %v1466 = vunpack.c.l.b16 %v1370
      %v1467 = vunpack.c.l.b16 %v1371
      %v1468 = vunpack.c.l.b16 %v1372
      %v1469 = vunpack.c.l.b16 %v1373
      %v1470 = vunpack.c.l.b16 %v1374
      %v1471 = vunpack.c.l.b16 %v1375
      %v1472 = vunpack.c.l.b16 %v1376
      %v1473 = vunpack.c.l.b16 %v1377
      %v1474 = vunpack.c.l.b16 %v1378
      %v1475 = vunpack.c.l.b16 %v1379
      %v1476 = vunpack.c.l.b16 %v1380
      %v1477 = vunpack.c.l.b16 %v1381
      %v1478 = vunpack.c.l.b16 %v1382
      %v1479 = vunpack.c.l.b16 %v1383
      %v1480 = vunpack.c.l.b16 %v1384
      %v1481 = vunpack.c.l.b16 %v1385
      %v1482 = vunpack.c.l.b16 %v1386
      %v1483 = vunpack.c.l.b16 %v1387
      %v1484 = vpack.c.b16 %v1437, %v1436
      %v1485 = vpack.c.b16 %v1439, %v1438
      %v1486 = vpack.c.b16 %v1441, %v1440
      %v1487 = vpack.c.b16 %v1443, %v1442
      %v1488 = vpack.c.b16 %v1445, %v1444
      %v1489 = vpack.c.b16 %v1447, %v1446
      %v1490 = vpack.c.b16 %v1449, %v1448
      %v1491 = vpack.c.b16 %v1451, %v1450
      %v1492 = vpack.c.b16 %v1453, %v1452
      %v1493 = vpack.c.b16 %v1455, %v1454
      %v1494 = vpack.c.b16 %v1457, %v1456
      %v1495 = vpack.c.b16 %v1459, %v1458
      %v1496 = vpack.c.b16 %v1461, %v1460
      %v1497 = vpack.c.b16 %v1463, %v1462
      %v1498 = vpack.c.b16 %v1465, %v1464
      %v1499 = vpack.c.b16 %v1467, %v1466
      %v1500 = vpack.c.b16 %v1469, %v1468
      %v1501 = vpack.c.b16 %v1471, %v1470
      %v1502 = vpack.c.b16 %v1473, %v1472
      %v1503 = vpack.c.b16 %v1475, %v1474
      %v1504 = vpack.c.b16 %v1477, %v1476
      %v1505 = vpack.c.b16 %v1479, %v1478
      %v1506 = vpack.c.b16 %v1481, %v1480
      %v1507 = vpack.c.b16 %v1483, %v1482
      %1532 = vmatprep.subr.bf16.mxu0 0
      %1533 = vmatpush1.bf16.msra.mxu0 %v1484
      %1534 = vmatprep.subr.bf16.mxu0 0
      %1535 = vmatpush1.bf16.msra.mxu0 %v1485
      %1536 = vmatprep.subr.bf16.mxu0 0
      %1537 = vmatpush1.bf16.msra.mxu0 %v1486
      %1538 = vmatprep.subr.bf16.mxu0 0
      %1539 = vmatpush1.bf16.msra.mxu0 %v1487
      %1540 = vmatprep.subr.bf16.mxu0 0
      %1541 = vmatpush1.bf16.msra.mxu0 %v1488
      %1542 = vmatprep.subr.bf16.mxu0 0
      %1543 = vmatpush1.bf16.msra.mxu0 %v1489
      %1544 = vmatprep.subr.bf16.mxu0 0
      %1545 = vmatpush1.bf16.msra.mxu0 %v1490
      %1546 = vmatprep.subr.bf16.mxu0 0
      %1547 = vmatpush1.bf16.msra.mxu0 %v1491
      %1548 = vmatprep.subr.bf16.mxu0 0
      %1549 = vmatpush1.bf16.msra.mxu0 %v1492
      %1550 = vmatprep.subr.bf16.mxu0 0
      %1551 = vmatpush1.bf16.msra.mxu0 %v1493
      %1552 = vmatprep.subr.bf16.mxu0 0
      %1553 = vmatpush1.bf16.msra.mxu0 %v1494
      %1554 = vmatprep.subr.bf16.mxu0 0
      %1555 = vmatpush1.bf16.msra.mxu0 %v1495
      %1556 = vmatprep.subr.bf16.mxu0 0
      %1557 = vmatpush1.bf16.msra.mxu0 %v1496
      %1558 = vmatprep.subr.bf16.mxu0 0
      %1559 = vmatpush1.bf16.msra.mxu0 %v1497
      %1560 = vmatprep.subr.bf16.mxu0 0
      %1561 = vmatpush1.bf16.msra.mxu0 %v1498
      %1562 = vmatprep.subr.bf16.mxu0 0
      %1563 = vmatpush1.bf16.msra.mxu0 %v1499
      %1564 = vmatprep.mubr.bf16.mxu0 %v1307
      %1565 = vmatmul.mubr.bf16.gmra.mrb[0].mxu0 %v1283
      %v1566 = vpop.f32.mrb[0].mxu0
      %v1567 = vadd.f32 0.0, %v1566
      %v1568 = vpop.f32.mrb[0].mxu0
      %v1569 = vpop.f32.mrb[0].mxu0
      %v1570 = vadd.f32 0.0, %v1569
      %v1571 = vpop.f32.mrb[0].mxu0
      %1572 = vmatprep.mubr.bf16.mxu0 %v1308
      %1573 = vmatmul.mubr.bf16.gmra.mrb[0].mxu0 %v1284
      %v1574 = vpop.f32.mrb[0].mxu0
      %v1575 = vadd.f32 0.0, %v1574
      %v1576 = vpop.f32.mrb[0].mxu0
      %v1577 = vpop.f32.mrb[0].mxu0
      %v1578 = vadd.f32 0.0, %v1577
      %v1579 = vpop.f32.mrb[0].mxu0
      %1580 = vmatprep.mubr.bf16.mxu0 %v1309
      %1581 = vmatmul.mubr.bf16.gmra.mrb[0].mxu0 %v1285
      %v1582 = vpop.f32.mrb[0].mxu0
      %v1583 = vadd.f32 0.0, %v1582
      %v1584 = vpop.f32.mrb[0].mxu0
      %v1585 = vpop.f32.mrb[0].mxu0
      %v1586 = vadd.f32 0.0, %v1585
      %v1587 = vpop.f32.mrb[0].mxu0
      %1588 = vmatprep.mubr.bf16.mxu0 %v1310
      %1589 = vmatmul.mubr.bf16.gmra.mrb[0].mxu0 %v1286
      %v1590 = vpop.f32.mrb[0].mxu0
      %v1591 = vadd.f32 0.0, %v1590
      %v1592 = vpop.f32.mrb[0].mxu0
      %v1593 = vpop.f32.mrb[0].mxu0
      %v1594 = vadd.f32 0.0, %v1593
      %v1595 = vpop.f32.mrb[0].mxu0
      %1596 = vmatprep.mubr.bf16.mxu0 %v1311
      %1597 = vmatmul.mubr.bf16.gmra.mrb[0].mxu0 %v1287
      %v1598 = vpop.f32.mrb[0].mxu0
      %v1599 = vadd.f32 0.0, %v1598
      %v1600 = vpop.f32.mrb[0].mxu0
      %v1601 = vpop.f32.mrb[0].mxu0
      %v1602 = vadd.f32 0.0, %v1601
      %v1603 = vpop.f32.mrb[0].mxu0
      %1604 = vmatprep.mubr.bf16.mxu0 %v1312
      %1605 = vmatmul.mubr.bf16.gmra.mrb[0].mxu0 %v1288
      %v1606 = vpop.f32.mrb[0].mxu0
      %v1607 = vadd.f32 0.0, %v1606
      %v1608 = vpop.f32.mrb[0].mxu0
      %v1609 = vpop.f32.mrb[0].mxu0
      %v1610 = vadd.f32 0.0, %v1609
      %v1611 = vpop.f32.mrb[0].mxu0
      %1612 = vmatprep.mubr.bf16.mxu0 %v1313
      %1613 = vmatmul.mubr.bf16.gmra.mrb[0].mxu0 %v1289
      %v1614 = vpop.f32.mrb[0].mxu0
      %v1615 = vadd.f32 0.0, %v1614
      %v1616 = vpop.f32.mrb[0].mxu0
      %v1617 = vpop.f32.mrb[0].mxu0
      %v1618 = vadd.f32 0.0, %v1617
      %v1619 = vpop.f32.mrb[0].mxu0
      %1620 = vmatprep.mubr.bf16.mxu0 %v1314
      %1621 = vmatmul.mubr.bf16.gmra.mrb[0].mxu0 %v1290
      %v1622 = vpop.f32.mrb[0].mxu0
      %v1623 = vadd.f32 0.0, %v1622
      %v1624 = vpop.f32.mrb[0].mxu0
      %v1625 = vpop.f32.mrb[0].mxu0
      %v1626 = vadd.f32 0.0, %v1625
      %v1627 = vpop.f32.mrb[0].mxu0
      %1628 = vdwg.mxu0
      %1629 = vmatprep.subr.bf16.mxu0 0
      %1630 = vmatpush1.bf16.msra.mxu0 %v1500
      %1631 = vmatprep.subr.bf16.mxu0 0
      %1632 = vmatpush1.bf16.msra.mxu0 %v1501
      %1633 = vmatprep.subr.bf16.mxu0 0
      %1634 = vmatpush1.bf16.msra.mxu0 %v1502
      %1635 = vmatprep.subr.bf16.mxu0 0
      %1636 = vmatpush1.bf16.msra.mxu0 %v1503
      %1637 = vmatprep.subr.bf16.mxu0 0
      %1638 = vmatpush1.bf16.msra.mxu0 %v1504
      %1639 = vmatprep.subr.bf16.mxu0 0
      %1640 = vmatpush1.bf16.msra.mxu0 %v1505
      %1641 = vmatprep.subr.bf16.mxu0 0
      %1642 = vmatpush1.bf16.msra.mxu0 %v1506
      %1643 = vmatprep.subr.bf16.mxu0 0
      %1644 = vmatpush1.bf16.msra.mxu0 %v1507
      %1645 = vmatprep.subr.bf16.mxu0 0
      %1646 = vmatpush1.bf16.msra.mxu0 0
      %1647 = vmatprep.subr.bf16.mxu0 0
      %1648 = vmatpush1.bf16.msra.mxu0 0
      %1649 = vmatprep.subr.bf16.mxu0 0
      %1650 = vmatpush1.bf16.msra.mxu0 0
      %1651 = vmatprep.subr.bf16.mxu0 0
      %1652 = vmatpush1.bf16.msra.mxu0 0
      %1653 = vmatprep.subr.bf16.mxu0 0
      %1654 = vmatpush1.bf16.msra.mxu0 0
      %1655 = vmatprep.subr.bf16.mxu0 0
      %1656 = vmatpush1.bf16.msra.mxu0 0
      %1657 = vmatprep.subr.bf16.mxu0 0
      %1658 = vmatpush1.bf16.msra.mxu0 0
      %1659 = vmatprep.subr.bf16.mxu0 0
      %1660 = vmatpush1.bf16.msra.mxu0 0
      %1661 = vmatprep.mubr.bf16.mxu0 0
      %1662 = vmatmul.mubr.bf16.gmra.mrb[0].mxu0 %v1331
      %v1663 = vpop.f32.mrb[0].mxu0
      %v1664 = vadd.f32 %v1567, %v1663
      %v1665 = vpop.f32.mrb[0].mxu0
      %v1666 = vpop.f32.mrb[0].mxu0
      %v1667 = vadd.f32 %v1570, %v1666
      %v1668 = vpop.f32.mrb[0].mxu0
      %1669 = vmatprep.mubr.bf16.mxu0 0
      %1670 = vmatmul.mubr.bf16.gmra.mrb[0].mxu0 %v1332
      %v1671 = vpop.f32.mrb[0].mxu0
      %v1672 = vadd.f32 %v1575, %v1671
      %v1673 = vpop.f32.mrb[0].mxu0
      %v1674 = vpop.f32.mrb[0].mxu0
      %v1675 = vadd.f32 %v1578, %v1674
      %v1676 = vpop.f32.mrb[0].mxu0
      %1677 = vmatprep.mubr.bf16.mxu0 0
      %1678 = vmatmul.mubr.bf16.gmra.mrb[0].mxu0 %v1333
      %v1679 = vpop.f32.mrb[0].mxu0
      %v1680 = vadd.f32 %v1583, %v1679
      %v1681 = vpop.f32.mrb[0].mxu0
      %v1682 = vpop.f32.mrb[0].mxu0
      %v1683 = vadd.f32 %v1586, %v1682
      %v1684 = vpop.f32.mrb[0].mxu0
      %1685 = vmatprep.mubr.bf16.mxu0 0
      %1686 = vmatmul.mubr.bf16.gmra.mrb[0].mxu0 %v1334
      %v1687 = vpop.f32.mrb[0].mxu0
      %v1688 = vadd.f32 %v1591, %v1687
      %v1689 = vpop.f32.mrb[0].mxu0
      %v1690 = vpop.f32.mrb[0].mxu0
      %v1691 = vadd.f32 %v1594, %v1690
      %v1692 = vpop.f32.mrb[0].mxu0
      %1693 = vmatprep.mubr.bf16.mxu0 0
      %1694 = vmatmul.mubr.bf16.gmra.mrb[0].mxu0 %v1335
      %v1695 = vpop.f32.mrb[0].mxu0
      %v1696 = vadd.f32 %v1599, %v1695
      %v1697 = vpop.f32.mrb[0].mxu0
      %v1698 = vpop.f32.mrb[0].mxu0
      %v1699 = vadd.f32 %v1602, %v1698
      %v1700 = vpop.f32.mrb[0].mxu0
      %1701 = vmatprep.mubr.bf16.mxu0 0
      %1702 = vmatmul.mubr.bf16.gmra.mrb[0].mxu0 %v1336
      %v1703 = vpop.f32.mrb[0].mxu0
      %v1704 = vadd.f32 %v1607, %v1703
      %v1705 = vpop.f32.mrb[0].mxu0
      %v1706 = vpop.f32.mrb[0].mxu0
      %v1707 = vadd.f32 %v1610, %v1706
      %v1708 = vpop.f32.mrb[0].mxu0
      %1709 = vmatprep.mubr.bf16.mxu0 0
      %1710 = vmatmul.mubr.bf16.gmra.mrb[0].mxu0 %v1337
      %v1711 = vpop.f32.mrb[0].mxu0
      %v1712 = vadd.f32 %v1615, %v1711
      %v1713 = vpop.f32.mrb[0].mxu0
      %v1714 = vpop.f32.mrb[0].mxu0
      %v1715 = vadd.f32 %v1618, %v1714
      %v1716 = vpop.f32.mrb[0].mxu0
      %1717 = vmatprep.mubr.bf16.mxu0 0
      %1718 = vmatmul.mubr.bf16.gmra.mrb[0].mxu0 %v1338
      %v1719 = vpop.f32.mrb[0].mxu0
      %v1720 = vadd.f32 %v1623, %v1719
      %v1721 = vpop.f32.mrb[0].mxu0
      %v1722 = vpop.f32.mrb[0].mxu0
      %v1723 = vadd.f32 %v1626, %v1722
      %v1724 = vpop.f32.mrb[0].mxu0
      %1725 = vdwg.mxu0
      %v1726 = vadd.f32 %v1204, %v1664
      %v1727 = vadd.f32 %v1207, %v1667
      %v1728 = vadd.f32 %v1212, %v1672
      %v1729 = vadd.f32 %v1215, %v1675
      %v1730 = vadd.f32 %v1220, %v1680
      %v1731 = vadd.f32 %v1223, %v1683
      %v1732 = vadd.f32 %v1228, %v1688
      %v1733 = vadd.f32 %v1231, %v1691
      %v1734 = vadd.f32 %v1236, %v1696
      %v1735 = vadd.f32 %v1239, %v1699
      %v1736 = vadd.f32 %v1244, %v1704
      %v1737 = vadd.f32 %v1247, %v1707
      %v1738 = vadd.f32 %v1252, %v1712
      %v1739 = vadd.f32 %v1255, %v1715
      %v1740 = vadd.f32 %v1260, %v1720
      %v1741 = vadd.f32 %v1263, %v1723
      %v1743 = vlaneseq
      %v1744 = vshrl.u32 %v1743, 7
      %v1745 = vsub.s32 0, %v1744
      %v1746 = vrot.slane %v226, %v1745
      %v1748 = vadd.f32 %v1726, %v1746
      %v1749 = vadd.f32 %v1727, %v1746
      %v1750 = vadd.f32 %v1728, %v1746
      %v1751 = vadd.f32 %v1729, %v1746
      %v1752 = vadd.f32 %v1730, %v1746
      %v1753 = vadd.f32 %v1731, %v1746
      %v1754 = vadd.f32 %v1732, %v1746
      %v1755 = vadd.f32 %v1733, %v1746
      %v1756 = vadd.f32 %v1734, %v1746
      %v1757 = vadd.f32 %v1735, %v1746
      %v1758 = vadd.f32 %v1736, %v1746
      %v1759 = vadd.f32 %v1737, %v1746
      %v1760 = vadd.f32 %v1738, %v1746
      %v1761 = vadd.f32 %v1739, %v1746
      %v1762 = vadd.f32 %v1740, %v1746
      %v1763 = vadd.f32 %v1741, %v1746
      %v1764 = vmax.f32 %v1748, 0.0
      %v1765 = vmax.f32 %v1749, 0.0
      %v1766 = vmax.f32 %v1750, 0.0
      %v1767 = vmax.f32 %v1751, 0.0
      %v1768 = vmax.f32 %v1752, 0.0
      %v1769 = vmax.f32 %v1753, 0.0
      %v1770 = vmax.f32 %v1754, 0.0
      %v1771 = vmax.f32 %v1755, 0.0
      %v1772 = vmax.f32 %v1756, 0.0
      %v1773 = vmax.f32 %v1757, 0.0
      %v1774 = vmax.f32 %v1758, 0.0
      %v1775 = vmax.f32 %v1759, 0.0
      %v1776 = vmax.f32 %v1760, 0.0
      %v1777 = vmax.f32 %v1761, 0.0
      %v1778 = vmax.f32 %v1762, 0.0
      %v1779 = vmax.f32 %v1763, 0.0
      %v1780 = vpack.c.bf16 %v1765, %v1764
      %v1781 = vpack.c.bf16 %v1767, %v1766
      %v1782 = vpack.c.bf16 %v1769, %v1768
      %v1783 = vpack.c.bf16 %v1771, %v1770
      %v1784 = vpack.c.bf16 %v1773, %v1772
      %v1785 = vpack.c.bf16 %v1775, %v1774
      %v1786 = vpack.c.bf16 %v1777, %v1776
      %v1787 = vpack.c.bf16 %v1779, %v1778
      %v1796 = vunpack.c.l.b16 %v1780
      %v1797 = vunpack.c.h.b16 %v1780
      %v1798 = vunpack.c.l.b16 %v1781
      %v1799 = vunpack.c.h.b16 %v1781
      %v1800 = vunpack.c.l.b16 %v1782
      %v1801 = vunpack.c.h.b16 %v1782
      %v1802 = vunpack.c.l.b16 %v1783
      %v1803 = vunpack.c.h.b16 %v1783
      %v1804 = vunpack.c.l.b16 %v1784
      %v1805 = vunpack.c.h.b16 %v1784
      %v1806 = vunpack.c.l.b16 %v1785
      %v1807 = vunpack.c.h.b16 %v1785
      %v1808 = vunpack.c.l.b16 %v1786
      %v1809 = vunpack.c.h.b16 %v1786
      %v1810 = vunpack.c.l.b16 %v1787
      %v1811 = vunpack.c.h.b16 %v1787
      %v1812 = vpack.c.b16 %v1796, %v1796
      %v1813 = vpack.c.b16 %v1797, %v1797
      %v1814 = vpack.c.b16 %v1798, %v1798
      %v1815 = vpack.c.b16 %v1799, %v1799
      %v1816 = vpack.c.b16 %v1800, %v1800
      %v1817 = vpack.c.b16 %v1801, %v1801
      %v1818 = vpack.c.b16 %v1802, %v1802
      %v1819 = vpack.c.b16 %v1803, %v1803
      %v1820 = vpack.c.b16 %v1804, %v1804
      %v1821 = vpack.c.b16 %v1805, %v1805
      %v1822 = vpack.c.b16 %v1806, %v1806
      %v1823 = vpack.c.b16 %v1807, %v1807
      %v1824 = vpack.c.b16 %v1808, %v1808
      %v1825 = vpack.c.b16 %v1809, %v1809
      %v1826 = vpack.c.b16 %v1810, %v1810
      %v1827 = vpack.c.b16 %v1811, %v1811
      %vm1828 = vsmask.f32 4368
      %vm1829 = vmor %vm236, %vm1828
      %v1831 = vshrl.u32 %v1812, 16
      %v1833 = vrot.slane %v1831, 7
      %v1834 = vshll.u32 %v1812, 16
      %v1836 = vor.u32 %v1833, %v1834
      %v1837 = vrot.slane %v1833, 4
      %v1839 = vshrl.u32 %v1813, 16
      %v1841 = vrot.slane %v1839, 7
      %v1842 = vshll.u32 %v1813, 16
      %v1844 = vor.u32 %v1841, %v1842
      %v1845 = vsel %vm1829, %v1837, %v1844
      %v1846 = vrot.slane %v1841, 4
      %v1848 = vshrl.u32 %v1814, 16
      %v1850 = vrot.slane %v1848, 7
      %v1851 = vshll.u32 %v1814, 16
      %v1853 = vor.u32 %v1850, %v1851
      %v1854 = vrot.slane %v1850, 4
      %v1856 = vshrl.u32 %v1815, 16
      %v1858 = vrot.slane %v1856, 7
      %v1859 = vshll.u32 %v1815, 16
      %v1861 = vor.u32 %v1858, %v1859
      %v1862 = vsel %vm1829, %v1854, %v1861
      %v1863 = vrot.slane %v1858, 4
      %v1865 = vshrl.u32 %v1816, 16
      %v1867 = vrot.slane %v1865, 7
      %v1868 = vshll.u32 %v1816, 16
      %v1870 = vor.u32 %v1867, %v1868
      %v1871 = vrot.slane %v1867, 4
      %v1873 = vshrl.u32 %v1817, 16
      %v1875 = vrot.slane %v1873, 7
      %v1876 = vshll.u32 %v1817, 16
      %v1878 = vor.u32 %v1875, %v1876
      %v1879 = vsel %vm1829, %v1871, %v1878
      %v1880 = vrot.slane %v1875, 4
      %v1882 = vshrl.u32 %v1818, 16
      %v1884 = vrot.slane %v1882, 7
      %v1885 = vshll.u32 %v1818, 16
      %v1887 = vor.u32 %v1884, %v1885
      %v1888 = vrot.slane %v1884, 4
      %v1890 = vshrl.u32 %v1819, 16
      %v1892 = vrot.slane %v1890, 7
      %v1893 = vshll.u32 %v1819, 16
      %v1895 = vor.u32 %v1892, %v1893
      %v1896 = vsel %vm1829, %v1888, %v1895
      %v1897 = vrot.slane %v1892, 4
      %v1899 = vshrl.u32 %v1820, 16
      %v1901 = vrot.slane %v1899, 7
      %v1902 = vshll.u32 %v1820, 16
      %v1904 = vor.u32 %v1901, %v1902
      %v1905 = vrot.slane %v1901, 4
      %v1907 = vshrl.u32 %v1821, 16
      %v1909 = vrot.slane %v1907, 7
      %v1910 = vshll.u32 %v1821, 16
      %v1912 = vor.u32 %v1909, %v1910
      %v1913 = vsel %vm1829, %v1905, %v1912
      %v1914 = vrot.slane %v1909, 4
      %v1916 = vshrl.u32 %v1822, 16
      %v1918 = vrot.slane %v1916, 7
      %v1919 = vshll.u32 %v1822, 16
      %v1921 = vor.u32 %v1918, %v1919
      %v1922 = vrot.slane %v1918, 4
      %v1924 = vshrl.u32 %v1823, 16
      %v1926 = vrot.slane %v1924, 7
      %v1927 = vshll.u32 %v1823, 16
      %v1929 = vor.u32 %v1926, %v1927
      %v1930 = vsel %vm1829, %v1922, %v1929
      %v1931 = vrot.slane %v1926, 4
      %v1933 = vshrl.u32 %v1824, 16
      %v1935 = vrot.slane %v1933, 7
      %v1936 = vshll.u32 %v1824, 16
      %v1938 = vor.u32 %v1935, %v1936
      %v1939 = vrot.slane %v1935, 4
      %v1941 = vshrl.u32 %v1825, 16
      %v1943 = vrot.slane %v1941, 7
      %v1944 = vshll.u32 %v1825, 16
      %v1946 = vor.u32 %v1943, %v1944
      %v1947 = vsel %vm1829, %v1939, %v1946
      %v1948 = vrot.slane %v1943, 4
      %v1950 = vshrl.u32 %v1826, 16
      %v1952 = vrot.slane %v1950, 7
      %v1953 = vshll.u32 %v1826, 16
      %v1955 = vor.u32 %v1952, %v1953
      %v1956 = vrot.slane %v1952, 4
      %v1958 = vshrl.u32 %v1827, 16
      %v1960 = vrot.slane %v1958, 7
      %v1961 = vshll.u32 %v1827, 16
      %v1963 = vor.u32 %v1960, %v1961
      %v1964 = vsel %vm1829, %v1956, %v1963
      %v1965 = vrot.slane %v1960, 4
      %s1990 = scalar_lea.vmem [#allocation2], 12
      %vm1991 = vcmask 1043456
      %vm1992 = vmand %vm1991, %vm292
      %v1993 = vld [vmem:[%s1990] sm:$0xf]
      %v1994 = vsel %vm1992, %v1836, %v1993
      %1995 = vst [vmem:[%s1990] sm:$0xf] %v1994
      %1996 = vst [vmem:[%s1990 + $0x4] sm:$0xf] %v1845
      %v1997 = vld [vmem:[%s1990 + $0x8] sm:$0x1]
      %v1998 = vsel %vm237, %v1846, %v1997
      %1999 = vst [vmem:[%s1990 + $0x8] sm:$0x1] %v1998
      %v2000 = vld [vmem:[%s1990 + $0xc] sm:$0xf]
      %v2001 = vsel %vm1992, %v1853, %v2000
      %2002 = vst [vmem:[%s1990 + $0xc] sm:$0xf] %v2001
      %2003 = vst [vmem:[%s1990 + $0x10] sm:$0xf] %v1862
      %v2004 = vld [vmem:[%s1990 + $0x14] sm:$0x1]
      %v2005 = vsel %vm237, %v1863, %v2004
      %2006 = vst [vmem:[%s1990 + $0x14] sm:$0x1] %v2005
      %v2007 = vld [vmem:[%s1990 + $0x18] sm:$0xf]
      %v2008 = vsel %vm1992, %v1870, %v2007
      %2009 = vst [vmem:[%s1990 + $0x18] sm:$0xf] %v2008
      %2010 = vst [vmem:[%s1990 + $0x1c] sm:$0xf] %v1879
      %v2011 = vld [vmem:[%s1990 + $0x20] sm:$0x1]
      %v2012 = vsel %vm237, %v1880, %v2011
      %2013 = vst [vmem:[%s1990 + $0x20] sm:$0x1] %v2012
      %v2014 = vld [vmem:[%s1990 + $0x24] sm:$0xf]
      %v2015 = vsel %vm1992, %v1887, %v2014
      %2016 = vst [vmem:[%s1990 + $0x24] sm:$0xf] %v2015
      %2017 = vst [vmem:[%s1990 + $0x28] sm:$0xf] %v1896
      %v2018 = vld [vmem:[%s1990 + $0x2c] sm:$0x1]
      %v2019 = vsel %vm237, %v1897, %v2018
      %2020 = vst [vmem:[%s1990 + $0x2c] sm:$0x1] %v2019
      %v2021 = vld [vmem:[%s1990 + $0x30] sm:$0xf]
      %v2022 = vsel %vm1992, %v1904, %v2021
      %2023 = vst [vmem:[%s1990 + $0x30] sm:$0xf] %v2022
      %2024 = vst [vmem:[%s1990 + $0x34] sm:$0xf] %v1913
      %v2025 = vld [vmem:[%s1990 + $0x38] sm:$0x1]
      %v2026 = vsel %vm237, %v1914, %v2025
      %2027 = vst [vmem:[%s1990 + $0x38] sm:$0x1] %v2026
      %v2028 = vld [vmem:[%s1990 + $0x3c] sm:$0xf]
      %v2029 = vsel %vm1992, %v1921, %v2028
      %2030 = vst [vmem:[%s1990 + $0x3c] sm:$0xf] %v2029
      %2031 = vst [vmem:[%s1990 + $0x40] sm:$0xf] %v1930
      %v2032 = vld [vmem:[%s1990 + $0x44] sm:$0x1]
      %v2033 = vsel %vm237, %v1931, %v2032
      %2034 = vst [vmem:[%s1990 + $0x44] sm:$0x1] %v2033
      %v2035 = vld [vmem:[%s1990 + $0x48] sm:$0xf]
      %v2036 = vsel %vm1992, %v1938, %v2035
      %2037 = vst [vmem:[%s1990 + $0x48] sm:$0xf] %v2036
      %2038 = vst [vmem:[%s1990 + $0x4c] sm:$0xf] %v1947
      %v2039 = vld [vmem:[%s1990 + $0x50] sm:$0x1]
      %v2040 = vsel %vm237, %v1948, %v2039
      %2041 = vst [vmem:[%s1990 + $0x50] sm:$0x1] %v2040
      %v2042 = vld [vmem:[%s1990 + $0x54] sm:$0xf]
      %v2043 = vsel %vm1992, %v1955, %v2042
      %2044 = vst [vmem:[%s1990 + $0x54] sm:$0xf] %v2043
      %2045 = vst [vmem:[%s1990 + $0x58] sm:$0xf] %v1964
      %v2046 = vld [vmem:[%s1990 + $0x5c] sm:$0x1]
      %v2047 = vsel %vm237, %v1965, %v2046
      %2048 = vst [vmem:[%s1990 + $0x5c] sm:$0x1] %v2047
      %s2049 = scalar_lea.vmem %s219, 192
      %v2050 = vld [vmem:[%s2049] sm:$0xff]
      %v2051 = vld [vmem:[%s2049 + $0x8] sm:$0xff]
      %v2052 = vld [vmem:[%s2049 + $0x18] sm:$0xff]
      %v2053 = vld [vmem:[%s2049 + $0x20] sm:$0xff]
      %v2054 = vld [vmem:[%s2049 + $0x30] sm:$0xff]
      %v2055 = vld [vmem:[%s2049 + $0x38] sm:$0xff]
      %v2056 = vld [vmem:[%s2049 + $0x48] sm:$0xff]
      %v2057 = vld [vmem:[%s2049 + $0x50] sm:$0xff]
      %v2058 = vld [vmem:[%s2049 + $0x60] sm:$0xff]
      %v2059 = vld [vmem:[%s2049 + $0x68] sm:$0xff]
      %v2060 = vld [vmem:[%s2049 + $0x78] sm:$0xff]
      %v2061 = vld [vmem:[%s2049 + $0x80] sm:$0xff]
      %v2062 = vld [vmem:[%s2049 + $0x90] sm:$0xff]
      %v2063 = vld [vmem:[%s2049 + $0x98] sm:$0xff]
      %v2064 = vld [vmem:[%s2049 + $0xa8] sm:$0xff]
      %v2065 = vld [vmem:[%s2049 + $0xb0] sm:$0xff]
      %v2066 = vpack.c.bf16 %v2051, %v2050
      %v2067 = vpack.c.bf16 %v2053, %v2052
      %v2068 = vpack.c.bf16 %v2055, %v2054
      %v2069 = vpack.c.bf16 %v2057, %v2056
      %v2070 = vpack.c.bf16 %v2059, %v2058
      %v2071 = vpack.c.bf16 %v2061, %v2060
      %v2072 = vpack.c.bf16 %v2063, %v2062
      %v2073 = vpack.c.bf16 %v2065, %v2064
      %v2074 = vld [vmem:[%s2049 + $0x1] sm:$0xff]
      %v2075 = vld [vmem:[%s2049 + $0x9] sm:$0xff]
      %v2076 = vld [vmem:[%s2049 + $0x19] sm:$0xff]
      %v2077 = vld [vmem:[%s2049 + $0x21] sm:$0xff]
      %v2078 = vld [vmem:[%s2049 + $0x31] sm:$0xff]
      %v2079 = vld [vmem:[%s2049 + $0x39] sm:$0xff]
      %v2080 = vld [vmem:[%s2049 + $0x49] sm:$0xff]
      %v2081 = vld [vmem:[%s2049 + $0x51] sm:$0xff]
      %v2082 = vld [vmem:[%s2049 + $0x61] sm:$0xff]
      %v2083 = vld [vmem:[%s2049 + $0x69] sm:$0xff]
      %v2084 = vld [vmem:[%s2049 + $0x79] sm:$0xff]
      %v2085 = vld [vmem:[%s2049 + $0x81] sm:$0xff]
      %v2086 = vld [vmem:[%s2049 + $0x91] sm:$0xff]
      %v2087 = vld [vmem:[%s2049 + $0x99] sm:$0xff]
      %v2088 = vld [vmem:[%s2049 + $0xa9] sm:$0xff]
      %v2089 = vld [vmem:[%s2049 + $0xb1] sm:$0xff]
      %v2090 = vpack.c.bf16 %v2075, %v2074
      %v2091 = vpack.c.bf16 %v2077, %v2076
      %v2092 = vpack.c.bf16 %v2079, %v2078
      %v2093 = vpack.c.bf16 %v2081, %v2080
      %v2094 = vpack.c.bf16 %v2083, %v2082
      %v2095 = vpack.c.bf16 %v2085, %v2084
      %v2096 = vpack.c.bf16 %v2087, %v2086
      %v2097 = vpack.c.bf16 %v2089, %v2088
      %v2098 = vld [vmem:[%s2049 + $0x2] sm:$0xff]
      %v2099 = vld [vmem:[%s2049 + $0xa] sm:$0xff]
      %v2100 = vld [vmem:[%s2049 + $0x1a] sm:$0xff]
      %v2101 = vld [vmem:[%s2049 + $0x22] sm:$0xff]
      %v2102 = vld [vmem:[%s2049 + $0x32] sm:$0xff]
      %v2103 = vld [vmem:[%s2049 + $0x3a] sm:$0xff]
      %v2104 = vld [vmem:[%s2049 + $0x4a] sm:$0xff]
      %v2105 = vld [vmem:[%s2049 + $0x52] sm:$0xff]
      %v2106 = vld [vmem:[%s2049 + $0x62] sm:$0xff]
      %v2107 = vld [vmem:[%s2049 + $0x6a] sm:$0xff]
      %v2108 = vld [vmem:[%s2049 + $0x7a] sm:$0xff]
      %v2109 = vld [vmem:[%s2049 + $0x82] sm:$0xff]
      %v2110 = vld [vmem:[%s2049 + $0x92] sm:$0xff]
      %v2111 = vld [vmem:[%s2049 + $0x9a] sm:$0xff]
      %v2112 = vld [vmem:[%s2049 + $0xaa] sm:$0xff]
      %v2113 = vld [vmem:[%s2049 + $0xb2] sm:$0xff]
      %v2114 = vpack.c.bf16 %v2099, %v2098
      %v2115 = vpack.c.bf16 %v2101, %v2100
      %v2116 = vpack.c.bf16 %v2103, %v2102
      %v2117 = vpack.c.bf16 %v2105, %v2104
      %v2118 = vpack.c.bf16 %v2107, %v2106
      %v2119 = vpack.c.bf16 %v2109, %v2108
      %v2120 = vpack.c.bf16 %v2111, %v2110
      %v2121 = vpack.c.bf16 %v2113, %v2112
      %v2122 = vld [vmem:[%s1] sm:$0xf]
      %v2123 = vld [vmem:[%s1 + $0x4] sm:$0xf]
      %v2124 = vld [vmem:[%s1 + $0x8] sm:$0xf]
      %v2125 = vld [vmem:[%s1 + $0xc] sm:$0xf]
      %v2126 = vld [vmem:[%s1 + $0x10] sm:$0xf]
      %v2127 = vld [vmem:[%s1 + $0x14] sm:$0xf]
      %v2128 = vld [vmem:[%s1 + $0x18] sm:$0xf]
      %v2129 = vld [vmem:[%s1 + $0x1c] sm:$0xf]
      %v2130 = vld [vmem:[%s1 + $0x20] sm:$0xf]
      %v2131 = vld [vmem:[%s1 + $0x24] sm:$0xf]
      %v2132 = vld [vmem:[%s1 + $0x28] sm:$0xf]
      %v2133 = vld [vmem:[%s1 + $0x2c] sm:$0xf]
      %v2134 = vld [vmem:[%s1 + $0x30] sm:$0xf]
      %v2135 = vld [vmem:[%s1 + $0x34] sm:$0xf]
      %v2136 = vld [vmem:[%s1 + $0x38] sm:$0xf]
      %v2137 = vld [vmem:[%s1 + $0x3c] sm:$0xf]
      %v2138 = vld [vmem:[%s1 + $0x40] sm:$0xf]
      %v2139 = vld [vmem:[%s1 + $0x44] sm:$0xf]
      %v2140 = vld [vmem:[%s1 + $0x48] sm:$0xf]
      %v2141 = vld [vmem:[%s1 + $0x4c] sm:$0xf]
      %v2142 = vld [vmem:[%s1 + $0x50] sm:$0xf]
      %v2143 = vld [vmem:[%s1 + $0x54] sm:$0xf]
      %v2144 = vld [vmem:[%s1 + $0x58] sm:$0xf]
      %v2145 = vld [vmem:[%s1 + $0x5c] sm:$0xf]
      %v2146 = vld [vmem:[%s1 + $0x60] sm:$0xf]
      %v2147 = vld [vmem:[%s1 + $0x64] sm:$0xf]
      %v2148 = vld [vmem:[%s1 + $0x68] sm:$0xf]
      %v2149 = vld [vmem:[%s1 + $0x6c] sm:$0xf]
      %v2150 = vld [vmem:[%s1 + $0x70] sm:$0xf]
      %v2151 = vld [vmem:[%s1 + $0x74] sm:$0xf]
      %v2152 = vld [vmem:[%s1 + $0x78] sm:$0xf]
      %v2153 = vld [vmem:[%s1 + $0x7c] sm:$0xf]
      %v2154 = vld [vmem:[%s1 + $0x80] sm:$0xf]
      %v2155 = vld [vmem:[%s1 + $0x84] sm:$0xf]
      %v2156 = vld [vmem:[%s1 + $0x88] sm:$0xf]
      %v2157 = vld [vmem:[%s1 + $0x8c] sm:$0xf]
      %v2158 = vld [vmem:[%s1 + $0x90] sm:$0xf]
      %v2159 = vld [vmem:[%s1 + $0x94] sm:$0xf]
      %v2160 = vld [vmem:[%s1 + $0x98] sm:$0xf]
      %v2161 = vld [vmem:[%s1 + $0x9c] sm:$0xf]
      %v2162 = vld [vmem:[%s1 + $0xa0] sm:$0xf]
      %v2163 = vld [vmem:[%s1 + $0xa4] sm:$0xf]
      %v2164 = vld [vmem:[%s1 + $0xa8] sm:$0xf]
      %v2165 = vld [vmem:[%s1 + $0xac] sm:$0xf]
      %v2166 = vld [vmem:[%s1 + $0xb0] sm:$0xf]
      %v2167 = vld [vmem:[%s1 + $0xb4] sm:$0xf]
      %v2168 = vld [vmem:[%s1 + $0xb8] sm:$0xf]
      %v2169 = vld [vmem:[%s1 + $0xbc] sm:$0xf]
      %s2170 = scalar_lea.vmem %s219, 216
      %v2171 = vld [vmem:[%s2170] sm:$0xff]
      %v2172 = vld [vmem:[%s2170 + $0x8] sm:$0xff]
      %v2173 = vld [vmem:[%s2170 + $0x18] sm:$0xff]
      %v2174 = vld [vmem:[%s2170 + $0x20] sm:$0xff]
      %v2175 = vld [vmem:[%s2170 + $0x30] sm:$0xff]
      %v2176 = vld [vmem:[%s2170 + $0x38] sm:$0xff]
      %v2177 = vld [vmem:[%s2170 + $0x48] sm:$0xff]
      %v2178 = vld [vmem:[%s2170 + $0x50] sm:$0xff]
      %v2179 = vld [vmem:[%s2170 + $0x60] sm:$0xff]
      %v2180 = vld [vmem:[%s2170 + $0x68] sm:$0xff]
      %v2181 = vld [vmem:[%s2170 + $0x78] sm:$0xff]
      %v2182 = vld [vmem:[%s2170 + $0x80] sm:$0xff]
      %v2183 = vld [vmem:[%s2170 + $0x90] sm:$0xff]
      %v2184 = vld [vmem:[%s2170 + $0x98] sm:$0xff]
      %v2185 = vld [vmem:[%s2170 + $0xa8] sm:$0xff]
      %v2186 = vld [vmem:[%s2170 + $0xb0] sm:$0xff]
      %v2187 = vpack.c.bf16 %v2172, %v2171
      %v2188 = vpack.c.bf16 %v2174, %v2173
      %v2189 = vpack.c.bf16 %v2176, %v2175
      %v2190 = vpack.c.bf16 %v2178, %v2177
      %v2191 = vpack.c.bf16 %v2180, %v2179
      %v2192 = vpack.c.bf16 %v2182, %v2181
      %v2193 = vpack.c.bf16 %v2184, %v2183
      %v2194 = vpack.c.bf16 %v2186, %v2185
      %v2195 = vld [vmem:[%s2170 + $0x1] sm:$0xff]
      %v2196 = vld [vmem:[%s2170 + $0x9] sm:$0xff]
      %v2197 = vld [vmem:[%s2170 + $0x19] sm:$0xff]
      %v2198 = vld [vmem:[%s2170 + $0x21] sm:$0xff]
      %v2199 = vld [vmem:[%s2170 + $0x31] sm:$0xff]
      %v2200 = vld [vmem:[%s2170 + $0x39] sm:$0xff]
      %v2201 = vld [vmem:[%s2170 + $0x49] sm:$0xff]
      %v2202 = vld [vmem:[%s2170 + $0x51] sm:$0xff]
      %v2203 = vld [vmem:[%s2170 + $0x61] sm:$0xff]
      %v2204 = vld [vmem:[%s2170 + $0x69] sm:$0xff]
      %v2205 = vld [vmem:[%s2170 + $0x79] sm:$0xff]
      %v2206 = vld [vmem:[%s2170 + $0x81] sm:$0xff]
      %v2207 = vld [vmem:[%s2170 + $0x91] sm:$0xff]
      %v2208 = vld [vmem:[%s2170 + $0x99] sm:$0xff]
      %v2209 = vld [vmem:[%s2170 + $0xa9] sm:$0xff]
      %v2210 = vld [vmem:[%s2170 + $0xb1] sm:$0xff]
      %v2211 = vpack.c.bf16 %v2196, %v2195
      %v2212 = vpack.c.bf16 %v2198, %v2197
      %v2213 = vpack.c.bf16 %v2200, %v2199
      %v2214 = vpack.c.bf16 %v2202, %v2201
      %v2215 = vpack.c.bf16 %v2204, %v2203
      %v2216 = vpack.c.bf16 %v2206, %v2205
      %v2217 = vpack.c.bf16 %v2208, %v2207
      %v2218 = vpack.c.bf16 %v2210, %v2209
      %v2219 = vld [vmem:[%s2170 + $0x2] sm:$0xff]
      %v2220 = vld [vmem:[%s2170 + $0xa] sm:$0xff]
      %v2221 = vld [vmem:[%s2170 + $0x1a] sm:$0xff]
      %v2222 = vld [vmem:[%s2170 + $0x22] sm:$0xff]
      %v2223 = vld [vmem:[%s2170 + $0x32] sm:$0xff]
      %v2224 = vld [vmem:[%s2170 + $0x3a] sm:$0xff]
      %v2225 = vld [vmem:[%s2170 + $0x4a] sm:$0xff]
      %v2226 = vld [vmem:[%s2170 + $0x52] sm:$0xff]
      %v2227 = vld [vmem:[%s2170 + $0x62] sm:$0xff]
      %v2228 = vld [vmem:[%s2170 + $0x6a] sm:$0xff]
      %v2229 = vld [vmem:[%s2170 + $0x7a] sm:$0xff]
      %v2230 = vld [vmem:[%s2170 + $0x82] sm:$0xff]
      %v2231 = vld [vmem:[%s2170 + $0x92] sm:$0xff]
      %v2232 = vld [vmem:[%s2170 + $0x9a] sm:$0xff]
      %v2233 = vld [vmem:[%s2170 + $0xaa] sm:$0xff]
      %v2234 = vld [vmem:[%s2170 + $0xb2] sm:$0xff]
      %v2235 = vpack.c.bf16 %v2220, %v2219
      %v2236 = vpack.c.bf16 %v2222, %v2221
      %v2237 = vpack.c.bf16 %v2224, %v2223
      %v2238 = vpack.c.bf16 %v2226, %v2225
      %v2239 = vpack.c.bf16 %v2228, %v2227
      %v2240 = vpack.c.bf16 %v2230, %v2229
      %v2241 = vpack.c.bf16 %v2232, %v2231
      %v2242 = vpack.c.bf16 %v2234, %v2233
      %v2243 = vld [vmem:[%s541] sm:$0xf]
      %v2244 = vld [vmem:[%s541 + $0x4] sm:$0xf]
      %v2245 = vld [vmem:[%s541 + $0x8] sm:$0xf]
      %v2246 = vld [vmem:[%s541 + $0xc] sm:$0xf]
      %v2247 = vld [vmem:[%s541 + $0x10] sm:$0xf]
      %v2248 = vld [vmem:[%s541 + $0x14] sm:$0xf]
      %v2249 = vld [vmem:[%s541 + $0x18] sm:$0xf]
      %v2250 = vld [vmem:[%s541 + $0x1c] sm:$0xf]
      %v2251 = vld [vmem:[%s541 + $0x20] sm:$0xf]
      %v2252 = vld [vmem:[%s541 + $0x24] sm:$0xf]
      %v2253 = vld [vmem:[%s541 + $0x28] sm:$0xf]
      %v2254 = vld [vmem:[%s541 + $0x2c] sm:$0xf]
      %v2255 = vld [vmem:[%s541 + $0x30] sm:$0xf]
      %v2256 = vld [vmem:[%s541 + $0x34] sm:$0xf]
      %v2257 = vld [vmem:[%s541 + $0x38] sm:$0xf]
      %v2258 = vld [vmem:[%s541 + $0x3c] sm:$0xf]
      %v2259 = vld [vmem:[%s541 + $0x40] sm:$0xf]
      %v2260 = vld [vmem:[%s541 + $0x44] sm:$0xf]
      %v2261 = vld [vmem:[%s541 + $0x48] sm:$0xf]
      %v2262 = vld [vmem:[%s541 + $0x4c] sm:$0xf]
      %v2263 = vld [vmem:[%s541 + $0x50] sm:$0xf]
      %v2264 = vld [vmem:[%s541 + $0x54] sm:$0xf]
      %v2265 = vld [vmem:[%s541 + $0x58] sm:$0xf]
      %v2266 = vld [vmem:[%s541 + $0x5c] sm:$0xf]
      %v2267 = vld [vmem:[%s541 + $0x60] sm:$0xf]
      %v2268 = vld [vmem:[%s541 + $0x64] sm:$0xf]
      %v2269 = vld [vmem:[%s541 + $0x68] sm:$0xf]
      %v2270 = vld [vmem:[%s541 + $0x6c] sm:$0xf]
      %v2271 = vld [vmem:[%s541 + $0x70] sm:$0xf]
      %v2272 = vld [vmem:[%s541 + $0x74] sm:$0xf]
      %v2273 = vld [vmem:[%s541 + $0x78] sm:$0xf]
      %v2274 = vld [vmem:[%s541 + $0x7c] sm:$0xf]
      %v2275 = vld [vmem:[%s541 + $0x80] sm:$0xf]
      %v2276 = vld [vmem:[%s541 + $0x84] sm:$0xf]
      %v2277 = vld [vmem:[%s541 + $0x88] sm:$0xf]
      %v2278 = vld [vmem:[%s541 + $0x8c] sm:$0xf]
      %v2279 = vld [vmem:[%s541 + $0x90] sm:$0xf]
      %v2280 = vld [vmem:[%s541 + $0x94] sm:$0xf]
      %v2281 = vld [vmem:[%s541 + $0x98] sm:$0xf]
      %v2282 = vld [vmem:[%s541 + $0x9c] sm:$0xf]
      %v2283 = vld [vmem:[%s541 + $0xa0] sm:$0xf]
      %v2284 = vld [vmem:[%s541 + $0xa4] sm:$0xf]
      %v2285 = vld [vmem:[%s541 + $0xa8] sm:$0xf]
      %v2286 = vld [vmem:[%s541 + $0xac] sm:$0xf]
      %v2287 = vld [vmem:[%s541 + $0xb0] sm:$0xf]
      %v2288 = vld [vmem:[%s541 + $0xb4] sm:$0xf]
      %v2289 = vld [vmem:[%s541 + $0xb8] sm:$0xf]
      %v2290 = vld [vmem:[%s541 + $0xbc] sm:$0xf]
      %v2339 = vunpack.c.l.b16 %v2243
      %v2340 = vunpack.c.l.b16 %v2244
      %v2341 = vunpack.c.l.b16 %v2245
      %v2342 = vunpack.c.l.b16 %v2246
      %v2343 = vunpack.c.l.b16 %v2247
      %v2344 = vunpack.c.l.b16 %v2248
      %v2345 = vunpack.c.l.b16 %v2249
      %v2346 = vunpack.c.l.b16 %v2250
      %v2347 = vunpack.c.l.b16 %v2251
      %v2348 = vunpack.c.l.b16 %v2252
      %v2349 = vunpack.c.l.b16 %v2253
      %v2350 = vunpack.c.l.b16 %v2254
      %v2351 = vunpack.c.l.b16 %v2255
      %v2352 = vunpack.c.l.b16 %v2256
      %v2353 = vunpack.c.l.b16 %v2257
      %v2354 = vunpack.c.l.b16 %v2258
      %v2355 = vunpack.c.l.b16 %v2259
      %v2356 = vunpack.c.l.b16 %v2260
      %v2357 = vunpack.c.l.b16 %v2261
      %v2358 = vunpack.c.l.b16 %v2262
      %v2359 = vunpack.c.l.b16 %v2263
      %v2360 = vunpack.c.l.b16 %v2264
      %v2361 = vunpack.c.l.b16 %v2265
      %v2362 = vunpack.c.l.b16 %v2266
      %v2363 = vunpack.c.l.b16 %v2267
      %v2364 = vunpack.c.l.b16 %v2268
      %v2365 = vunpack.c.l.b16 %v2269
      %v2366 = vunpack.c.l.b16 %v2270
      %v2367 = vunpack.c.l.b16 %v2271
      %v2368 = vunpack.c.l.b16 %v2272
      %v2369 = vunpack.c.l.b16 %v2273
      %v2370 = vunpack.c.l.b16 %v2274
      %v2371 = vunpack.c.l.b16 %v2275
      %v2372 = vunpack.c.l.b16 %v2276
      %v2373 = vunpack.c.l.b16 %v2277
      %v2374 = vunpack.c.l.b16 %v2278
      %v2375 = vunpack.c.l.b16 %v2279
      %v2376 = vunpack.c.l.b16 %v2280
      %v2377 = vunpack.c.l.b16 %v2281
      %v2378 = vunpack.c.l.b16 %v2282
      %v2379 = vunpack.c.l.b16 %v2283
      %v2380 = vunpack.c.l.b16 %v2284
      %v2381 = vunpack.c.l.b16 %v2285
      %v2382 = vunpack.c.l.b16 %v2286
      %v2383 = vunpack.c.l.b16 %v2287
      %v2384 = vunpack.c.l.b16 %v2288
      %v2385 = vunpack.c.l.b16 %v2289
      %v2386 = vunpack.c.l.b16 %v2290
      %v2387 = vpack.c.b16 %v2340, %v2339
      %v2388 = vpack.c.b16 %v2342, %v2341
      %v2389 = vpack.c.b16 %v2344, %v2343
      %v2390 = vpack.c.b16 %v2346, %v2345
      %v2391 = vpack.c.b16 %v2348, %v2347
      %v2392 = vpack.c.b16 %v2350, %v2349
      %v2393 = vpack.c.b16 %v2352, %v2351
      %v2394 = vpack.c.b16 %v2354, %v2353
      %v2395 = vpack.c.b16 %v2356, %v2355
      %v2396 = vpack.c.b16 %v2358, %v2357
      %v2397 = vpack.c.b16 %v2360, %v2359
      %v2398 = vpack.c.b16 %v2362, %v2361
      %v2399 = vpack.c.b16 %v2364, %v2363
      %v2400 = vpack.c.b16 %v2366, %v2365
      %v2401 = vpack.c.b16 %v2368, %v2367
      %v2402 = vpack.c.b16 %v2370, %v2369
      %v2403 = vpack.c.b16 %v2372, %v2371
      %v2404 = vpack.c.b16 %v2374, %v2373
      %v2405 = vpack.c.b16 %v2376, %v2375
      %v2406 = vpack.c.b16 %v2378, %v2377
      %v2407 = vpack.c.b16 %v2380, %v2379
      %v2408 = vpack.c.b16 %v2382, %v2381
      %v2409 = vpack.c.b16 %v2384, %v2383
      %v2410 = vpack.c.b16 %v2386, %v2385
      %2435 = vmatprep.subr.bf16.mxu0 0
      %2436 = vmatpush1.bf16.msra.mxu0 %v2387
      %2437 = vmatprep.subr.bf16.mxu0 0
      %2438 = vmatpush1.bf16.msra.mxu0 %v2388
      %2439 = vmatprep.subr.bf16.mxu0 0
      %2440 = vmatpush1.bf16.msra.mxu0 %v2389
      %2441 = vmatprep.subr.bf16.mxu0 0
      %2442 = vmatpush1.bf16.msra.mxu0 %v2390
      %2443 = vmatprep.subr.bf16.mxu0 0
      %2444 = vmatpush1.bf16.msra.mxu0 %v2391
      %2445 = vmatprep.subr.bf16.mxu0 0
      %2446 = vmatpush1.bf16.msra.mxu0 %v2392
      %2447 = vmatprep.subr.bf16.mxu0 0
      %2448 = vmatpush1.bf16.msra.mxu0 %v2393
      %2449 = vmatprep.subr.bf16.mxu0 0
      %2450 = vmatpush1.bf16.msra.mxu0 %v2394
      %2451 = vmatprep.subr.bf16.mxu0 0
      %2452 = vmatpush1.bf16.msra.mxu0 %v2395
      %2453 = vmatprep.subr.bf16.mxu0 0
      %2454 = vmatpush1.bf16.msra.mxu0 %v2396
      %2455 = vmatprep.subr.bf16.mxu0 0
      %2456 = vmatpush1.bf16.msra.mxu0 %v2397
      %2457 = vmatprep.subr.bf16.mxu0 0
      %2458 = vmatpush1.bf16.msra.mxu0 %v2398
      %2459 = vmatprep.subr.bf16.mxu0 0
      %2460 = vmatpush1.bf16.msra.mxu0 %v2399
      %2461 = vmatprep.subr.bf16.mxu0 0
      %2462 = vmatpush1.bf16.msra.mxu0 %v2400
      %2463 = vmatprep.subr.bf16.mxu0 0
      %2464 = vmatpush1.bf16.msra.mxu0 %v2401
      %2465 = vmatprep.subr.bf16.mxu0 0
      %2466 = vmatpush1.bf16.msra.mxu0 %v2402
      %2467 = vmatprep.mubr.bf16.mxu0 %v2211
      %2468 = vmatmul.mubr.bf16.gmra.mrb[0].mxu0 %v2187
      %v2469 = vpop.f32.mrb[0].mxu0
      %v2470 = vadd.f32 0.0, %v2469
      %v2471 = vpop.f32.mrb[0].mxu0
      %v2472 = vpop.f32.mrb[0].mxu0
      %v2473 = vadd.f32 0.0, %v2472
      %v2474 = vpop.f32.mrb[0].mxu0
      %2475 = vmatprep.mubr.bf16.mxu0 %v2212
      %2476 = vmatmul.mubr.bf16.gmra.mrb[0].mxu0 %v2188
      %v2477 = vpop.f32.mrb[0].mxu0
      %v2478 = vadd.f32 0.0, %v2477
      %v2479 = vpop.f32.mrb[0].mxu0
      %v2480 = vpop.f32.mrb[0].mxu0
      %v2481 = vadd.f32 0.0, %v2480
      %v2482 = vpop.f32.mrb[0].mxu0
      %2483 = vmatprep.mubr.bf16.mxu0 %v2213
      %2484 = vmatmul.mubr.bf16.gmra.mrb[0].mxu0 %v2189
      %v2485 = vpop.f32.mrb[0].mxu0
      %v2486 = vadd.f32 0.0, %v2485
      %v2487 = vpop.f32.mrb[0].mxu0
      %v2488 = vpop.f32.mrb[0].mxu0
      %v2489 = vadd.f32 0.0, %v2488
      %v2490 = vpop.f32.mrb[0].mxu0
      %2491 = vmatprep.mubr.bf16.mxu0 %v2214
      %2492 = vmatmul.mubr.bf16.gmra.mrb[0].mxu0 %v2190
      %v2493 = vpop.f32.mrb[0].mxu0
      %v2494 = vadd.f32 0.0, %v2493
      %v2495 = vpop.f32.mrb[0].mxu0
      %v2496 = vpop.f32.mrb[0].mxu0
      %v2497 = vadd.f32 0.0, %v2496
      %v2498 = vpop.f32.mrb[0].mxu0
      %2499 = vmatprep.mubr.bf16.mxu0 %v2215
      %2500 = vmatmul.mubr.bf16.gmra.mrb[0].mxu0 %v2191
      %v2501 = vpop.f32.mrb[0].mxu0
      %v2502 = vadd.f32 0.0, %v2501
      %v2503 = vpop.f32.mrb[0].mxu0
      %v2504 = vpop.f32.mrb[0].mxu0
      %v2505 = vadd.f32 0.0, %v2504
      %v2506 = vpop.f32.mrb[0].mxu0
      %2507 = vmatprep.mubr.bf16.mxu0 %v2216
      %2508 = vmatmul.mubr.bf16.gmra.mrb[0].mxu0 %v2192
      %v2509 = vpop.f32.mrb[0].mxu0
      %v2510 = vadd.f32 0.0, %v2509
      %v2511 = vpop.f32.mrb[0].mxu0
      %v2512 = vpop.f32.mrb[0].mxu0
      %v2513 = vadd.f32 0.0, %v2512
      %v2514 = vpop.f32.mrb[0].mxu0
      %2515 = vmatprep.mubr.bf16.mxu0 %v2217
      %2516 = vmatmul.mubr.bf16.gmra.mrb[0].mxu0 %v2193
      %v2517 = vpop.f32.mrb[0].mxu0
      %v2518 = vadd.f32 0.0, %v2517
      %v2519 = vpop.f32.mrb[0].mxu0
      %v2520 = vpop.f32.mrb[0].mxu0
      %v2521 = vadd.f32 0.0, %v2520
      %v2522 = vpop.f32.mrb[0].mxu0
      %2523 = vmatprep.mubr.bf16.mxu0 %v2218
      %2524 = vmatmul.mubr.bf16.gmra.mrb[0].mxu0 %v2194
      %v2525 = vpop.f32.mrb[0].mxu0
      %v2526 = vadd.f32 0.0, %v2525
      %v2527 = vpop.f32.mrb[0].mxu0
      %v2528 = vpop.f32.mrb[0].mxu0
      %v2529 = vadd.f32 0.0, %v2528
      %v2530 = vpop.f32.mrb[0].mxu0
      %2531 = vdwg.mxu0
      %2532 = vmatprep.subr.bf16.mxu0 0
      %2533 = vmatpush1.bf16.msra.mxu0 %v2403
      %2534 = vmatprep.subr.bf16.mxu0 0
      %2535 = vmatpush1.bf16.msra.mxu0 %v2404
      %2536 = vmatprep.subr.bf16.mxu0 0
      %2537 = vmatpush1.bf16.msra.mxu0 %v2405
      %2538 = vmatprep.subr.bf16.mxu0 0
      %2539 = vmatpush1.bf16.msra.mxu0 %v2406
      %2540 = vmatprep.subr.bf16.mxu0 0
      %2541 = vmatpush1.bf16.msra.mxu0 %v2407
      %2542 = vmatprep.subr.bf16.mxu0 0
      %2543 = vmatpush1.bf16.msra.mxu0 %v2408
      %2544 = vmatprep.subr.bf16.mxu0 0
      %2545 = vmatpush1.bf16.msra.mxu0 %v2409
      %2546 = vmatprep.subr.bf16.mxu0 0
      %2547 = vmatpush1.bf16.msra.mxu0 %v2410
      %2548 = vmatprep.subr.bf16.mxu0 0
      %2549 = vmatpush1.bf16.msra.mxu0 0
      %2550 = vmatprep.subr.bf16.mxu0 0
      %2551 = vmatpush1.bf16.msra.mxu0 0
      %2552 = vmatprep.subr.bf16.mxu0 0
      %2553 = vmatpush1.bf16.msra.mxu0 0
      %2554 = vmatprep.subr.bf16.mxu0 0
      %2555 = vmatpush1.bf16.msra.mxu0 0
      %2556 = vmatprep.subr.bf16.mxu0 0
      %2557 = vmatpush1.bf16.msra.mxu0 0
      %2558 = vmatprep.subr.bf16.mxu0 0
      %2559 = vmatpush1.bf16.msra.mxu0 0
      %2560 = vmatprep.subr.bf16.mxu0 0
      %2561 = vmatpush1.bf16.msra.mxu0 0
      %2562 = vmatprep.subr.bf16.mxu0 0
      %2563 = vmatpush1.bf16.msra.mxu0 0
      %2564 = vmatprep.mubr.bf16.mxu0 0
      %2565 = vmatmul.mubr.bf16.gmra.mrb[0].mxu0 %v2235
      %v2566 = vpop.f32.mrb[0].mxu0
      %v2567 = vadd.f32 %v2470, %v2566
      %v2568 = vpop.f32.mrb[0].mxu0
      %v2569 = vpop.f32.mrb[0].mxu0
      %v2570 = vadd.f32 %v2473, %v2569
      %v2571 = vpop.f32.mrb[0].mxu0
      %2572 = vmatprep.mubr.bf16.mxu0 0
      %2573 = vmatmul.mubr.bf16.gmra.mrb[0].mxu0 %v2236
      %v2574 = vpop.f32.mrb[0].mxu0
      %v2575 = vadd.f32 %v2478, %v2574
      %v2576 = vpop.f32.mrb[0].mxu0
      %v2577 = vpop.f32.mrb[0].mxu0
      %v2578 = vadd.f32 %v2481, %v2577
      %v2579 = vpop.f32.mrb[0].mxu0
      %2580 = vmatprep.mubr.bf16.mxu0 0
      %2581 = vmatmul.mubr.bf16.gmra.mrb[0].mxu0 %v2237
      %v2582 = vpop.f32.mrb[0].mxu0
      %v2583 = vadd.f32 %v2486, %v2582
      %v2584 = vpop.f32.mrb[0].mxu0
      %v2585 = vpop.f32.mrb[0].mxu0
      %v2586 = vadd.f32 %v2489, %v2585
      %v2587 = vpop.f32.mrb[0].mxu0
      %2588 = vmatprep.mubr.bf16.mxu0 0
      %2589 = vmatmul.mubr.bf16.gmra.mrb[0].mxu0 %v2238
      %v2590 = vpop.f32.mrb[0].mxu0
      %v2591 = vadd.f32 %v2494, %v2590
      %v2592 = vpop.f32.mrb[0].mxu0
      %v2593 = vpop.f32.mrb[0].mxu0
      %v2594 = vadd.f32 %v2497, %v2593
      %v2595 = vpop.f32.mrb[0].mxu0
      %2596 = vmatprep.mubr.bf16.mxu0 0
      %2597 = vmatmul.mubr.bf16.gmra.mrb[0].mxu0 %v2239
      %v2598 = vpop.f32.mrb[0].mxu0
      %v2599 = vadd.f32 %v2502, %v2598
      %v2600 = vpop.f32.mrb[0].mxu0
      %v2601 = vpop.f32.mrb[0].mxu0
      %v2602 = vadd.f32 %v2505, %v2601
      %v2603 = vpop.f32.mrb[0].mxu0
      %2604 = vmatprep.mubr.bf16.mxu0 0
      %2605 = vmatmul.mubr.bf16.gmra.mrb[0].mxu0 %v2240
      %v2606 = vpop.f32.mrb[0].mxu0
      %v2607 = vadd.f32 %v2510, %v2606
      %v2608 = vpop.f32.mrb[0].mxu0
      %v2609 = vpop.f32.mrb[0].mxu0
      %v2610 = vadd.f32 %v2513, %v2609
      %v2611 = vpop.f32.mrb[0].mxu0
      %2612 = vmatprep.mubr.bf16.mxu0 0
      %2613 = vmatmul.mubr.bf16.gmra.mrb[0].mxu0 %v2241
      %v2614 = vpop.f32.mrb[0].mxu0
      %v2615 = vadd.f32 %v2518, %v2614
      %v2616 = vpop.f32.mrb[0].mxu0
      %v2617 = vpop.f32.mrb[0].mxu0
      %v2618 = vadd.f32 %v2521, %v2617
      %v2619 = vpop.f32.mrb[0].mxu0
      %2620 = vmatprep.mubr.bf16.mxu0 0
      %2621 = vmatmul.mubr.bf16.gmra.mrb[0].mxu0 %v2242
      %v2622 = vpop.f32.mrb[0].mxu0
      %v2623 = vadd.f32 %v2526, %v2622
      %v2624 = vpop.f32.mrb[0].mxu0
      %v2625 = vpop.f32.mrb[0].mxu0
      %v2626 = vadd.f32 %v2529, %v2625
      %v2627 = vpop.f32.mrb[0].mxu0
      %2628 = vdwg.mxu0
      %v2677 = vunpack.c.l.b16 %v2122
      %v2678 = vunpack.c.l.b16 %v2123
      %v2679 = vunpack.c.l.b16 %v2124
      %v2680 = vunpack.c.l.b16 %v2125
      %v2681 = vunpack.c.l.b16 %v2126
      %v2682 = vunpack.c.l.b16 %v2127
      %v2683 = vunpack.c.l.b16 %v2128
      %v2684 = vunpack.c.l.b16 %v2129
      %v2685 = vunpack.c.l.b16 %v2130
      %v2686 = vunpack.c.l.b16 %v2131
      %v2687 = vunpack.c.l.b16 %v2132
      %v2688 = vunpack.c.l.b16 %v2133
      %v2689 = vunpack.c.l.b16 %v2134
      %v2690 = vunpack.c.l.b16 %v2135
      %v2691 = vunpack.c.l.b16 %v2136
      %v2692 = vunpack.c.l.b16 %v2137
      %v2693 = vunpack.c.l.b16 %v2138
      %v2694 = vunpack.c.l.b16 %v2139
      %v2695 = vunpack.c.l.b16 %v2140
      %v2696 = vunpack.c.l.b16 %v2141
      %v2697 = vunpack.c.l.b16 %v2142
      %v2698 = vunpack.c.l.b16 %v2143
      %v2699 = vunpack.c.l.b16 %v2144
      %v2700 = vunpack.c.l.b16 %v2145
      %v2701 = vunpack.c.l.b16 %v2146
      %v2702 = vunpack.c.l.b16 %v2147
      %v2703 = vunpack.c.l.b16 %v2148
      %v2704 = vunpack.c.l.b16 %v2149
      %v2705 = vunpack.c.l.b16 %v2150
      %v2706 = vunpack.c.l.b16 %v2151
      %v2707 = vunpack.c.l.b16 %v2152
      %v2708 = vunpack.c.l.b16 %v2153
      %v2709 = vunpack.c.l.b16 %v2154
      %v2710 = vunpack.c.l.b16 %v2155
      %v2711 = vunpack.c.l.b16 %v2156
      %v2712 = vunpack.c.l.b16 %v2157
      %v2713 = vunpack.c.l.b16 %v2158
      %v2714 = vunpack.c.l.b16 %v2159
      %v2715 = vunpack.c.l.b16 %v2160
      %v2716 = vunpack.c.l.b16 %v2161
      %v2717 = vunpack.c.l.b16 %v2162
      %v2718 = vunpack.c.l.b16 %v2163
      %v2719 = vunpack.c.l.b16 %v2164
      %v2720 = vunpack.c.l.b16 %v2165
      %v2721 = vunpack.c.l.b16 %v2166
      %v2722 = vunpack.c.l.b16 %v2167
      %v2723 = vunpack.c.l.b16 %v2168
      %v2724 = vunpack.c.l.b16 %v2169
      %v2725 = vpack.c.b16 %v2678, %v2677
      %v2726 = vpack.c.b16 %v2680, %v2679
      %v2727 = vpack.c.b16 %v2682, %v2681
      %v2728 = vpack.c.b16 %v2684, %v2683
      %v2729 = vpack.c.b16 %v2686, %v2685
      %v2730 = vpack.c.b16 %v2688, %v2687
      %v2731 = vpack.c.b16 %v2690, %v2689
      %v2732 = vpack.c.b16 %v2692, %v2691
      %v2733 = vpack.c.b16 %v2694, %v2693
      %v2734 = vpack.c.b16 %v2696, %v2695
      %v2735 = vpack.c.b16 %v2698, %v2697
      %v2736 = vpack.c.b16 %v2700, %v2699
      %v2737 = vpack.c.b16 %v2702, %v2701
      %v2738 = vpack.c.b16 %v2704, %v2703
      %v2739 = vpack.c.b16 %v2706, %v2705
      %v2740 = vpack.c.b16 %v2708, %v2707
      %v2741 = vpack.c.b16 %v2710, %v2709
      %v2742 = vpack.c.b16 %v2712, %v2711
      %v2743 = vpack.c.b16 %v2714, %v2713
      %v2744 = vpack.c.b16 %v2716, %v2715
      %v2745 = vpack.c.b16 %v2718, %v2717
      %v2746 = vpack.c.b16 %v2720, %v2719
      %v2747 = vpack.c.b16 %v2722, %v2721
      %v2748 = vpack.c.b16 %v2724, %v2723
      %2773 = vmatprep.subr.bf16.mxu0 0
      %2774 = vmatpush1.bf16.msra.mxu0 %v2725
      %2775 = vmatprep.subr.bf16.mxu0 0
      %2776 = vmatpush1.bf16.msra.mxu0 %v2726
      %2777 = vmatprep.subr.bf16.mxu0 0
      %2778 = vmatpush1.bf16.msra.mxu0 %v2727
      %2779 = vmatprep.subr.bf16.mxu0 0
      %2780 = vmatpush1.bf16.msra.mxu0 %v2728
      %2781 = vmatprep.subr.bf16.mxu0 0
      %2782 = vmatpush1.bf16.msra.mxu0 %v2729
      %2783 = vmatprep.subr.bf16.mxu0 0
      %2784 = vmatpush1.bf16.msra.mxu0 %v2730
      %2785 = vmatprep.subr.bf16.mxu0 0
      %2786 = vmatpush1.bf16.msra.mxu0 %v2731
      %2787 = vmatprep.subr.bf16.mxu0 0
      %2788 = vmatpush1.bf16.msra.mxu0 %v2732
      %2789 = vmatprep.subr.bf16.mxu0 0
      %2790 = vmatpush1.bf16.msra.mxu0 %v2733
      %2791 = vmatprep.subr.bf16.mxu0 0
      %2792 = vmatpush1.bf16.msra.mxu0 %v2734
      %2793 = vmatprep.subr.bf16.mxu0 0
      %2794 = vmatpush1.bf16.msra.mxu0 %v2735
      %2795 = vmatprep.subr.bf16.mxu0 0
      %2796 = vmatpush1.bf16.msra.mxu0 %v2736
      %2797 = vmatprep.subr.bf16.mxu0 0
      %2798 = vmatpush1.bf16.msra.mxu0 %v2737
      %2799 = vmatprep.subr.bf16.mxu0 0
      %2800 = vmatpush1.bf16.msra.mxu0 %v2738
      %2801 = vmatprep.subr.bf16.mxu0 0
      %2802 = vmatpush1.bf16.msra.mxu0 %v2739
      %2803 = vmatprep.subr.bf16.mxu0 0
      %2804 = vmatpush1.bf16.msra.mxu0 %v2740
      %2805 = vmatprep.mubr.bf16.mxu0 %v2090
      %2806 = vmatmul.mubr.bf16.gmra.mrb[0].mxu0 %v2066
      %v2807 = vpop.f32.mrb[0].mxu0
      %v2808 = vadd.f32 %v2567, %v2807
      %v2809 = vpop.f32.mrb[0].mxu0
      %v2810 = vpop.f32.mrb[0].mxu0
      %v2811 = vadd.f32 %v2570, %v2810
      %v2812 = vpop.f32.mrb[0].mxu0
      %2813 = vmatprep.mubr.bf16.mxu0 %v2091
      %2814 = vmatmul.mubr.bf16.gmra.mrb[0].mxu0 %v2067
      %v2815 = vpop.f32.mrb[0].mxu0
      %v2816 = vadd.f32 %v2575, %v2815
      %v2817 = vpop.f32.mrb[0].mxu0
      %v2818 = vpop.f32.mrb[0].mxu0
      %v2819 = vadd.f32 %v2578, %v2818
      %v2820 = vpop.f32.mrb[0].mxu0
      %2821 = vmatprep.mubr.bf16.mxu0 %v2092
      %2822 = vmatmul.mubr.bf16.gmra.mrb[0].mxu0 %v2068
      %v2823 = vpop.f32.mrb[0].mxu0
      %v2824 = vadd.f32 %v2583, %v2823
      %v2825 = vpop.f32.mrb[0].mxu0
      %v2826 = vpop.f32.mrb[0].mxu0
      %v2827 = vadd.f32 %v2586, %v2826
      %v2828 = vpop.f32.mrb[0].mxu0
      %2829 = vmatprep.mubr.bf16.mxu0 %v2093
      %2830 = vmatmul.mubr.bf16.gmra.mrb[0].mxu0 %v2069
      %v2831 = vpop.f32.mrb[0].mxu0
      %v2832 = vadd.f32 %v2591, %v2831
      %v2833 = vpop.f32.mrb[0].mxu0
      %v2834 = vpop.f32.mrb[0].mxu0
      %v2835 = vadd.f32 %v2594, %v2834
      %v2836 = vpop.f32.mrb[0].mxu0
      %2837 = vmatprep.mubr.bf16.mxu0 %v2094
      %2838 = vmatmul.mubr.bf16.gmra.mrb[0].mxu0 %v2070
      %v2839 = vpop.f32.mrb[0].mxu0
      %v2840 = vadd.f32 %v2599, %v2839
      %v2841 = vpop.f32.mrb[0].mxu0
      %v2842 = vpop.f32.mrb[0].mxu0
      %v2843 = vadd.f32 %v2602, %v2842
      %v2844 = vpop.f32.mrb[0].mxu0
      %2845 = vmatprep.mubr.bf16.mxu0 %v2095
      %2846 = vmatmul.mubr.bf16.gmra.mrb[0].mxu0 %v2071
      %v2847 = vpop.f32.mrb[0].mxu0
      %v2848 = vadd.f32 %v2607, %v2847
      %v2849 = vpop.f32.mrb[0].mxu0
      %v2850 = vpop.f32.mrb[0].mxu0
      %v2851 = vadd.f32 %v2610, %v2850
      %v2852 = vpop.f32.mrb[0].mxu0
      %2853 = vmatprep.mubr.bf16.mxu0 %v2096
      %2854 = vmatmul.mubr.bf16.gmra.mrb[0].mxu0 %v2072
      %v2855 = vpop.f32.mrb[0].mxu0
      %v2856 = vadd.f32 %v2615, %v2855
      %v2857 = vpop.f32.mrb[0].mxu0
      %v2858 = vpop.f32.mrb[0].mxu0
      %v2859 = vadd.f32 %v2618, %v2858
      %v2860 = vpop.f32.mrb[0].mxu0
      %2861 = vmatprep.mubr.bf16.mxu0 %v2097
      %2862 = vmatmul.mubr.bf16.gmra.mrb[0].mxu0 %v2073
      %v2863 = vpop.f32.mrb[0].mxu0
      %v2864 = vadd.f32 %v2623, %v2863
      %v2865 = vpop.f32.mrb[0].mxu0
      %v2866 = vpop.f32.mrb[0].mxu0
      %v2867 = vadd.f32 %v2626, %v2866
      %v2868 = vpop.f32.mrb[0].mxu0
      %2869 = vdwg.mxu0
      %2870 = vmatprep.subr.bf16.mxu0 0
      %2871 = vmatpush1.bf16.msra.mxu0 %v2741
      %2872 = vmatprep.subr.bf16.mxu0 0
      %2873 = vmatpush1.bf16.msra.mxu0 %v2742
      %2874 = vmatprep.subr.bf16.mxu0 0
      %2875 = vmatpush1.bf16.msra.mxu0 %v2743
      %2876 = vmatprep.subr.bf16.mxu0 0
      %2877 = vmatpush1.bf16.msra.mxu0 %v2744
      %2878 = vmatprep.subr.bf16.mxu0 0
      %2879 = vmatpush1.bf16.msra.mxu0 %v2745
      %2880 = vmatprep.subr.bf16.mxu0 0
      %2881 = vmatpush1.bf16.msra.mxu0 %v2746
      %2882 = vmatprep.subr.bf16.mxu0 0
      %2883 = vmatpush1.bf16.msra.mxu0 %v2747
      %2884 = vmatprep.subr.bf16.mxu0 0
      %2885 = vmatpush1.bf16.msra.mxu0 %v2748
      %2886 = vmatprep.subr.bf16.mxu0 0
      %2887 = vmatpush1.bf16.msra.mxu0 0
      %2888 = vmatprep.subr.bf16.mxu0 0
      %2889 = vmatpush1.bf16.msra.mxu0 0
      %2890 = vmatprep.subr.bf16.mxu0 0
      %2891 = vmatpush1.bf16.msra.mxu0 0
      %2892 = vmatprep.subr.bf16.mxu0 0
      %2893 = vmatpush1.bf16.msra.mxu0 0
      %2894 = vmatprep.subr.bf16.mxu0 0
      %2895 = vmatpush1.bf16.msra.mxu0 0
      %2896 = vmatprep.subr.bf16.mxu0 0
      %2897 = vmatpush1.bf16.msra.mxu0 0
      %2898 = vmatprep.subr.bf16.mxu0 0
      %2899 = vmatpush1.bf16.msra.mxu0 0
      %2900 = vmatprep.subr.bf16.mxu0 0
      %2901 = vmatpush1.bf16.msra.mxu0 0
      %2902 = vmatprep.mubr.bf16.mxu0 0
      %2903 = vmatmul.mubr.bf16.gmra.mrb[0].mxu0 %v2114
      %v2904 = vpop.f32.mrb[0].mxu0
      %v2905 = vadd.f32 %v2808, %v2904
      %v2906 = vpop.f32.mrb[0].mxu0
      %v2907 = vpop.f32.mrb[0].mxu0
      %v2908 = vadd.f32 %v2811, %v2907
      %v2909 = vpop.f32.mrb[0].mxu0
      %2910 = vmatprep.mubr.bf16.mxu0 0
      %2911 = vmatmul.mubr.bf16.gmra.mrb[0].mxu0 %v2115
      %v2912 = vpop.f32.mrb[0].mxu0
      %v2913 = vadd.f32 %v2816, %v2912
      %v2914 = vpop.f32.mrb[0].mxu0
      %v2915 = vpop.f32.mrb[0].mxu0
      %v2916 = vadd.f32 %v2819, %v2915
      %v2917 = vpop.f32.mrb[0].mxu0
      %2918 = vmatprep.mubr.bf16.mxu0 0
      %2919 = vmatmul.mubr.bf16.gmra.mrb[0].mxu0 %v2116
      %v2920 = vpop.f32.mrb[0].mxu0
      %v2921 = vadd.f32 %v2824, %v2920
      %v2922 = vpop.f32.mrb[0].mxu0
      %v2923 = vpop.f32.mrb[0].mxu0
      %v2924 = vadd.f32 %v2827, %v2923
      %v2925 = vpop.f32.mrb[0].mxu0
      %2926 = vmatprep.mubr.bf16.mxu0 0
      %2927 = vmatmul.mubr.bf16.gmra.mrb[0].mxu0 %v2117
      %v2928 = vpop.f32.mrb[0].mxu0
      %v2929 = vadd.f32 %v2832, %v2928
      %v2930 = vpop.f32.mrb[0].mxu0
      %v2931 = vpop.f32.mrb[0].mxu0
      %v2932 = vadd.f32 %v2835, %v2931
      %v2933 = vpop.f32.mrb[0].mxu0
      %2934 = vmatprep.mubr.bf16.mxu0 0
      %2935 = vmatmul.mubr.bf16.gmra.mrb[0].mxu0 %v2118
      %v2936 = vpop.f32.mrb[0].mxu0
      %v2937 = vadd.f32 %v2840, %v2936
      %v2938 = vpop.f32.mrb[0].mxu0
      %v2939 = vpop.f32.mrb[0].mxu0
      %v2940 = vadd.f32 %v2843, %v2939
      %v2941 = vpop.f32.mrb[0].mxu0
      %2942 = vmatprep.mubr.bf16.mxu0 0
      %2943 = vmatmul.mubr.bf16.gmra.mrb[0].mxu0 %v2119
      %v2944 = vpop.f32.mrb[0].mxu0
      %v2945 = vadd.f32 %v2848, %v2944
      %v2946 = vpop.f32.mrb[0].mxu0
      %v2947 = vpop.f32.mrb[0].mxu0
      %v2948 = vadd.f32 %v2851, %v2947
      %v2949 = vpop.f32.mrb[0].mxu0
      %2950 = vmatprep.mubr.bf16.mxu0 0
      %2951 = vmatmul.mubr.bf16.gmra.mrb[0].mxu0 %v2120
      %v2952 = vpop.f32.mrb[0].mxu0
      %v2953 = vadd.f32 %v2856, %v2952
      %v2954 = vpop.f32.mrb[0].mxu0
      %v2955 = vpop.f32.mrb[0].mxu0
      %v2956 = vadd.f32 %v2859, %v2955
      %v2957 = vpop.f32.mrb[0].mxu0
      %2958 = vmatprep.mubr.bf16.mxu0 0
      %2959 = vmatmul.mubr.bf16.gmra.mrb[0].mxu0 %v2121
      %v2960 = vpop.f32.mrb[0].mxu0
      %v2961 = vadd.f32 %v2864, %v2960
      %v2962 = vpop.f32.mrb[0].mxu0
      %v2963 = vpop.f32.mrb[0].mxu0
      %v2964 = vadd.f32 %v2867, %v2963
      %v2965 = vpop.f32.mrb[0].mxu0
      %2966 = vdwg.mxu0
      %s2967 = scalar_lea.vmem %s219, 240
      %v2968 = vld [vmem:[%s2967] sm:$0xff]
      %v2969 = vld [vmem:[%s2967 + $0x8] sm:$0xff]
      %v2970 = vld [vmem:[%s2967 + $0x18] sm:$0xff]
      %v2971 = vld [vmem:[%s2967 + $0x20] sm:$0xff]
      %v2972 = vld [vmem:[%s2967 + $0x30] sm:$0xff]
      %v2973 = vld [vmem:[%s2967 + $0x38] sm:$0xff]
      %v2974 = vld [vmem:[%s2967 + $0x48] sm:$0xff]
      %v2975 = vld [vmem:[%s2967 + $0x50] sm:$0xff]
      %v2976 = vld [vmem:[%s2967 + $0x60] sm:$0xff]
      %v2977 = vld [vmem:[%s2967 + $0x68] sm:$0xff]
      %v2978 = vld [vmem:[%s2967 + $0x78] sm:$0xff]
      %v2979 = vld [vmem:[%s2967 + $0x80] sm:$0xff]
      %v2980 = vld [vmem:[%s2967 + $0x90] sm:$0xff]
      %v2981 = vld [vmem:[%s2967 + $0x98] sm:$0xff]
      %v2982 = vld [vmem:[%s2967 + $0xa8] sm:$0xff]
      %v2983 = vld [vmem:[%s2967 + $0xb0] sm:$0xff]
      %v2984 = vpack.c.bf16 %v2969, %v2968
      %v2985 = vpack.c.bf16 %v2971, %v2970
      %v2986 = vpack.c.bf16 %v2973, %v2972
      %v2987 = vpack.c.bf16 %v2975, %v2974
      %v2988 = vpack.c.bf16 %v2977, %v2976
      %v2989 = vpack.c.bf16 %v2979, %v2978
      %v2990 = vpack.c.bf16 %v2981, %v2980
      %v2991 = vpack.c.bf16 %v2983, %v2982
      %v2992 = vld [vmem:[%s2967 + $0x1] sm:$0xff]
      %v2993 = vld [vmem:[%s2967 + $0x9] sm:$0xff]
      %v2994 = vld [vmem:[%s2967 + $0x19] sm:$0xff]
      %v2995 = vld [vmem:[%s2967 + $0x21] sm:$0xff]
      %v2996 = vld [vmem:[%s2967 + $0x31] sm:$0xff]
      %v2997 = vld [vmem:[%s2967 + $0x39] sm:$0xff]
      %v2998 = vld [vmem:[%s2967 + $0x49] sm:$0xff]
      %v2999 = vld [vmem:[%s2967 + $0x51] sm:$0xff]
      %v3000 = vld [vmem:[%s2967 + $0x61] sm:$0xff]
      %v3001 = vld [vmem:[%s2967 + $0x69] sm:$0xff]
      %v3002 = vld [vmem:[%s2967 + $0x79] sm:$0xff]
      %v3003 = vld [vmem:[%s2967 + $0x81] sm:$0xff]
      %v3004 = vld [vmem:[%s2967 + $0x91] sm:$0xff]
      %v3005 = vld [vmem:[%s2967 + $0x99] sm:$0xff]
      %v3006 = vld [vmem:[%s2967 + $0xa9] sm:$0xff]
      %v3007 = vld [vmem:[%s2967 + $0xb1] sm:$0xff]
      %v3008 = vpack.c.bf16 %v2993, %v2992
      %v3009 = vpack.c.bf16 %v2995, %v2994
      %v3010 = vpack.c.bf16 %v2997, %v2996
      %v3011 = vpack.c.bf16 %v2999, %v2998
      %v3012 = vpack.c.bf16 %v3001, %v3000
      %v3013 = vpack.c.bf16 %v3003, %v3002
      %v3014 = vpack.c.bf16 %v3005, %v3004
      %v3015 = vpack.c.bf16 %v3007, %v3006
      %v3016 = vld [vmem:[%s2967 + $0x2] sm:$0xff]
      %v3017 = vld [vmem:[%s2967 + $0xa] sm:$0xff]
      %v3018 = vld [vmem:[%s2967 + $0x1a] sm:$0xff]
      %v3019 = vld [vmem:[%s2967 + $0x22] sm:$0xff]
      %v3020 = vld [vmem:[%s2967 + $0x32] sm:$0xff]
      %v3021 = vld [vmem:[%s2967 + $0x3a] sm:$0xff]
      %v3022 = vld [vmem:[%s2967 + $0x4a] sm:$0xff]
      %v3023 = vld [vmem:[%s2967 + $0x52] sm:$0xff]
      %v3024 = vld [vmem:[%s2967 + $0x62] sm:$0xff]
      %v3025 = vld [vmem:[%s2967 + $0x6a] sm:$0xff]
      %v3026 = vld [vmem:[%s2967 + $0x7a] sm:$0xff]
      %v3027 = vld [vmem:[%s2967 + $0x82] sm:$0xff]
      %v3028 = vld [vmem:[%s2967 + $0x92] sm:$0xff]
      %v3029 = vld [vmem:[%s2967 + $0x9a] sm:$0xff]
      %v3030 = vld [vmem:[%s2967 + $0xaa] sm:$0xff]
      %v3031 = vld [vmem:[%s2967 + $0xb2] sm:$0xff]
      %v3032 = vpack.c.bf16 %v3017, %v3016
      %v3033 = vpack.c.bf16 %v3019, %v3018
      %v3034 = vpack.c.bf16 %v3021, %v3020
      %v3035 = vpack.c.bf16 %v3023, %v3022
      %v3036 = vpack.c.bf16 %v3025, %v3024
      %v3037 = vpack.c.bf16 %v3027, %v3026
      %v3038 = vpack.c.bf16 %v3029, %v3028
      %v3039 = vpack.c.bf16 %v3031, %v3030
      %v3040 = vld [vmem:[%s1339] sm:$0xf]
      %v3041 = vld [vmem:[%s1339 + $0x4] sm:$0xf]
      %v3042 = vld [vmem:[%s1339 + $0x8] sm:$0xf]
      %v3043 = vld [vmem:[%s1339 + $0xc] sm:$0xf]
      %v3044 = vld [vmem:[%s1339 + $0x10] sm:$0xf]
      %v3045 = vld [vmem:[%s1339 + $0x14] sm:$0xf]
      %v3046 = vld [vmem:[%s1339 + $0x18] sm:$0xf]
      %v3047 = vld [vmem:[%s1339 + $0x1c] sm:$0xf]
      %v3048 = vld [vmem:[%s1339 + $0x20] sm:$0xf]
      %v3049 = vld [vmem:[%s1339 + $0x24] sm:$0xf]
      %v3050 = vld [vmem:[%s1339 + $0x28] sm:$0xf]
      %v3051 = vld [vmem:[%s1339 + $0x2c] sm:$0xf]
      %v3052 = vld [vmem:[%s1339 + $0x30] sm:$0xf]
      %v3053 = vld [vmem:[%s1339 + $0x34] sm:$0xf]
      %v3054 = vld [vmem:[%s1339 + $0x38] sm:$0xf]
      %v3055 = vld [vmem:[%s1339 + $0x3c] sm:$0xf]
      %v3056 = vld [vmem:[%s1339 + $0x40] sm:$0xf]
      %v3057 = vld [vmem:[%s1339 + $0x44] sm:$0xf]
      %v3058 = vld [vmem:[%s1339 + $0x48] sm:$0xf]
      %v3059 = vld [vmem:[%s1339 + $0x4c] sm:$0xf]
      %v3060 = vld [vmem:[%s1339 + $0x50] sm:$0xf]
      %v3061 = vld [vmem:[%s1339 + $0x54] sm:$0xf]
      %v3062 = vld [vmem:[%s1339 + $0x58] sm:$0xf]
      %v3063 = vld [vmem:[%s1339 + $0x5c] sm:$0xf]
      %v3064 = vld [vmem:[%s1339 + $0x60] sm:$0xf]
      %v3065 = vld [vmem:[%s1339 + $0x64] sm:$0xf]
      %v3066 = vld [vmem:[%s1339 + $0x68] sm:$0xf]
      %v3067 = vld [vmem:[%s1339 + $0x6c] sm:$0xf]
      %v3068 = vld [vmem:[%s1339 + $0x70] sm:$0xf]
      %v3069 = vld [vmem:[%s1339 + $0x74] sm:$0xf]
      %v3070 = vld [vmem:[%s1339 + $0x78] sm:$0xf]
      %v3071 = vld [vmem:[%s1339 + $0x7c] sm:$0xf]
      %v3072 = vld [vmem:[%s1339 + $0x80] sm:$0xf]
      %v3073 = vld [vmem:[%s1339 + $0x84] sm:$0xf]
      %v3074 = vld [vmem:[%s1339 + $0x88] sm:$0xf]
      %v3075 = vld [vmem:[%s1339 + $0x8c] sm:$0xf]
      %v3076 = vld [vmem:[%s1339 + $0x90] sm:$0xf]
      %v3077 = vld [vmem:[%s1339 + $0x94] sm:$0xf]
      %v3078 = vld [vmem:[%s1339 + $0x98] sm:$0xf]
      %v3079 = vld [vmem:[%s1339 + $0x9c] sm:$0xf]
      %v3080 = vld [vmem:[%s1339 + $0xa0] sm:$0xf]
      %v3081 = vld [vmem:[%s1339 + $0xa4] sm:$0xf]
      %v3082 = vld [vmem:[%s1339 + $0xa8] sm:$0xf]
      %v3083 = vld [vmem:[%s1339 + $0xac] sm:$0xf]
      %v3084 = vld [vmem:[%s1339 + $0xb0] sm:$0xf]
      %v3085 = vld [vmem:[%s1339 + $0xb4] sm:$0xf]
      %v3086 = vld [vmem:[%s1339 + $0xb8] sm:$0xf]
      %v3087 = vld [vmem:[%s1339 + $0xbc] sm:$0xf]
      %v3136 = vunpack.c.l.b16 %v3040
      %v3137 = vunpack.c.l.b16 %v3041
      %v3138 = vunpack.c.l.b16 %v3042
      %v3139 = vunpack.c.l.b16 %v3043
      %v3140 = vunpack.c.l.b16 %v3044
      %v3141 = vunpack.c.l.b16 %v3045
      %v3142 = vunpack.c.l.b16 %v3046
      %v3143 = vunpack.c.l.b16 %v3047
      %v3144 = vunpack.c.l.b16 %v3048
      %v3145 = vunpack.c.l.b16 %v3049
      %v3146 = vunpack.c.l.b16 %v3050
      %v3147 = vunpack.c.l.b16 %v3051
      %v3148 = vunpack.c.l.b16 %v3052
      %v3149 = vunpack.c.l.b16 %v3053
      %v3150 = vunpack.c.l.b16 %v3054
      %v3151 = vunpack.c.l.b16 %v3055
      %v3152 = vunpack.c.l.b16 %v3056
      %v3153 = vunpack.c.l.b16 %v3057
      %v3154 = vunpack.c.l.b16 %v3058
      %v3155 = vunpack.c.l.b16 %v3059
      %v3156 = vunpack.c.l.b16 %v3060
      %v3157 = vunpack.c.l.b16 %v3061
      %v3158 = vunpack.c.l.b16 %v3062
      %v3159 = vunpack.c.l.b16 %v3063
      %v3160 = vunpack.c.l.b16 %v3064
      %v3161 = vunpack.c.l.b16 %v3065
      %v3162 = vunpack.c.l.b16 %v3066
      %v3163 = vunpack.c.l.b16 %v3067
      %v3164 = vunpack.c.l.b16 %v3068
      %v3165 = vunpack.c.l.b16 %v3069
      %v3166 = vunpack.c.l.b16 %v3070
      %v3167 = vunpack.c.l.b16 %v3071
      %v3168 = vunpack.c.l.b16 %v3072
      %v3169 = vunpack.c.l.b16 %v3073
      %v3170 = vunpack.c.l.b16 %v3074
      %v3171 = vunpack.c.l.b16 %v3075
      %v3172 = vunpack.c.l.b16 %v3076
      %v3173 = vunpack.c.l.b16 %v3077
      %v3174 = vunpack.c.l.b16 %v3078
      %v3175 = vunpack.c.l.b16 %v3079
      %v3176 = vunpack.c.l.b16 %v3080
      %v3177 = vunpack.c.l.b16 %v3081
      %v3178 = vunpack.c.l.b16 %v3082
      %v3179 = vunpack.c.l.b16 %v3083
      %v3180 = vunpack.c.l.b16 %v3084
      %v3181 = vunpack.c.l.b16 %v3085
      %v3182 = vunpack.c.l.b16 %v3086
      %v3183 = vunpack.c.l.b16 %v3087
      %v3184 = vpack.c.b16 %v3137, %v3136
      %v3185 = vpack.c.b16 %v3139, %v3138
      %v3186 = vpack.c.b16 %v3141, %v3140
      %v3187 = vpack.c.b16 %v3143, %v3142
      %v3188 = vpack.c.b16 %v3145, %v3144
      %v3189 = vpack.c.b16 %v3147, %v3146
      %v3190 = vpack.c.b16 %v3149, %v3148
      %v3191 = vpack.c.b16 %v3151, %v3150
      %v3192 = vpack.c.b16 %v3153, %v3152
      %v3193 = vpack.c.b16 %v3155, %v3154
      %v3194 = vpack.c.b16 %v3157, %v3156
      %v3195 = vpack.c.b16 %v3159, %v3158
      %v3196 = vpack.c.b16 %v3161, %v3160
      %v3197 = vpack.c.b16 %v3163, %v3162
      %v3198 = vpack.c.b16 %v3165, %v3164
      %v3199 = vpack.c.b16 %v3167, %v3166
      %v3200 = vpack.c.b16 %v3169, %v3168
      %v3201 = vpack.c.b16 %v3171, %v3170
      %v3202 = vpack.c.b16 %v3173, %v3172
      %v3203 = vpack.c.b16 %v3175, %v3174
      %v3204 = vpack.c.b16 %v3177, %v3176
      %v3205 = vpack.c.b16 %v3179, %v3178
      %v3206 = vpack.c.b16 %v3181, %v3180
      %v3207 = vpack.c.b16 %v3183, %v3182
      %3232 = vmatprep.subr.bf16.mxu0 0
      %3233 = vmatpush1.bf16.msra.mxu0 %v3184
      %3234 = vmatprep.subr.bf16.mxu0 0
      %3235 = vmatpush1.bf16.msra.mxu0 %v3185
      %3236 = vmatprep.subr.bf16.mxu0 0
      %3237 = vmatpush1.bf16.msra.mxu0 %v3186
      %3238 = vmatprep.subr.bf16.mxu0 0
      %3239 = vmatpush1.bf16.msra.mxu0 %v3187
      %3240 = vmatprep.subr.bf16.mxu0 0
      %3241 = vmatpush1.bf16.msra.mxu0 %v3188
      %3242 = vmatprep.subr.bf16.mxu0 0
      %3243 = vmatpush1.bf16.msra.mxu0 %v3189
      %3244 = vmatprep.subr.bf16.mxu0 0
      %3245 = vmatpush1.bf16.msra.mxu0 %v3190
      %3246 = vmatprep.subr.bf16.mxu0 0
      %3247 = vmatpush1.bf16.msra.mxu0 %v3191
      %3248 = vmatprep.subr.bf16.mxu0 0
      %3249 = vmatpush1.bf16.msra.mxu0 %v3192
      %3250 = vmatprep.subr.bf16.mxu0 0
      %3251 = vmatpush1.bf16.msra.mxu0 %v3193
      %3252 = vmatprep.subr.bf16.mxu0 0
      %3253 = vmatpush1.bf16.msra.mxu0 %v3194
      %3254 = vmatprep.subr.bf16.mxu0 0
      %3255 = vmatpush1.bf16.msra.mxu0 %v3195
      %3256 = vmatprep.subr.bf16.mxu0 0
      %3257 = vmatpush1.bf16.msra.mxu0 %v3196
      %3258 = vmatprep.subr.bf16.mxu0 0
      %3259 = vmatpush1.bf16.msra.mxu0 %v3197
      %3260 = vmatprep.subr.bf16.mxu0 0
      %3261 = vmatpush1.bf16.msra.mxu0 %v3198
      %3262 = vmatprep.subr.bf16.mxu0 0
      %3263 = vmatpush1.bf16.msra.mxu0 %v3199
      %3264 = vmatprep.mubr.bf16.mxu0 %v3008
      %3265 = vmatmul.mubr.bf16.gmra.mrb[0].mxu0 %v2984
      %v3266 = vpop.f32.mrb[0].mxu0
      %v3267 = vadd.f32 0.0, %v3266
      %v3268 = vpop.f32.mrb[0].mxu0
      %v3269 = vpop.f32.mrb[0].mxu0
      %v3270 = vadd.f32 0.0, %v3269
      %v3271 = vpop.f32.mrb[0].mxu0
      %3272 = vmatprep.mubr.bf16.mxu0 %v3009
      %3273 = vmatmul.mubr.bf16.gmra.mrb[0].mxu0 %v2985
      %v3274 = vpop.f32.mrb[0].mxu0
      %v3275 = vadd.f32 0.0, %v3274
      %v3276 = vpop.f32.mrb[0].mxu0
      %v3277 = vpop.f32.mrb[0].mxu0
      %v3278 = vadd.f32 0.0, %v3277
      %v3279 = vpop.f32.mrb[0].mxu0
      %3280 = vmatprep.mubr.bf16.mxu0 %v3010
      %3281 = vmatmul.mubr.bf16.gmra.mrb[0].mxu0 %v2986
      %v3282 = vpop.f32.mrb[0].mxu0
      %v3283 = vadd.f32 0.0, %v3282
      %v3284 = vpop.f32.mrb[0].mxu0
      %v3285 = vpop.f32.mrb[0].mxu0
      %v3286 = vadd.f32 0.0, %v3285
      %v3287 = vpop.f32.mrb[0].mxu0
      %3288 = vmatprep.mubr.bf16.mxu0 %v3011
      %3289 = vmatmul.mubr.bf16.gmra.mrb[0].mxu0 %v2987
      %v3290 = vpop.f32.mrb[0].mxu0
      %v3291 = vadd.f32 0.0, %v3290
      %v3292 = vpop.f32.mrb[0].mxu0
      %v3293 = vpop.f32.mrb[0].mxu0
      %v3294 = vadd.f32 0.0, %v3293
      %v3295 = vpop.f32.mrb[0].mxu0
      %3296 = vmatprep.mubr.bf16.mxu0 %v3012
      %3297 = vmatmul.mubr.bf16.gmra.mrb[0].mxu0 %v2988
      %v3298 = vpop.f32.mrb[0].mxu0
      %v3299 = vadd.f32 0.0, %v3298
      %v3300 = vpop.f32.mrb[0].mxu0
      %v3301 = vpop.f32.mrb[0].mxu0
      %v3302 = vadd.f32 0.0, %v3301
      %v3303 = vpop.f32.mrb[0].mxu0
      %3304 = vmatprep.mubr.bf16.mxu0 %v3013
      %3305 = vmatmul.mubr.bf16.gmra.mrb[0].mxu0 %v2989
      %v3306 = vpop.f32.mrb[0].mxu0
      %v3307 = vadd.f32 0.0, %v3306
      %v3308 = vpop.f32.mrb[0].mxu0
      %v3309 = vpop.f32.mrb[0].mxu0
      %v3310 = vadd.f32 0.0, %v3309
      %v3311 = vpop.f32.mrb[0].mxu0
      %3312 = vmatprep.mubr.bf16.mxu0 %v3014
      %3313 = vmatmul.mubr.bf16.gmra.mrb[0].mxu0 %v2990
      %v3314 = vpop.f32.mrb[0].mxu0
      %v3315 = vadd.f32 0.0, %v3314
      %v3316 = vpop.f32.mrb[0].mxu0
      %v3317 = vpop.f32.mrb[0].mxu0
      %v3318 = vadd.f32 0.0, %v3317
      %v3319 = vpop.f32.mrb[0].mxu0
      %3320 = vmatprep.mubr.bf16.mxu0 %v3015
      %3321 = vmatmul.mubr.bf16.gmra.mrb[0].mxu0 %v2991
      %v3322 = vpop.f32.mrb[0].mxu0
      %v3323 = vadd.f32 0.0, %v3322
      %v3324 = vpop.f32.mrb[0].mxu0
      %v3325 = vpop.f32.mrb[0].mxu0
      %v3326 = vadd.f32 0.0, %v3325
      %v3327 = vpop.f32.mrb[0].mxu0
      %3328 = vdwg.mxu0
      %3329 = vmatprep.subr.bf16.mxu0 0
      %3330 = vmatpush1.bf16.msra.mxu0 %v3200
      %3331 = vmatprep.subr.bf16.mxu0 0
      %3332 = vmatpush1.bf16.msra.mxu0 %v3201
      %3333 = vmatprep.subr.bf16.mxu0 0
      %3334 = vmatpush1.bf16.msra.mxu0 %v3202
      %3335 = vmatprep.subr.bf16.mxu0 0
      %3336 = vmatpush1.bf16.msra.mxu0 %v3203
      %3337 = vmatprep.subr.bf16.mxu0 0
      %3338 = vmatpush1.bf16.msra.mxu0 %v3204
      %3339 = vmatprep.subr.bf16.mxu0 0
      %3340 = vmatpush1.bf16.msra.mxu0 %v3205
      %3341 = vmatprep.subr.bf16.mxu0 0
      %3342 = vmatpush1.bf16.msra.mxu0 %v3206
      %3343 = vmatprep.subr.bf16.mxu0 0
      %3344 = vmatpush1.bf16.msra.mxu0 %v3207
      %3345 = vmatprep.subr.bf16.mxu0 0
      %3346 = vmatpush1.bf16.msra.mxu0 0
      %3347 = vmatprep.subr.bf16.mxu0 0
      %3348 = vmatpush1.bf16.msra.mxu0 0
      %3349 = vmatprep.subr.bf16.mxu0 0
      %3350 = vmatpush1.bf16.msra.mxu0 0
      %3351 = vmatprep.subr.bf16.mxu0 0
      %3352 = vmatpush1.bf16.msra.mxu0 0
      %3353 = vmatprep.subr.bf16.mxu0 0
      %3354 = vmatpush1.bf16.msra.mxu0 0
      %3355 = vmatprep.subr.bf16.mxu0 0
      %3356 = vmatpush1.bf16.msra.mxu0 0
      %3357 = vmatprep.subr.bf16.mxu0 0
      %3358 = vmatpush1.bf16.msra.mxu0 0
      %3359 = vmatprep.subr.bf16.mxu0 0
      %3360 = vmatpush1.bf16.msra.mxu0 0
      %3361 = vmatprep.mubr.bf16.mxu0 0
      %3362 = vmatmul.mubr.bf16.gmra.mrb[0].mxu0 %v3032
      %v3363 = vpop.f32.mrb[0].mxu0
      %v3364 = vadd.f32 %v3267, %v3363
      %v3365 = vpop.f32.mrb[0].mxu0
      %v3366 = vpop.f32.mrb[0].mxu0
      %v3367 = vadd.f32 %v3270, %v3366
      %v3368 = vpop.f32.mrb[0].mxu0
      %3369 = vmatprep.mubr.bf16.mxu0 0
      %3370 = vmatmul.mubr.bf16.gmra.mrb[0].mxu0 %v3033
      %v3371 = vpop.f32.mrb[0].mxu0
      %v3372 = vadd.f32 %v3275, %v3371
      %v3373 = vpop.f32.mrb[0].mxu0
      %v3374 = vpop.f32.mrb[0].mxu0
      %v3375 = vadd.f32 %v3278, %v3374
      %v3376 = vpop.f32.mrb[0].mxu0
      %3377 = vmatprep.mubr.bf16.mxu0 0
      %3378 = vmatmul.mubr.bf16.gmra.mrb[0].mxu0 %v3034
      %v3379 = vpop.f32.mrb[0].mxu0
      %v3380 = vadd.f32 %v3283, %v3379
      %v3381 = vpop.f32.mrb[0].mxu0
      %v3382 = vpop.f32.mrb[0].mxu0
      %v3383 = vadd.f32 %v3286, %v3382
      %v3384 = vpop.f32.mrb[0].mxu0
      %3385 = vmatprep.mubr.bf16.mxu0 0
      %3386 = vmatmul.mubr.bf16.gmra.mrb[0].mxu0 %v3035
      %v3387 = vpop.f32.mrb[0].mxu0
      %v3388 = vadd.f32 %v3291, %v3387
      %v3389 = vpop.f32.mrb[0].mxu0
      %v3390 = vpop.f32.mrb[0].mxu0
      %v3391 = vadd.f32 %v3294, %v3390
      %v3392 = vpop.f32.mrb[0].mxu0
      %3393 = vmatprep.mubr.bf16.mxu0 0
      %3394 = vmatmul.mubr.bf16.gmra.mrb[0].mxu0 %v3036
      %v3395 = vpop.f32.mrb[0].mxu0
      %v3396 = vadd.f32 %v3299, %v3395
      %v3397 = vpop.f32.mrb[0].mxu0
      %v3398 = vpop.f32.mrb[0].mxu0
      %v3399 = vadd.f32 %v3302, %v3398
      %v3400 = vpop.f32.mrb[0].mxu0
      %3401 = vmatprep.mubr.bf16.mxu0 0
      %3402 = vmatmul.mubr.bf16.gmra.mrb[0].mxu0 %v3037
      %v3403 = vpop.f32.mrb[0].mxu0
      %v3404 = vadd.f32 %v3307, %v3403
      %v3405 = vpop.f32.mrb[0].mxu0
      %v3406 = vpop.f32.mrb[0].mxu0
      %v3407 = vadd.f32 %v3310, %v3406
      %v3408 = vpop.f32.mrb[0].mxu0
      %3409 = vmatprep.mubr.bf16.mxu0 0
      %3410 = vmatmul.mubr.bf16.gmra.mrb[0].mxu0 %v3038
      %v3411 = vpop.f32.mrb[0].mxu0
      %v3412 = vadd.f32 %v3315, %v3411
      %v3413 = vpop.f32.mrb[0].mxu0
      %v3414 = vpop.f32.mrb[0].mxu0
      %v3415 = vadd.f32 %v3318, %v3414
      %v3416 = vpop.f32.mrb[0].mxu0
      %3417 = vmatprep.mubr.bf16.mxu0 0
      %3418 = vmatmul.mubr.bf16.gmra.mrb[0].mxu0 %v3039
      %v3419 = vpop.f32.mrb[0].mxu0
      %v3420 = vadd.f32 %v3323, %v3419
      %v3421 = vpop.f32.mrb[0].mxu0
      %v3422 = vpop.f32.mrb[0].mxu0
      %v3423 = vadd.f32 %v3326, %v3422
      %v3424 = vpop.f32.mrb[0].mxu0
      %3425 = vdwg.mxu0
      %v3426 = vadd.f32 %v2905, %v3364
      %v3427 = vadd.f32 %v2908, %v3367
      %v3428 = vadd.f32 %v2913, %v3372
      %v3429 = vadd.f32 %v2916, %v3375
      %v3430 = vadd.f32 %v2921, %v3380
      %v3431 = vadd.f32 %v2924, %v3383
      %v3432 = vadd.f32 %v2929, %v3388
      %v3433 = vadd.f32 %v2932, %v3391
      %v3434 = vadd.f32 %v2937, %v3396
      %v3435 = vadd.f32 %v2940, %v3399
      %v3436 = vadd.f32 %v2945, %v3404
      %v3437 = vadd.f32 %v2948, %v3407
      %v3438 = vadd.f32 %v2953, %v3412
      %v3439 = vadd.f32 %v2956, %v3415
      %v3440 = vadd.f32 %v2961, %v3420
      %v3441 = vadd.f32 %v2964, %v3423
      %v3442 = vadd.f32 %v3426, %v1746
      %v3443 = vadd.f32 %v3427, %v1746
      %v3444 = vadd.f32 %v3428, %v1746
      %v3445 = vadd.f32 %v3429, %v1746
      %v3446 = vadd.f32 %v3430, %v1746
      %v3447 = vadd.f32 %v3431, %v1746
      %v3448 = vadd.f32 %v3432, %v1746
      %v3449 = vadd.f32 %v3433, %v1746
      %v3450 = vadd.f32 %v3434, %v1746
      %v3451 = vadd.f32 %v3435, %v1746
      %v3452 = vadd.f32 %v3436, %v1746
      %v3453 = vadd.f32 %v3437, %v1746
      %v3454 = vadd.f32 %v3438, %v1746
      %v3455 = vadd.f32 %v3439, %v1746
      %v3456 = vadd.f32 %v3440, %v1746
      %v3457 = vadd.f32 %v3441, %v1746
      %v3458 = vmax.f32 %v3442, 0.0
      %v3459 = vmax.f32 %v3443, 0.0
      %v3460 = vmax.f32 %v3444, 0.0
      %v3461 = vmax.f32 %v3445, 0.0
      %v3462 = vmax.f32 %v3446, 0.0
      %v3463 = vmax.f32 %v3447, 0.0
      %v3464 = vmax.f32 %v3448, 0.0
      %v3465 = vmax.f32 %v3449, 0.0
      %v3466 = vmax.f32 %v3450, 0.0
      %v3467 = vmax.f32 %v3451, 0.0
      %v3468 = vmax.f32 %v3452, 0.0
      %v3469 = vmax.f32 %v3453, 0.0
      %v3470 = vmax.f32 %v3454, 0.0
      %v3471 = vmax.f32 %v3455, 0.0
      %v3472 = vmax.f32 %v3456, 0.0
      %v3473 = vmax.f32 %v3457, 0.0
      %v3474 = vpack.c.bf16 %v3459, %v3458
      %v3475 = vpack.c.bf16 %v3461, %v3460
      %v3476 = vpack.c.bf16 %v3463, %v3462
      %v3477 = vpack.c.bf16 %v3465, %v3464
      %v3478 = vpack.c.bf16 %v3467, %v3466
      %v3479 = vpack.c.bf16 %v3469, %v3468
      %v3480 = vpack.c.bf16 %v3471, %v3470
      %v3481 = vpack.c.bf16 %v3473, %v3472
      %v3490 = vunpack.c.l.b16 %v3474
      %v3491 = vunpack.c.h.b16 %v3474
      %v3492 = vunpack.c.l.b16 %v3475
      %v3493 = vunpack.c.h.b16 %v3475
      %v3494 = vunpack.c.l.b16 %v3476
      %v3495 = vunpack.c.h.b16 %v3476
      %v3496 = vunpack.c.l.b16 %v3477
      %v3497 = vunpack.c.h.b16 %v3477
      %v3498 = vunpack.c.l.b16 %v3478
      %v3499 = vunpack.c.h.b16 %v3478
      %v3500 = vunpack.c.l.b16 %v3479
      %v3501 = vunpack.c.h.b16 %v3479
      %v3502 = vunpack.c.l.b16 %v3480
      %v3503 = vunpack.c.h.b16 %v3480
      %v3504 = vunpack.c.l.b16 %v3481
      %v3505 = vunpack.c.h.b16 %v3481
      %v3506 = vpack.c.b16 %v3490, %v3490
      %v3507 = vpack.c.b16 %v3491, %v3491
      %v3508 = vpack.c.b16 %v3492, %v3492
      %v3509 = vpack.c.b16 %v3493, %v3493
      %v3510 = vpack.c.b16 %v3494, %v3494
      %v3511 = vpack.c.b16 %v3495, %v3495
      %v3512 = vpack.c.b16 %v3496, %v3496
      %v3513 = vpack.c.b16 %v3497, %v3497
      %v3514 = vpack.c.b16 %v3498, %v3498
      %v3515 = vpack.c.b16 %v3499, %v3499
      %v3516 = vpack.c.b16 %v3500, %v3500
      %v3517 = vpack.c.b16 %v3501, %v3501
      %v3518 = vpack.c.b16 %v3502, %v3502
      %v3519 = vpack.c.b16 %v3503, %v3503
      %v3520 = vpack.c.b16 %v3504, %v3504
      %v3521 = vpack.c.b16 %v3505, %v3505
      %v3523 = vshrl.u32 %v3506, 16
      %v3525 = vrot.slane %v3523, 7
      %v3526 = vshll.u32 %v3506, 16
      %v3528 = vor.u32 %v3525, %v3526
      %v3529 = vrot.slane %v3525, 4
      %v3531 = vshrl.u32 %v3507, 16
      %v3533 = vrot.slane %v3531, 7
      %v3534 = vshll.u32 %v3507, 16
      %v3536 = vor.u32 %v3533, %v3534
      %v3537 = vsel %vm1829, %v3529, %v3536
      %v3538 = vrot.slane %v3533, 4
      %v3540 = vshrl.u32 %v3508, 16
      %v3542 = vrot.slane %v3540, 7
      %v3543 = vshll.u32 %v3508, 16
      %v3545 = vor.u32 %v3542, %v3543
      %v3546 = vrot.slane %v3542, 4
      %v3548 = vshrl.u32 %v3509, 16
      %v3550 = vrot.slane %v3548, 7
      %v3551 = vshll.u32 %v3509, 16
      %v3553 = vor.u32 %v3550, %v3551
      %v3554 = vsel %vm1829, %v3546, %v3553
      %v3555 = vrot.slane %v3550, 4
      %v3557 = vshrl.u32 %v3510, 16
      %v3559 = vrot.slane %v3557, 7
      %v3560 = vshll.u32 %v3510, 16
      %v3562 = vor.u32 %v3559, %v3560
      %v3563 = vrot.slane %v3559, 4
      %v3565 = vshrl.u32 %v3511, 16
      %v3567 = vrot.slane %v3565, 7
      %v3568 = vshll.u32 %v3511, 16
      %v3570 = vor.u32 %v3567, %v3568
      %v3571 = vsel %vm1829, %v3563, %v3570
      %v3572 = vrot.slane %v3567, 4
      %v3574 = vshrl.u32 %v3512, 16
      %v3576 = vrot.slane %v3574, 7
      %v3577 = vshll.u32 %v3512, 16
      %v3579 = vor.u32 %v3576, %v3577
      %v3580 = vrot.slane %v3576, 4
      %v3582 = vshrl.u32 %v3513, 16
      %v3584 = vrot.slane %v3582, 7
      %v3585 = vshll.u32 %v3513, 16
      %v3587 = vor.u32 %v3584, %v3585
      %v3588 = vsel %vm1829, %v3580, %v3587
      %v3589 = vrot.slane %v3584, 4
      %v3591 = vshrl.u32 %v3514, 16
      %v3593 = vrot.slane %v3591, 7
      %v3594 = vshll.u32 %v3514, 16
      %v3596 = vor.u32 %v3593, %v3594
      %v3597 = vrot.slane %v3593, 4
      %v3599 = vshrl.u32 %v3515, 16
      %v3601 = vrot.slane %v3599, 7
      %v3602 = vshll.u32 %v3515, 16
      %v3604 = vor.u32 %v3601, %v3602
      %v3605 = vsel %vm1829, %v3597, %v3604
      %v3606 = vrot.slane %v3601, 4
      %v3608 = vshrl.u32 %v3516, 16
      %v3610 = vrot.slane %v3608, 7
      %v3611 = vshll.u32 %v3516, 16
      %v3613 = vor.u32 %v3610, %v3611
      %v3614 = vrot.slane %v3610, 4
      %v3616 = vshrl.u32 %v3517, 16
      %v3618 = vrot.slane %v3616, 7
      %v3619 = vshll.u32 %v3517, 16
      %v3621 = vor.u32 %v3618, %v3619
      %v3622 = vsel %vm1829, %v3614, %v3621
      %v3623 = vrot.slane %v3618, 4
      %v3625 = vshrl.u32 %v3518, 16
      %v3627 = vrot.slane %v3625, 7
      %v3628 = vshll.u32 %v3518, 16
      %v3630 = vor.u32 %v3627, %v3628
      %v3631 = vrot.slane %v3627, 4
      %v3633 = vshrl.u32 %v3519, 16
      %v3635 = vrot.slane %v3633, 7
      %v3636 = vshll.u32 %v3519, 16
      %v3638 = vor.u32 %v3635, %v3636
      %v3639 = vsel %vm1829, %v3631, %v3638
      %v3640 = vrot.slane %v3635, 4
      %v3642 = vshrl.u32 %v3520, 16
      %v3644 = vrot.slane %v3642, 7
      %v3645 = vshll.u32 %v3520, 16
      %v3647 = vor.u32 %v3644, %v3645
      %v3648 = vrot.slane %v3644, 4
      %v3650 = vshrl.u32 %v3521, 16
      %v3652 = vrot.slane %v3650, 7
      %v3653 = vshll.u32 %v3521, 16
      %v3655 = vor.u32 %v3652, %v3653
      %v3656 = vsel %vm1829, %v3648, %v3655
      %v3657 = vrot.slane %v3652, 4
      %s3682 = scalar_lea.vmem [#allocation2], 108
      %v3683 = vld [vmem:[%s3682] sm:$0xf]
      %v3684 = vsel %vm1992, %v3528, %v3683
      %3685 = vst [vmem:[%s3682] sm:$0xf] %v3684
      %3686 = vst [vmem:[%s3682 + $0x4] sm:$0xf] %v3537
      %v3687 = vld [vmem:[%s3682 + $0x8] sm:$0x1]
      %v3688 = vsel %vm237, %v3538, %v3687
      %3689 = vst [vmem:[%s3682 + $0x8] sm:$0x1] %v3688
      %v3690 = vld [vmem:[%s3682 + $0xc] sm:$0xf]
      %v3691 = vsel %vm1992, %v3545, %v3690
      %3692 = vst [vmem:[%s3682 + $0xc] sm:$0xf] %v3691
      %3693 = vst [vmem:[%s3682 + $0x10] sm:$0xf] %v3554
      %v3694 = vld [vmem:[%s3682 + $0x14] sm:$0x1]
      %v3695 = vsel %vm237, %v3555, %v3694
      %3696 = vst [vmem:[%s3682 + $0x14] sm:$0x1] %v3695
      %v3697 = vld [vmem:[%s3682 + $0x18] sm:$0xf]
      %v3698 = vsel %vm1992, %v3562, %v3697
      %3699 = vst [vmem:[%s3682 + $0x18] sm:$0xf] %v3698
      %3700 = vst [vmem:[%s3682 + $0x1c] sm:$0xf] %v3571
      %v3701 = vld [vmem:[%s3682 + $0x20] sm:$0x1]
      %v3702 = vsel %vm237, %v3572, %v3701
      %3703 = vst [vmem:[%s3682 + $0x20] sm:$0x1] %v3702
      %v3704 = vld [vmem:[%s3682 + $0x24] sm:$0xf]
      %v3705 = vsel %vm1992, %v3579, %v3704
      %3706 = vst [vmem:[%s3682 + $0x24] sm:$0xf] %v3705
      %3707 = vst [vmem:[%s3682 + $0x28] sm:$0xf] %v3588
      %v3708 = vld [vmem:[%s3682 + $0x2c] sm:$0x1]
      %v3709 = vsel %vm237, %v3589, %v3708
      %3710 = vst [vmem:[%s3682 + $0x2c] sm:$0x1] %v3709
      %v3711 = vld [vmem:[%s3682 + $0x30] sm:$0xf]
      %v3712 = vsel %vm1992, %v3596, %v3711
      %3713 = vst [vmem:[%s3682 + $0x30] sm:$0xf] %v3712
      %3714 = vst [vmem:[%s3682 + $0x34] sm:$0xf] %v3605
      %v3715 = vld [vmem:[%s3682 + $0x38] sm:$0x1]
      %v3716 = vsel %vm237, %v3606, %v3715
      %3717 = vst [vmem:[%s3682 + $0x38] sm:$0x1] %v3716
      %v3718 = vld [vmem:[%s3682 + $0x3c] sm:$0xf]
      %v3719 = vsel %vm1992, %v3613, %v3718
      %3720 = vst [vmem:[%s3682 + $0x3c] sm:$0xf] %v3719
      %3721 = vst [vmem:[%s3682 + $0x40] sm:$0xf] %v3622
      %v3722 = vld [vmem:[%s3682 + $0x44] sm:$0x1]
      %v3723 = vsel %vm237, %v3623, %v3722
      %3724 = vst [vmem:[%s3682 + $0x44] sm:$0x1] %v3723
      %v3725 = vld [vmem:[%s3682 + $0x48] sm:$0xf]
      %v3726 = vsel %vm1992, %v3630, %v3725
      %3727 = vst [vmem:[%s3682 + $0x48] sm:$0xf] %v3726
      %3728 = vst [vmem:[%s3682 + $0x4c] sm:$0xf] %v3639
      %v3729 = vld [vmem:[%s3682 + $0x50] sm:$0x1]
      %v3730 = vsel %vm237, %v3640, %v3729
      %3731 = vst [vmem:[%s3682 + $0x50] sm:$0x1] %v3730
      %v3732 = vld [vmem:[%s3682 + $0x54] sm:$0xf]
      %v3733 = vsel %vm1992, %v3647, %v3732
      %3734 = vst [vmem:[%s3682 + $0x54] sm:$0xf] %v3733
      %3735 = vst [vmem:[%s3682 + $0x58] sm:$0xf] %v3656
      %v3736 = vld [vmem:[%s3682 + $0x5c] sm:$0x1]
      %v3737 = vsel %vm237, %v3657, %v3736
      %3738 = vst [vmem:[%s3682 + $0x5c] sm:$0x1] %v3737
      %v3739 = vld [vmem:[#allocation2] sm:$0xf]
      %v3740 = vld [vmem:[#allocation2 + $0x4] sm:$0xf]
      %v3741 = vld [vmem:[#allocation2 + $0xc] sm:$0xf]
      %v3742 = vld [vmem:[#allocation2 + $0x10] sm:$0xf]
      %v3743 = vld [vmem:[#allocation2 + $0x18] sm:$0xf]
      %v3744 = vld [vmem:[#allocation2 + $0x1c] sm:$0xf]
      %v3745 = vld [vmem:[#allocation2 + $0x24] sm:$0xf]
      %v3746 = vld [vmem:[#allocation2 + $0x28] sm:$0xf]
      %v3747 = vld [vmem:[#allocation2 + $0x30] sm:$0xf]
      %v3748 = vld [vmem:[#allocation2 + $0x34] sm:$0xf]
      %v3749 = vld [vmem:[#allocation2 + $0x3c] sm:$0xf]
      %v3750 = vld [vmem:[#allocation2 + $0x40] sm:$0xf]
      %v3751 = vld [vmem:[#allocation2 + $0x48] sm:$0xf]
      %v3752 = vld [vmem:[#allocation2 + $0x4c] sm:$0xf]
      %v3753 = vld [vmem:[#allocation2 + $0x54] sm:$0xf]
      %v3754 = vld [vmem:[#allocation2 + $0x58] sm:$0xf]
      %v3755 = vld [vmem:[#allocation2 + $0x8] sm:$0x1]
      %v3756 = vld [vmem:[#allocation2 + $0x14] sm:$0x1]
      %v3757 = vld [vmem:[#allocation2 + $0x20] sm:$0x1]
      %v3758 = vld [vmem:[#allocation2 + $0x2c] sm:$0x1]
      %v3759 = vld [vmem:[#allocation2 + $0x38] sm:$0x1]
      %v3760 = vld [vmem:[#allocation2 + $0x44] sm:$0x1]
      %v3761 = vld [vmem:[#allocation2 + $0x50] sm:$0x1]
      %v3762 = vld [vmem:[#allocation2 + $0x5c] sm:$0x1]
      %vm3763 = vsmask.f32 3328
      %vm3764 = vsmask.f32 7440
      %vm3765 = vmor %vm3763, %vm3764
      %v3767 = vshrl.u32 %v3739, 16
      %v3769 = vrot.slane %v3767, 4
      %v3770 = vshll.u32 %v3739, 16
      %v3772 = vrot.slane %v3770, 5
      %v3773 = vor.u32 %v3769, %v3772
      %v3774 = vrot.slane %v3773, 4
      %v3776 = vshll.u32 %v3740, 16
      %v3778 = vrot.slane %v3776, 5
      %v3779 = vsel %vm3765, %v3774, %v3778
      %v3780 = vshrl.u32 %v3740, 16
      %v3782 = vrot.slane %v3780, 4
      %v3783 = vor.u32 %v3782, %v3778
      %v3784 = vrot.slane %v3783, 4
      %v3786 = vshll.u32 %v3755, 16
      %v3788 = vrot.slane %v3786, 5
      %v3789 = vsel %vm3765, %v3784, %v3788
      %v3791 = vshrl.u32 %v3741, 16
      %v3793 = vrot.slane %v3791, 4
      %v3794 = vshll.u32 %v3741, 16
      %v3796 = vrot.slane %v3794, 5
      %v3797 = vor.u32 %v3793, %v3796
      %v3798 = vrot.slane %v3797, 4
      %v3800 = vshll.u32 %v3742, 16
      %v3802 = vrot.slane %v3800, 5
      %v3803 = vsel %vm3765, %v3798, %v3802
      %v3804 = vshrl.u32 %v3742, 16
      %v3806 = vrot.slane %v3804, 4
      %v3807 = vor.u32 %v3806, %v3802
      %v3808 = vrot.slane %v3807, 4
      %v3810 = vshll.u32 %v3756, 16
      %v3812 = vrot.slane %v3810, 5
      %v3813 = vsel %vm3765, %v3808, %v3812
      %v3815 = vshrl.u32 %v3743, 16
      %v3817 = vrot.slane %v3815, 4
      %v3818 = vshll.u32 %v3743, 16
      %v3820 = vrot.slane %v3818, 5
      %v3821 = vor.u32 %v3817, %v3820
      %v3822 = vrot.slane %v3821, 4
      %v3824 = vshll.u32 %v3744, 16
      %v3826 = vrot.slane %v3824, 5
      %v3827 = vsel %vm3765, %v3822, %v3826
      %v3828 = vshrl.u32 %v3744, 16
      %v3830 = vrot.slane %v3828, 4
      %v3831 = vor.u32 %v3830, %v3826
      %v3832 = vrot.slane %v3831, 4
      %v3834 = vshll.u32 %v3757, 16
      %v3836 = vrot.slane %v3834, 5
      %v3837 = vsel %vm3765, %v3832, %v3836
      %v3839 = vshrl.u32 %v3745, 16
      %v3841 = vrot.slane %v3839, 4
      %v3842 = vshll.u32 %v3745, 16
      %v3844 = vrot.slane %v3842, 5
      %v3845 = vor.u32 %v3841, %v3844
      %v3846 = vrot.slane %v3845, 4
      %v3848 = vshll.u32 %v3746, 16
      %v3850 = vrot.slane %v3848, 5
      %v3851 = vsel %vm3765, %v3846, %v3850
      %v3852 = vshrl.u32 %v3746, 16
      %v3854 = vrot.slane %v3852, 4
      %v3855 = vor.u32 %v3854, %v3850
      %v3856 = vrot.slane %v3855, 4
      %v3858 = vshll.u32 %v3758, 16
      %v3860 = vrot.slane %v3858, 5
      %v3861 = vsel %vm3765, %v3856, %v3860
      %v3863 = vshrl.u32 %v3747, 16
      %v3865 = vrot.slane %v3863, 4
      %v3866 = vshll.u32 %v3747, 16
      %v3868 = vrot.slane %v3866, 5
      %v3869 = vor.u32 %v3865, %v3868
      %v3870 = vrot.slane %v3869, 4
      %v3872 = vshll.u32 %v3748, 16
      %v3874 = vrot.slane %v3872, 5
      %v3875 = vsel %vm3765, %v3870, %v3874
      %v3876 = vshrl.u32 %v3748, 16
      %v3878 = vrot.slane %v3876, 4
      %v3879 = vor.u32 %v3878, %v3874
      %v3880 = vrot.slane %v3879, 4
      %v3882 = vshll.u32 %v3759, 16
      %v3884 = vrot.slane %v3882, 5
      %v3885 = vsel %vm3765, %v3880, %v3884
      %v3887 = vshrl.u32 %v3749, 16
      %v3889 = vrot.slane %v3887, 4
      %v3890 = vshll.u32 %v3749, 16
      %v3892 = vrot.slane %v3890, 5
      %v3893 = vor.u32 %v3889, %v3892
      %v3894 = vrot.slane %v3893, 4
      %v3896 = vshll.u32 %v3750, 16
      %v3898 = vrot.slane %v3896, 5
      %v3899 = vsel %vm3765, %v3894, %v3898
      %v3900 = vshrl.u32 %v3750, 16
      %v3902 = vrot.slane %v3900, 4
      %v3903 = vor.u32 %v3902, %v3898
      %v3904 = vrot.slane %v3903, 4
      %v3906 = vshll.u32 %v3760, 16
      %v3908 = vrot.slane %v3906, 5
      %v3909 = vsel %vm3765, %v3904, %v3908
      %v3911 = vshrl.u32 %v3751, 16
      %v3913 = vrot.slane %v3911, 4
      %v3914 = vshll.u32 %v3751, 16
      %v3916 = vrot.slane %v3914, 5
      %v3917 = vor.u32 %v3913, %v3916
      %v3918 = vrot.slane %v3917, 4
      %v3920 = vshll.u32 %v3752, 16
      %v3922 = vrot.slane %v3920, 5
      %v3923 = vsel %vm3765, %v3918, %v3922
      %v3924 = vshrl.u32 %v3752, 16
      %v3926 = vrot.slane %v3924, 4
      %v3927 = vor.u32 %v3926, %v3922
      %v3928 = vrot.slane %v3927, 4
      %v3930 = vshll.u32 %v3761, 16
      %v3932 = vrot.slane %v3930, 5
      %v3933 = vsel %vm3765, %v3928, %v3932
      %v3935 = vshrl.u32 %v3753, 16
      %v3937 = vrot.slane %v3935, 4
      %v3938 = vshll.u32 %v3753, 16
      %v3940 = vrot.slane %v3938, 5
      %v3941 = vor.u32 %v3937, %v3940
      %v3942 = vrot.slane %v3941, 4
      %v3944 = vshll.u32 %v3754, 16
      %v3946 = vrot.slane %v3944, 5
      %v3947 = vsel %vm3765, %v3942, %v3946
      %v3948 = vshrl.u32 %v3754, 16
      %v3950 = vrot.slane %v3948, 4
      %v3951 = vor.u32 %v3950, %v3946
      %v3952 = vrot.slane %v3951, 4
      %v3954 = vshll.u32 %v3762, 16
      %v3956 = vrot.slane %v3954, 5
      %v3957 = vsel %vm3765, %v3952, %v3956
      %v3958 = vld [vmem:[#allocation2] sm:$0xe]
      %v3959 = vld [vmem:[#allocation2 + $0xc] sm:$0xe]
      %v3960 = vld [vmem:[#allocation2 + $0x18] sm:$0xe]
      %v3961 = vld [vmem:[#allocation2 + $0x24] sm:$0xe]
      %v3962 = vld [vmem:[#allocation2 + $0x30] sm:$0xe]
      %v3963 = vld [vmem:[#allocation2 + $0x3c] sm:$0xe]
      %v3964 = vld [vmem:[#allocation2 + $0x48] sm:$0xe]
      %v3965 = vld [vmem:[#allocation2 + $0x54] sm:$0xe]
      %vm3990 = vcmask 1042432
      %vm3991 = vcmask 1046532
      %vm3992 = vmor %vm3990, %vm3991
      %v3993 = vrot.slane %v3958, 5
      %v3994 = vrot.slane %v3993, 4
      %v3995 = vrot.slane %v3740, 5
      %v3996 = vsel %vm3992, %v3994, %v3995
      %v3997 = vrot.slane %v3995, 4
      %v3998 = vrot.slane %v3755, 5
      %v3999 = vsel %vm3992, %v3997, %v3998
      %v4000 = vrot.slane %v3959, 5
      %v4001 = vrot.slane %v4000, 4
      %v4002 = vrot.slane %v3742, 5
      %v4003 = vsel %vm3992, %v4001, %v4002
      %v4004 = vrot.slane %v4002, 4
      %v4005 = vrot.slane %v3756, 5
      %v4006 = vsel %vm3992, %v4004, %v4005
      %v4007 = vrot.slane %v3960, 5
      %v4008 = vrot.slane %v4007, 4
      %v4009 = vrot.slane %v3744, 5
      %v4010 = vsel %vm3992, %v4008, %v4009
      %v4011 = vrot.slane %v4009, 4
      %v4012 = vrot.slane %v3757, 5
      %v4013 = vsel %vm3992, %v4011, %v4012
      %v4014 = vrot.slane %v3961, 5
      %v4015 = vrot.slane %v4014, 4
      %v4016 = vrot.slane %v3746, 5
      %v4017 = vsel %vm3992, %v4015, %v4016
      %v4018 = vrot.slane %v4016, 4
      %v4019 = vrot.slane %v3758, 5
      %v4020 = vsel %vm3992, %v4018, %v4019
      %v4021 = vrot.slane %v3962, 5
      %v4022 = vrot.slane %v4021, 4
      %v4023 = vrot.slane %v3748, 5
      %v4024 = vsel %vm3992, %v4022, %v4023
      %v4025 = vrot.slane %v4023, 4
      %v4026 = vrot.slane %v3759, 5
      %v4027 = vsel %vm3992, %v4025, %v4026
      %v4028 = vrot.slane %v3963, 5
      %v4029 = vrot.slane %v4028, 4
      %v4030 = vrot.slane %v3750, 5
      %v4031 = vsel %vm3992, %v4029, %v4030
      %v4032 = vrot.slane %v4030, 4
      %v4033 = vrot.slane %v3760, 5
      %v4034 = vsel %vm3992, %v4032, %v4033
      %v4035 = vrot.slane %v3964, 5
      %v4036 = vrot.slane %v4035, 4
      %v4037 = vrot.slane %v3752, 5
      %v4038 = vsel %vm3992, %v4036, %v4037
      %v4039 = vrot.slane %v4037, 4
      %v4040 = vrot.slane %v3761, 5
      %v4041 = vsel %vm3992, %v4039, %v4040
      %v4042 = vrot.slane %v3965, 5
      %v4043 = vrot.slane %v4042, 4
      %v4044 = vrot.slane %v3754, 5
      %v4045 = vsel %vm3992, %v4043, %v4044
      %v4046 = vrot.slane %v4044, 4
      %v4047 = vrot.slane %v3762, 5
      %v4048 = vsel %vm3992, %v4046, %v4047
      %v4057 = vunpack.c.l.b16 %v3739
      %v4058 = vunpack.c.l.b16 %v3740
      %v4059 = vunpack.c.l.b16 %v3741
      %v4060 = vunpack.c.l.b16 %v3742
      %v4061 = vunpack.c.l.b16 %v3743
      %v4062 = vunpack.c.l.b16 %v3744
      %v4063 = vunpack.c.l.b16 %v3745
      %v4064 = vunpack.c.l.b16 %v3746
      %v4065 = vunpack.c.l.b16 %v3747
      %v4066 = vunpack.c.l.b16 %v3748
      %v4067 = vunpack.c.l.b16 %v3749
      %v4068 = vunpack.c.l.b16 %v3750
      %v4069 = vunpack.c.l.b16 %v3751
      %v4070 = vunpack.c.l.b16 %v3752
      %v4071 = vunpack.c.l.b16 %v3753
      %v4072 = vunpack.c.l.b16 %v3754
      %v4073 = vpack.c.b16 %v4058, %v4057
      %v4074 = vpack.c.b16 %v4060, %v4059
      %v4075 = vpack.c.b16 %v4062, %v4061
      %v4076 = vpack.c.b16 %v4064, %v4063
      %v4077 = vpack.c.b16 %v4066, %v4065
      %v4078 = vpack.c.b16 %v4068, %v4067
      %v4079 = vpack.c.b16 %v4070, %v4069
      %v4080 = vpack.c.b16 %v4072, %v4071
      %v4089 = vunpack.c.l.b16 %v3779
      %v4090 = vunpack.c.l.b16 %v3789
      %v4091 = vunpack.c.l.b16 %v3803
      %v4092 = vunpack.c.l.b16 %v3813
      %v4093 = vunpack.c.l.b16 %v3827
      %v4094 = vunpack.c.l.b16 %v3837
      %v4095 = vunpack.c.l.b16 %v3851
      %v4096 = vunpack.c.l.b16 %v3861
      %v4097 = vunpack.c.l.b16 %v3875
      %v4098 = vunpack.c.l.b16 %v3885
      %v4099 = vunpack.c.l.b16 %v3899
      %v4100 = vunpack.c.l.b16 %v3909
      %v4101 = vunpack.c.l.b16 %v3923
      %v4102 = vunpack.c.l.b16 %v3933
      %v4103 = vunpack.c.l.b16 %v3947
      %v4104 = vunpack.c.l.b16 %v3957
      %v4105 = vpack.c.b16 %v4090, %v4089
      %v4106 = vpack.c.b16 %v4092, %v4091
      %v4107 = vpack.c.b16 %v4094, %v4093
      %v4108 = vpack.c.b16 %v4096, %v4095
      %v4109 = vpack.c.b16 %v4098, %v4097
      %v4110 = vpack.c.b16 %v4100, %v4099
      %v4111 = vpack.c.b16 %v4102, %v4101
      %v4112 = vpack.c.b16 %v4104, %v4103
      %v4121 = vunpack.c.l.b16 %v3996
      %v4122 = vunpack.c.l.b16 %v3999
      %v4123 = vunpack.c.l.b16 %v4003
      %v4124 = vunpack.c.l.b16 %v4006
      %v4125 = vunpack.c.l.b16 %v4010
      %v4126 = vunpack.c.l.b16 %v4013
      %v4127 = vunpack.c.l.b16 %v4017
      %v4128 = vunpack.c.l.b16 %v4020
      %v4129 = vunpack.c.l.b16 %v4024
      %v4130 = vunpack.c.l.b16 %v4027
      %v4131 = vunpack.c.l.b16 %v4031
      %v4132 = vunpack.c.l.b16 %v4034
      %v4133 = vunpack.c.l.b16 %v4038
      %v4134 = vunpack.c.l.b16 %v4041
      %v4135 = vunpack.c.l.b16 %v4045
      %v4136 = vunpack.c.l.b16 %v4048
      %v4137 = vpack.c.b16 %v4122, %v4121
      %v4138 = vpack.c.b16 %v4124, %v4123
      %v4139 = vpack.c.b16 %v4126, %v4125
      %v4140 = vpack.c.b16 %v4128, %v4127
      %v4141 = vpack.c.b16 %v4130, %v4129
      %v4142 = vpack.c.b16 %v4132, %v4131
      %v4143 = vpack.c.b16 %v4134, %v4133
      %v4144 = vpack.c.b16 %v4136, %v4135
      %v4153 = vld [vmem:[%s3] sm:$0xf]
      %v4154 = vld [vmem:[%s3 + $0x4] sm:$0xf]
      %v4155 = vld [vmem:[%s3 + $0x8] sm:$0xf]
      %v4156 = vld [vmem:[%s3 + $0xc] sm:$0xf]
      %v4157 = vld [vmem:[%s3 + $0x10] sm:$0xf]
      %v4158 = vld [vmem:[%s3 + $0x14] sm:$0xf]
      %v4159 = vld [vmem:[%s3 + $0x18] sm:$0xf]
      %v4160 = vld [vmem:[%s3 + $0x1c] sm:$0xf]
      %v4161 = vld [vmem:[%s3 + $0x20] sm:$0xf]
      %v4162 = vld [vmem:[%s3 + $0x24] sm:$0xf]
      %v4163 = vld [vmem:[%s3 + $0x28] sm:$0xf]
      %v4164 = vld [vmem:[%s3 + $0x2c] sm:$0xf]
      %v4165 = vld [vmem:[%s3 + $0x30] sm:$0xf]
      %v4166 = vld [vmem:[%s3 + $0x34] sm:$0xf]
      %v4167 = vld [vmem:[%s3 + $0x38] sm:$0xf]
      %v4168 = vld [vmem:[%s3 + $0x3c] sm:$0xf]
      %v4169 = vld [vmem:[%s3 + $0x40] sm:$0xf]
      %v4170 = vld [vmem:[%s3 + $0x44] sm:$0xf]
      %v4171 = vld [vmem:[%s3 + $0x48] sm:$0xf]
      %v4172 = vld [vmem:[%s3 + $0x4c] sm:$0xf]
      %v4173 = vld [vmem:[%s3 + $0x50] sm:$0xf]
      %v4174 = vld [vmem:[%s3 + $0x54] sm:$0xf]
      %v4175 = vld [vmem:[%s3 + $0x58] sm:$0xf]
      %v4176 = vld [vmem:[%s3 + $0x5c] sm:$0xf]
      %v4177 = vld [vmem:[%s3 + $0x60] sm:$0xf]
      %v4178 = vld [vmem:[%s3 + $0x64] sm:$0xf]
      %v4179 = vld [vmem:[%s3 + $0x68] sm:$0xf]
      %v4180 = vld [vmem:[%s3 + $0x6c] sm:$0xf]
      %v4181 = vld [vmem:[%s3 + $0x70] sm:$0xf]
      %v4182 = vld [vmem:[%s3 + $0x74] sm:$0xf]
      %v4183 = vld [vmem:[%s3 + $0x78] sm:$0xf]
      %v4184 = vld [vmem:[%s3 + $0x7c] sm:$0xf]
      %v4185 = vld [vmem:[%s3 + $0x80] sm:$0xf]
      %v4186 = vld [vmem:[%s3 + $0x84] sm:$0xf]
      %v4187 = vld [vmem:[%s3 + $0x88] sm:$0xf]
      %v4188 = vld [vmem:[%s3 + $0x8c] sm:$0xf]
      %v4189 = vld [vmem:[%s3 + $0x90] sm:$0xf]
      %v4190 = vld [vmem:[%s3 + $0x94] sm:$0xf]
      %v4191 = vld [vmem:[%s3 + $0x98] sm:$0xf]
      %v4192 = vld [vmem:[%s3 + $0x9c] sm:$0xf]
      %v4193 = vld [vmem:[%s3 + $0xa0] sm:$0xf]
      %v4194 = vld [vmem:[%s3 + $0xa4] sm:$0xf]
      %v4195 = vld [vmem:[%s3 + $0xa8] sm:$0xf]
      %v4196 = vld [vmem:[%s3 + $0xac] sm:$0xf]
      %v4197 = vld [vmem:[%s3 + $0xb0] sm:$0xf]
      %v4198 = vld [vmem:[%s3 + $0xb4] sm:$0xf]
      %v4199 = vld [vmem:[%s3 + $0xb8] sm:$0xf]
      %v4200 = vld [vmem:[%s3 + $0xbc] sm:$0xf]
      %v4201 = vld [vmem:[%s1990] sm:$0xf]
      %v4202 = vld [vmem:[%s1990 + $0x4] sm:$0xf]
      %v4203 = vld [vmem:[%s1990 + $0xc] sm:$0xf]
      %v4204 = vld [vmem:[%s1990 + $0x10] sm:$0xf]
      %v4205 = vld [vmem:[%s1990 + $0x18] sm:$0xf]
      %v4206 = vld [vmem:[%s1990 + $0x1c] sm:$0xf]
      %v4207 = vld [vmem:[%s1990 + $0x24] sm:$0xf]
      %v4208 = vld [vmem:[%s1990 + $0x28] sm:$0xf]
      %v4209 = vld [vmem:[%s1990 + $0x30] sm:$0xf]
      %v4210 = vld [vmem:[%s1990 + $0x34] sm:$0xf]
      %v4211 = vld [vmem:[%s1990 + $0x3c] sm:$0xf]
      %v4212 = vld [vmem:[%s1990 + $0x40] sm:$0xf]
      %v4213 = vld [vmem:[%s1990 + $0x48] sm:$0xf]
      %v4214 = vld [vmem:[%s1990 + $0x4c] sm:$0xf]
      %v4215 = vld [vmem:[%s1990 + $0x54] sm:$0xf]
      %v4216 = vld [vmem:[%s1990 + $0x58] sm:$0xf]
      %v4217 = vld [vmem:[%s1990 + $0x8] sm:$0x1]
      %v4218 = vld [vmem:[%s1990 + $0x14] sm:$0x1]
      %v4219 = vld [vmem:[%s1990 + $0x20] sm:$0x1]
      %v4220 = vld [vmem:[%s1990 + $0x2c] sm:$0x1]
      %v4221 = vld [vmem:[%s1990 + $0x38] sm:$0x1]
      %v4222 = vld [vmem:[%s1990 + $0x44] sm:$0x1]
      %v4223 = vld [vmem:[%s1990 + $0x50] sm:$0x1]
      %v4224 = vld [vmem:[%s1990 + $0x5c] sm:$0x1]
      %v4226 = vshrl.u32 %v4201, 16
      %v4228 = vrot.slane %v4226, 4
      %v4229 = vshll.u32 %v4201, 16
      %v4231 = vrot.slane %v4229, 5
      %v4232 = vor.u32 %v4228, %v4231
      %v4233 = vrot.slane %v4232, 4
      %v4235 = vshll.u32 %v4202, 16
      %v4237 = vrot.slane %v4235, 5
      %v4238 = vsel %vm3765, %v4233, %v4237
      %v4239 = vshrl.u32 %v4202, 16
      %v4241 = vrot.slane %v4239, 4
      %v4242 = vor.u32 %v4241, %v4237
      %v4243 = vrot.slane %v4242, 4
      %v4245 = vshll.u32 %v4217, 16
      %v4247 = vrot.slane %v4245, 5
      %v4248 = vsel %vm3765, %v4243, %v4247
      %v4250 = vshrl.u32 %v4203, 16
      %v4252 = vrot.slane %v4250, 4
      %v4253 = vshll.u32 %v4203, 16
      %v4255 = vrot.slane %v4253, 5
      %v4256 = vor.u32 %v4252, %v4255
      %v4257 = vrot.slane %v4256, 4
      %v4259 = vshll.u32 %v4204, 16
      %v4261 = vrot.slane %v4259, 5
      %v4262 = vsel %vm3765, %v4257, %v4261
      %v4263 = vshrl.u32 %v4204, 16
      %v4265 = vrot.slane %v4263, 4
      %v4266 = vor.u32 %v4265, %v4261
      %v4267 = vrot.slane %v4266, 4
      %v4269 = vshll.u32 %v4218, 16
      %v4271 = vrot.slane %v4269, 5
      %v4272 = vsel %vm3765, %v4267, %v4271
      %v4274 = vshrl.u32 %v4205, 16
      %v4276 = vrot.slane %v4274, 4
      %v4277 = vshll.u32 %v4205, 16
      %v4279 = vrot.slane %v4277, 5
      %v4280 = vor.u32 %v4276, %v4279
      %v4281 = vrot.slane %v4280, 4
      %v4283 = vshll.u32 %v4206, 16
      %v4285 = vrot.slane %v4283, 5
      %v4286 = vsel %vm3765, %v4281, %v4285
      %v4287 = vshrl.u32 %v4206, 16
      %v4289 = vrot.slane %v4287, 4
      %v4290 = vor.u32 %v4289, %v4285
      %v4291 = vrot.slane %v4290, 4
      %v4293 = vshll.u32 %v4219, 16
      %v4295 = vrot.slane %v4293, 5
      %v4296 = vsel %vm3765, %v4291, %v4295
      %v4298 = vshrl.u32 %v4207, 16
      %v4300 = vrot.slane %v4298, 4
      %v4301 = vshll.u32 %v4207, 16
      %v4303 = vrot.slane %v4301, 5
      %v4304 = vor.u32 %v4300, %v4303
      %v4305 = vrot.slane %v4304, 4
      %v4307 = vshll.u32 %v4208, 16
      %v4309 = vrot.slane %v4307, 5
      %v4310 = vsel %vm3765, %v4305, %v4309
      %v4311 = vshrl.u32 %v4208, 16
      %v4313 = vrot.slane %v4311, 4
      %v4314 = vor.u32 %v4313, %v4309
      %v4315 = vrot.slane %v4314, 4
      %v4317 = vshll.u32 %v4220, 16
      %v4319 = vrot.slane %v4317, 5
      %v4320 = vsel %vm3765, %v4315, %v4319
      %v4322 = vshrl.u32 %v4209, 16
      %v4324 = vrot.slane %v4322, 4
      %v4325 = vshll.u32 %v4209, 16
      %v4327 = vrot.slane %v4325, 5
      %v4328 = vor.u32 %v4324, %v4327
      %v4329 = vrot.slane %v4328, 4
      %v4331 = vshll.u32 %v4210, 16
      %v4333 = vrot.slane %v4331, 5
      %v4334 = vsel %vm3765, %v4329, %v4333
      %v4335 = vshrl.u32 %v4210, 16
      %v4337 = vrot.slane %v4335, 4
      %v4338 = vor.u32 %v4337, %v4333
      %v4339 = vrot.slane %v4338, 4
      %v4341 = vshll.u32 %v4221, 16
      %v4343 = vrot.slane %v4341, 5
      %v4344 = vsel %vm3765, %v4339, %v4343
      %v4346 = vshrl.u32 %v4211, 16
      %v4348 = vrot.slane %v4346, 4
      %v4349 = vshll.u32 %v4211, 16
      %v4351 = vrot.slane %v4349, 5
      %v4352 = vor.u32 %v4348, %v4351
      %v4353 = vrot.slane %v4352, 4
      %v4355 = vshll.u32 %v4212, 16
      %v4357 = vrot.slane %v4355, 5
      %v4358 = vsel %vm3765, %v4353, %v4357
      %v4359 = vshrl.u32 %v4212, 16
      %v4361 = vrot.slane %v4359, 4
      %v4362 = vor.u32 %v4361, %v4357
      %v4363 = vrot.slane %v4362, 4
      %v4365 = vshll.u32 %v4222, 16
      %v4367 = vrot.slane %v4365, 5
      %v4368 = vsel %vm3765, %v4363, %v4367
      %v4370 = vshrl.u32 %v4213, 16
      %v4372 = vrot.slane %v4370, 4
      %v4373 = vshll.u32 %v4213, 16
      %v4375 = vrot.slane %v4373, 5
      %v4376 = vor.u32 %v4372, %v4375
      %v4377 = vrot.slane %v4376, 4
      %v4379 = vshll.u32 %v4214, 16
      %v4381 = vrot.slane %v4379, 5
      %v4382 = vsel %vm3765, %v4377, %v4381
      %v4383 = vshrl.u32 %v4214, 16
      %v4385 = vrot.slane %v4383, 4
      %v4386 = vor.u32 %v4385, %v4381
      %v4387 = vrot.slane %v4386, 4
      %v4389 = vshll.u32 %v4223, 16
      %v4391 = vrot.slane %v4389, 5
      %v4392 = vsel %vm3765, %v4387, %v4391
      %v4394 = vshrl.u32 %v4215, 16
      %v4396 = vrot.slane %v4394, 4
      %v4397 = vshll.u32 %v4215, 16
      %v4399 = vrot.slane %v4397, 5
      %v4400 = vor.u32 %v4396, %v4399
      %v4401 = vrot.slane %v4400, 4
      %v4403 = vshll.u32 %v4216, 16
      %v4405 = vrot.slane %v4403, 5
      %v4406 = vsel %vm3765, %v4401, %v4405
      %v4407 = vshrl.u32 %v4216, 16
      %v4409 = vrot.slane %v4407, 4
      %v4410 = vor.u32 %v4409, %v4405
      %v4411 = vrot.slane %v4410, 4
      %v4413 = vshll.u32 %v4224, 16
      %v4415 = vrot.slane %v4413, 5
      %v4416 = vsel %vm3765, %v4411, %v4415
      %v4417 = vld [vmem:[%s1990] sm:$0xe]
      %v4418 = vld [vmem:[%s1990 + $0xc] sm:$0xe]
      %v4419 = vld [vmem:[%s1990 + $0x18] sm:$0xe]
      %v4420 = vld [vmem:[%s1990 + $0x24] sm:$0xe]
      %v4421 = vld [vmem:[%s1990 + $0x30] sm:$0xe]
      %v4422 = vld [vmem:[%s1990 + $0x3c] sm:$0xe]
      %v4423 = vld [vmem:[%s1990 + $0x48] sm:$0xe]
      %v4424 = vld [vmem:[%s1990 + $0x54] sm:$0xe]
      %v4449 = vrot.slane %v4417, 5
      %v4450 = vrot.slane %v4449, 4
      %v4451 = vrot.slane %v4202, 5
      %v4452 = vsel %vm3992, %v4450, %v4451
      %v4453 = vrot.slane %v4451, 4
      %v4454 = vrot.slane %v4217, 5
      %v4455 = vsel %vm3992, %v4453, %v4454
      %v4456 = vrot.slane %v4418, 5
      %v4457 = vrot.slane %v4456, 4
      %v4458 = vrot.slane %v4204, 5
      %v4459 = vsel %vm3992, %v4457, %v4458
      %v4460 = vrot.slane %v4458, 4
      %v4461 = vrot.slane %v4218, 5
      %v4462 = vsel %vm3992, %v4460, %v4461
      %v4463 = vrot.slane %v4419, 5
      %v4464 = vrot.slane %v4463, 4
      %v4465 = vrot.slane %v4206, 5
      %v4466 = vsel %vm3992, %v4464, %v4465
      %v4467 = vrot.slane %v4465, 4
      %v4468 = vrot.slane %v4219, 5
      %v4469 = vsel %vm3992, %v4467, %v4468
      %v4470 = vrot.slane %v4420, 5
      %v4471 = vrot.slane %v4470, 4
      %v4472 = vrot.slane %v4208, 5
      %v4473 = vsel %vm3992, %v4471, %v4472
      %v4474 = vrot.slane %v4472, 4
      %v4475 = vrot.slane %v4220, 5
      %v4476 = vsel %vm3992, %v4474, %v4475
      %v4477 = vrot.slane %v4421, 5
      %v4478 = vrot.slane %v4477, 4
      %v4479 = vrot.slane %v4210, 5
      %v4480 = vsel %vm3992, %v4478, %v4479
      %v4481 = vrot.slane %v4479, 4
      %v4482 = vrot.slane %v4221, 5
      %v4483 = vsel %vm3992, %v4481, %v4482
      %v4484 = vrot.slane %v4422, 5
      %v4485 = vrot.slane %v4484, 4
      %v4486 = vrot.slane %v4212, 5
      %v4487 = vsel %vm3992, %v4485, %v4486
      %v4488 = vrot.slane %v4486, 4
      %v4489 = vrot.slane %v4222, 5
      %v4490 = vsel %vm3992, %v4488, %v4489
      %v4491 = vrot.slane %v4423, 5
      %v4492 = vrot.slane %v4491, 4
      %v4493 = vrot.slane %v4214, 5
      %v4494 = vsel %vm3992, %v4492, %v4493
      %v4495 = vrot.slane %v4493, 4
      %v4496 = vrot.slane %v4223, 5
      %v4497 = vsel %vm3992, %v4495, %v4496
      %v4498 = vrot.slane %v4424, 5
      %v4499 = vrot.slane %v4498, 4
      %v4500 = vrot.slane %v4216, 5
      %v4501 = vsel %vm3992, %v4499, %v4500
      %v4502 = vrot.slane %v4500, 4
      %v4503 = vrot.slane %v4224, 5
      %v4504 = vsel %vm3992, %v4502, %v4503
      %v4513 = vunpack.c.l.b16 %v4201
      %v4514 = vunpack.c.l.b16 %v4202
      %v4515 = vunpack.c.l.b16 %v4203
      %v4516 = vunpack.c.l.b16 %v4204
      %v4517 = vunpack.c.l.b16 %v4205
      %v4518 = vunpack.c.l.b16 %v4206
      %v4519 = vunpack.c.l.b16 %v4207
      %v4520 = vunpack.c.l.b16 %v4208
      %v4521 = vunpack.c.l.b16 %v4209
      %v4522 = vunpack.c.l.b16 %v4210
      %v4523 = vunpack.c.l.b16 %v4211
      %v4524 = vunpack.c.l.b16 %v4212
      %v4525 = vunpack.c.l.b16 %v4213
      %v4526 = vunpack.c.l.b16 %v4214
      %v4527 = vunpack.c.l.b16 %v4215
      %v4528 = vunpack.c.l.b16 %v4216
      %v4529 = vpack.c.b16 %v4514, %v4513
      %v4530 = vpack.c.b16 %v4516, %v4515
      %v4531 = vpack.c.b16 %v4518, %v4517
      %v4532 = vpack.c.b16 %v4520, %v4519
      %v4533 = vpack.c.b16 %v4522, %v4521
      %v4534 = vpack.c.b16 %v4524, %v4523
      %v4535 = vpack.c.b16 %v4526, %v4525
      %v4536 = vpack.c.b16 %v4528, %v4527
      %v4545 = vunpack.c.l.b16 %v4238
      %v4546 = vunpack.c.l.b16 %v4248
      %v4547 = vunpack.c.l.b16 %v4262
      %v4548 = vunpack.c.l.b16 %v4272
      %v4549 = vunpack.c.l.b16 %v4286
      %v4550 = vunpack.c.l.b16 %v4296
      %v4551 = vunpack.c.l.b16 %v4310
      %v4552 = vunpack.c.l.b16 %v4320
      %v4553 = vunpack.c.l.b16 %v4334
      %v4554 = vunpack.c.l.b16 %v4344
      %v4555 = vunpack.c.l.b16 %v4358
      %v4556 = vunpack.c.l.b16 %v4368
      %v4557 = vunpack.c.l.b16 %v4382
      %v4558 = vunpack.c.l.b16 %v4392
      %v4559 = vunpack.c.l.b16 %v4406
      %v4560 = vunpack.c.l.b16 %v4416
      %v4561 = vpack.c.b16 %v4546, %v4545
      %v4562 = vpack.c.b16 %v4548, %v4547
      %v4563 = vpack.c.b16 %v4550, %v4549
      %v4564 = vpack.c.b16 %v4552, %v4551
      %v4565 = vpack.c.b16 %v4554, %v4553
      %v4566 = vpack.c.b16 %v4556, %v4555
      %v4567 = vpack.c.b16 %v4558, %v4557
      %v4568 = vpack.c.b16 %v4560, %v4559
      %v4577 = vunpack.c.l.b16 %v4452
      %v4578 = vunpack.c.l.b16 %v4455
      %v4579 = vunpack.c.l.b16 %v4459
      %v4580 = vunpack.c.l.b16 %v4462
      %v4581 = vunpack.c.l.b16 %v4466
      %v4582 = vunpack.c.l.b16 %v4469
      %v4583 = vunpack.c.l.b16 %v4473
      %v4584 = vunpack.c.l.b16 %v4476
      %v4585 = vunpack.c.l.b16 %v4480
      %v4586 = vunpack.c.l.b16 %v4483
      %v4587 = vunpack.c.l.b16 %v4487
      %v4588 = vunpack.c.l.b16 %v4490
      %v4589 = vunpack.c.l.b16 %v4494
      %v4590 = vunpack.c.l.b16 %v4497
      %v4591 = vunpack.c.l.b16 %v4501
      %v4592 = vunpack.c.l.b16 %v4504
      %v4593 = vpack.c.b16 %v4578, %v4577
      %v4594 = vpack.c.b16 %v4580, %v4579
      %v4595 = vpack.c.b16 %v4582, %v4581
      %v4596 = vpack.c.b16 %v4584, %v4583
      %v4597 = vpack.c.b16 %v4586, %v4585
      %v4598 = vpack.c.b16 %v4588, %v4587
      %v4599 = vpack.c.b16 %v4590, %v4589
      %v4600 = vpack.c.b16 %v4592, %v4591
      %s4609 = scalar_lea.vmem %s3, 192
      %v4610 = vld [vmem:[%s4609] sm:$0xf]
      %v4611 = vld [vmem:[%s4609 + $0x4] sm:$0xf]
      %v4612 = vld [vmem:[%s4609 + $0x8] sm:$0xf]
      %v4613 = vld [vmem:[%s4609 + $0xc] sm:$0xf]
      %v4614 = vld [vmem:[%s4609 + $0x10] sm:$0xf]
      %v4615 = vld [vmem:[%s4609 + $0x14] sm:$0xf]
      %v4616 = vld [vmem:[%s4609 + $0x18] sm:$0xf]
      %v4617 = vld [vmem:[%s4609 + $0x1c] sm:$0xf]
      %v4618 = vld [vmem:[%s4609 + $0x20] sm:$0xf]
      %v4619 = vld [vmem:[%s4609 + $0x24] sm:$0xf]
      %v4620 = vld [vmem:[%s4609 + $0x28] sm:$0xf]
      %v4621 = vld [vmem:[%s4609 + $0x2c] sm:$0xf]
      %v4622 = vld [vmem:[%s4609 + $0x30] sm:$0xf]
      %v4623 = vld [vmem:[%s4609 + $0x34] sm:$0xf]
      %v4624 = vld [vmem:[%s4609 + $0x38] sm:$0xf]
      %v4625 = vld [vmem:[%s4609 + $0x3c] sm:$0xf]
      %v4626 = vld [vmem:[%s4609 + $0x40] sm:$0xf]
      %v4627 = vld [vmem:[%s4609 + $0x44] sm:$0xf]
      %v4628 = vld [vmem:[%s4609 + $0x48] sm:$0xf]
      %v4629 = vld [vmem:[%s4609 + $0x4c] sm:$0xf]
      %v4630 = vld [vmem:[%s4609 + $0x50] sm:$0xf]
      %v4631 = vld [vmem:[%s4609 + $0x54] sm:$0xf]
      %v4632 = vld [vmem:[%s4609 + $0x58] sm:$0xf]
      %v4633 = vld [vmem:[%s4609 + $0x5c] sm:$0xf]
      %v4634 = vld [vmem:[%s4609 + $0x60] sm:$0xf]
      %v4635 = vld [vmem:[%s4609 + $0x64] sm:$0xf]
      %v4636 = vld [vmem:[%s4609 + $0x68] sm:$0xf]
      %v4637 = vld [vmem:[%s4609 + $0x6c] sm:$0xf]
      %v4638 = vld [vmem:[%s4609 + $0x70] sm:$0xf]
      %v4639 = vld [vmem:[%s4609 + $0x74] sm:$0xf]
      %v4640 = vld [vmem:[%s4609 + $0x78] sm:$0xf]
      %v4641 = vld [vmem:[%s4609 + $0x7c] sm:$0xf]
      %v4642 = vld [vmem:[%s4609 + $0x80] sm:$0xf]
      %v4643 = vld [vmem:[%s4609 + $0x84] sm:$0xf]
      %v4644 = vld [vmem:[%s4609 + $0x88] sm:$0xf]
      %v4645 = vld [vmem:[%s4609 + $0x8c] sm:$0xf]
      %v4646 = vld [vmem:[%s4609 + $0x90] sm:$0xf]
      %v4647 = vld [vmem:[%s4609 + $0x94] sm:$0xf]
      %v4648 = vld [vmem:[%s4609 + $0x98] sm:$0xf]
      %v4649 = vld [vmem:[%s4609 + $0x9c] sm:$0xf]
      %v4650 = vld [vmem:[%s4609 + $0xa0] sm:$0xf]
      %v4651 = vld [vmem:[%s4609 + $0xa4] sm:$0xf]
      %v4652 = vld [vmem:[%s4609 + $0xa8] sm:$0xf]
      %v4653 = vld [vmem:[%s4609 + $0xac] sm:$0xf]
      %v4654 = vld [vmem:[%s4609 + $0xb0] sm:$0xf]
      %v4655 = vld [vmem:[%s4609 + $0xb4] sm:$0xf]
      %v4656 = vld [vmem:[%s4609 + $0xb8] sm:$0xf]
      %v4657 = vld [vmem:[%s4609 + $0xbc] sm:$0xf]
      %v4706 = vunpack.c.l.b16 %v4610
      %v4707 = vunpack.c.l.b16 %v4611
      %v4708 = vunpack.c.l.b16 %v4612
      %v4709 = vunpack.c.l.b16 %v4613
      %v4710 = vunpack.c.l.b16 %v4614
      %v4711 = vunpack.c.l.b16 %v4615
      %v4712 = vunpack.c.l.b16 %v4616
      %v4713 = vunpack.c.l.b16 %v4617
      %v4714 = vunpack.c.l.b16 %v4618
      %v4715 = vunpack.c.l.b16 %v4619
      %v4716 = vunpack.c.l.b16 %v4620
      %v4717 = vunpack.c.l.b16 %v4621
      %v4718 = vunpack.c.l.b16 %v4622
      %v4719 = vunpack.c.l.b16 %v4623
      %v4720 = vunpack.c.l.b16 %v4624
      %v4721 = vunpack.c.l.b16 %v4625
      %v4722 = vunpack.c.l.b16 %v4626
      %v4723 = vunpack.c.l.b16 %v4627
      %v4724 = vunpack.c.l.b16 %v4628
      %v4725 = vunpack.c.l.b16 %v4629
      %v4726 = vunpack.c.l.b16 %v4630
      %v4727 = vunpack.c.l.b16 %v4631
      %v4728 = vunpack.c.l.b16 %v4632
      %v4729 = vunpack.c.l.b16 %v4633
      %v4730 = vunpack.c.l.b16 %v4634
      %v4731 = vunpack.c.l.b16 %v4635
      %v4732 = vunpack.c.l.b16 %v4636
      %v4733 = vunpack.c.l.b16 %v4637
      %v4734 = vunpack.c.l.b16 %v4638
      %v4735 = vunpack.c.l.b16 %v4639
      %v4736 = vunpack.c.l.b16 %v4640
      %v4737 = vunpack.c.l.b16 %v4641
      %v4738 = vunpack.c.l.b16 %v4642
      %v4739 = vunpack.c.l.b16 %v4643
      %v4740 = vunpack.c.l.b16 %v4644
      %v4741 = vunpack.c.l.b16 %v4645
      %v4742 = vunpack.c.l.b16 %v4646
      %v4743 = vunpack.c.l.b16 %v4647
      %v4744 = vunpack.c.l.b16 %v4648
      %v4745 = vunpack.c.l.b16 %v4649
      %v4746 = vunpack.c.l.b16 %v4650
      %v4747 = vunpack.c.l.b16 %v4651
      %v4748 = vunpack.c.l.b16 %v4652
      %v4749 = vunpack.c.l.b16 %v4653
      %v4750 = vunpack.c.l.b16 %v4654
      %v4751 = vunpack.c.l.b16 %v4655
      %v4752 = vunpack.c.l.b16 %v4656
      %v4753 = vunpack.c.l.b16 %v4657
      %v4754 = vpack.c.b16 %v4707, %v4706
      %v4755 = vpack.c.b16 %v4709, %v4708
      %v4756 = vpack.c.b16 %v4711, %v4710
      %v4757 = vpack.c.b16 %v4713, %v4712
      %v4758 = vpack.c.b16 %v4715, %v4714
      %v4759 = vpack.c.b16 %v4717, %v4716
      %v4760 = vpack.c.b16 %v4719, %v4718
      %v4761 = vpack.c.b16 %v4721, %v4720
      %v4762 = vpack.c.b16 %v4723, %v4722
      %v4763 = vpack.c.b16 %v4725, %v4724
      %v4764 = vpack.c.b16 %v4727, %v4726
      %v4765 = vpack.c.b16 %v4729, %v4728
      %v4766 = vpack.c.b16 %v4731, %v4730
      %v4767 = vpack.c.b16 %v4733, %v4732
      %v4768 = vpack.c.b16 %v4735, %v4734
      %v4769 = vpack.c.b16 %v4737, %v4736
      %v4770 = vpack.c.b16 %v4739, %v4738
      %v4771 = vpack.c.b16 %v4741, %v4740
      %v4772 = vpack.c.b16 %v4743, %v4742
      %v4773 = vpack.c.b16 %v4745, %v4744
      %v4774 = vpack.c.b16 %v4747, %v4746
      %v4775 = vpack.c.b16 %v4749, %v4748
      %v4776 = vpack.c.b16 %v4751, %v4750
      %v4777 = vpack.c.b16 %v4753, %v4752
      %4802 = vmatprep.subr.bf16.mxu0 0
      %4803 = vmatpush1.bf16.msra.mxu0 %v4754
      %4804 = vmatprep.subr.bf16.mxu0 0
      %4805 = vmatpush1.bf16.msra.mxu0 %v4755
      %4806 = vmatprep.subr.bf16.mxu0 0
      %4807 = vmatpush1.bf16.msra.mxu0 %v4756
      %4808 = vmatprep.subr.bf16.mxu0 0
      %4809 = vmatpush1.bf16.msra.mxu0 %v4757
      %4810 = vmatprep.subr.bf16.mxu0 0
      %4811 = vmatpush1.bf16.msra.mxu0 %v4758
      %4812 = vmatprep.subr.bf16.mxu0 0
      %4813 = vmatpush1.bf16.msra.mxu0 %v4759
      %4814 = vmatprep.subr.bf16.mxu0 0
      %4815 = vmatpush1.bf16.msra.mxu0 %v4760
      %4816 = vmatprep.subr.bf16.mxu0 0
      %4817 = vmatpush1.bf16.msra.mxu0 %v4761
      %4818 = vmatprep.subr.bf16.mxu0 0
      %4819 = vmatpush1.bf16.msra.mxu0 %v4762
      %4820 = vmatprep.subr.bf16.mxu0 0
      %4821 = vmatpush1.bf16.msra.mxu0 %v4763
      %4822 = vmatprep.subr.bf16.mxu0 0
      %4823 = vmatpush1.bf16.msra.mxu0 %v4764
      %4824 = vmatprep.subr.bf16.mxu0 0
      %4825 = vmatpush1.bf16.msra.mxu0 %v4765
      %4826 = vmatprep.subr.bf16.mxu0 0
      %4827 = vmatpush1.bf16.msra.mxu0 %v4766
      %4828 = vmatprep.subr.bf16.mxu0 0
      %4829 = vmatpush1.bf16.msra.mxu0 %v4767
      %4830 = vmatprep.subr.bf16.mxu0 0
      %4831 = vmatpush1.bf16.msra.mxu0 %v4768
      %4832 = vmatprep.subr.bf16.mxu0 0
      %4833 = vmatpush1.bf16.msra.mxu0 %v4769
      %4834 = vmatprep.mubr.bf16.mxu0 %v4561
      %4835 = vmatmul.mubr.bf16.gmra.mrb[0].mxu0 %v4529
      %v4836 = vpop.f32.mrb[0].mxu0
      %v4837 = vadd.f32 0.0, %v4836
      %v4838 = vpop.f32.mrb[0].mxu0
      %v4839 = vpop.f32.mrb[0].mxu0
      %v4840 = vadd.f32 0.0, %v4839
      %v4841 = vpop.f32.mrb[0].mxu0
      %4842 = vmatprep.mubr.bf16.mxu0 %v4562
      %4843 = vmatmul.mubr.bf16.gmra.mrb[0].mxu0 %v4530
      %v4844 = vpop.f32.mrb[0].mxu0
      %v4845 = vadd.f32 0.0, %v4844
      %v4846 = vpop.f32.mrb[0].mxu0
      %v4847 = vpop.f32.mrb[0].mxu0
      %v4848 = vadd.f32 0.0, %v4847
      %v4849 = vpop.f32.mrb[0].mxu0
      %4850 = vmatprep.mubr.bf16.mxu0 %v4563
      %4851 = vmatmul.mubr.bf16.gmra.mrb[0].mxu0 %v4531
      %v4852 = vpop.f32.mrb[0].mxu0
      %v4853 = vadd.f32 0.0, %v4852
      %v4854 = vpop.f32.mrb[0].mxu0
      %v4855 = vpop.f32.mrb[0].mxu0
      %v4856 = vadd.f32 0.0, %v4855
      %v4857 = vpop.f32.mrb[0].mxu0
      %4858 = vmatprep.mubr.bf16.mxu0 %v4564
      %4859 = vmatmul.mubr.bf16.gmra.mrb[0].mxu0 %v4532
      %v4860 = vpop.f32.mrb[0].mxu0
      %v4861 = vadd.f32 0.0, %v4860
      %v4862 = vpop.f32.mrb[0].mxu0
      %v4863 = vpop.f32.mrb[0].mxu0
      %v4864 = vadd.f32 0.0, %v4863
      %v4865 = vpop.f32.mrb[0].mxu0
      %4866 = vmatprep.mubr.bf16.mxu0 %v4565
      %4867 = vmatmul.mubr.bf16.gmra.mrb[0].mxu0 %v4533
      %v4868 = vpop.f32.mrb[0].mxu0
      %v4869 = vadd.f32 0.0, %v4868
      %v4870 = vpop.f32.mrb[0].mxu0
      %v4871 = vpop.f32.mrb[0].mxu0
      %v4872 = vadd.f32 0.0, %v4871
      %v4873 = vpop.f32.mrb[0].mxu0
      %4874 = vmatprep.mubr.bf16.mxu0 %v4566
      %4875 = vmatmul.mubr.bf16.gmra.mrb[0].mxu0 %v4534
      %v4876 = vpop.f32.mrb[0].mxu0
      %v4877 = vadd.f32 0.0, %v4876
      %v4878 = vpop.f32.mrb[0].mxu0
      %v4879 = vpop.f32.mrb[0].mxu0
      %v4880 = vadd.f32 0.0, %v4879
      %v4881 = vpop.f32.mrb[0].mxu0
      %4882 = vmatprep.mubr.bf16.mxu0 %v4567
      %4883 = vmatmul.mubr.bf16.gmra.mrb[0].mxu0 %v4535
      %v4884 = vpop.f32.mrb[0].mxu0
      %v4885 = vadd.f32 0.0, %v4884
      %v4886 = vpop.f32.mrb[0].mxu0
      %v4887 = vpop.f32.mrb[0].mxu0
      %v4888 = vadd.f32 0.0, %v4887
      %v4889 = vpop.f32.mrb[0].mxu0
      %4890 = vmatprep.mubr.bf16.mxu0 %v4568
      %4891 = vmatmul.mubr.bf16.gmra.mrb[0].mxu0 %v4536
      %v4892 = vpop.f32.mrb[0].mxu0
      %v4893 = vadd.f32 0.0, %v4892
      %v4894 = vpop.f32.mrb[0].mxu0
      %v4895 = vpop.f32.mrb[0].mxu0
      %v4896 = vadd.f32 0.0, %v4895
      %v4897 = vpop.f32.mrb[0].mxu0
      %4898 = vdwg.mxu0
      %4899 = vmatprep.subr.bf16.mxu0 0
      %4900 = vmatpush1.bf16.msra.mxu0 %v4770
      %4901 = vmatprep.subr.bf16.mxu0 0
      %4902 = vmatpush1.bf16.msra.mxu0 %v4771
      %4903 = vmatprep.subr.bf16.mxu0 0
      %4904 = vmatpush1.bf16.msra.mxu0 %v4772
      %4905 = vmatprep.subr.bf16.mxu0 0
      %4906 = vmatpush1.bf16.msra.mxu0 %v4773
      %4907 = vmatprep.subr.bf16.mxu0 0
      %4908 = vmatpush1.bf16.msra.mxu0 %v4774
      %4909 = vmatprep.subr.bf16.mxu0 0
      %4910 = vmatpush1.bf16.msra.mxu0 %v4775
      %4911 = vmatprep.subr.bf16.mxu0 0
      %4912 = vmatpush1.bf16.msra.mxu0 %v4776
      %4913 = vmatprep.subr.bf16.mxu0 0
      %4914 = vmatpush1.bf16.msra.mxu0 %v4777
      %4915 = vmatprep.subr.bf16.mxu0 0
      %4916 = vmatpush1.bf16.msra.mxu0 0
      %4917 = vmatprep.subr.bf16.mxu0 0
      %4918 = vmatpush1.bf16.msra.mxu0 0
      %4919 = vmatprep.subr.bf16.mxu0 0
      %4920 = vmatpush1.bf16.msra.mxu0 0
      %4921 = vmatprep.subr.bf16.mxu0 0
      %4922 = vmatpush1.bf16.msra.mxu0 0
      %4923 = vmatprep.subr.bf16.mxu0 0
      %4924 = vmatpush1.bf16.msra.mxu0 0
      %4925 = vmatprep.subr.bf16.mxu0 0
      %4926 = vmatpush1.bf16.msra.mxu0 0
      %4927 = vmatprep.subr.bf16.mxu0 0
      %4928 = vmatpush1.bf16.msra.mxu0 0
      %4929 = vmatprep.subr.bf16.mxu0 0
      %4930 = vmatpush1.bf16.msra.mxu0 0
      %4931 = vmatprep.mubr.bf16.mxu0 0
      %4932 = vmatmul.mubr.bf16.gmra.mrb[0].mxu0 %v4593
      %v4933 = vpop.f32.mrb[0].mxu0
      %v4934 = vadd.f32 %v4837, %v4933
      %v4935 = vpop.f32.mrb[0].mxu0
      %v4936 = vpop.f32.mrb[0].mxu0
      %v4937 = vadd.f32 %v4840, %v4936
      %v4938 = vpop.f32.mrb[0].mxu0
      %4939 = vmatprep.mubr.bf16.mxu0 0
      %4940 = vmatmul.mubr.bf16.gmra.mrb[0].mxu0 %v4594
      %v4941 = vpop.f32.mrb[0].mxu0
      %v4942 = vadd.f32 %v4845, %v4941
      %v4943 = vpop.f32.mrb[0].mxu0
      %v4944 = vpop.f32.mrb[0].mxu0
      %v4945 = vadd.f32 %v4848, %v4944
      %v4946 = vpop.f32.mrb[0].mxu0
      %4947 = vmatprep.mubr.bf16.mxu0 0
      %4948 = vmatmul.mubr.bf16.gmra.mrb[0].mxu0 %v4595
      %v4949 = vpop.f32.mrb[0].mxu0
      %v4950 = vadd.f32 %v4853, %v4949
      %v4951 = vpop.f32.mrb[0].mxu0
      %v4952 = vpop.f32.mrb[0].mxu0
      %v4953 = vadd.f32 %v4856, %v4952
      %v4954 = vpop.f32.mrb[0].mxu0
      %4955 = vmatprep.mubr.bf16.mxu0 0
      %4956 = vmatmul.mubr.bf16.gmra.mrb[0].mxu0 %v4596
      %v4957 = vpop.f32.mrb[0].mxu0
      %v4958 = vadd.f32 %v4861, %v4957
      %v4959 = vpop.f32.mrb[0].mxu0
      %v4960 = vpop.f32.mrb[0].mxu0
      %v4961 = vadd.f32 %v4864, %v4960
      %v4962 = vpop.f32.mrb[0].mxu0
      %4963 = vmatprep.mubr.bf16.mxu0 0
      %4964 = vmatmul.mubr.bf16.gmra.mrb[0].mxu0 %v4597
      %v4965 = vpop.f32.mrb[0].mxu0
      %v4966 = vadd.f32 %v4869, %v4965
      %v4967 = vpop.f32.mrb[0].mxu0
      %v4968 = vpop.f32.mrb[0].mxu0
      %v4969 = vadd.f32 %v4872, %v4968
      %v4970 = vpop.f32.mrb[0].mxu0
      %4971 = vmatprep.mubr.bf16.mxu0 0
      %4972 = vmatmul.mubr.bf16.gmra.mrb[0].mxu0 %v4598
      %v4973 = vpop.f32.mrb[0].mxu0
      %v4974 = vadd.f32 %v4877, %v4973
      %v4975 = vpop.f32.mrb[0].mxu0
      %v4976 = vpop.f32.mrb[0].mxu0
      %v4977 = vadd.f32 %v4880, %v4976
      %v4978 = vpop.f32.mrb[0].mxu0
      %4979 = vmatprep.mubr.bf16.mxu0 0
      %4980 = vmatmul.mubr.bf16.gmra.mrb[0].mxu0 %v4599
      %v4981 = vpop.f32.mrb[0].mxu0
      %v4982 = vadd.f32 %v4885, %v4981
      %v4983 = vpop.f32.mrb[0].mxu0
      %v4984 = vpop.f32.mrb[0].mxu0
      %v4985 = vadd.f32 %v4888, %v4984
      %v4986 = vpop.f32.mrb[0].mxu0
      %4987 = vmatprep.mubr.bf16.mxu0 0
      %4988 = vmatmul.mubr.bf16.gmra.mrb[0].mxu0 %v4600
      %v4989 = vpop.f32.mrb[0].mxu0
      %v4990 = vadd.f32 %v4893, %v4989
      %v4991 = vpop.f32.mrb[0].mxu0
      %v4992 = vpop.f32.mrb[0].mxu0
      %v4993 = vadd.f32 %v4896, %v4992
      %v4994 = vpop.f32.mrb[0].mxu0
      %4995 = vdwg.mxu0
      %v5044 = vunpack.c.l.b16 %v4153
      %v5045 = vunpack.c.l.b16 %v4154
      %v5046 = vunpack.c.l.b16 %v4155
      %v5047 = vunpack.c.l.b16 %v4156
      %v5048 = vunpack.c.l.b16 %v4157
      %v5049 = vunpack.c.l.b16 %v4158
      %v5050 = vunpack.c.l.b16 %v4159
      %v5051 = vunpack.c.l.b16 %v4160
      %v5052 = vunpack.c.l.b16 %v4161
      %v5053 = vunpack.c.l.b16 %v4162
      %v5054 = vunpack.c.l.b16 %v4163
      %v5055 = vunpack.c.l.b16 %v4164
      %v5056 = vunpack.c.l.b16 %v4165
      %v5057 = vunpack.c.l.b16 %v4166
      %v5058 = vunpack.c.l.b16 %v4167
      %v5059 = vunpack.c.l.b16 %v4168
      %v5060 = vunpack.c.l.b16 %v4169
      %v5061 = vunpack.c.l.b16 %v4170
      %v5062 = vunpack.c.l.b16 %v4171
      %v5063 = vunpack.c.l.b16 %v4172
      %v5064 = vunpack.c.l.b16 %v4173
      %v5065 = vunpack.c.l.b16 %v4174
      %v5066 = vunpack.c.l.b16 %v4175
      %v5067 = vunpack.c.l.b16 %v4176
      %v5068 = vunpack.c.l.b16 %v4177
      %v5069 = vunpack.c.l.b16 %v4178
      %v5070 = vunpack.c.l.b16 %v4179
      %v5071 = vunpack.c.l.b16 %v4180
      %v5072 = vunpack.c.l.b16 %v4181
      %v5073 = vunpack.c.l.b16 %v4182
      %v5074 = vunpack.c.l.b16 %v4183
      %v5075 = vunpack.c.l.b16 %v4184
      %v5076 = vunpack.c.l.b16 %v4185
      %v5077 = vunpack.c.l.b16 %v4186
      %v5078 = vunpack.c.l.b16 %v4187
      %v5079 = vunpack.c.l.b16 %v4188
      %v5080 = vunpack.c.l.b16 %v4189
      %v5081 = vunpack.c.l.b16 %v4190
      %v5082 = vunpack.c.l.b16 %v4191
      %v5083 = vunpack.c.l.b16 %v4192
      %v5084 = vunpack.c.l.b16 %v4193
      %v5085 = vunpack.c.l.b16 %v4194
      %v5086 = vunpack.c.l.b16 %v4195
      %v5087 = vunpack.c.l.b16 %v4196
      %v5088 = vunpack.c.l.b16 %v4197
      %v5089 = vunpack.c.l.b16 %v4198
      %v5090 = vunpack.c.l.b16 %v4199
      %v5091 = vunpack.c.l.b16 %v4200
      %v5092 = vpack.c.b16 %v5045, %v5044
      %v5093 = vpack.c.b16 %v5047, %v5046
      %v5094 = vpack.c.b16 %v5049, %v5048
      %v5095 = vpack.c.b16 %v5051, %v5050
      %v5096 = vpack.c.b16 %v5053, %v5052
      %v5097 = vpack.c.b16 %v5055, %v5054
      %v5098 = vpack.c.b16 %v5057, %v5056
      %v5099 = vpack.c.b16 %v5059, %v5058
      %v5100 = vpack.c.b16 %v5061, %v5060
      %v5101 = vpack.c.b16 %v5063, %v5062
      %v5102 = vpack.c.b16 %v5065, %v5064
      %v5103 = vpack.c.b16 %v5067, %v5066
      %v5104 = vpack.c.b16 %v5069, %v5068
      %v5105 = vpack.c.b16 %v5071, %v5070
      %v5106 = vpack.c.b16 %v5073, %v5072
      %v5107 = vpack.c.b16 %v5075, %v5074
      %v5108 = vpack.c.b16 %v5077, %v5076
      %v5109 = vpack.c.b16 %v5079, %v5078
      %v5110 = vpack.c.b16 %v5081, %v5080
      %v5111 = vpack.c.b16 %v5083, %v5082
      %v5112 = vpack.c.b16 %v5085, %v5084
      %v5113 = vpack.c.b16 %v5087, %v5086
      %v5114 = vpack.c.b16 %v5089, %v5088
      %v5115 = vpack.c.b16 %v5091, %v5090
      %5140 = vmatprep.subr.bf16.mxu0 0
      %5141 = vmatpush1.bf16.msra.mxu0 %v5092
      %5142 = vmatprep.subr.bf16.mxu0 0
      %5143 = vmatpush1.bf16.msra.mxu0 %v5093
      %5144 = vmatprep.subr.bf16.mxu0 0
      %5145 = vmatpush1.bf16.msra.mxu0 %v5094
      %5146 = vmatprep.subr.bf16.mxu0 0
      %5147 = vmatpush1.bf16.msra.mxu0 %v5095
      %5148 = vmatprep.subr.bf16.mxu0 0
      %5149 = vmatpush1.bf16.msra.mxu0 %v5096
      %5150 = vmatprep.subr.bf16.mxu0 0
      %5151 = vmatpush1.bf16.msra.mxu0 %v5097
      %5152 = vmatprep.subr.bf16.mxu0 0
      %5153 = vmatpush1.bf16.msra.mxu0 %v5098
      %5154 = vmatprep.subr.bf16.mxu0 0
      %5155 = vmatpush1.bf16.msra.mxu0 %v5099
      %5156 = vmatprep.subr.bf16.mxu0 0
      %5157 = vmatpush1.bf16.msra.mxu0 %v5100
      %5158 = vmatprep.subr.bf16.mxu0 0
      %5159 = vmatpush1.bf16.msra.mxu0 %v5101
      %5160 = vmatprep.subr.bf16.mxu0 0
      %5161 = vmatpush1.bf16.msra.mxu0 %v5102
      %5162 = vmatprep.subr.bf16.mxu0 0
      %5163 = vmatpush1.bf16.msra.mxu0 %v5103
      %5164 = vmatprep.subr.bf16.mxu0 0
      %5165 = vmatpush1.bf16.msra.mxu0 %v5104
      %5166 = vmatprep.subr.bf16.mxu0 0
      %5167 = vmatpush1.bf16.msra.mxu0 %v5105
      %5168 = vmatprep.subr.bf16.mxu0 0
      %5169 = vmatpush1.bf16.msra.mxu0 %v5106
      %5170 = vmatprep.subr.bf16.mxu0 0
      %5171 = vmatpush1.bf16.msra.mxu0 %v5107
      %5172 = vmatprep.mubr.bf16.mxu0 %v4105
      %5173 = vmatmul.mubr.bf16.gmra.mrb[0].mxu0 %v4073
      %v5174 = vpop.f32.mrb[0].mxu0
      %v5175 = vadd.f32 %v4934, %v5174
      %v5176 = vpop.f32.mrb[0].mxu0
      %v5177 = vpop.f32.mrb[0].mxu0
      %v5178 = vadd.f32 %v4937, %v5177
      %v5179 = vpop.f32.mrb[0].mxu0
      %5180 = vmatprep.mubr.bf16.mxu0 %v4106
      %5181 = vmatmul.mubr.bf16.gmra.mrb[0].mxu0 %v4074
      %v5182 = vpop.f32.mrb[0].mxu0
      %v5183 = vadd.f32 %v4942, %v5182
      %v5184 = vpop.f32.mrb[0].mxu0
      %v5185 = vpop.f32.mrb[0].mxu0
      %v5186 = vadd.f32 %v4945, %v5185
      %v5187 = vpop.f32.mrb[0].mxu0
      %5188 = vmatprep.mubr.bf16.mxu0 %v4107
      %5189 = vmatmul.mubr.bf16.gmra.mrb[0].mxu0 %v4075
      %v5190 = vpop.f32.mrb[0].mxu0
      %v5191 = vadd.f32 %v4950, %v5190
      %v5192 = vpop.f32.mrb[0].mxu0
      %v5193 = vpop.f32.mrb[0].mxu0
      %v5194 = vadd.f32 %v4953, %v5193
      %v5195 = vpop.f32.mrb[0].mxu0
      %5196 = vmatprep.mubr.bf16.mxu0 %v4108
      %5197 = vmatmul.mubr.bf16.gmra.mrb[0].mxu0 %v4076
      %v5198 = vpop.f32.mrb[0].mxu0
      %v5199 = vadd.f32 %v4958, %v5198
      %v5200 = vpop.f32.mrb[0].mxu0
      %v5201 = vpop.f32.mrb[0].mxu0
      %v5202 = vadd.f32 %v4961, %v5201
      %v5203 = vpop.f32.mrb[0].mxu0
      %5204 = vmatprep.mubr.bf16.mxu0 %v4109
      %5205 = vmatmul.mubr.bf16.gmra.mrb[0].mxu0 %v4077
      %v5206 = vpop.f32.mrb[0].mxu0
      %v5207 = vadd.f32 %v4966, %v5206
      %v5208 = vpop.f32.mrb[0].mxu0
      %v5209 = vpop.f32.mrb[0].mxu0
      %v5210 = vadd.f32 %v4969, %v5209
      %v5211 = vpop.f32.mrb[0].mxu0
      %5212 = vmatprep.mubr.bf16.mxu0 %v4110
      %5213 = vmatmul.mubr.bf16.gmra.mrb[0].mxu0 %v4078
      %v5214 = vpop.f32.mrb[0].mxu0
      %v5215 = vadd.f32 %v4974, %v5214
      %v5216 = vpop.f32.mrb[0].mxu0
      %v5217 = vpop.f32.mrb[0].mxu0
      %v5218 = vadd.f32 %v4977, %v5217
      %v5219 = vpop.f32.mrb[0].mxu0
      %5220 = vmatprep.mubr.bf16.mxu0 %v4111
      %5221 = vmatmul.mubr.bf16.gmra.mrb[0].mxu0 %v4079
      %v5222 = vpop.f32.mrb[0].mxu0
      %v5223 = vadd.f32 %v4982, %v5222
      %v5224 = vpop.f32.mrb[0].mxu0
      %v5225 = vpop.f32.mrb[0].mxu0
      %v5226 = vadd.f32 %v4985, %v5225
      %v5227 = vpop.f32.mrb[0].mxu0
      %5228 = vmatprep.mubr.bf16.mxu0 %v4112
      %5229 = vmatmul.mubr.bf16.gmra.mrb[0].mxu0 %v4080
      %v5230 = vpop.f32.mrb[0].mxu0
      %v5231 = vadd.f32 %v4990, %v5230
      %v5232 = vpop.f32.mrb[0].mxu0
      %v5233 = vpop.f32.mrb[0].mxu0
      %v5234 = vadd.f32 %v4993, %v5233
      %v5235 = vpop.f32.mrb[0].mxu0
      %5236 = vdwg.mxu0
      %5237 = vmatprep.subr.bf16.mxu0 0
      %5238 = vmatpush1.bf16.msra.mxu0 %v5108
      %5239 = vmatprep.subr.bf16.mxu0 0
      %5240 = vmatpush1.bf16.msra.mxu0 %v5109
      %5241 = vmatprep.subr.bf16.mxu0 0
      %5242 = vmatpush1.bf16.msra.mxu0 %v5110
      %5243 = vmatprep.subr.bf16.mxu0 0
      %5244 = vmatpush1.bf16.msra.mxu0 %v5111
      %5245 = vmatprep.subr.bf16.mxu0 0
      %5246 = vmatpush1.bf16.msra.mxu0 %v5112
      %5247 = vmatprep.subr.bf16.mxu0 0
      %5248 = vmatpush1.bf16.msra.mxu0 %v5113
      %5249 = vmatprep.subr.bf16.mxu0 0
      %5250 = vmatpush1.bf16.msra.mxu0 %v5114
      %5251 = vmatprep.subr.bf16.mxu0 0
      %5252 = vmatpush1.bf16.msra.mxu0 %v5115
      %5253 = vmatprep.subr.bf16.mxu0 0
      %5254 = vmatpush1.bf16.msra.mxu0 0
      %5255 = vmatprep.subr.bf16.mxu0 0
      %5256 = vmatpush1.bf16.msra.mxu0 0
      %5257 = vmatprep.subr.bf16.mxu0 0
      %5258 = vmatpush1.bf16.msra.mxu0 0
      %5259 = vmatprep.subr.bf16.mxu0 0
      %5260 = vmatpush1.bf16.msra.mxu0 0
      %5261 = vmatprep.subr.bf16.mxu0 0
      %5262 = vmatpush1.bf16.msra.mxu0 0
      %5263 = vmatprep.subr.bf16.mxu0 0
      %5264 = vmatpush1.bf16.msra.mxu0 0
      %5265 = vmatprep.subr.bf16.mxu0 0
      %5266 = vmatpush1.bf16.msra.mxu0 0
      %5267 = vmatprep.subr.bf16.mxu0 0
      %5268 = vmatpush1.bf16.msra.mxu0 0
      %5269 = vmatprep.mubr.bf16.mxu0 0
      %5270 = vmatmul.mubr.bf16.gmra.mrb[0].mxu0 %v4137
      %v5271 = vpop.f32.mrb[0].mxu0
      %v5272 = vadd.f32 %v5175, %v5271
      %v5273 = vpop.f32.mrb[0].mxu0
      %v5274 = vpop.f32.mrb[0].mxu0
      %v5275 = vadd.f32 %v5178, %v5274
      %v5276 = vpop.f32.mrb[0].mxu0
      %5277 = vmatprep.mubr.bf16.mxu0 0
      %5278 = vmatmul.mubr.bf16.gmra.mrb[0].mxu0 %v4138
      %v5279 = vpop.f32.mrb[0].mxu0
      %v5280 = vadd.f32 %v5183, %v5279
      %v5281 = vpop.f32.mrb[0].mxu0
      %v5282 = vpop.f32.mrb[0].mxu0
      %v5283 = vadd.f32 %v5186, %v5282
      %v5284 = vpop.f32.mrb[0].mxu0
      %5285 = vmatprep.mubr.bf16.mxu0 0
      %5286 = vmatmul.mubr.bf16.gmra.mrb[0].mxu0 %v4139
      %v5287 = vpop.f32.mrb[0].mxu0
      %v5288 = vadd.f32 %v5191, %v5287
      %v5289 = vpop.f32.mrb[0].mxu0
      %v5290 = vpop.f32.mrb[0].mxu0
      %v5291 = vadd.f32 %v5194, %v5290
      %v5292 = vpop.f32.mrb[0].mxu0
      %5293 = vmatprep.mubr.bf16.mxu0 0
      %5294 = vmatmul.mubr.bf16.gmra.mrb[0].mxu0 %v4140
      %v5295 = vpop.f32.mrb[0].mxu0
      %v5296 = vadd.f32 %v5199, %v5295
      %v5297 = vpop.f32.mrb[0].mxu0
      %v5298 = vpop.f32.mrb[0].mxu0
      %v5299 = vadd.f32 %v5202, %v5298
      %v5300 = vpop.f32.mrb[0].mxu0
      %5301 = vmatprep.mubr.bf16.mxu0 0
      %5302 = vmatmul.mubr.bf16.gmra.mrb[0].mxu0 %v4141
      %v5303 = vpop.f32.mrb[0].mxu0
      %v5304 = vadd.f32 %v5207, %v5303
      %v5305 = vpop.f32.mrb[0].mxu0
      %v5306 = vpop.f32.mrb[0].mxu0
      %v5307 = vadd.f32 %v5210, %v5306
      %v5308 = vpop.f32.mrb[0].mxu0
      %5309 = vmatprep.mubr.bf16.mxu0 0
      %5310 = vmatmul.mubr.bf16.gmra.mrb[0].mxu0 %v4142
      %v5311 = vpop.f32.mrb[0].mxu0
      %v5312 = vadd.f32 %v5215, %v5311
      %v5313 = vpop.f32.mrb[0].mxu0
      %v5314 = vpop.f32.mrb[0].mxu0
      %v5315 = vadd.f32 %v5218, %v5314
      %v5316 = vpop.f32.mrb[0].mxu0
      %5317 = vmatprep.mubr.bf16.mxu0 0
      %5318 = vmatmul.mubr.bf16.gmra.mrb[0].mxu0 %v4143
      %v5319 = vpop.f32.mrb[0].mxu0
      %v5320 = vadd.f32 %v5223, %v5319
      %v5321 = vpop.f32.mrb[0].mxu0
      %v5322 = vpop.f32.mrb[0].mxu0
      %v5323 = vadd.f32 %v5226, %v5322
      %v5324 = vpop.f32.mrb[0].mxu0
      %5325 = vmatprep.mubr.bf16.mxu0 0
      %5326 = vmatmul.mubr.bf16.gmra.mrb[0].mxu0 %v4144
      %v5327 = vpop.f32.mrb[0].mxu0
      %v5328 = vadd.f32 %v5231, %v5327
      %v5329 = vpop.f32.mrb[0].mxu0
      %v5330 = vpop.f32.mrb[0].mxu0
      %v5331 = vadd.f32 %v5234, %v5330
      %v5332 = vpop.f32.mrb[0].mxu0
      %5333 = vdwg.mxu0
      %s5334 = scalar_lea.vmem [#allocation2], 24
      %v5335 = vld [vmem:[%s5334] sm:$0xf]
      %v5336 = vld [vmem:[%s5334 + $0x4] sm:$0xf]
      %v5337 = vld [vmem:[%s5334 + $0xc] sm:$0xf]
      %v5338 = vld [vmem:[%s5334 + $0x10] sm:$0xf]
      %v5339 = vld [vmem:[%s5334 + $0x18] sm:$0xf]
      %v5340 = vld [vmem:[%s5334 + $0x1c] sm:$0xf]
      %v5341 = vld [vmem:[%s5334 + $0x24] sm:$0xf]
      %v5342 = vld [vmem:[%s5334 + $0x28] sm:$0xf]
      %v5343 = vld [vmem:[%s5334 + $0x30] sm:$0xf]
      %v5344 = vld [vmem:[%s5334 + $0x34] sm:$0xf]
      %v5345 = vld [vmem:[%s5334 + $0x3c] sm:$0xf]
      %v5346 = vld [vmem:[%s5334 + $0x40] sm:$0xf]
      %v5347 = vld [vmem:[%s5334 + $0x48] sm:$0xf]
      %v5348 = vld [vmem:[%s5334 + $0x4c] sm:$0xf]
      %v5349 = vld [vmem:[%s5334 + $0x54] sm:$0xf]
      %v5350 = vld [vmem:[%s5334 + $0x58] sm:$0xf]
      %v5351 = vld [vmem:[%s5334 + $0x8] sm:$0x1]
      %v5352 = vld [vmem:[%s5334 + $0x14] sm:$0x1]
      %v5353 = vld [vmem:[%s5334 + $0x20] sm:$0x1]
      %v5354 = vld [vmem:[%s5334 + $0x2c] sm:$0x1]
      %v5355 = vld [vmem:[%s5334 + $0x38] sm:$0x1]
      %v5356 = vld [vmem:[%s5334 + $0x44] sm:$0x1]
      %v5357 = vld [vmem:[%s5334 + $0x50] sm:$0x1]
      %v5358 = vld [vmem:[%s5334 + $0x5c] sm:$0x1]
      %v5360 = vshrl.u32 %v5335, 16
      %v5362 = vrot.slane %v5360, 4
      %v5363 = vshll.u32 %v5335, 16
      %v5365 = vrot.slane %v5363, 5
      %v5366 = vor.u32 %v5362, %v5365
      %v5367 = vrot.slane %v5366, 4
      %v5369 = vshll.u32 %v5336, 16
      %v5371 = vrot.slane %v5369, 5
      %v5372 = vsel %vm3765, %v5367, %v5371
      %v5373 = vshrl.u32 %v5336, 16
      %v5375 = vrot.slane %v5373, 4
      %v5376 = vor.u32 %v5375, %v5371
      %v5377 = vrot.slane %v5376, 4
      %v5379 = vshll.u32 %v5351, 16
      %v5381 = vrot.slane %v5379, 5
      %v5382 = vsel %vm3765, %v5377, %v5381
      %v5384 = vshrl.u32 %v5337, 16
      %v5386 = vrot.slane %v5384, 4
      %v5387 = vshll.u32 %v5337, 16
      %v5389 = vrot.slane %v5387, 5
      %v5390 = vor.u32 %v5386, %v5389
      %v5391 = vrot.slane %v5390, 4
      %v5393 = vshll.u32 %v5338, 16
      %v5395 = vrot.slane %v5393, 5
      %v5396 = vsel %vm3765, %v5391, %v5395
      %v5397 = vshrl.u32 %v5338, 16
      %v5399 = vrot.slane %v5397, 4
      %v5400 = vor.u32 %v5399, %v5395
      %v5401 = vrot.slane %v5400, 4
      %v5403 = vshll.u32 %v5352, 16
      %v5405 = vrot.slane %v5403, 5
      %v5406 = vsel %vm3765, %v5401, %v5405
      %v5408 = vshrl.u32 %v5339, 16
      %v5410 = vrot.slane %v5408, 4
      %v5411 = vshll.u32 %v5339, 16
      %v5413 = vrot.slane %v5411, 5
      %v5414 = vor.u32 %v5410, %v5413
      %v5415 = vrot.slane %v5414, 4
      %v5417 = vshll.u32 %v5340, 16
      %v5419 = vrot.slane %v5417, 5
      %v5420 = vsel %vm3765, %v5415, %v5419
      %v5421 = vshrl.u32 %v5340, 16
      %v5423 = vrot.slane %v5421, 4
      %v5424 = vor.u32 %v5423, %v5419
      %v5425 = vrot.slane %v5424, 4
      %v5427 = vshll.u32 %v5353, 16
      %v5429 = vrot.slane %v5427, 5
      %v5430 = vsel %vm3765, %v5425, %v5429
      %v5432 = vshrl.u32 %v5341, 16
      %v5434 = vrot.slane %v5432, 4
      %v5435 = vshll.u32 %v5341, 16
      %v5437 = vrot.slane %v5435, 5
      %v5438 = vor.u32 %v5434, %v5437
      %v5439 = vrot.slane %v5438, 4
      %v5441 = vshll.u32 %v5342, 16
      %v5443 = vrot.slane %v5441, 5
      %v5444 = vsel %vm3765, %v5439, %v5443
      %v5445 = vshrl.u32 %v5342, 16
      %v5447 = vrot.slane %v5445, 4
      %v5448 = vor.u32 %v5447, %v5443
      %v5449 = vrot.slane %v5448, 4
      %v5451 = vshll.u32 %v5354, 16
      %v5453 = vrot.slane %v5451, 5
      %v5454 = vsel %vm3765, %v5449, %v5453
      %v5456 = vshrl.u32 %v5343, 16
      %v5458 = vrot.slane %v5456, 4
      %v5459 = vshll.u32 %v5343, 16
      %v5461 = vrot.slane %v5459, 5
      %v5462 = vor.u32 %v5458, %v5461
      %v5463 = vrot.slane %v5462, 4
      %v5465 = vshll.u32 %v5344, 16
      %v5467 = vrot.slane %v5465, 5
      %v5468 = vsel %vm3765, %v5463, %v5467
      %v5469 = vshrl.u32 %v5344, 16
      %v5471 = vrot.slane %v5469, 4
      %v5472 = vor.u32 %v5471, %v5467
      %v5473 = vrot.slane %v5472, 4
      %v5475 = vshll.u32 %v5355, 16
      %v5477 = vrot.slane %v5475, 5
      %v5478 = vsel %vm3765, %v5473, %v5477
      %v5480 = vshrl.u32 %v5345, 16
      %v5482 = vrot.slane %v5480, 4
      %v5483 = vshll.u32 %v5345, 16
      %v5485 = vrot.slane %v5483, 5
      %v5486 = vor.u32 %v5482, %v5485
      %v5487 = vrot.slane %v5486, 4
      %v5489 = vshll.u32 %v5346, 16
      %v5491 = vrot.slane %v5489, 5
      %v5492 = vsel %vm3765, %v5487, %v5491
      %v5493 = vshrl.u32 %v5346, 16
      %v5495 = vrot.slane %v5493, 4
      %v5496 = vor.u32 %v5495, %v5491
      %v5497 = vrot.slane %v5496, 4
      %v5499 = vshll.u32 %v5356, 16
      %v5501 = vrot.slane %v5499, 5
      %v5502 = vsel %vm3765, %v5497, %v5501
      %v5504 = vshrl.u32 %v5347, 16
      %v5506 = vrot.slane %v5504, 4
      %v5507 = vshll.u32 %v5347, 16
      %v5509 = vrot.slane %v5507, 5
      %v5510 = vor.u32 %v5506, %v5509
      %v5511 = vrot.slane %v5510, 4
      %v5513 = vshll.u32 %v5348, 16
      %v5515 = vrot.slane %v5513, 5
      %v5516 = vsel %vm3765, %v5511, %v5515
      %v5517 = vshrl.u32 %v5348, 16
      %v5519 = vrot.slane %v5517, 4
      %v5520 = vor.u32 %v5519, %v5515
      %v5521 = vrot.slane %v5520, 4
      %v5523 = vshll.u32 %v5357, 16
      %v5525 = vrot.slane %v5523, 5
      %v5526 = vsel %vm3765, %v5521, %v5525
      %v5528 = vshrl.u32 %v5349, 16
      %v5530 = vrot.slane %v5528, 4
      %v5531 = vshll.u32 %v5349, 16
      %v5533 = vrot.slane %v5531, 5
      %v5534 = vor.u32 %v5530, %v5533
      %v5535 = vrot.slane %v5534, 4
      %v5537 = vshll.u32 %v5350, 16
      %v5539 = vrot.slane %v5537, 5
      %v5540 = vsel %vm3765, %v5535, %v5539
      %v5541 = vshrl.u32 %v5350, 16
      %v5543 = vrot.slane %v5541, 4
      %v5544 = vor.u32 %v5543, %v5539
      %v5545 = vrot.slane %v5544, 4
      %v5547 = vshll.u32 %v5358, 16
      %v5549 = vrot.slane %v5547, 5
      %v5550 = vsel %vm3765, %v5545, %v5549
      %v5551 = vld [vmem:[%s5334] sm:$0xe]
      %v5552 = vld [vmem:[%s5334 + $0xc] sm:$0xe]
      %v5553 = vld [vmem:[%s5334 + $0x18] sm:$0xe]
      %v5554 = vld [vmem:[%s5334 + $0x24] sm:$0xe]
      %v5555 = vld [vmem:[%s5334 + $0x30] sm:$0xe]
      %v5556 = vld [vmem:[%s5334 + $0x3c] sm:$0xe]
      %v5557 = vld [vmem:[%s5334 + $0x48] sm:$0xe]
      %v5558 = vld [vmem:[%s5334 + $0x54] sm:$0xe]
      %v5583 = vrot.slane %v5551, 5
      %v5584 = vrot.slane %v5583, 4
      %v5585 = vrot.slane %v5336, 5
      %v5586 = vsel %vm3992, %v5584, %v5585
      %v5587 = vrot.slane %v5585, 4
      %v5588 = vrot.slane %v5351, 5
      %v5589 = vsel %vm3992, %v5587, %v5588
      %v5590 = vrot.slane %v5552, 5
      %v5591 = vrot.slane %v5590, 4
      %v5592 = vrot.slane %v5338, 5
      %v5593 = vsel %vm3992, %v5591, %v5592
      %v5594 = vrot.slane %v5592, 4
      %v5595 = vrot.slane %v5352, 5
      %v5596 = vsel %vm3992, %v5594, %v5595
      %v5597 = vrot.slane %v5553, 5
      %v5598 = vrot.slane %v5597, 4
      %v5599 = vrot.slane %v5340, 5
      %v5600 = vsel %vm3992, %v5598, %v5599
      %v5601 = vrot.slane %v5599, 4
      %v5602 = vrot.slane %v5353, 5
      %v5603 = vsel %vm3992, %v5601, %v5602
      %v5604 = vrot.slane %v5554, 5
      %v5605 = vrot.slane %v5604, 4
      %v5606 = vrot.slane %v5342, 5
      %v5607 = vsel %vm3992, %v5605, %v5606
      %v5608 = vrot.slane %v5606, 4
      %v5609 = vrot.slane %v5354, 5
      %v5610 = vsel %vm3992, %v5608, %v5609
      %v5611 = vrot.slane %v5555, 5
      %v5612 = vrot.slane %v5611, 4
      %v5613 = vrot.slane %v5344, 5
      %v5614 = vsel %vm3992, %v5612, %v5613
      %v5615 = vrot.slane %v5613, 4
      %v5616 = vrot.slane %v5355, 5
      %v5617 = vsel %vm3992, %v5615, %v5616
      %v5618 = vrot.slane %v5556, 5
      %v5619 = vrot.slane %v5618, 4
      %v5620 = vrot.slane %v5346, 5
      %v5621 = vsel %vm3992, %v5619, %v5620
      %v5622 = vrot.slane %v5620, 4
      %v5623 = vrot.slane %v5356, 5
      %v5624 = vsel %vm3992, %v5622, %v5623
      %v5625 = vrot.slane %v5557, 5
      %v5626 = vrot.slane %v5625, 4
      %v5627 = vrot.slane %v5348, 5
      %v5628 = vsel %vm3992, %v5626, %v5627
      %v5629 = vrot.slane %v5627, 4
      %v5630 = vrot.slane %v5357, 5
      %v5631 = vsel %vm3992, %v5629, %v5630
      %v5632 = vrot.slane %v5558, 5
      %v5633 = vrot.slane %v5632, 4
      %v5634 = vrot.slane %v5350, 5
      %v5635 = vsel %vm3992, %v5633, %v5634
      %v5636 = vrot.slane %v5634, 4
      %v5637 = vrot.slane %v5358, 5
      %v5638 = vsel %vm3992, %v5636, %v5637
      %v5647 = vunpack.c.l.b16 %v5335
      %v5648 = vunpack.c.l.b16 %v5336
      %v5649 = vunpack.c.l.b16 %v5337
      %v5650 = vunpack.c.l.b16 %v5338
      %v5651 = vunpack.c.l.b16 %v5339
      %v5652 = vunpack.c.l.b16 %v5340
      %v5653 = vunpack.c.l.b16 %v5341
      %v5654 = vunpack.c.l.b16 %v5342
      %v5655 = vunpack.c.l.b16 %v5343
      %v5656 = vunpack.c.l.b16 %v5344
      %v5657 = vunpack.c.l.b16 %v5345
      %v5658 = vunpack.c.l.b16 %v5346
      %v5659 = vunpack.c.l.b16 %v5347
      %v5660 = vunpack.c.l.b16 %v5348
      %v5661 = vunpack.c.l.b16 %v5349
      %v5662 = vunpack.c.l.b16 %v5350
      %v5663 = vpack.c.b16 %v5648, %v5647
      %v5664 = vpack.c.b16 %v5650, %v5649
      %v5665 = vpack.c.b16 %v5652, %v5651
      %v5666 = vpack.c.b16 %v5654, %v5653
      %v5667 = vpack.c.b16 %v5656, %v5655
      %v5668 = vpack.c.b16 %v5658, %v5657
      %v5669 = vpack.c.b16 %v5660, %v5659
      %v5670 = vpack.c.b16 %v5662, %v5661
      %v5679 = vunpack.c.l.b16 %v5372
      %v5680 = vunpack.c.l.b16 %v5382
      %v5681 = vunpack.c.l.b16 %v5396
      %v5682 = vunpack.c.l.b16 %v5406
      %v5683 = vunpack.c.l.b16 %v5420
      %v5684 = vunpack.c.l.b16 %v5430
      %v5685 = vunpack.c.l.b16 %v5444
      %v5686 = vunpack.c.l.b16 %v5454
      %v5687 = vunpack.c.l.b16 %v5468
      %v5688 = vunpack.c.l.b16 %v5478
      %v5689 = vunpack.c.l.b16 %v5492
      %v5690 = vunpack.c.l.b16 %v5502
      %v5691 = vunpack.c.l.b16 %v5516
      %v5692 = vunpack.c.l.b16 %v5526
      %v5693 = vunpack.c.l.b16 %v5540
      %v5694 = vunpack.c.l.b16 %v5550
      %v5695 = vpack.c.b16 %v5680, %v5679
      %v5696 = vpack.c.b16 %v5682, %v5681
      %v5697 = vpack.c.b16 %v5684, %v5683
      %v5698 = vpack.c.b16 %v5686, %v5685
      %v5699 = vpack.c.b16 %v5688, %v5687
      %v5700 = vpack.c.b16 %v5690, %v5689
      %v5701 = vpack.c.b16 %v5692, %v5691
      %v5702 = vpack.c.b16 %v5694, %v5693
      %v5711 = vunpack.c.l.b16 %v5586
      %v5712 = vunpack.c.l.b16 %v5589
      %v5713 = vunpack.c.l.b16 %v5593
      %v5714 = vunpack.c.l.b16 %v5596
      %v5715 = vunpack.c.l.b16 %v5600
      %v5716 = vunpack.c.l.b16 %v5603
      %v5717 = vunpack.c.l.b16 %v5607
      %v5718 = vunpack.c.l.b16 %v5610
      %v5719 = vunpack.c.l.b16 %v5614
      %v5720 = vunpack.c.l.b16 %v5617
      %v5721 = vunpack.c.l.b16 %v5621
      %v5722 = vunpack.c.l.b16 %v5624
      %v5723 = vunpack.c.l.b16 %v5628
      %v5724 = vunpack.c.l.b16 %v5631
      %v5725 = vunpack.c.l.b16 %v5635
      %v5726 = vunpack.c.l.b16 %v5638
      %v5727 = vpack.c.b16 %v5712, %v5711
      %v5728 = vpack.c.b16 %v5714, %v5713
      %v5729 = vpack.c.b16 %v5716, %v5715
      %v5730 = vpack.c.b16 %v5718, %v5717
      %v5731 = vpack.c.b16 %v5720, %v5719
      %v5732 = vpack.c.b16 %v5722, %v5721
      %v5733 = vpack.c.b16 %v5724, %v5723
      %v5734 = vpack.c.b16 %v5726, %v5725
      %s5743 = scalar_lea.vmem %s3, 384
      %v5744 = vld [vmem:[%s5743] sm:$0xf]
      %v5745 = vld [vmem:[%s5743 + $0x4] sm:$0xf]
      %v5746 = vld [vmem:[%s5743 + $0x8] sm:$0xf]
      %v5747 = vld [vmem:[%s5743 + $0xc] sm:$0xf]
      %v5748 = vld [vmem:[%s5743 + $0x10] sm:$0xf]
      %v5749 = vld [vmem:[%s5743 + $0x14] sm:$0xf]
      %v5750 = vld [vmem:[%s5743 + $0x18] sm:$0xf]
      %v5751 = vld [vmem:[%s5743 + $0x1c] sm:$0xf]
      %v5752 = vld [vmem:[%s5743 + $0x20] sm:$0xf]
      %v5753 = vld [vmem:[%s5743 + $0x24] sm:$0xf]
      %v5754 = vld [vmem:[%s5743 + $0x28] sm:$0xf]
      %v5755 = vld [vmem:[%s5743 + $0x2c] sm:$0xf]
      %v5756 = vld [vmem:[%s5743 + $0x30] sm:$0xf]
      %v5757 = vld [vmem:[%s5743 + $0x34] sm:$0xf]
      %v5758 = vld [vmem:[%s5743 + $0x38] sm:$0xf]
      %v5759 = vld [vmem:[%s5743 + $0x3c] sm:$0xf]
      %v5760 = vld [vmem:[%s5743 + $0x40] sm:$0xf]
      %v5761 = vld [vmem:[%s5743 + $0x44] sm:$0xf]
      %v5762 = vld [vmem:[%s5743 + $0x48] sm:$0xf]
      %v5763 = vld [vmem:[%s5743 + $0x4c] sm:$0xf]
      %v5764 = vld [vmem:[%s5743 + $0x50] sm:$0xf]
      %v5765 = vld [vmem:[%s5743 + $0x54] sm:$0xf]
      %v5766 = vld [vmem:[%s5743 + $0x58] sm:$0xf]
      %v5767 = vld [vmem:[%s5743 + $0x5c] sm:$0xf]
      %v5768 = vld [vmem:[%s5743 + $0x60] sm:$0xf]
      %v5769 = vld [vmem:[%s5743 + $0x64] sm:$0xf]
      %v5770 = vld [vmem:[%s5743 + $0x68] sm:$0xf]
      %v5771 = vld [vmem:[%s5743 + $0x6c] sm:$0xf]
      %v5772 = vld [vmem:[%s5743 + $0x70] sm:$0xf]
      %v5773 = vld [vmem:[%s5743 + $0x74] sm:$0xf]
      %v5774 = vld [vmem:[%s5743 + $0x78] sm:$0xf]
      %v5775 = vld [vmem:[%s5743 + $0x7c] sm:$0xf]
      %v5776 = vld [vmem:[%s5743 + $0x80] sm:$0xf]
      %v5777 = vld [vmem:[%s5743 + $0x84] sm:$0xf]
      %v5778 = vld [vmem:[%s5743 + $0x88] sm:$0xf]
      %v5779 = vld [vmem:[%s5743 + $0x8c] sm:$0xf]
      %v5780 = vld [vmem:[%s5743 + $0x90] sm:$0xf]
      %v5781 = vld [vmem:[%s5743 + $0x94] sm:$0xf]
      %v5782 = vld [vmem:[%s5743 + $0x98] sm:$0xf]
      %v5783 = vld [vmem:[%s5743 + $0x9c] sm:$0xf]
      %v5784 = vld [vmem:[%s5743 + $0xa0] sm:$0xf]
      %v5785 = vld [vmem:[%s5743 + $0xa4] sm:$0xf]
      %v5786 = vld [vmem:[%s5743 + $0xa8] sm:$0xf]
      %v5787 = vld [vmem:[%s5743 + $0xac] sm:$0xf]
      %v5788 = vld [vmem:[%s5743 + $0xb0] sm:$0xf]
      %v5789 = vld [vmem:[%s5743 + $0xb4] sm:$0xf]
      %v5790 = vld [vmem:[%s5743 + $0xb8] sm:$0xf]
      %v5791 = vld [vmem:[%s5743 + $0xbc] sm:$0xf]
      %v5840 = vunpack.c.l.b16 %v5744
      %v5841 = vunpack.c.l.b16 %v5745
      %v5842 = vunpack.c.l.b16 %v5746
      %v5843 = vunpack.c.l.b16 %v5747
      %v5844 = vunpack.c.l.b16 %v5748
      %v5845 = vunpack.c.l.b16 %v5749
      %v5846 = vunpack.c.l.b16 %v5750
      %v5847 = vunpack.c.l.b16 %v5751
      %v5848 = vunpack.c.l.b16 %v5752
      %v5849 = vunpack.c.l.b16 %v5753
      %v5850 = vunpack.c.l.b16 %v5754
      %v5851 = vunpack.c.l.b16 %v5755
      %v5852 = vunpack.c.l.b16 %v5756
      %v5853 = vunpack.c.l.b16 %v5757
      %v5854 = vunpack.c.l.b16 %v5758
      %v5855 = vunpack.c.l.b16 %v5759
      %v5856 = vunpack.c.l.b16 %v5760
      %v5857 = vunpack.c.l.b16 %v5761
      %v5858 = vunpack.c.l.b16 %v5762
      %v5859 = vunpack.c.l.b16 %v5763
      %v5860 = vunpack.c.l.b16 %v5764
      %v5861 = vunpack.c.l.b16 %v5765
      %v5862 = vunpack.c.l.b16 %v5766
      %v5863 = vunpack.c.l.b16 %v5767
      %v5864 = vunpack.c.l.b16 %v5768
      %v5865 = vunpack.c.l.b16 %v5769
      %v5866 = vunpack.c.l.b16 %v5770
      %v5867 = vunpack.c.l.b16 %v5771
      %v5868 = vunpack.c.l.b16 %v5772
      %v5869 = vunpack.c.l.b16 %v5773
      %v5870 = vunpack.c.l.b16 %v5774
      %v5871 = vunpack.c.l.b16 %v5775
      %v5872 = vunpack.c.l.b16 %v5776
      %v5873 = vunpack.c.l.b16 %v5777
      %v5874 = vunpack.c.l.b16 %v5778
      %v5875 = vunpack.c.l.b16 %v5779
      %v5876 = vunpack.c.l.b16 %v5780
      %v5877 = vunpack.c.l.b16 %v5781
      %v5878 = vunpack.c.l.b16 %v5782
      %v5879 = vunpack.c.l.b16 %v5783
      %v5880 = vunpack.c.l.b16 %v5784
      %v5881 = vunpack.c.l.b16 %v5785
      %v5882 = vunpack.c.l.b16 %v5786
      %v5883 = vunpack.c.l.b16 %v5787
      %v5884 = vunpack.c.l.b16 %v5788
      %v5885 = vunpack.c.l.b16 %v5789
      %v5886 = vunpack.c.l.b16 %v5790
      %v5887 = vunpack.c.l.b16 %v5791
      %v5888 = vpack.c.b16 %v5841, %v5840
      %v5889 = vpack.c.b16 %v5843, %v5842
      %v5890 = vpack.c.b16 %v5845, %v5844
      %v5891 = vpack.c.b16 %v5847, %v5846
      %v5892 = vpack.c.b16 %v5849, %v5848
      %v5893 = vpack.c.b16 %v5851, %v5850
      %v5894 = vpack.c.b16 %v5853, %v5852
      %v5895 = vpack.c.b16 %v5855, %v5854
      %v5896 = vpack.c.b16 %v5857, %v5856
      %v5897 = vpack.c.b16 %v5859, %v5858
      %v5898 = vpack.c.b16 %v5861, %v5860
      %v5899 = vpack.c.b16 %v5863, %v5862
      %v5900 = vpack.c.b16 %v5865, %v5864
      %v5901 = vpack.c.b16 %v5867, %v5866
      %v5902 = vpack.c.b16 %v5869, %v5868
      %v5903 = vpack.c.b16 %v5871, %v5870
      %v5904 = vpack.c.b16 %v5873, %v5872
      %v5905 = vpack.c.b16 %v5875, %v5874
      %v5906 = vpack.c.b16 %v5877, %v5876
      %v5907 = vpack.c.b16 %v5879, %v5878
      %v5908 = vpack.c.b16 %v5881, %v5880
      %v5909 = vpack.c.b16 %v5883, %v5882
      %v5910 = vpack.c.b16 %v5885, %v5884
      %v5911 = vpack.c.b16 %v5887, %v5886
      %5936 = vmatprep.subr.bf16.mxu0 0
      %5937 = vmatpush1.bf16.msra.mxu0 %v5888
      %5938 = vmatprep.subr.bf16.mxu0 0
      %5939 = vmatpush1.bf16.msra.mxu0 %v5889
      %5940 = vmatprep.subr.bf16.mxu0 0
      %5941 = vmatpush1.bf16.msra.mxu0 %v5890
      %5942 = vmatprep.subr.bf16.mxu0 0
      %5943 = vmatpush1.bf16.msra.mxu0 %v5891
      %5944 = vmatprep.subr.bf16.mxu0 0
      %5945 = vmatpush1.bf16.msra.mxu0 %v5892
      %5946 = vmatprep.subr.bf16.mxu0 0
      %5947 = vmatpush1.bf16.msra.mxu0 %v5893
      %5948 = vmatprep.subr.bf16.mxu0 0
      %5949 = vmatpush1.bf16.msra.mxu0 %v5894
      %5950 = vmatprep.subr.bf16.mxu0 0
      %5951 = vmatpush1.bf16.msra.mxu0 %v5895
      %5952 = vmatprep.subr.bf16.mxu0 0
      %5953 = vmatpush1.bf16.msra.mxu0 %v5896
      %5954 = vmatprep.subr.bf16.mxu0 0
      %5955 = vmatpush1.bf16.msra.mxu0 %v5897
      %5956 = vmatprep.subr.bf16.mxu0 0
      %5957 = vmatpush1.bf16.msra.mxu0 %v5898
      %5958 = vmatprep.subr.bf16.mxu0 0
      %5959 = vmatpush1.bf16.msra.mxu0 %v5899
      %5960 = vmatprep.subr.bf16.mxu0 0
      %5961 = vmatpush1.bf16.msra.mxu0 %v5900
      %5962 = vmatprep.subr.bf16.mxu0 0
      %5963 = vmatpush1.bf16.msra.mxu0 %v5901
      %5964 = vmatprep.subr.bf16.mxu0 0
      %5965 = vmatpush1.bf16.msra.mxu0 %v5902
      %5966 = vmatprep.subr.bf16.mxu0 0
      %5967 = vmatpush1.bf16.msra.mxu0 %v5903
      %5968 = vmatprep.mubr.bf16.mxu0 %v5695
      %5969 = vmatmul.mubr.bf16.gmra.mrb[0].mxu0 %v5663
      %v5970 = vpop.f32.mrb[0].mxu0
      %v5971 = vadd.f32 0.0, %v5970
      %v5972 = vpop.f32.mrb[0].mxu0
      %v5973 = vpop.f32.mrb[0].mxu0
      %v5974 = vadd.f32 0.0, %v5973
      %v5975 = vpop.f32.mrb[0].mxu0
      %5976 = vmatprep.mubr.bf16.mxu0 %v5696
      %5977 = vmatmul.mubr.bf16.gmra.mrb[0].mxu0 %v5664
      %v5978 = vpop.f32.mrb[0].mxu0
      %v5979 = vadd.f32 0.0, %v5978
      %v5980 = vpop.f32.mrb[0].mxu0
      %v5981 = vpop.f32.mrb[0].mxu0
      %v5982 = vadd.f32 0.0, %v5981
      %v5983 = vpop.f32.mrb[0].mxu0
      %5984 = vmatprep.mubr.bf16.mxu0 %v5697
      %5985 = vmatmul.mubr.bf16.gmra.mrb[0].mxu0 %v5665
      %v5986 = vpop.f32.mrb[0].mxu0
      %v5987 = vadd.f32 0.0, %v5986
      %v5988 = vpop.f32.mrb[0].mxu0
      %v5989 = vpop.f32.mrb[0].mxu0
      %v5990 = vadd.f32 0.0, %v5989
      %v5991 = vpop.f32.mrb[0].mxu0
      %5992 = vmatprep.mubr.bf16.mxu0 %v5698
      %5993 = vmatmul.mubr.bf16.gmra.mrb[0].mxu0 %v5666
      %v5994 = vpop.f32.mrb[0].mxu0
      %v5995 = vadd.f32 0.0, %v5994
      %v5996 = vpop.f32.mrb[0].mxu0
      %v5997 = vpop.f32.mrb[0].mxu0
      %v5998 = vadd.f32 0.0, %v5997
      %v5999 = vpop.f32.mrb[0].mxu0
      %6000 = vmatprep.mubr.bf16.mxu0 %v5699
      %6001 = vmatmul.mubr.bf16.gmra.mrb[0].mxu0 %v5667
      %v6002 = vpop.f32.mrb[0].mxu0
      %v6003 = vadd.f32 0.0, %v6002
      %v6004 = vpop.f32.mrb[0].mxu0
      %v6005 = vpop.f32.mrb[0].mxu0
      %v6006 = vadd.f32 0.0, %v6005
      %v6007 = vpop.f32.mrb[0].mxu0
      %6008 = vmatprep.mubr.bf16.mxu0 %v5700
      %6009 = vmatmul.mubr.bf16.gmra.mrb[0].mxu0 %v5668
      %v6010 = vpop.f32.mrb[0].mxu0
      %v6011 = vadd.f32 0.0, %v6010
      %v6012 = vpop.f32.mrb[0].mxu0
      %v6013 = vpop.f32.mrb[0].mxu0
      %v6014 = vadd.f32 0.0, %v6013
      %v6015 = vpop.f32.mrb[0].mxu0
      %6016 = vmatprep.mubr.bf16.mxu0 %v5701
      %6017 = vmatmul.mubr.bf16.gmra.mrb[0].mxu0 %v5669
      %v6018 = vpop.f32.mrb[0].mxu0
      %v6019 = vadd.f32 0.0, %v6018
      %v6020 = vpop.f32.mrb[0].mxu0
      %v6021 = vpop.f32.mrb[0].mxu0
      %v6022 = vadd.f32 0.0, %v6021
      %v6023 = vpop.f32.mrb[0].mxu0
      %6024 = vmatprep.mubr.bf16.mxu0 %v5702
      %6025 = vmatmul.mubr.bf16.gmra.mrb[0].mxu0 %v5670
      %v6026 = vpop.f32.mrb[0].mxu0
      %v6027 = vadd.f32 0.0, %v6026
      %v6028 = vpop.f32.mrb[0].mxu0
      %v6029 = vpop.f32.mrb[0].mxu0
      %v6030 = vadd.f32 0.0, %v6029
      %v6031 = vpop.f32.mrb[0].mxu0
      %6032 = vdwg.mxu0
      %6033 = vmatprep.subr.bf16.mxu0 0
      %6034 = vmatpush1.bf16.msra.mxu0 %v5904
      %6035 = vmatprep.subr.bf16.mxu0 0
      %6036 = vmatpush1.bf16.msra.mxu0 %v5905
      %6037 = vmatprep.subr.bf16.mxu0 0
      %6038 = vmatpush1.bf16.msra.mxu0 %v5906
      %6039 = vmatprep.subr.bf16.mxu0 0
      %6040 = vmatpush1.bf16.msra.mxu0 %v5907
      %6041 = vmatprep.subr.bf16.mxu0 0
      %6042 = vmatpush1.bf16.msra.mxu0 %v5908
      %6043 = vmatprep.subr.bf16.mxu0 0
      %6044 = vmatpush1.bf16.msra.mxu0 %v5909
      %6045 = vmatprep.subr.bf16.mxu0 0
      %6046 = vmatpush1.bf16.msra.mxu0 %v5910
      %6047 = vmatprep.subr.bf16.mxu0 0
      %6048 = vmatpush1.bf16.msra.mxu0 %v5911
      %6049 = vmatprep.subr.bf16.mxu0 0
      %6050 = vmatpush1.bf16.msra.mxu0 0
      %6051 = vmatprep.subr.bf16.mxu0 0
      %6052 = vmatpush1.bf16.msra.mxu0 0
      %6053 = vmatprep.subr.bf16.mxu0 0
      %6054 = vmatpush1.bf16.msra.mxu0 0
      %6055 = vmatprep.subr.bf16.mxu0 0
      %6056 = vmatpush1.bf16.msra.mxu0 0
      %6057 = vmatprep.subr.bf16.mxu0 0
      %6058 = vmatpush1.bf16.msra.mxu0 0
      %6059 = vmatprep.subr.bf16.mxu0 0
      %6060 = vmatpush1.bf16.msra.mxu0 0
      %6061 = vmatprep.subr.bf16.mxu0 0
      %6062 = vmatpush1.bf16.msra.mxu0 0
      %6063 = vmatprep.subr.bf16.mxu0 0
      %6064 = vmatpush1.bf16.msra.mxu0 0
      %6065 = vmatprep.mubr.bf16.mxu0 0
      %6066 = vmatmul.mubr.bf16.gmra.mrb[0].mxu0 %v5727
      %v6067 = vpop.f32.mrb[0].mxu0
      %v6068 = vadd.f32 %v5971, %v6067
      %v6069 = vpop.f32.mrb[0].mxu0
      %v6070 = vpop.f32.mrb[0].mxu0
      %v6071 = vadd.f32 %v5974, %v6070
      %v6072 = vpop.f32.mrb[0].mxu0
      %6073 = vmatprep.mubr.bf16.mxu0 0
      %6074 = vmatmul.mubr.bf16.gmra.mrb[0].mxu0 %v5728
      %v6075 = vpop.f32.mrb[0].mxu0
      %v6076 = vadd.f32 %v5979, %v6075
      %v6077 = vpop.f32.mrb[0].mxu0
      %v6078 = vpop.f32.mrb[0].mxu0
      %v6079 = vadd.f32 %v5982, %v6078
      %v6080 = vpop.f32.mrb[0].mxu0
      %6081 = vmatprep.mubr.bf16.mxu0 0
      %6082 = vmatmul.mubr.bf16.gmra.mrb[0].mxu0 %v5729
      %v6083 = vpop.f32.mrb[0].mxu0
      %v6084 = vadd.f32 %v5987, %v6083
      %v6085 = vpop.f32.mrb[0].mxu0
      %v6086 = vpop.f32.mrb[0].mxu0
      %v6087 = vadd.f32 %v5990, %v6086
      %v6088 = vpop.f32.mrb[0].mxu0
      %6089 = vmatprep.mubr.bf16.mxu0 0
      %6090 = vmatmul.mubr.bf16.gmra.mrb[0].mxu0 %v5730
      %v6091 = vpop.f32.mrb[0].mxu0
      %v6092 = vadd.f32 %v5995, %v6091
      %v6093 = vpop.f32.mrb[0].mxu0
      %v6094 = vpop.f32.mrb[0].mxu0
      %v6095 = vadd.f32 %v5998, %v6094
      %v6096 = vpop.f32.mrb[0].mxu0
      %6097 = vmatprep.mubr.bf16.mxu0 0
      %6098 = vmatmul.mubr.bf16.gmra.mrb[0].mxu0 %v5731
      %v6099 = vpop.f32.mrb[0].mxu0
      %v6100 = vadd.f32 %v6003, %v6099
      %v6101 = vpop.f32.mrb[0].mxu0
      %v6102 = vpop.f32.mrb[0].mxu0
      %v6103 = vadd.f32 %v6006, %v6102
      %v6104 = vpop.f32.mrb[0].mxu0
      %6105 = vmatprep.mubr.bf16.mxu0 0
      %6106 = vmatmul.mubr.bf16.gmra.mrb[0].mxu0 %v5732
      %v6107 = vpop.f32.mrb[0].mxu0
      %v6108 = vadd.f32 %v6011, %v6107
      %v6109 = vpop.f32.mrb[0].mxu0
      %v6110 = vpop.f32.mrb[0].mxu0
      %v6111 = vadd.f32 %v6014, %v6110
      %v6112 = vpop.f32.mrb[0].mxu0
      %6113 = vmatprep.mubr.bf16.mxu0 0
      %6114 = vmatmul.mubr.bf16.gmra.mrb[0].mxu0 %v5733
      %v6115 = vpop.f32.mrb[0].mxu0
      %v6116 = vadd.f32 %v6019, %v6115
      %v6117 = vpop.f32.mrb[0].mxu0
      %v6118 = vpop.f32.mrb[0].mxu0
      %v6119 = vadd.f32 %v6022, %v6118
      %v6120 = vpop.f32.mrb[0].mxu0
      %6121 = vmatprep.mubr.bf16.mxu0 0
      %6122 = vmatmul.mubr.bf16.gmra.mrb[0].mxu0 %v5734
      %v6123 = vpop.f32.mrb[0].mxu0
      %v6124 = vadd.f32 %v6027, %v6123
      %v6125 = vpop.f32.mrb[0].mxu0
      %v6126 = vpop.f32.mrb[0].mxu0
      %v6127 = vadd.f32 %v6030, %v6126
      %v6128 = vpop.f32.mrb[0].mxu0
      %6129 = vdwg.mxu0
      %v6130 = vadd.f32 %v5272, %v6068
      %v6131 = vadd.f32 %v5275, %v6071
      %v6132 = vadd.f32 %v5280, %v6076
      %v6133 = vadd.f32 %v5283, %v6079
      %v6134 = vadd.f32 %v5288, %v6084
      %v6135 = vadd.f32 %v5291, %v6087
      %v6136 = vadd.f32 %v5296, %v6092
      %v6137 = vadd.f32 %v5299, %v6095
      %v6138 = vadd.f32 %v5304, %v6100
      %v6139 = vadd.f32 %v5307, %v6103
      %v6140 = vadd.f32 %v5312, %v6108
      %v6141 = vadd.f32 %v5315, %v6111
      %v6142 = vadd.f32 %v5320, %v6116
      %v6143 = vadd.f32 %v5323, %v6119
      %v6144 = vadd.f32 %v5328, %v6124
      %v6145 = vadd.f32 %v5331, %v6127
      %v6146 = vld [vmem:[%s468 + $0x1] sm:$0xff]
      %v6147 = vld [vmem:[%s468 + $0x9] sm:$0xff]
      %v6148 = vld [vmem:[%s468 + $0x19] sm:$0xff]
      %v6149 = vld [vmem:[%s468 + $0x21] sm:$0xff]
      %v6150 = vld [vmem:[%s468 + $0x31] sm:$0xff]
      %v6151 = vld [vmem:[%s468 + $0x39] sm:$0xff]
      %v6152 = vld [vmem:[%s468 + $0x49] sm:$0xff]
      %v6153 = vld [vmem:[%s468 + $0x51] sm:$0xff]
      %v6154 = vld [vmem:[%s468 + $0x61] sm:$0xff]
      %v6155 = vld [vmem:[%s468 + $0x69] sm:$0xff]
      %v6156 = vld [vmem:[%s468 + $0x79] sm:$0xff]
      %v6157 = vld [vmem:[%s468 + $0x81] sm:$0xff]
      %v6158 = vld [vmem:[%s468 + $0x91] sm:$0xff]
      %v6159 = vld [vmem:[%s468 + $0x99] sm:$0xff]
      %v6160 = vld [vmem:[%s468 + $0xa9] sm:$0xff]
      %v6161 = vld [vmem:[%s468 + $0xb1] sm:$0xff]
      %v6163 = vlaneseq
      %v6164 = vshrl.u32 %v6163, 7
      %v6165 = vsub.s32 0, %v6164
      %v6166 = vrot.slane %v227, %v6165
      %v6168 = vadd.f32 %v6130, %v6166
      %v6169 = vadd.f32 %v6131, %v6166
      %v6170 = vadd.f32 %v6132, %v6166
      %v6171 = vadd.f32 %v6133, %v6166
      %v6172 = vadd.f32 %v6134, %v6166
      %v6173 = vadd.f32 %v6135, %v6166
      %v6174 = vadd.f32 %v6136, %v6166
      %v6175 = vadd.f32 %v6137, %v6166
      %v6176 = vadd.f32 %v6138, %v6166
      %v6177 = vadd.f32 %v6139, %v6166
      %v6178 = vadd.f32 %v6140, %v6166
      %v6179 = vadd.f32 %v6141, %v6166
      %v6180 = vadd.f32 %v6142, %v6166
      %v6181 = vadd.f32 %v6143, %v6166
      %v6182 = vadd.f32 %v6144, %v6166
      %v6183 = vadd.f32 %v6145, %v6166
      %v6184 = vadd.f32 %v6168, %v6146
      %v6185 = vadd.f32 %v6169, %v6147
      %v6186 = vadd.f32 %v6170, %v6148
      %v6187 = vadd.f32 %v6171, %v6149
      %v6188 = vadd.f32 %v6172, %v6150
      %v6189 = vadd.f32 %v6173, %v6151
      %v6190 = vadd.f32 %v6174, %v6152
      %v6191 = vadd.f32 %v6175, %v6153
      %v6192 = vadd.f32 %v6176, %v6154
      %v6193 = vadd.f32 %v6177, %v6155
      %v6194 = vadd.f32 %v6178, %v6156
      %v6195 = vadd.f32 %v6179, %v6157
      %v6196 = vadd.f32 %v6180, %v6158
      %v6197 = vadd.f32 %v6181, %v6159
      %v6198 = vadd.f32 %v6182, %v6160
      %v6199 = vadd.f32 %v6183, %v6161
      %v6200 = vmax.f32 %v6184, 0.0
      %v6201 = vmax.f32 %v6185, 0.0
      %v6202 = vmax.f32 %v6186, 0.0
      %v6203 = vmax.f32 %v6187, 0.0
      %v6204 = vmax.f32 %v6188, 0.0
      %v6205 = vmax.f32 %v6189, 0.0
      %v6206 = vmax.f32 %v6190, 0.0
      %v6207 = vmax.f32 %v6191, 0.0
      %v6208 = vmax.f32 %v6192, 0.0
      %v6209 = vmax.f32 %v6193, 0.0
      %v6210 = vmax.f32 %v6194, 0.0
      %v6211 = vmax.f32 %v6195, 0.0
      %v6212 = vmax.f32 %v6196, 0.0
      %v6213 = vmax.f32 %v6197, 0.0
      %v6214 = vmax.f32 %v6198, 0.0
      %v6215 = vmax.f32 %v6199, 0.0
      %6216 = vst [vmem:[%s224] sm:$0xff] %v6200
      %6217 = vst [vmem:[%s224 + $0x8] sm:$0xff] %v6201
      %6218 = vst [vmem:[%s224 + $0x10] sm:$0xff] %v6202
      %6219 = vst [vmem:[%s224 + $0x18] sm:$0xff] %v6203
      %6220 = vst [vmem:[%s224 + $0x20] sm:$0xff] %v6204
      %6221 = vst [vmem:[%s224 + $0x28] sm:$0xff] %v6205
      %6222 = vst [vmem:[%s224 + $0x30] sm:$0xff] %v6206
      %6223 = vst [vmem:[%s224 + $0x38] sm:$0xff] %v6207
      %6224 = vst [vmem:[%s224 + $0x40] sm:$0xff] %v6208
      %6225 = vst [vmem:[%s224 + $0x48] sm:$0xff] %v6209
      %6226 = vst [vmem:[%s224 + $0x50] sm:$0xff] %v6210
      %6227 = vst [vmem:[%s224 + $0x58] sm:$0xff] %v6211
      %6228 = vst [vmem:[%s224 + $0x60] sm:$0xff] %v6212
      %6229 = vst [vmem:[%s224 + $0x68] sm:$0xff] %v6213
      %6230 = vst [vmem:[%s224 + $0x70] sm:$0xff] %v6214
      %6231 = vst [vmem:[%s224 + $0x78] sm:$0xff] %v6215
      %s6232 = scalar_lea.vmem [#allocation2], 96
      %v6233 = vld [vmem:[%s6232] sm:$0xf]
      %v6234 = vld [vmem:[%s6232 + $0x4] sm:$0xf]
      %v6235 = vld [vmem:[%s6232 + $0xc] sm:$0xf]
      %v6236 = vld [vmem:[%s6232 + $0x10] sm:$0xf]
      %v6237 = vld [vmem:[%s6232 + $0x18] sm:$0xf]
      %v6238 = vld [vmem:[%s6232 + $0x1c] sm:$0xf]
      %v6239 = vld [vmem:[%s6232 + $0x24] sm:$0xf]
      %v6240 = vld [vmem:[%s6232 + $0x28] sm:$0xf]
      %v6241 = vld [vmem:[%s6232 + $0x30] sm:$0xf]
      %v6242 = vld [vmem:[%s6232 + $0x34] sm:$0xf]
      %v6243 = vld [vmem:[%s6232 + $0x3c] sm:$0xf]
      %v6244 = vld [vmem:[%s6232 + $0x40] sm:$0xf]
      %v6245 = vld [vmem:[%s6232 + $0x48] sm:$0xf]
      %v6246 = vld [vmem:[%s6232 + $0x4c] sm:$0xf]
      %v6247 = vld [vmem:[%s6232 + $0x54] sm:$0xf]
      %v6248 = vld [vmem:[%s6232 + $0x58] sm:$0xf]
      %v6249 = vld [vmem:[%s6232 + $0x8] sm:$0x1]
      %v6250 = vld [vmem:[%s6232 + $0x14] sm:$0x1]
      %v6251 = vld [vmem:[%s6232 + $0x20] sm:$0x1]
      %v6252 = vld [vmem:[%s6232 + $0x2c] sm:$0x1]
      %v6253 = vld [vmem:[%s6232 + $0x38] sm:$0x1]
      %v6254 = vld [vmem:[%s6232 + $0x44] sm:$0x1]
      %v6255 = vld [vmem:[%s6232 + $0x50] sm:$0x1]
      %v6256 = vld [vmem:[%s6232 + $0x5c] sm:$0x1]
      %v6258 = vshrl.u32 %v6233, 16
      %v6260 = vrot.slane %v6258, 4
      %v6261 = vshll.u32 %v6233, 16
      %v6263 = vrot.slane %v6261, 5
      %v6264 = vor.u32 %v6260, %v6263
      %v6265 = vrot.slane %v6264, 4
      %v6267 = vshll.u32 %v6234, 16
      %v6269 = vrot.slane %v6267, 5
      %v6270 = vsel %vm3765, %v6265, %v6269
      %v6271 = vshrl.u32 %v6234, 16
      %v6273 = vrot.slane %v6271, 4
      %v6274 = vor.u32 %v6273, %v6269
      %v6275 = vrot.slane %v6274, 4
      %v6277 = vshll.u32 %v6249, 16
      %v6279 = vrot.slane %v6277, 5
      %v6280 = vsel %vm3765, %v6275, %v6279
      %v6282 = vshrl.u32 %v6235, 16
      %v6284 = vrot.slane %v6282, 4
      %v6285 = vshll.u32 %v6235, 16
      %v6287 = vrot.slane %v6285, 5
      %v6288 = vor.u32 %v6284, %v6287
      %v6289 = vrot.slane %v6288, 4
      %v6291 = vshll.u32 %v6236, 16
      %v6293 = vrot.slane %v6291, 5
      %v6294 = vsel %vm3765, %v6289, %v6293
      %v6295 = vshrl.u32 %v6236, 16
      %v6297 = vrot.slane %v6295, 4
      %v6298 = vor.u32 %v6297, %v6293
      %v6299 = vrot.slane %v6298, 4
      %v6301 = vshll.u32 %v6250, 16
      %v6303 = vrot.slane %v6301, 5
      %v6304 = vsel %vm3765, %v6299, %v6303
      %v6306 = vshrl.u32 %v6237, 16
      %v6308 = vrot.slane %v6306, 4
      %v6309 = vshll.u32 %v6237, 16
      %v6311 = vrot.slane %v6309, 5
      %v6312 = vor.u32 %v6308, %v6311
      %v6313 = vrot.slane %v6312, 4
      %v6315 = vshll.u32 %v6238, 16
      %v6317 = vrot.slane %v6315, 5
      %v6318 = vsel %vm3765, %v6313, %v6317
      %v6319 = vshrl.u32 %v6238, 16
      %v6321 = vrot.slane %v6319, 4
      %v6322 = vor.u32 %v6321, %v6317
      %v6323 = vrot.slane %v6322, 4
      %v6325 = vshll.u32 %v6251, 16
      %v6327 = vrot.slane %v6325, 5
      %v6328 = vsel %vm3765, %v6323, %v6327
      %v6330 = vshrl.u32 %v6239, 16
      %v6332 = vrot.slane %v6330, 4
      %v6333 = vshll.u32 %v6239, 16
      %v6335 = vrot.slane %v6333, 5
      %v6336 = vor.u32 %v6332, %v6335
      %v6337 = vrot.slane %v6336, 4
      %v6339 = vshll.u32 %v6240, 16
      %v6341 = vrot.slane %v6339, 5
      %v6342 = vsel %vm3765, %v6337, %v6341
      %v6343 = vshrl.u32 %v6240, 16
      %v6345 = vrot.slane %v6343, 4
      %v6346 = vor.u32 %v6345, %v6341
      %v6347 = vrot.slane %v6346, 4
      %v6349 = vshll.u32 %v6252, 16
      %v6351 = vrot.slane %v6349, 5
      %v6352 = vsel %vm3765, %v6347, %v6351
      %v6354 = vshrl.u32 %v6241, 16
      %v6356 = vrot.slane %v6354, 4
      %v6357 = vshll.u32 %v6241, 16
      %v6359 = vrot.slane %v6357, 5
      %v6360 = vor.u32 %v6356, %v6359
      %v6361 = vrot.slane %v6360, 4
      %v6363 = vshll.u32 %v6242, 16
      %v6365 = vrot.slane %v6363, 5
      %v6366 = vsel %vm3765, %v6361, %v6365
      %v6367 = vshrl.u32 %v6242, 16
      %v6369 = vrot.slane %v6367, 4
      %v6370 = vor.u32 %v6369, %v6365
      %v6371 = vrot.slane %v6370, 4
      %v6373 = vshll.u32 %v6253, 16
      %v6375 = vrot.slane %v6373, 5
      %v6376 = vsel %vm3765, %v6371, %v6375
      %v6378 = vshrl.u32 %v6243, 16
      %v6380 = vrot.slane %v6378, 4
      %v6381 = vshll.u32 %v6243, 16
      %v6383 = vrot.slane %v6381, 5
      %v6384 = vor.u32 %v6380, %v6383
      %v6385 = vrot.slane %v6384, 4
      %v6387 = vshll.u32 %v6244, 16
      %v6389 = vrot.slane %v6387, 5
      %v6390 = vsel %vm3765, %v6385, %v6389
      %v6391 = vshrl.u32 %v6244, 16
      %v6393 = vrot.slane %v6391, 4
      %v6394 = vor.u32 %v6393, %v6389
      %v6395 = vrot.slane %v6394, 4
      %v6397 = vshll.u32 %v6254, 16
      %v6399 = vrot.slane %v6397, 5
      %v6400 = vsel %vm3765, %v6395, %v6399
      %v6402 = vshrl.u32 %v6245, 16
      %v6404 = vrot.slane %v6402, 4
      %v6405 = vshll.u32 %v6245, 16
      %v6407 = vrot.slane %v6405, 5
      %v6408 = vor.u32 %v6404, %v6407
      %v6409 = vrot.slane %v6408, 4
      %v6411 = vshll.u32 %v6246, 16
      %v6413 = vrot.slane %v6411, 5
      %v6414 = vsel %vm3765, %v6409, %v6413
      %v6415 = vshrl.u32 %v6246, 16
      %v6417 = vrot.slane %v6415, 4
      %v6418 = vor.u32 %v6417, %v6413
      %v6419 = vrot.slane %v6418, 4
      %v6421 = vshll.u32 %v6255, 16
      %v6423 = vrot.slane %v6421, 5
      %v6424 = vsel %vm3765, %v6419, %v6423
      %v6426 = vshrl.u32 %v6247, 16
      %v6428 = vrot.slane %v6426, 4
      %v6429 = vshll.u32 %v6247, 16
      %v6431 = vrot.slane %v6429, 5
      %v6432 = vor.u32 %v6428, %v6431
      %v6433 = vrot.slane %v6432, 4
      %v6435 = vshll.u32 %v6248, 16
      %v6437 = vrot.slane %v6435, 5
      %v6438 = vsel %vm3765, %v6433, %v6437
      %v6439 = vshrl.u32 %v6248, 16
      %v6441 = vrot.slane %v6439, 4
      %v6442 = vor.u32 %v6441, %v6437
      %v6443 = vrot.slane %v6442, 4
      %v6445 = vshll.u32 %v6256, 16
      %v6447 = vrot.slane %v6445, 5
      %v6448 = vsel %vm3765, %v6443, %v6447
      %v6449 = vld [vmem:[%s6232] sm:$0xe]
      %v6450 = vld [vmem:[%s6232 + $0xc] sm:$0xe]
      %v6451 = vld [vmem:[%s6232 + $0x18] sm:$0xe]
      %v6452 = vld [vmem:[%s6232 + $0x24] sm:$0xe]
      %v6453 = vld [vmem:[%s6232 + $0x30] sm:$0xe]
      %v6454 = vld [vmem:[%s6232 + $0x3c] sm:$0xe]
      %v6455 = vld [vmem:[%s6232 + $0x48] sm:$0xe]
      %v6456 = vld [vmem:[%s6232 + $0x54] sm:$0xe]
      %v6481 = vrot.slane %v6449, 5
      %v6482 = vrot.slane %v6481, 4
      %v6483 = vrot.slane %v6234, 5
      %v6484 = vsel %vm3992, %v6482, %v6483
      %v6485 = vrot.slane %v6483, 4
      %v6486 = vrot.slane %v6249, 5
      %v6487 = vsel %vm3992, %v6485, %v6486
      %v6488 = vrot.slane %v6450, 5
      %v6489 = vrot.slane %v6488, 4
      %v6490 = vrot.slane %v6236, 5
      %v6491 = vsel %vm3992, %v6489, %v6490
      %v6492 = vrot.slane %v6490, 4
      %v6493 = vrot.slane %v6250, 5
      %v6494 = vsel %vm3992, %v6492, %v6493
      %v6495 = vrot.slane %v6451, 5
      %v6496 = vrot.slane %v6495, 4
      %v6497 = vrot.slane %v6238, 5
      %v6498 = vsel %vm3992, %v6496, %v6497
      %v6499 = vrot.slane %v6497, 4
      %v6500 = vrot.slane %v6251, 5
      %v6501 = vsel %vm3992, %v6499, %v6500
      %v6502 = vrot.slane %v6452, 5
      %v6503 = vrot.slane %v6502, 4
      %v6504 = vrot.slane %v6240, 5
      %v6505 = vsel %vm3992, %v6503, %v6504
      %v6506 = vrot.slane %v6504, 4
      %v6507 = vrot.slane %v6252, 5
      %v6508 = vsel %vm3992, %v6506, %v6507
      %v6509 = vrot.slane %v6453, 5
      %v6510 = vrot.slane %v6509, 4
      %v6511 = vrot.slane %v6242, 5
      %v6512 = vsel %vm3992, %v6510, %v6511
      %v6513 = vrot.slane %v6511, 4
      %v6514 = vrot.slane %v6253, 5
      %v6515 = vsel %vm3992, %v6513, %v6514
      %v6516 = vrot.slane %v6454, 5
      %v6517 = vrot.slane %v6516, 4
      %v6518 = vrot.slane %v6244, 5
      %v6519 = vsel %vm3992, %v6517, %v6518
      %v6520 = vrot.slane %v6518, 4
      %v6521 = vrot.slane %v6254, 5
      %v6522 = vsel %vm3992, %v6520, %v6521
      %v6523 = vrot.slane %v6455, 5
      %v6524 = vrot.slane %v6523, 4
      %v6525 = vrot.slane %v6246, 5
      %v6526 = vsel %vm3992, %v6524, %v6525
      %v6527 = vrot.slane %v6525, 4
      %v6528 = vrot.slane %v6255, 5
      %v6529 = vsel %vm3992, %v6527, %v6528
      %v6530 = vrot.slane %v6456, 5
      %v6531 = vrot.slane %v6530, 4
      %v6532 = vrot.slane %v6248, 5
      %v6533 = vsel %vm3992, %v6531, %v6532
      %v6534 = vrot.slane %v6532, 4
      %v6535 = vrot.slane %v6256, 5
      %v6536 = vsel %vm3992, %v6534, %v6535
      %v6545 = vunpack.c.l.b16 %v6233
      %v6546 = vunpack.c.l.b16 %v6234
      %v6547 = vunpack.c.l.b16 %v6235
      %v6548 = vunpack.c.l.b16 %v6236
      %v6549 = vunpack.c.l.b16 %v6237
      %v6550 = vunpack.c.l.b16 %v6238
      %v6551 = vunpack.c.l.b16 %v6239
      %v6552 = vunpack.c.l.b16 %v6240
      %v6553 = vunpack.c.l.b16 %v6241
      %v6554 = vunpack.c.l.b16 %v6242
      %v6555 = vunpack.c.l.b16 %v6243
      %v6556 = vunpack.c.l.b16 %v6244
      %v6557 = vunpack.c.l.b16 %v6245
      %v6558 = vunpack.c.l.b16 %v6246
      %v6559 = vunpack.c.l.b16 %v6247
      %v6560 = vunpack.c.l.b16 %v6248
      %v6561 = vpack.c.b16 %v6546, %v6545
      %v6562 = vpack.c.b16 %v6548, %v6547
      %v6563 = vpack.c.b16 %v6550, %v6549
      %v6564 = vpack.c.b16 %v6552, %v6551
      %v6565 = vpack.c.b16 %v6554, %v6553
      %v6566 = vpack.c.b16 %v6556, %v6555
      %v6567 = vpack.c.b16 %v6558, %v6557
      %v6568 = vpack.c.b16 %v6560, %v6559
      %v6577 = vunpack.c.l.b16 %v6270
      %v6578 = vunpack.c.l.b16 %v6280
      %v6579 = vunpack.c.l.b16 %v6294
      %v6580 = vunpack.c.l.b16 %v6304
      %v6581 = vunpack.c.l.b16 %v6318
      %v6582 = vunpack.c.l.b16 %v6328
      %v6583 = vunpack.c.l.b16 %v6342
      %v6584 = vunpack.c.l.b16 %v6352
      %v6585 = vunpack.c.l.b16 %v6366
      %v6586 = vunpack.c.l.b16 %v6376
      %v6587 = vunpack.c.l.b16 %v6390
      %v6588 = vunpack.c.l.b16 %v6400
      %v6589 = vunpack.c.l.b16 %v6414
      %v6590 = vunpack.c.l.b16 %v6424
      %v6591 = vunpack.c.l.b16 %v6438
      %v6592 = vunpack.c.l.b16 %v6448
      %v6593 = vpack.c.b16 %v6578, %v6577
      %v6594 = vpack.c.b16 %v6580, %v6579
      %v6595 = vpack.c.b16 %v6582, %v6581
      %v6596 = vpack.c.b16 %v6584, %v6583
      %v6597 = vpack.c.b16 %v6586, %v6585
      %v6598 = vpack.c.b16 %v6588, %v6587
      %v6599 = vpack.c.b16 %v6590, %v6589
      %v6600 = vpack.c.b16 %v6592, %v6591
      %v6609 = vunpack.c.l.b16 %v6484
      %v6610 = vunpack.c.l.b16 %v6487
      %v6611 = vunpack.c.l.b16 %v6491
      %v6612 = vunpack.c.l.b16 %v6494
      %v6613 = vunpack.c.l.b16 %v6498
      %v6614 = vunpack.c.l.b16 %v6501
      %v6615 = vunpack.c.l.b16 %v6505
      %v6616 = vunpack.c.l.b16 %v6508
      %v6617 = vunpack.c.l.b16 %v6512
      %v6618 = vunpack.c.l.b16 %v6515
      %v6619 = vunpack.c.l.b16 %v6519
      %v6620 = vunpack.c.l.b16 %v6522
      %v6621 = vunpack.c.l.b16 %v6526
      %v6622 = vunpack.c.l.b16 %v6529
      %v6623 = vunpack.c.l.b16 %v6533
      %v6624 = vunpack.c.l.b16 %v6536
      %v6625 = vpack.c.b16 %v6610, %v6609
      %v6626 = vpack.c.b16 %v6612, %v6611
      %v6627 = vpack.c.b16 %v6614, %v6613
      %v6628 = vpack.c.b16 %v6616, %v6615
      %v6629 = vpack.c.b16 %v6618, %v6617
      %v6630 = vpack.c.b16 %v6620, %v6619
      %v6631 = vpack.c.b16 %v6622, %v6621
      %v6632 = vpack.c.b16 %v6624, %v6623
      %v6641 = vld [vmem:[%s3] sm:$0xf]
      %v6642 = vld [vmem:[%s3 + $0x4] sm:$0xf]
      %v6643 = vld [vmem:[%s3 + $0x8] sm:$0xf]
      %v6644 = vld [vmem:[%s3 + $0xc] sm:$0xf]
      %v6645 = vld [vmem:[%s3 + $0x10] sm:$0xf]
      %v6646 = vld [vmem:[%s3 + $0x14] sm:$0xf]
      %v6647 = vld [vmem:[%s3 + $0x18] sm:$0xf]
      %v6648 = vld [vmem:[%s3 + $0x1c] sm:$0xf]
      %v6649 = vld [vmem:[%s3 + $0x20] sm:$0xf]
      %v6650 = vld [vmem:[%s3 + $0x24] sm:$0xf]
      %v6651 = vld [vmem:[%s3 + $0x28] sm:$0xf]
      %v6652 = vld [vmem:[%s3 + $0x2c] sm:$0xf]
      %v6653 = vld [vmem:[%s3 + $0x30] sm:$0xf]
      %v6654 = vld [vmem:[%s3 + $0x34] sm:$0xf]
      %v6655 = vld [vmem:[%s3 + $0x38] sm:$0xf]
      %v6656 = vld [vmem:[%s3 + $0x3c] sm:$0xf]
      %v6657 = vld [vmem:[%s3 + $0x40] sm:$0xf]
      %v6658 = vld [vmem:[%s3 + $0x44] sm:$0xf]
      %v6659 = vld [vmem:[%s3 + $0x48] sm:$0xf]
      %v6660 = vld [vmem:[%s3 + $0x4c] sm:$0xf]
      %v6661 = vld [vmem:[%s3 + $0x50] sm:$0xf]
      %v6662 = vld [vmem:[%s3 + $0x54] sm:$0xf]
      %v6663 = vld [vmem:[%s3 + $0x58] sm:$0xf]
      %v6664 = vld [vmem:[%s3 + $0x5c] sm:$0xf]
      %v6665 = vld [vmem:[%s3 + $0x60] sm:$0xf]
      %v6666 = vld [vmem:[%s3 + $0x64] sm:$0xf]
      %v6667 = vld [vmem:[%s3 + $0x68] sm:$0xf]
      %v6668 = vld [vmem:[%s3 + $0x6c] sm:$0xf]
      %v6669 = vld [vmem:[%s3 + $0x70] sm:$0xf]
      %v6670 = vld [vmem:[%s3 + $0x74] sm:$0xf]
      %v6671 = vld [vmem:[%s3 + $0x78] sm:$0xf]
      %v6672 = vld [vmem:[%s3 + $0x7c] sm:$0xf]
      %v6673 = vld [vmem:[%s3 + $0x80] sm:$0xf]
      %v6674 = vld [vmem:[%s3 + $0x84] sm:$0xf]
      %v6675 = vld [vmem:[%s3 + $0x88] sm:$0xf]
      %v6676 = vld [vmem:[%s3 + $0x8c] sm:$0xf]
      %v6677 = vld [vmem:[%s3 + $0x90] sm:$0xf]
      %v6678 = vld [vmem:[%s3 + $0x94] sm:$0xf]
      %v6679 = vld [vmem:[%s3 + $0x98] sm:$0xf]
      %v6680 = vld [vmem:[%s3 + $0x9c] sm:$0xf]
      %v6681 = vld [vmem:[%s3 + $0xa0] sm:$0xf]
      %v6682 = vld [vmem:[%s3 + $0xa4] sm:$0xf]
      %v6683 = vld [vmem:[%s3 + $0xa8] sm:$0xf]
      %v6684 = vld [vmem:[%s3 + $0xac] sm:$0xf]
      %v6685 = vld [vmem:[%s3 + $0xb0] sm:$0xf]
      %v6686 = vld [vmem:[%s3 + $0xb4] sm:$0xf]
      %v6687 = vld [vmem:[%s3 + $0xb8] sm:$0xf]
      %v6688 = vld [vmem:[%s3 + $0xbc] sm:$0xf]
      %v6689 = vld [vmem:[%s3682] sm:$0xf]
      %v6690 = vld [vmem:[%s3682 + $0x4] sm:$0xf]
      %v6691 = vld [vmem:[%s3682 + $0xc] sm:$0xf]
      %v6692 = vld [vmem:[%s3682 + $0x10] sm:$0xf]
      %v6693 = vld [vmem:[%s3682 + $0x18] sm:$0xf]
      %v6694 = vld [vmem:[%s3682 + $0x1c] sm:$0xf]
      %v6695 = vld [vmem:[%s3682 + $0x24] sm:$0xf]
      %v6696 = vld [vmem:[%s3682 + $0x28] sm:$0xf]
      %v6697 = vld [vmem:[%s3682 + $0x30] sm:$0xf]
      %v6698 = vld [vmem:[%s3682 + $0x34] sm:$0xf]
      %v6699 = vld [vmem:[%s3682 + $0x3c] sm:$0xf]
      %v6700 = vld [vmem:[%s3682 + $0x40] sm:$0xf]
      %v6701 = vld [vmem:[%s3682 + $0x48] sm:$0xf]
      %v6702 = vld [vmem:[%s3682 + $0x4c] sm:$0xf]
      %v6703 = vld [vmem:[%s3682 + $0x54] sm:$0xf]
      %v6704 = vld [vmem:[%s3682 + $0x58] sm:$0xf]
      %v6705 = vld [vmem:[%s3682 + $0x8] sm:$0x1]
      %v6706 = vld [vmem:[%s3682 + $0x14] sm:$0x1]
      %v6707 = vld [vmem:[%s3682 + $0x20] sm:$0x1]
      %v6708 = vld [vmem:[%s3682 + $0x2c] sm:$0x1]
      %v6709 = vld [vmem:[%s3682 + $0x38] sm:$0x1]
      %v6710 = vld [vmem:[%s3682 + $0x44] sm:$0x1]
      %v6711 = vld [vmem:[%s3682 + $0x50] sm:$0x1]
      %v6712 = vld [vmem:[%s3682 + $0x5c] sm:$0x1]
      %v6714 = vshrl.u32 %v6689, 16
      %v6716 = vrot.slane %v6714, 4
      %v6717 = vshll.u32 %v6689, 16
      %v6719 = vrot.slane %v6717, 5
      %v6720 = vor.u32 %v6716, %v6719
      %v6721 = vrot.slane %v6720, 4
      %v6723 = vshll.u32 %v6690, 16
      %v6725 = vrot.slane %v6723, 5
      %v6726 = vsel %vm3765, %v6721, %v6725
      %v6727 = vshrl.u32 %v6690, 16
      %v6729 = vrot.slane %v6727, 4
      %v6730 = vor.u32 %v6729, %v6725
      %v6731 = vrot.slane %v6730, 4
      %v6733 = vshll.u32 %v6705, 16
      %v6735 = vrot.slane %v6733, 5
      %v6736 = vsel %vm3765, %v6731, %v6735
      %v6738 = vshrl.u32 %v6691, 16
      %v6740 = vrot.slane %v6738, 4
      %v6741 = vshll.u32 %v6691, 16
      %v6743 = vrot.slane %v6741, 5
      %v6744 = vor.u32 %v6740, %v6743
      %v6745 = vrot.slane %v6744, 4
      %v6747 = vshll.u32 %v6692, 16
      %v6749 = vrot.slane %v6747, 5
      %v6750 = vsel %vm3765, %v6745, %v6749
      %v6751 = vshrl.u32 %v6692, 16
      %v6753 = vrot.slane %v6751, 4
      %v6754 = vor.u32 %v6753, %v6749
      %v6755 = vrot.slane %v6754, 4
      %v6757 = vshll.u32 %v6706, 16
      %v6759 = vrot.slane %v6757, 5
      %v6760 = vsel %vm3765, %v6755, %v6759
      %v6762 = vshrl.u32 %v6693, 16
      %v6764 = vrot.slane %v6762, 4
      %v6765 = vshll.u32 %v6693, 16
      %v6767 = vrot.slane %v6765, 5
      %v6768 = vor.u32 %v6764, %v6767
      %v6769 = vrot.slane %v6768, 4
      %v6771 = vshll.u32 %v6694, 16
      %v6773 = vrot.slane %v6771, 5
      %v6774 = vsel %vm3765, %v6769, %v6773
      %v6775 = vshrl.u32 %v6694, 16
      %v6777 = vrot.slane %v6775, 4
      %v6778 = vor.u32 %v6777, %v6773
      %v6779 = vrot.slane %v6778, 4
      %v6781 = vshll.u32 %v6707, 16
      %v6783 = vrot.slane %v6781, 5
      %v6784 = vsel %vm3765, %v6779, %v6783
      %v6786 = vshrl.u32 %v6695, 16
      %v6788 = vrot.slane %v6786, 4
      %v6789 = vshll.u32 %v6695, 16
      %v6791 = vrot.slane %v6789, 5
      %v6792 = vor.u32 %v6788, %v6791
      %v6793 = vrot.slane %v6792, 4
      %v6795 = vshll.u32 %v6696, 16
      %v6797 = vrot.slane %v6795, 5
      %v6798 = vsel %vm3765, %v6793, %v6797
      %v6799 = vshrl.u32 %v6696, 16
      %v6801 = vrot.slane %v6799, 4
      %v6802 = vor.u32 %v6801, %v6797
      %v6803 = vrot.slane %v6802, 4
      %v6805 = vshll.u32 %v6708, 16
      %v6807 = vrot.slane %v6805, 5
      %v6808 = vsel %vm3765, %v6803, %v6807
      %v6810 = vshrl.u32 %v6697, 16
      %v6812 = vrot.slane %v6810, 4
      %v6813 = vshll.u32 %v6697, 16
      %v6815 = vrot.slane %v6813, 5
      %v6816 = vor.u32 %v6812, %v6815
      %v6817 = vrot.slane %v6816, 4
      %v6819 = vshll.u32 %v6698, 16
      %v6821 = vrot.slane %v6819, 5
      %v6822 = vsel %vm3765, %v6817, %v6821
      %v6823 = vshrl.u32 %v6698, 16
      %v6825 = vrot.slane %v6823, 4
      %v6826 = vor.u32 %v6825, %v6821
      %v6827 = vrot.slane %v6826, 4
      %v6829 = vshll.u32 %v6709, 16
      %v6831 = vrot.slane %v6829, 5
      %v6832 = vsel %vm3765, %v6827, %v6831
      %v6834 = vshrl.u32 %v6699, 16
      %v6836 = vrot.slane %v6834, 4
      %v6837 = vshll.u32 %v6699, 16
      %v6839 = vrot.slane %v6837, 5
      %v6840 = vor.u32 %v6836, %v6839
      %v6841 = vrot.slane %v6840, 4
      %v6843 = vshll.u32 %v6700, 16
      %v6845 = vrot.slane %v6843, 5
      %v6846 = vsel %vm3765, %v6841, %v6845
      %v6847 = vshrl.u32 %v6700, 16
      %v6849 = vrot.slane %v6847, 4
      %v6850 = vor.u32 %v6849, %v6845
      %v6851 = vrot.slane %v6850, 4
      %v6853 = vshll.u32 %v6710, 16
      %v6855 = vrot.slane %v6853, 5
      %v6856 = vsel %vm3765, %v6851, %v6855
      %v6858 = vshrl.u32 %v6701, 16
      %v6860 = vrot.slane %v6858, 4
      %v6861 = vshll.u32 %v6701, 16
      %v6863 = vrot.slane %v6861, 5
      %v6864 = vor.u32 %v6860, %v6863
      %v6865 = vrot.slane %v6864, 4
      %v6867 = vshll.u32 %v6702, 16
      %v6869 = vrot.slane %v6867, 5
      %v6870 = vsel %vm3765, %v6865, %v6869
      %v6871 = vshrl.u32 %v6702, 16
      %v6873 = vrot.slane %v6871, 4
      %v6874 = vor.u32 %v6873, %v6869
      %v6875 = vrot.slane %v6874, 4
      %v6877 = vshll.u32 %v6711, 16
      %v6879 = vrot.slane %v6877, 5
      %v6880 = vsel %vm3765, %v6875, %v6879
      %v6882 = vshrl.u32 %v6703, 16
      %v6884 = vrot.slane %v6882, 4
      %v6885 = vshll.u32 %v6703, 16
      %v6887 = vrot.slane %v6885, 5
      %v6888 = vor.u32 %v6884, %v6887
      %v6889 = vrot.slane %v6888, 4
      %v6891 = vshll.u32 %v6704, 16
      %v6893 = vrot.slane %v6891, 5
      %v6894 = vsel %vm3765, %v6889, %v6893
      %v6895 = vshrl.u32 %v6704, 16
      %v6897 = vrot.slane %v6895, 4
      %v6898 = vor.u32 %v6897, %v6893
      %v6899 = vrot.slane %v6898, 4
      %v6901 = vshll.u32 %v6712, 16
      %v6903 = vrot.slane %v6901, 5
      %v6904 = vsel %vm3765, %v6899, %v6903
      %v6905 = vld [vmem:[%s3682] sm:$0xe]
      %v6906 = vld [vmem:[%s3682 + $0xc] sm:$0xe]
      %v6907 = vld [vmem:[%s3682 + $0x18] sm:$0xe]
      %v6908 = vld [vmem:[%s3682 + $0x24] sm:$0xe]
      %v6909 = vld [vmem:[%s3682 + $0x30] sm:$0xe]
      %v6910 = vld [vmem:[%s3682 + $0x3c] sm:$0xe]
      %v6911 = vld [vmem:[%s3682 + $0x48] sm:$0xe]
      %v6912 = vld [vmem:[%s3682 + $0x54] sm:$0xe]
      %v6937 = vrot.slane %v6905, 5
      %v6938 = vrot.slane %v6937, 4
      %v6939 = vrot.slane %v6690, 5
      %v6940 = vsel %vm3992, %v6938, %v6939
      %v6941 = vrot.slane %v6939, 4
      %v6942 = vrot.slane %v6705, 5
      %v6943 = vsel %vm3992, %v6941, %v6942
      %v6944 = vrot.slane %v6906, 5
      %v6945 = vrot.slane %v6944, 4
      %v6946 = vrot.slane %v6692, 5
      %v6947 = vsel %vm3992, %v6945, %v6946
      %v6948 = vrot.slane %v6946, 4
      %v6949 = vrot.slane %v6706, 5
      %v6950 = vsel %vm3992, %v6948, %v6949
      %v6951 = vrot.slane %v6907, 5
      %v6952 = vrot.slane %v6951, 4
      %v6953 = vrot.slane %v6694, 5
      %v6954 = vsel %vm3992, %v6952, %v6953
      %v6955 = vrot.slane %v6953, 4
      %v6956 = vrot.slane %v6707, 5
      %v6957 = vsel %vm3992, %v6955, %v6956
      %v6958 = vrot.slane %v6908, 5
      %v6959 = vrot.slane %v6958, 4
      %v6960 = vrot.slane %v6696, 5
      %v6961 = vsel %vm3992, %v6959, %v6960
      %v6962 = vrot.slane %v6960, 4
      %v6963 = vrot.slane %v6708, 5
      %v6964 = vsel %vm3992, %v6962, %v6963
      %v6965 = vrot.slane %v6909, 5
      %v6966 = vrot.slane %v6965, 4
      %v6967 = vrot.slane %v6698, 5
      %v6968 = vsel %vm3992, %v6966, %v6967
      %v6969 = vrot.slane %v6967, 4
      %v6970 = vrot.slane %v6709, 5
      %v6971 = vsel %vm3992, %v6969, %v6970
      %v6972 = vrot.slane %v6910, 5
      %v6973 = vrot.slane %v6972, 4
      %v6974 = vrot.slane %v6700, 5
      %v6975 = vsel %vm3992, %v6973, %v6974
      %v6976 = vrot.slane %v6974, 4
      %v6977 = vrot.slane %v6710, 5
      %v6978 = vsel %vm3992, %v6976, %v6977
      %v6979 = vrot.slane %v6911, 5
      %v6980 = vrot.slane %v6979, 4
      %v6981 = vrot.slane %v6702, 5
      %v6982 = vsel %vm3992, %v6980, %v6981
      %v6983 = vrot.slane %v6981, 4
      %v6984 = vrot.slane %v6711, 5
      %v6985 = vsel %vm3992, %v6983, %v6984
      %v6986 = vrot.slane %v6912, 5
      %v6987 = vrot.slane %v6986, 4
      %v6988 = vrot.slane %v6704, 5
      %v6989 = vsel %vm3992, %v6987, %v6988
      %v6990 = vrot.slane %v6988, 4
      %v6991 = vrot.slane %v6712, 5
      %v6992 = vsel %vm3992, %v6990, %v6991
      %v7001 = vunpack.c.l.b16 %v6689
      %v7002 = vunpack.c.l.b16 %v6690
      %v7003 = vunpack.c.l.b16 %v6691
      %v7004 = vunpack.c.l.b16 %v6692
      %v7005 = vunpack.c.l.b16 %v6693
      %v7006 = vunpack.c.l.b16 %v6694
      %v7007 = vunpack.c.l.b16 %v6695
      %v7008 = vunpack.c.l.b16 %v6696
      %v7009 = vunpack.c.l.b16 %v6697
      %v7010 = vunpack.c.l.b16 %v6698
      %v7011 = vunpack.c.l.b16 %v6699
      %v7012 = vunpack.c.l.b16 %v6700
      %v7013 = vunpack.c.l.b16 %v6701
      %v7014 = vunpack.c.l.b16 %v6702
      %v7015 = vunpack.c.l.b16 %v6703
      %v7016 = vunpack.c.l.b16 %v6704
      %v7017 = vpack.c.b16 %v7002, %v7001
      %v7018 = vpack.c.b16 %v7004, %v7003
      %v7019 = vpack.c.b16 %v7006, %v7005
      %v7020 = vpack.c.b16 %v7008, %v7007
      %v7021 = vpack.c.b16 %v7010, %v7009
      %v7022 = vpack.c.b16 %v7012, %v7011
      %v7023 = vpack.c.b16 %v7014, %v7013
      %v7024 = vpack.c.b16 %v7016, %v7015
      %v7033 = vunpack.c.l.b16 %v6726
      %v7034 = vunpack.c.l.b16 %v6736
      %v7035 = vunpack.c.l.b16 %v6750
      %v7036 = vunpack.c.l.b16 %v6760
      %v7037 = vunpack.c.l.b16 %v6774
      %v7038 = vunpack.c.l.b16 %v6784
      %v7039 = vunpack.c.l.b16 %v6798
      %v7040 = vunpack.c.l.b16 %v6808
      %v7041 = vunpack.c.l.b16 %v6822
      %v7042 = vunpack.c.l.b16 %v6832
      %v7043 = vunpack.c.l.b16 %v6846
      %v7044 = vunpack.c.l.b16 %v6856
      %v7045 = vunpack.c.l.b16 %v6870
      %v7046 = vunpack.c.l.b16 %v6880
      %v7047 = vunpack.c.l.b16 %v6894
      %v7048 = vunpack.c.l.b16 %v6904
      %v7049 = vpack.c.b16 %v7034, %v7033
      %v7050 = vpack.c.b16 %v7036, %v7035
      %v7051 = vpack.c.b16 %v7038, %v7037
      %v7052 = vpack.c.b16 %v7040, %v7039
      %v7053 = vpack.c.b16 %v7042, %v7041
      %v7054 = vpack.c.b16 %v7044, %v7043
      %v7055 = vpack.c.b16 %v7046, %v7045
      %v7056 = vpack.c.b16 %v7048, %v7047
      %v7065 = vunpack.c.l.b16 %v6940
      %v7066 = vunpack.c.l.b16 %v6943
      %v7067 = vunpack.c.l.b16 %v6947
      %v7068 = vunpack.c.l.b16 %v6950
      %v7069 = vunpack.c.l.b16 %v6954
      %v7070 = vunpack.c.l.b16 %v6957
      %v7071 = vunpack.c.l.b16 %v6961
      %v7072 = vunpack.c.l.b16 %v6964
      %v7073 = vunpack.c.l.b16 %v6968
      %v7074 = vunpack.c.l.b16 %v6971
      %v7075 = vunpack.c.l.b16 %v6975
      %v7076 = vunpack.c.l.b16 %v6978
      %v7077 = vunpack.c.l.b16 %v6982
      %v7078 = vunpack.c.l.b16 %v6985
      %v7079 = vunpack.c.l.b16 %v6989
      %v7080 = vunpack.c.l.b16 %v6992
      %v7081 = vpack.c.b16 %v7066, %v7065
      %v7082 = vpack.c.b16 %v7068, %v7067
      %v7083 = vpack.c.b16 %v7070, %v7069
      %v7084 = vpack.c.b16 %v7072, %v7071
      %v7085 = vpack.c.b16 %v7074, %v7073
      %v7086 = vpack.c.b16 %v7076, %v7075
      %v7087 = vpack.c.b16 %v7078, %v7077
      %v7088 = vpack.c.b16 %v7080, %v7079
      %v7097 = vld [vmem:[%s4609] sm:$0xf]
      %v7098 = vld [vmem:[%s4609 + $0x4] sm:$0xf]
      %v7099 = vld [vmem:[%s4609 + $0x8] sm:$0xf]
      %v7100 = vld [vmem:[%s4609 + $0xc] sm:$0xf]
      %v7101 = vld [vmem:[%s4609 + $0x10] sm:$0xf]
      %v7102 = vld [vmem:[%s4609 + $0x14] sm:$0xf]
      %v7103 = vld [vmem:[%s4609 + $0x18] sm:$0xf]
      %v7104 = vld [vmem:[%s4609 + $0x1c] sm:$0xf]
      %v7105 = vld [vmem:[%s4609 + $0x20] sm:$0xf]
      %v7106 = vld [vmem:[%s4609 + $0x24] sm:$0xf]
      %v7107 = vld [vmem:[%s4609 + $0x28] sm:$0xf]
      %v7108 = vld [vmem:[%s4609 + $0x2c] sm:$0xf]
      %v7109 = vld [vmem:[%s4609 + $0x30] sm:$0xf]
      %v7110 = vld [vmem:[%s4609 + $0x34] sm:$0xf]
      %v7111 = vld [vmem:[%s4609 + $0x38] sm:$0xf]
      %v7112 = vld [vmem:[%s4609 + $0x3c] sm:$0xf]
      %v7113 = vld [vmem:[%s4609 + $0x40] sm:$0xf]
      %v7114 = vld [vmem:[%s4609 + $0x44] sm:$0xf]
      %v7115 = vld [vmem:[%s4609 + $0x48] sm:$0xf]
      %v7116 = vld [vmem:[%s4609 + $0x4c] sm:$0xf]
      %v7117 = vld [vmem:[%s4609 + $0x50] sm:$0xf]
      %v7118 = vld [vmem:[%s4609 + $0x54] sm:$0xf]
      %v7119 = vld [vmem:[%s4609 + $0x58] sm:$0xf]
      %v7120 = vld [vmem:[%s4609 + $0x5c] sm:$0xf]
      %v7121 = vld [vmem:[%s4609 + $0x60] sm:$0xf]
      %v7122 = vld [vmem:[%s4609 + $0x64] sm:$0xf]
      %v7123 = vld [vmem:[%s4609 + $0x68] sm:$0xf]
      %v7124 = vld [vmem:[%s4609 + $0x6c] sm:$0xf]
      %v7125 = vld [vmem:[%s4609 + $0x70] sm:$0xf]
      %v7126 = vld [vmem:[%s4609 + $0x74] sm:$0xf]
      %v7127 = vld [vmem:[%s4609 + $0x78] sm:$0xf]
      %v7128 = vld [vmem:[%s4609 + $0x7c] sm:$0xf]
      %v7129 = vld [vmem:[%s4609 + $0x80] sm:$0xf]
      %v7130 = vld [vmem:[%s4609 + $0x84] sm:$0xf]
      %v7131 = vld [vmem:[%s4609 + $0x88] sm:$0xf]
      %v7132 = vld [vmem:[%s4609 + $0x8c] sm:$0xf]
      %v7133 = vld [vmem:[%s4609 + $0x90] sm:$0xf]
      %v7134 = vld [vmem:[%s4609 + $0x94] sm:$0xf]
      %v7135 = vld [vmem:[%s4609 + $0x98] sm:$0xf]
      %v7136 = vld [vmem:[%s4609 + $0x9c] sm:$0xf]
      %v7137 = vld [vmem:[%s4609 + $0xa0] sm:$0xf]
      %v7138 = vld [vmem:[%s4609 + $0xa4] sm:$0xf]
      %v7139 = vld [vmem:[%s4609 + $0xa8] sm:$0xf]
      %v7140 = vld [vmem:[%s4609 + $0xac] sm:$0xf]
      %v7141 = vld [vmem:[%s4609 + $0xb0] sm:$0xf]
      %v7142 = vld [vmem:[%s4609 + $0xb4] sm:$0xf]
      %v7143 = vld [vmem:[%s4609 + $0xb8] sm:$0xf]
      %v7144 = vld [vmem:[%s4609 + $0xbc] sm:$0xf]
      %v7193 = vunpack.c.l.b16 %v7097
      %v7194 = vunpack.c.l.b16 %v7098
      %v7195 = vunpack.c.l.b16 %v7099
      %v7196 = vunpack.c.l.b16 %v7100
      %v7197 = vunpack.c.l.b16 %v7101
      %v7198 = vunpack.c.l.b16 %v7102
      %v7199 = vunpack.c.l.b16 %v7103
      %v7200 = vunpack.c.l.b16 %v7104
      %v7201 = vunpack.c.l.b16 %v7105
      %v7202 = vunpack.c.l.b16 %v7106
      %v7203 = vunpack.c.l.b16 %v7107
      %v7204 = vunpack.c.l.b16 %v7108
      %v7205 = vunpack.c.l.b16 %v7109
      %v7206 = vunpack.c.l.b16 %v7110
      %v7207 = vunpack.c.l.b16 %v7111
      %v7208 = vunpack.c.l.b16 %v7112
      %v7209 = vunpack.c.l.b16 %v7113
      %v7210 = vunpack.c.l.b16 %v7114
      %v7211 = vunpack.c.l.b16 %v7115
      %v7212 = vunpack.c.l.b16 %v7116
      %v7213 = vunpack.c.l.b16 %v7117
      %v7214 = vunpack.c.l.b16 %v7118
      %v7215 = vunpack.c.l.b16 %v7119
      %v7216 = vunpack.c.l.b16 %v7120
      %v7217 = vunpack.c.l.b16 %v7121
      %v7218 = vunpack.c.l.b16 %v7122
      %v7219 = vunpack.c.l.b16 %v7123
      %v7220 = vunpack.c.l.b16 %v7124
      %v7221 = vunpack.c.l.b16 %v7125
      %v7222 = vunpack.c.l.b16 %v7126
      %v7223 = vunpack.c.l.b16 %v7127
      %v7224 = vunpack.c.l.b16 %v7128
      %v7225 = vunpack.c.l.b16 %v7129
      %v7226 = vunpack.c.l.b16 %v7130
      %v7227 = vunpack.c.l.b16 %v7131
      %v7228 = vunpack.c.l.b16 %v7132
      %v7229 = vunpack.c.l.b16 %v7133
      %v7230 = vunpack.c.l.b16 %v7134
      %v7231 = vunpack.c.l.b16 %v7135
      %v7232 = vunpack.c.l.b16 %v7136
      %v7233 = vunpack.c.l.b16 %v7137
      %v7234 = vunpack.c.l.b16 %v7138
      %v7235 = vunpack.c.l.b16 %v7139
      %v7236 = vunpack.c.l.b16 %v7140
      %v7237 = vunpack.c.l.b16 %v7141
      %v7238 = vunpack.c.l.b16 %v7142
      %v7239 = vunpack.c.l.b16 %v7143
      %v7240 = vunpack.c.l.b16 %v7144
      %v7241 = vpack.c.b16 %v7194, %v7193
      %v7242 = vpack.c.b16 %v7196, %v7195
      %v7243 = vpack.c.b16 %v7198, %v7197
      %v7244 = vpack.c.b16 %v7200, %v7199
      %v7245 = vpack.c.b16 %v7202, %v7201
      %v7246 = vpack.c.b16 %v7204, %v7203
      %v7247 = vpack.c.b16 %v7206, %v7205
      %v7248 = vpack.c.b16 %v7208, %v7207
      %v7249 = vpack.c.b16 %v7210, %v7209
      %v7250 = vpack.c.b16 %v7212, %v7211
      %v7251 = vpack.c.b16 %v7214, %v7213
      %v7252 = vpack.c.b16 %v7216, %v7215
      %v7253 = vpack.c.b16 %v7218, %v7217
      %v7254 = vpack.c.b16 %v7220, %v7219
      %v7255 = vpack.c.b16 %v7222, %v7221
      %v7256 = vpack.c.b16 %v7224, %v7223
      %v7257 = vpack.c.b16 %v7226, %v7225
      %v7258 = vpack.c.b16 %v7228, %v7227
      %v7259 = vpack.c.b16 %v7230, %v7229
      %v7260 = vpack.c.b16 %v7232, %v7231
      %v7261 = vpack.c.b16 %v7234, %v7233
      %v7262 = vpack.c.b16 %v7236, %v7235
      %v7263 = vpack.c.b16 %v7238, %v7237
      %v7264 = vpack.c.b16 %v7240, %v7239
      %7289 = vmatprep.subr.bf16.mxu0 0
      %7290 = vmatpush1.bf16.msra.mxu0 %v7241
      %7291 = vmatprep.subr.bf16.mxu0 0
      %7292 = vmatpush1.bf16.msra.mxu0 %v7242
      %7293 = vmatprep.subr.bf16.mxu0 0
      %7294 = vmatpush1.bf16.msra.mxu0 %v7243
      %7295 = vmatprep.subr.bf16.mxu0 0
      %7296 = vmatpush1.bf16.msra.mxu0 %v7244
      %7297 = vmatprep.subr.bf16.mxu0 0
      %7298 = vmatpush1.bf16.msra.mxu0 %v7245
      %7299 = vmatprep.subr.bf16.mxu0 0
      %7300 = vmatpush1.bf16.msra.mxu0 %v7246
      %7301 = vmatprep.subr.bf16.mxu0 0
      %7302 = vmatpush1.bf16.msra.mxu0 %v7247
      %7303 = vmatprep.subr.bf16.mxu0 0
      %7304 = vmatpush1.bf16.msra.mxu0 %v7248
      %7305 = vmatprep.subr.bf16.mxu0 0
      %7306 = vmatpush1.bf16.msra.mxu0 %v7249
      %7307 = vmatprep.subr.bf16.mxu0 0
      %7308 = vmatpush1.bf16.msra.mxu0 %v7250
      %7309 = vmatprep.subr.bf16.mxu0 0
      %7310 = vmatpush1.bf16.msra.mxu0 %v7251
      %7311 = vmatprep.subr.bf16.mxu0 0
      %7312 = vmatpush1.bf16.msra.mxu0 %v7252
      %7313 = vmatprep.subr.bf16.mxu0 0
      %7314 = vmatpush1.bf16.msra.mxu0 %v7253
      %7315 = vmatprep.subr.bf16.mxu0 0
      %7316 = vmatpush1.bf16.msra.mxu0 %v7254
      %7317 = vmatprep.subr.bf16.mxu0 0
      %7318 = vmatpush1.bf16.msra.mxu0 %v7255
      %7319 = vmatprep.subr.bf16.mxu0 0
      %7320 = vmatpush1.bf16.msra.mxu0 %v7256
      %7321 = vmatprep.mubr.bf16.mxu0 %v7049
      %7322 = vmatmul.mubr.bf16.gmra.mrb[0].mxu0 %v7017
      %v7323 = vpop.f32.mrb[0].mxu0
      %v7324 = vadd.f32 0.0, %v7323
      %v7325 = vpop.f32.mrb[0].mxu0
      %v7326 = vpop.f32.mrb[0].mxu0
      %v7327 = vadd.f32 0.0, %v7326
      %v7328 = vpop.f32.mrb[0].mxu0
      %7329 = vmatprep.mubr.bf16.mxu0 %v7050
      %7330 = vmatmul.mubr.bf16.gmra.mrb[0].mxu0 %v7018
      %v7331 = vpop.f32.mrb[0].mxu0
      %v7332 = vadd.f32 0.0, %v7331
      %v7333 = vpop.f32.mrb[0].mxu0
      %v7334 = vpop.f32.mrb[0].mxu0
      %v7335 = vadd.f32 0.0, %v7334
      %v7336 = vpop.f32.mrb[0].mxu0
      %7337 = vmatprep.mubr.bf16.mxu0 %v7051
      %7338 = vmatmul.mubr.bf16.gmra.mrb[0].mxu0 %v7019
      %v7339 = vpop.f32.mrb[0].mxu0
      %v7340 = vadd.f32 0.0, %v7339
      %v7341 = vpop.f32.mrb[0].mxu0
      %v7342 = vpop.f32.mrb[0].mxu0
      %v7343 = vadd.f32 0.0, %v7342
      %v7344 = vpop.f32.mrb[0].mxu0
      %7345 = vmatprep.mubr.bf16.mxu0 %v7052
      %7346 = vmatmul.mubr.bf16.gmra.mrb[0].mxu0 %v7020
      %v7347 = vpop.f32.mrb[0].mxu0
      %v7348 = vadd.f32 0.0, %v7347
      %v7349 = vpop.f32.mrb[0].mxu0
      %v7350 = vpop.f32.mrb[0].mxu0
      %v7351 = vadd.f32 0.0, %v7350
      %v7352 = vpop.f32.mrb[0].mxu0
      %7353 = vmatprep.mubr.bf16.mxu0 %v7053
      %7354 = vmatmul.mubr.bf16.gmra.mrb[0].mxu0 %v7021
      %v7355 = vpop.f32.mrb[0].mxu0
      %v7356 = vadd.f32 0.0, %v7355
      %v7357 = vpop.f32.mrb[0].mxu0
      %v7358 = vpop.f32.mrb[0].mxu0
      %v7359 = vadd.f32 0.0, %v7358
      %v7360 = vpop.f32.mrb[0].mxu0
      %7361 = vmatprep.mubr.bf16.mxu0 %v7054
      %7362 = vmatmul.mubr.bf16.gmra.mrb[0].mxu0 %v7022
      %v7363 = vpop.f32.mrb[0].mxu0
      %v7364 = vadd.f32 0.0, %v7363
      %v7365 = vpop.f32.mrb[0].mxu0
      %v7366 = vpop.f32.mrb[0].mxu0
      %v7367 = vadd.f32 0.0, %v7366
      %v7368 = vpop.f32.mrb[0].mxu0
      %7369 = vmatprep.mubr.bf16.mxu0 %v7055
      %7370 = vmatmul.mubr.bf16.gmra.mrb[0].mxu0 %v7023
      %v7371 = vpop.f32.mrb[0].mxu0
      %v7372 = vadd.f32 0.0, %v7371
      %v7373 = vpop.f32.mrb[0].mxu0
      %v7374 = vpop.f32.mrb[0].mxu0
      %v7375 = vadd.f32 0.0, %v7374
      %v7376 = vpop.f32.mrb[0].mxu0
      %7377 = vmatprep.mubr.bf16.mxu0 %v7056
      %7378 = vmatmul.mubr.bf16.gmra.mrb[0].mxu0 %v7024
      %v7379 = vpop.f32.mrb[0].mxu0
      %v7380 = vadd.f32 0.0, %v7379
      %v7381 = vpop.f32.mrb[0].mxu0
      %v7382 = vpop.f32.mrb[0].mxu0
      %v7383 = vadd.f32 0.0, %v7382
      %v7384 = vpop.f32.mrb[0].mxu0
      %7385 = vdwg.mxu0
      %7386 = vmatprep.subr.bf16.mxu0 0
      %7387 = vmatpush1.bf16.msra.mxu0 %v7257
      %7388 = vmatprep.subr.bf16.mxu0 0
      %7389 = vmatpush1.bf16.msra.mxu0 %v7258
      %7390 = vmatprep.subr.bf16.mxu0 0
      %7391 = vmatpush1.bf16.msra.mxu0 %v7259
      %7392 = vmatprep.subr.bf16.mxu0 0
      %7393 = vmatpush1.bf16.msra.mxu0 %v7260
      %7394 = vmatprep.subr.bf16.mxu0 0
      %7395 = vmatpush1.bf16.msra.mxu0 %v7261
      %7396 = vmatprep.subr.bf16.mxu0 0
      %7397 = vmatpush1.bf16.msra.mxu0 %v7262
      %7398 = vmatprep.subr.bf16.mxu0 0
      %7399 = vmatpush1.bf16.msra.mxu0 %v7263
      %7400 = vmatprep.subr.bf16.mxu0 0
      %7401 = vmatpush1.bf16.msra.mxu0 %v7264
      %7402 = vmatprep.subr.bf16.mxu0 0
      %7403 = vmatpush1.bf16.msra.mxu0 0
      %7404 = vmatprep.subr.bf16.mxu0 0
      %7405 = vmatpush1.bf16.msra.mxu0 0
      %7406 = vmatprep.subr.bf16.mxu0 0
      %7407 = vmatpush1.bf16.msra.mxu0 0
      %7408 = vmatprep.subr.bf16.mxu0 0
      %7409 = vmatpush1.bf16.msra.mxu0 0
      %7410 = vmatprep.subr.bf16.mxu0 0
      %7411 = vmatpush1.bf16.msra.mxu0 0
      %7412 = vmatprep.subr.bf16.mxu0 0
      %7413 = vmatpush1.bf16.msra.mxu0 0
      %7414 = vmatprep.subr.bf16.mxu0 0
      %7415 = vmatpush1.bf16.msra.mxu0 0
      %7416 = vmatprep.subr.bf16.mxu0 0
      %7417 = vmatpush1.bf16.msra.mxu0 0
      %7418 = vmatprep.mubr.bf16.mxu0 0
      %7419 = vmatmul.mubr.bf16.gmra.mrb[0].mxu0 %v7081
      %v7420 = vpop.f32.mrb[0].mxu0
      %v7421 = vadd.f32 %v7324, %v7420
      %v7422 = vpop.f32.mrb[0].mxu0
      %v7423 = vpop.f32.mrb[0].mxu0
      %v7424 = vadd.f32 %v7327, %v7423
      %v7425 = vpop.f32.mrb[0].mxu0
      %7426 = vmatprep.mubr.bf16.mxu0 0
      %7427 = vmatmul.mubr.bf16.gmra.mrb[0].mxu0 %v7082
      %v7428 = vpop.f32.mrb[0].mxu0
      %v7429 = vadd.f32 %v7332, %v7428
      %v7430 = vpop.f32.mrb[0].mxu0
      %v7431 = vpop.f32.mrb[0].mxu0
      %v7432 = vadd.f32 %v7335, %v7431
      %v7433 = vpop.f32.mrb[0].mxu0
      %7434 = vmatprep.mubr.bf16.mxu0 0
      %7435 = vmatmul.mubr.bf16.gmra.mrb[0].mxu0 %v7083
      %v7436 = vpop.f32.mrb[0].mxu0
      %v7437 = vadd.f32 %v7340, %v7436
      %v7438 = vpop.f32.mrb[0].mxu0
      %v7439 = vpop.f32.mrb[0].mxu0
      %v7440 = vadd.f32 %v7343, %v7439
      %v7441 = vpop.f32.mrb[0].mxu0
      %7442 = vmatprep.mubr.bf16.mxu0 0
      %7443 = vmatmul.mubr.bf16.gmra.mrb[0].mxu0 %v7084
      %v7444 = vpop.f32.mrb[0].mxu0
      %v7445 = vadd.f32 %v7348, %v7444
      %v7446 = vpop.f32.mrb[0].mxu0
      %v7447 = vpop.f32.mrb[0].mxu0
      %v7448 = vadd.f32 %v7351, %v7447
      %v7449 = vpop.f32.mrb[0].mxu0
      %7450 = vmatprep.mubr.bf16.mxu0 0
      %7451 = vmatmul.mubr.bf16.gmra.mrb[0].mxu0 %v7085
      %v7452 = vpop.f32.mrb[0].mxu0
      %v7453 = vadd.f32 %v7356, %v7452
      %v7454 = vpop.f32.mrb[0].mxu0
      %v7455 = vpop.f32.mrb[0].mxu0
      %v7456 = vadd.f32 %v7359, %v7455
      %v7457 = vpop.f32.mrb[0].mxu0
      %7458 = vmatprep.mubr.bf16.mxu0 0
      %7459 = vmatmul.mubr.bf16.gmra.mrb[0].mxu0 %v7086
      %v7460 = vpop.f32.mrb[0].mxu0
      %v7461 = vadd.f32 %v7364, %v7460
      %v7462 = vpop.f32.mrb[0].mxu0
      %v7463 = vpop.f32.mrb[0].mxu0
      %v7464 = vadd.f32 %v7367, %v7463
      %v7465 = vpop.f32.mrb[0].mxu0
      %7466 = vmatprep.mubr.bf16.mxu0 0
      %7467 = vmatmul.mubr.bf16.gmra.mrb[0].mxu0 %v7087
      %v7468 = vpop.f32.mrb[0].mxu0
      %v7469 = vadd.f32 %v7372, %v7468
      %v7470 = vpop.f32.mrb[0].mxu0
      %v7471 = vpop.f32.mrb[0].mxu0
      %v7472 = vadd.f32 %v7375, %v7471
      %v7473 = vpop.f32.mrb[0].mxu0
      %7474 = vmatprep.mubr.bf16.mxu0 0
      %7475 = vmatmul.mubr.bf16.gmra.mrb[0].mxu0 %v7088
      %v7476 = vpop.f32.mrb[0].mxu0
      %v7477 = vadd.f32 %v7380, %v7476
      %v7478 = vpop.f32.mrb[0].mxu0
      %v7479 = vpop.f32.mrb[0].mxu0
      %v7480 = vadd.f32 %v7383, %v7479
      %v7481 = vpop.f32.mrb[0].mxu0
      %7482 = vdwg.mxu0
      %v7531 = vunpack.c.l.b16 %v6641
      %v7532 = vunpack.c.l.b16 %v6642
      %v7533 = vunpack.c.l.b16 %v6643
      %v7534 = vunpack.c.l.b16 %v6644
      %v7535 = vunpack.c.l.b16 %v6645
      %v7536 = vunpack.c.l.b16 %v6646
      %v7537 = vunpack.c.l.b16 %v6647
      %v7538 = vunpack.c.l.b16 %v6648
      %v7539 = vunpack.c.l.b16 %v6649
      %v7540 = vunpack.c.l.b16 %v6650
      %v7541 = vunpack.c.l.b16 %v6651
      %v7542 = vunpack.c.l.b16 %v6652
      %v7543 = vunpack.c.l.b16 %v6653
      %v7544 = vunpack.c.l.b16 %v6654
      %v7545 = vunpack.c.l.b16 %v6655
      %v7546 = vunpack.c.l.b16 %v6656
      %v7547 = vunpack.c.l.b16 %v6657
      %v7548 = vunpack.c.l.b16 %v6658
      %v7549 = vunpack.c.l.b16 %v6659
      %v7550 = vunpack.c.l.b16 %v6660
      %v7551 = vunpack.c.l.b16 %v6661
      %v7552 = vunpack.c.l.b16 %v6662
      %v7553 = vunpack.c.l.b16 %v6663
      %v7554 = vunpack.c.l.b16 %v6664
      %v7555 = vunpack.c.l.b16 %v6665
      %v7556 = vunpack.c.l.b16 %v6666
      %v7557 = vunpack.c.l.b16 %v6667
      %v7558 = vunpack.c.l.b16 %v6668
      %v7559 = vunpack.c.l.b16 %v6669
      %v7560 = vunpack.c.l.b16 %v6670
      %v7561 = vunpack.c.l.b16 %v6671
      %v7562 = vunpack.c.l.b16 %v6672
      %v7563 = vunpack.c.l.b16 %v6673
      %v7564 = vunpack.c.l.b16 %v6674
      %v7565 = vunpack.c.l.b16 %v6675
      %v7566 = vunpack.c.l.b16 %v6676
      %v7567 = vunpack.c.l.b16 %v6677
      %v7568 = vunpack.c.l.b16 %v6678
      %v7569 = vunpack.c.l.b16 %v6679
      %v7570 = vunpack.c.l.b16 %v6680
      %v7571 = vunpack.c.l.b16 %v6681
      %v7572 = vunpack.c.l.b16 %v6682
      %v7573 = vunpack.c.l.b16 %v6683
      %v7574 = vunpack.c.l.b16 %v6684
      %v7575 = vunpack.c.l.b16 %v6685
      %v7576 = vunpack.c.l.b16 %v6686
      %v7577 = vunpack.c.l.b16 %v6687
      %v7578 = vunpack.c.l.b16 %v6688
      %v7579 = vpack.c.b16 %v7532, %v7531
      %v7580 = vpack.c.b16 %v7534, %v7533
      %v7581 = vpack.c.b16 %v7536, %v7535
      %v7582 = vpack.c.b16 %v7538, %v7537
      %v7583 = vpack.c.b16 %v7540, %v7539
      %v7584 = vpack.c.b16 %v7542, %v7541
      %v7585 = vpack.c.b16 %v7544, %v7543
      %v7586 = vpack.c.b16 %v7546, %v7545
      %v7587 = vpack.c.b16 %v7548, %v7547
      %v7588 = vpack.c.b16 %v7550, %v7549
      %v7589 = vpack.c.b16 %v7552, %v7551
      %v7590 = vpack.c.b16 %v7554, %v7553
      %v7591 = vpack.c.b16 %v7556, %v7555
      %v7592 = vpack.c.b16 %v7558, %v7557
      %v7593 = vpack.c.b16 %v7560, %v7559
      %v7594 = vpack.c.b16 %v7562, %v7561
      %v7595 = vpack.c.b16 %v7564, %v7563
      %v7596 = vpack.c.b16 %v7566, %v7565
      %v7597 = vpack.c.b16 %v7568, %v7567
      %v7598 = vpack.c.b16 %v7570, %v7569
      %v7599 = vpack.c.b16 %v7572, %v7571
      %v7600 = vpack.c.b16 %v7574, %v7573
      %v7601 = vpack.c.b16 %v7576, %v7575
      %v7602 = vpack.c.b16 %v7578, %v7577
      %7627 = vmatprep.subr.bf16.mxu0 0
      %7628 = vmatpush1.bf16.msra.mxu0 %v7579
      %7629 = vmatprep.subr.bf16.mxu0 0
      %7630 = vmatpush1.bf16.msra.mxu0 %v7580
      %7631 = vmatprep.subr.bf16.mxu0 0
      %7632 = vmatpush1.bf16.msra.mxu0 %v7581
      %7633 = vmatprep.subr.bf16.mxu0 0
      %7634 = vmatpush1.bf16.msra.mxu0 %v7582
      %7635 = vmatprep.subr.bf16.mxu0 0
      %7636 = vmatpush1.bf16.msra.mxu0 %v7583
      %7637 = vmatprep.subr.bf16.mxu0 0
      %7638 = vmatpush1.bf16.msra.mxu0 %v7584
      %7639 = vmatprep.subr.bf16.mxu0 0
      %7640 = vmatpush1.bf16.msra.mxu0 %v7585
      %7641 = vmatprep.subr.bf16.mxu0 0
      %7642 = vmatpush1.bf16.msra.mxu0 %v7586
      %7643 = vmatprep.subr.bf16.mxu0 0
      %7644 = vmatpush1.bf16.msra.mxu0 %v7587
      %7645 = vmatprep.subr.bf16.mxu0 0
      %7646 = vmatpush1.bf16.msra.mxu0 %v7588
      %7647 = vmatprep.subr.bf16.mxu0 0
      %7648 = vmatpush1.bf16.msra.mxu0 %v7589
      %7649 = vmatprep.subr.bf16.mxu0 0
      %7650 = vmatpush1.bf16.msra.mxu0 %v7590
      %7651 = vmatprep.subr.bf16.mxu0 0
      %7652 = vmatpush1.bf16.msra.mxu0 %v7591
      %7653 = vmatprep.subr.bf16.mxu0 0
      %7654 = vmatpush1.bf16.msra.mxu0 %v7592
      %7655 = vmatprep.subr.bf16.mxu0 0
      %7656 = vmatpush1.bf16.msra.mxu0 %v7593
      %7657 = vmatprep.subr.bf16.mxu0 0
      %7658 = vmatpush1.bf16.msra.mxu0 %v7594
      %7659 = vmatprep.mubr.bf16.mxu0 %v6593
      %7660 = vmatmul.mubr.bf16.gmra.mrb[0].mxu0 %v6561
      %v7661 = vpop.f32.mrb[0].mxu0
      %v7662 = vadd.f32 %v7421, %v7661
      %v7663 = vpop.f32.mrb[0].mxu0
      %v7664 = vpop.f32.mrb[0].mxu0
      %v7665 = vadd.f32 %v7424, %v7664
      %v7666 = vpop.f32.mrb[0].mxu0
      %7667 = vmatprep.mubr.bf16.mxu0 %v6594
      %7668 = vmatmul.mubr.bf16.gmra.mrb[0].mxu0 %v6562
      %v7669 = vpop.f32.mrb[0].mxu0
      %v7670 = vadd.f32 %v7429, %v7669
      %v7671 = vpop.f32.mrb[0].mxu0
      %v7672 = vpop.f32.mrb[0].mxu0
      %v7673 = vadd.f32 %v7432, %v7672
      %v7674 = vpop.f32.mrb[0].mxu0
      %7675 = vmatprep.mubr.bf16.mxu0 %v6595
      %7676 = vmatmul.mubr.bf16.gmra.mrb[0].mxu0 %v6563
      %v7677 = vpop.f32.mrb[0].mxu0
      %v7678 = vadd.f32 %v7437, %v7677
      %v7679 = vpop.f32.mrb[0].mxu0
      %v7680 = vpop.f32.mrb[0].mxu0
      %v7681 = vadd.f32 %v7440, %v7680
      %v7682 = vpop.f32.mrb[0].mxu0
      %7683 = vmatprep.mubr.bf16.mxu0 %v6596
      %7684 = vmatmul.mubr.bf16.gmra.mrb[0].mxu0 %v6564
      %v7685 = vpop.f32.mrb[0].mxu0
      %v7686 = vadd.f32 %v7445, %v7685
      %v7687 = vpop.f32.mrb[0].mxu0
      %v7688 = vpop.f32.mrb[0].mxu0
      %v7689 = vadd.f32 %v7448, %v7688
      %v7690 = vpop.f32.mrb[0].mxu0
      %7691 = vmatprep.mubr.bf16.mxu0 %v6597
      %7692 = vmatmul.mubr.bf16.gmra.mrb[0].mxu0 %v6565
      %v7693 = vpop.f32.mrb[0].mxu0
      %v7694 = vadd.f32 %v7453, %v7693
      %v7695 = vpop.f32.mrb[0].mxu0
      %v7696 = vpop.f32.mrb[0].mxu0
      %v7697 = vadd.f32 %v7456, %v7696
      %v7698 = vpop.f32.mrb[0].mxu0
      %7699 = vmatprep.mubr.bf16.mxu0 %v6598
      %7700 = vmatmul.mubr.bf16.gmra.mrb[0].mxu0 %v6566
      %v7701 = vpop.f32.mrb[0].mxu0
      %v7702 = vadd.f32 %v7461, %v7701
      %v7703 = vpop.f32.mrb[0].mxu0
      %v7704 = vpop.f32.mrb[0].mxu0
      %v7705 = vadd.f32 %v7464, %v7704
      %v7706 = vpop.f32.mrb[0].mxu0
      %7707 = vmatprep.mubr.bf16.mxu0 %v6599
      %7708 = vmatmul.mubr.bf16.gmra.mrb[0].mxu0 %v6567
      %v7709 = vpop.f32.mrb[0].mxu0
      %v7710 = vadd.f32 %v7469, %v7709
      %v7711 = vpop.f32.mrb[0].mxu0
      %v7712 = vpop.f32.mrb[0].mxu0
      %v7713 = vadd.f32 %v7472, %v7712
      %v7714 = vpop.f32.mrb[0].mxu0
      %7715 = vmatprep.mubr.bf16.mxu0 %v6600
      %7716 = vmatmul.mubr.bf16.gmra.mrb[0].mxu0 %v6568
      %v7717 = vpop.f32.mrb[0].mxu0
      %v7718 = vadd.f32 %v7477, %v7717
      %v7719 = vpop.f32.mrb[0].mxu0
      %v7720 = vpop.f32.mrb[0].mxu0
      %v7721 = vadd.f32 %v7480, %v7720
      %v7722 = vpop.f32.mrb[0].mxu0
      %7723 = vdwg.mxu0
      %7724 = vmatprep.subr.bf16.mxu0 0
      %7725 = vmatpush1.bf16.msra.mxu0 %v7595
      %7726 = vmatprep.subr.bf16.mxu0 0
      %7727 = vmatpush1.bf16.msra.mxu0 %v7596
      %7728 = vmatprep.subr.bf16.mxu0 0
      %7729 = vmatpush1.bf16.msra.mxu0 %v7597
      %7730 = vmatprep.subr.bf16.mxu0 0
      %7731 = vmatpush1.bf16.msra.mxu0 %v7598
      %7732 = vmatprep.subr.bf16.mxu0 0
      %7733 = vmatpush1.bf16.msra.mxu0 %v7599
      %7734 = vmatprep.subr.bf16.mxu0 0
      %7735 = vmatpush1.bf16.msra.mxu0 %v7600
      %7736 = vmatprep.subr.bf16.mxu0 0
      %7737 = vmatpush1.bf16.msra.mxu0 %v7601
      %7738 = vmatprep.subr.bf16.mxu0 0
      %7739 = vmatpush1.bf16.msra.mxu0 %v7602
      %7740 = vmatprep.subr.bf16.mxu0 0
      %7741 = vmatpush1.bf16.msra.mxu0 0
      %7742 = vmatprep.subr.bf16.mxu0 0
      %7743 = vmatpush1.bf16.msra.mxu0 0
      %7744 = vmatprep.subr.bf16.mxu0 0
      %7745 = vmatpush1.bf16.msra.mxu0 0
      %7746 = vmatprep.subr.bf16.mxu0 0
      %7747 = vmatpush1.bf16.msra.mxu0 0
      %7748 = vmatprep.subr.bf16.mxu0 0
      %7749 = vmatpush1.bf16.msra.mxu0 0
      %7750 = vmatprep.subr.bf16.mxu0 0
      %7751 = vmatpush1.bf16.msra.mxu0 0
      %7752 = vmatprep.subr.bf16.mxu0 0
      %7753 = vmatpush1.bf16.msra.mxu0 0
      %7754 = vmatprep.subr.bf16.mxu0 0
      %7755 = vmatpush1.bf16.msra.mxu0 0
      %7756 = vmatprep.mubr.bf16.mxu0 0
      %7757 = vmatmul.mubr.bf16.gmra.mrb[0].mxu0 %v6625
      %v7758 = vpop.f32.mrb[0].mxu0
      %v7759 = vadd.f32 %v7662, %v7758
      %v7760 = vpop.f32.mrb[0].mxu0
      %v7761 = vpop.f32.mrb[0].mxu0
      %v7762 = vadd.f32 %v7665, %v7761
      %v7763 = vpop.f32.mrb[0].mxu0
      %7764 = vmatprep.mubr.bf16.mxu0 0
      %7765 = vmatmul.mubr.bf16.gmra.mrb[0].mxu0 %v6626
      %v7766 = vpop.f32.mrb[0].mxu0
      %v7767 = vadd.f32 %v7670, %v7766
      %v7768 = vpop.f32.mrb[0].mxu0
      %v7769 = vpop.f32.mrb[0].mxu0
      %v7770 = vadd.f32 %v7673, %v7769
      %v7771 = vpop.f32.mrb[0].mxu0
      %7772 = vmatprep.mubr.bf16.mxu0 0
      %7773 = vmatmul.mubr.bf16.gmra.mrb[0].mxu0 %v6627
      %v7774 = vpop.f32.mrb[0].mxu0
      %v7775 = vadd.f32 %v7678, %v7774
      %v7776 = vpop.f32.mrb[0].mxu0
      %v7777 = vpop.f32.mrb[0].mxu0
      %v7778 = vadd.f32 %v7681, %v7777
      %v7779 = vpop.f32.mrb[0].mxu0
      %7780 = vmatprep.mubr.bf16.mxu0 0
      %7781 = vmatmul.mubr.bf16.gmra.mrb[0].mxu0 %v6628
      %v7782 = vpop.f32.mrb[0].mxu0
      %v7783 = vadd.f32 %v7686, %v7782
      %v7784 = vpop.f32.mrb[0].mxu0
      %v7785 = vpop.f32.mrb[0].mxu0
      %v7786 = vadd.f32 %v7689, %v7785
      %v7787 = vpop.f32.mrb[0].mxu0
      %7788 = vmatprep.mubr.bf16.mxu0 0
      %7789 = vmatmul.mubr.bf16.gmra.mrb[0].mxu0 %v6629
      %v7790 = vpop.f32.mrb[0].mxu0
      %v7791 = vadd.f32 %v7694, %v7790
      %v7792 = vpop.f32.mrb[0].mxu0
      %v7793 = vpop.f32.mrb[0].mxu0
      %v7794 = vadd.f32 %v7697, %v7793
      %v7795 = vpop.f32.mrb[0].mxu0
      %7796 = vmatprep.mubr.bf16.mxu0 0
      %7797 = vmatmul.mubr.bf16.gmra.mrb[0].mxu0 %v6630
      %v7798 = vpop.f32.mrb[0].mxu0
      %v7799 = vadd.f32 %v7702, %v7798
      %v7800 = vpop.f32.mrb[0].mxu0
      %v7801 = vpop.f32.mrb[0].mxu0
      %v7802 = vadd.f32 %v7705, %v7801
      %v7803 = vpop.f32.mrb[0].mxu0
      %7804 = vmatprep.mubr.bf16.mxu0 0
      %7805 = vmatmul.mubr.bf16.gmra.mrb[0].mxu0 %v6631
      %v7806 = vpop.f32.mrb[0].mxu0
      %v7807 = vadd.f32 %v7710, %v7806
      %v7808 = vpop.f32.mrb[0].mxu0
      %v7809 = vpop.f32.mrb[0].mxu0
      %v7810 = vadd.f32 %v7713, %v7809
      %v7811 = vpop.f32.mrb[0].mxu0
      %7812 = vmatprep.mubr.bf16.mxu0 0
      %7813 = vmatmul.mubr.bf16.gmra.mrb[0].mxu0 %v6632
      %v7814 = vpop.f32.mrb[0].mxu0
      %v7815 = vadd.f32 %v7718, %v7814
      %v7816 = vpop.f32.mrb[0].mxu0
      %v7817 = vpop.f32.mrb[0].mxu0
      %v7818 = vadd.f32 %v7721, %v7817
      %v7819 = vpop.f32.mrb[0].mxu0
      %7820 = vdwg.mxu0
      %s7821 = scalar_lea.vmem [#allocation2], 120
      %v7822 = vld [vmem:[%s7821] sm:$0xf]
      %v7823 = vld [vmem:[%s7821 + $0x4] sm:$0xf]
      %v7824 = vld [vmem:[%s7821 + $0xc] sm:$0xf]
      %v7825 = vld [vmem:[%s7821 + $0x10] sm:$0xf]
      %v7826 = vld [vmem:[%s7821 + $0x18] sm:$0xf]
      %v7827 = vld [vmem:[%s7821 + $0x1c] sm:$0xf]
      %v7828 = vld [vmem:[%s7821 + $0x24] sm:$0xf]
      %v7829 = vld [vmem:[%s7821 + $0x28] sm:$0xf]
      %v7830 = vld [vmem:[%s7821 + $0x30] sm:$0xf]
      %v7831 = vld [vmem:[%s7821 + $0x34] sm:$0xf]
      %v7832 = vld [vmem:[%s7821 + $0x3c] sm:$0xf]
      %v7833 = vld [vmem:[%s7821 + $0x40] sm:$0xf]
      %v7834 = vld [vmem:[%s7821 + $0x48] sm:$0xf]
      %v7835 = vld [vmem:[%s7821 + $0x4c] sm:$0xf]
      %v7836 = vld [vmem:[%s7821 + $0x54] sm:$0xf]
      %v7837 = vld [vmem:[%s7821 + $0x58] sm:$0xf]
      %v7838 = vld [vmem:[%s7821 + $0x8] sm:$0x1]
      %v7839 = vld [vmem:[%s7821 + $0x14] sm:$0x1]
      %v7840 = vld [vmem:[%s7821 + $0x20] sm:$0x1]
      %v7841 = vld [vmem:[%s7821 + $0x2c] sm:$0x1]
      %v7842 = vld [vmem:[%s7821 + $0x38] sm:$0x1]
      %v7843 = vld [vmem:[%s7821 + $0x44] sm:$0x1]
      %v7844 = vld [vmem:[%s7821 + $0x50] sm:$0x1]
      %v7845 = vld [vmem:[%s7821 + $0x5c] sm:$0x1]
      %v7847 = vshrl.u32 %v7822, 16
      %v7849 = vrot.slane %v7847, 4
      %v7850 = vshll.u32 %v7822, 16
      %v7852 = vrot.slane %v7850, 5
      %v7853 = vor.u32 %v7849, %v7852
      %v7854 = vrot.slane %v7853, 4
      %v7856 = vshll.u32 %v7823, 16
      %v7858 = vrot.slane %v7856, 5
      %v7859 = vsel %vm3765, %v7854, %v7858
      %v7860 = vshrl.u32 %v7823, 16
      %v7862 = vrot.slane %v7860, 4
      %v7863 = vor.u32 %v7862, %v7858
      %v7864 = vrot.slane %v7863, 4
      %v7866 = vshll.u32 %v7838, 16
      %v7868 = vrot.slane %v7866, 5
      %v7869 = vsel %vm3765, %v7864, %v7868
      %v7871 = vshrl.u32 %v7824, 16
      %v7873 = vrot.slane %v7871, 4
      %v7874 = vshll.u32 %v7824, 16
      %v7876 = vrot.slane %v7874, 5
      %v7877 = vor.u32 %v7873, %v7876
      %v7878 = vrot.slane %v7877, 4
      %v7880 = vshll.u32 %v7825, 16
      %v7882 = vrot.slane %v7880, 5
      %v7883 = vsel %vm3765, %v7878, %v7882
      %v7884 = vshrl.u32 %v7825, 16
      %v7886 = vrot.slane %v7884, 4
      %v7887 = vor.u32 %v7886, %v7882
      %v7888 = vrot.slane %v7887, 4
      %v7890 = vshll.u32 %v7839, 16
      %v7892 = vrot.slane %v7890, 5
      %v7893 = vsel %vm3765, %v7888, %v7892
      %v7895 = vshrl.u32 %v7826, 16
      %v7897 = vrot.slane %v7895, 4
      %v7898 = vshll.u32 %v7826, 16
      %v7900 = vrot.slane %v7898, 5
      %v7901 = vor.u32 %v7897, %v7900
      %v7902 = vrot.slane %v7901, 4
      %v7904 = vshll.u32 %v7827, 16
      %v7906 = vrot.slane %v7904, 5
      %v7907 = vsel %vm3765, %v7902, %v7906
      %v7908 = vshrl.u32 %v7827, 16
      %v7910 = vrot.slane %v7908, 4
      %v7911 = vor.u32 %v7910, %v7906
      %v7912 = vrot.slane %v7911, 4
      %v7914 = vshll.u32 %v7840, 16
      %v7916 = vrot.slane %v7914, 5
      %v7917 = vsel %vm3765, %v7912, %v7916
      %v7919 = vshrl.u32 %v7828, 16
      %v7921 = vrot.slane %v7919, 4
      %v7922 = vshll.u32 %v7828, 16
      %v7924 = vrot.slane %v7922, 5
      %v7925 = vor.u32 %v7921, %v7924
      %v7926 = vrot.slane %v7925, 4
      %v7928 = vshll.u32 %v7829, 16
      %v7930 = vrot.slane %v7928, 5
      %v7931 = vsel %vm3765, %v7926, %v7930
      %v7932 = vshrl.u32 %v7829, 16
      %v7934 = vrot.slane %v7932, 4
      %v7935 = vor.u32 %v7934, %v7930
      %v7936 = vrot.slane %v7935, 4
      %v7938 = vshll.u32 %v7841, 16
      %v7940 = vrot.slane %v7938, 5
      %v7941 = vsel %vm3765, %v7936, %v7940
      %v7943 = vshrl.u32 %v7830, 16
      %v7945 = vrot.slane %v7943, 4
      %v7946 = vshll.u32 %v7830, 16
      %v7948 = vrot.slane %v7946, 5
      %v7949 = vor.u32 %v7945, %v7948
      %v7950 = vrot.slane %v7949, 4
      %v7952 = vshll.u32 %v7831, 16
      %v7954 = vrot.slane %v7952, 5
      %v7955 = vsel %vm3765, %v7950, %v7954
      %v7956 = vshrl.u32 %v7831, 16
      %v7958 = vrot.slane %v7956, 4
      %v7959 = vor.u32 %v7958, %v7954
      %v7960 = vrot.slane %v7959, 4
      %v7962 = vshll.u32 %v7842, 16
      %v7964 = vrot.slane %v7962, 5
      %v7965 = vsel %vm3765, %v7960, %v7964
      %v7967 = vshrl.u32 %v7832, 16
      %v7969 = vrot.slane %v7967, 4
      %v7970 = vshll.u32 %v7832, 16
      %v7972 = vrot.slane %v7970, 5
      %v7973 = vor.u32 %v7969, %v7972
      %v7974 = vrot.slane %v7973, 4
      %v7976 = vshll.u32 %v7833, 16
      %v7978 = vrot.slane %v7976, 5
      %v7979 = vsel %vm3765, %v7974, %v7978
      %v7980 = vshrl.u32 %v7833, 16
      %v7982 = vrot.slane %v7980, 4
      %v7983 = vor.u32 %v7982, %v7978
      %v7984 = vrot.slane %v7983, 4
      %v7986 = vshll.u32 %v7843, 16
      %v7988 = vrot.slane %v7986, 5
      %v7989 = vsel %vm3765, %v7984, %v7988
      %v7991 = vshrl.u32 %v7834, 16
      %v7993 = vrot.slane %v7991, 4
      %v7994 = vshll.u32 %v7834, 16
      %v7996 = vrot.slane %v7994, 5
      %v7997 = vor.u32 %v7993, %v7996
      %v7998 = vrot.slane %v7997, 4
      %v8000 = vshll.u32 %v7835, 16
      %v8002 = vrot.slane %v8000, 5
      %v8003 = vsel %vm3765, %v7998, %v8002
      %v8004 = vshrl.u32 %v7835, 16
      %v8006 = vrot.slane %v8004, 4
      %v8007 = vor.u32 %v8006, %v8002
      %v8008 = vrot.slane %v8007, 4
      %v8010 = vshll.u32 %v7844, 16
      %v8012 = vrot.slane %v8010, 5
      %v8013 = vsel %vm3765, %v8008, %v8012
      %v8015 = vshrl.u32 %v7836, 16
      %v8017 = vrot.slane %v8015, 4
      %v8018 = vshll.u32 %v7836, 16
      %v8020 = vrot.slane %v8018, 5
      %v8021 = vor.u32 %v8017, %v8020
      %v8022 = vrot.slane %v8021, 4
      %v8024 = vshll.u32 %v7837, 16
      %v8026 = vrot.slane %v8024, 5
      %v8027 = vsel %vm3765, %v8022, %v8026
      %v8028 = vshrl.u32 %v7837, 16
      %v8030 = vrot.slane %v8028, 4
      %v8031 = vor.u32 %v8030, %v8026
      %v8032 = vrot.slane %v8031, 4
      %v8034 = vshll.u32 %v7845, 16
      %v8036 = vrot.slane %v8034, 5
      %v8037 = vsel %vm3765, %v8032, %v8036
      %v8038 = vld [vmem:[%s7821] sm:$0xe]
      %v8039 = vld [vmem:[%s7821 + $0xc] sm:$0xe]
      %v8040 = vld [vmem:[%s7821 + $0x18] sm:$0xe]
      %v8041 = vld [vmem:[%s7821 + $0x24] sm:$0xe]
      %v8042 = vld [vmem:[%s7821 + $0x30] sm:$0xe]
      %v8043 = vld [vmem:[%s7821 + $0x3c] sm:$0xe]
      %v8044 = vld [vmem:[%s7821 + $0x48] sm:$0xe]
      %v8045 = vld [vmem:[%s7821 + $0x54] sm:$0xe]
      %v8070 = vrot.slane %v8038, 5
      %v8071 = vrot.slane %v8070, 4
      %v8072 = vrot.slane %v7823, 5
      %v8073 = vsel %vm3992, %v8071, %v8072
      %v8074 = vrot.slane %v8072, 4
      %v8075 = vrot.slane %v7838, 5
      %v8076 = vsel %vm3992, %v8074, %v8075
      %v8077 = vrot.slane %v8039, 5
      %v8078 = vrot.slane %v8077, 4
      %v8079 = vrot.slane %v7825, 5
      %v8080 = vsel %vm3992, %v8078, %v8079
      %v8081 = vrot.slane %v8079, 4
      %v8082 = vrot.slane %v7839, 5
      %v8083 = vsel %vm3992, %v8081, %v8082
      %v8084 = vrot.slane %v8040, 5
      %v8085 = vrot.slane %v8084, 4
      %v8086 = vrot.slane %v7827, 5
      %v8087 = vsel %vm3992, %v8085, %v8086
      %v8088 = vrot.slane %v8086, 4
      %v8089 = vrot.slane %v7840, 5
      %v8090 = vsel %vm3992, %v8088, %v8089
      %v8091 = vrot.slane %v8041, 5
      %v8092 = vrot.slane %v8091, 4
      %v8093 = vrot.slane %v7829, 5
      %v8094 = vsel %vm3992, %v8092, %v8093
      %v8095 = vrot.slane %v8093, 4
      %v8096 = vrot.slane %v7841, 5
      %v8097 = vsel %vm3992, %v8095, %v8096
      %v8098 = vrot.slane %v8042, 5
      %v8099 = vrot.slane %v8098, 4
      %v8100 = vrot.slane %v7831, 5
      %v8101 = vsel %vm3992, %v8099, %v8100
      %v8102 = vrot.slane %v8100, 4
      %v8103 = vrot.slane %v7842, 5
      %v8104 = vsel %vm3992, %v8102, %v8103
      %v8105 = vrot.slane %v8043, 5
      %v8106 = vrot.slane %v8105, 4
      %v8107 = vrot.slane %v7833, 5
      %v8108 = vsel %vm3992, %v8106, %v8107
      %v8109 = vrot.slane %v8107, 4
      %v8110 = vrot.slane %v7843, 5
      %v8111 = vsel %vm3992, %v8109, %v8110
      %v8112 = vrot.slane %v8044, 5
      %v8113 = vrot.slane %v8112, 4
      %v8114 = vrot.slane %v7835, 5
      %v8115 = vsel %vm3992, %v8113, %v8114
      %v8116 = vrot.slane %v8114, 4
      %v8117 = vrot.slane %v7844, 5
      %v8118 = vsel %vm3992, %v8116, %v8117
      %v8119 = vrot.slane %v8045, 5
      %v8120 = vrot.slane %v8119, 4
      %v8121 = vrot.slane %v7837, 5
      %v8122 = vsel %vm3992, %v8120, %v8121
      %v8123 = vrot.slane %v8121, 4
      %v8124 = vrot.slane %v7845, 5
      %v8125 = vsel %vm3992, %v8123, %v8124
      %v8134 = vunpack.c.l.b16 %v7822
      %v8135 = vunpack.c.l.b16 %v7823
      %v8136 = vunpack.c.l.b16 %v7824
      %v8137 = vunpack.c.l.b16 %v7825
      %v8138 = vunpack.c.l.b16 %v7826
      %v8139 = vunpack.c.l.b16 %v7827
      %v8140 = vunpack.c.l.b16 %v7828
      %v8141 = vunpack.c.l.b16 %v7829
      %v8142 = vunpack.c.l.b16 %v7830
      %v8143 = vunpack.c.l.b16 %v7831
      %v8144 = vunpack.c.l.b16 %v7832
      %v8145 = vunpack.c.l.b16 %v7833
      %v8146 = vunpack.c.l.b16 %v7834
      %v8147 = vunpack.c.l.b16 %v7835
      %v8148 = vunpack.c.l.b16 %v7836
      %v8149 = vunpack.c.l.b16 %v7837
      %v8150 = vpack.c.b16 %v8135, %v8134
      %v8151 = vpack.c.b16 %v8137, %v8136
      %v8152 = vpack.c.b16 %v8139, %v8138
      %v8153 = vpack.c.b16 %v8141, %v8140
      %v8154 = vpack.c.b16 %v8143, %v8142
      %v8155 = vpack.c.b16 %v8145, %v8144
      %v8156 = vpack.c.b16 %v8147, %v8146
      %v8157 = vpack.c.b16 %v8149, %v8148
      %v8166 = vunpack.c.l.b16 %v7859
      %v8167 = vunpack.c.l.b16 %v7869
      %v8168 = vunpack.c.l.b16 %v7883
      %v8169 = vunpack.c.l.b16 %v7893
      %v8170 = vunpack.c.l.b16 %v7907
      %v8171 = vunpack.c.l.b16 %v7917
      %v8172 = vunpack.c.l.b16 %v7931
      %v8173 = vunpack.c.l.b16 %v7941
      %v8174 = vunpack.c.l.b16 %v7955
      %v8175 = vunpack.c.l.b16 %v7965
      %v8176 = vunpack.c.l.b16 %v7979
      %v8177 = vunpack.c.l.b16 %v7989
      %v8178 = vunpack.c.l.b16 %v8003
      %v8179 = vunpack.c.l.b16 %v8013
      %v8180 = vunpack.c.l.b16 %v8027
      %v8181 = vunpack.c.l.b16 %v8037
      %v8182 = vpack.c.b16 %v8167, %v8166
      %v8183 = vpack.c.b16 %v8169, %v8168
      %v8184 = vpack.c.b16 %v8171, %v8170
      %v8185 = vpack.c.b16 %v8173, %v8172
      %v8186 = vpack.c.b16 %v8175, %v8174
      %v8187 = vpack.c.b16 %v8177, %v8176
      %v8188 = vpack.c.b16 %v8179, %v8178
      %v8189 = vpack.c.b16 %v8181, %v8180
      %v8198 = vunpack.c.l.b16 %v8073
      %v8199 = vunpack.c.l.b16 %v8076
      %v8200 = vunpack.c.l.b16 %v8080
      %v8201 = vunpack.c.l.b16 %v8083
      %v8202 = vunpack.c.l.b16 %v8087
      %v8203 = vunpack.c.l.b16 %v8090
      %v8204 = vunpack.c.l.b16 %v8094
      %v8205 = vunpack.c.l.b16 %v8097
      %v8206 = vunpack.c.l.b16 %v8101
      %v8207 = vunpack.c.l.b16 %v8104
      %v8208 = vunpack.c.l.b16 %v8108
      %v8209 = vunpack.c.l.b16 %v8111
      %v8210 = vunpack.c.l.b16 %v8115
      %v8211 = vunpack.c.l.b16 %v8118
      %v8212 = vunpack.c.l.b16 %v8122
      %v8213 = vunpack.c.l.b16 %v8125
      %v8214 = vpack.c.b16 %v8199, %v8198
      %v8215 = vpack.c.b16 %v8201, %v8200
      %v8216 = vpack.c.b16 %v8203, %v8202
      %v8217 = vpack.c.b16 %v8205, %v8204
      %v8218 = vpack.c.b16 %v8207, %v8206
      %v8219 = vpack.c.b16 %v8209, %v8208
      %v8220 = vpack.c.b16 %v8211, %v8210
      %v8221 = vpack.c.b16 %v8213, %v8212
      %v8230 = vld [vmem:[%s5743] sm:$0xf]
      %v8231 = vld [vmem:[%s5743 + $0x4] sm:$0xf]
      %v8232 = vld [vmem:[%s5743 + $0x8] sm:$0xf]
      %v8233 = vld [vmem:[%s5743 + $0xc] sm:$0xf]
      %v8234 = vld [vmem:[%s5743 + $0x10] sm:$0xf]
      %v8235 = vld [vmem:[%s5743 + $0x14] sm:$0xf]
      %v8236 = vld [vmem:[%s5743 + $0x18] sm:$0xf]
      %v8237 = vld [vmem:[%s5743 + $0x1c] sm:$0xf]
      %v8238 = vld [vmem:[%s5743 + $0x20] sm:$0xf]
      %v8239 = vld [vmem:[%s5743 + $0x24] sm:$0xf]
      %v8240 = vld [vmem:[%s5743 + $0x28] sm:$0xf]
      %v8241 = vld [vmem:[%s5743 + $0x2c] sm:$0xf]
      %v8242 = vld [vmem:[%s5743 + $0x30] sm:$0xf]
      %v8243 = vld [vmem:[%s5743 + $0x34] sm:$0xf]
      %v8244 = vld [vmem:[%s5743 + $0x38] sm:$0xf]
      %v8245 = vld [vmem:[%s5743 + $0x3c] sm:$0xf]
      %v8246 = vld [vmem:[%s5743 + $0x40] sm:$0xf]
      %v8247 = vld [vmem:[%s5743 + $0x44] sm:$0xf]
      %v8248 = vld [vmem:[%s5743 + $0x48] sm:$0xf]
      %v8249 = vld [vmem:[%s5743 + $0x4c] sm:$0xf]
      %v8250 = vld [vmem:[%s5743 + $0x50] sm:$0xf]
      %v8251 = vld [vmem:[%s5743 + $0x54] sm:$0xf]
      %v8252 = vld [vmem:[%s5743 + $0x58] sm:$0xf]
      %v8253 = vld [vmem:[%s5743 + $0x5c] sm:$0xf]
      %v8254 = vld [vmem:[%s5743 + $0x60] sm:$0xf]
      %v8255 = vld [vmem:[%s5743 + $0x64] sm:$0xf]
      %v8256 = vld [vmem:[%s5743 + $0x68] sm:$0xf]
      %v8257 = vld [vmem:[%s5743 + $0x6c] sm:$0xf]
      %v8258 = vld [vmem:[%s5743 + $0x70] sm:$0xf]
      %v8259 = vld [vmem:[%s5743 + $0x74] sm:$0xf]
      %v8260 = vld [vmem:[%s5743 + $0x78] sm:$0xf]
      %v8261 = vld [vmem:[%s5743 + $0x7c] sm:$0xf]
      %v8262 = vld [vmem:[%s5743 + $0x80] sm:$0xf]
      %v8263 = vld [vmem:[%s5743 + $0x84] sm:$0xf]
      %v8264 = vld [vmem:[%s5743 + $0x88] sm:$0xf]
      %v8265 = vld [vmem:[%s5743 + $0x8c] sm:$0xf]
      %v8266 = vld [vmem:[%s5743 + $0x90] sm:$0xf]
      %v8267 = vld [vmem:[%s5743 + $0x94] sm:$0xf]
      %v8268 = vld [vmem:[%s5743 + $0x98] sm:$0xf]
      %v8269 = vld [vmem:[%s5743 + $0x9c] sm:$0xf]
      %v8270 = vld [vmem:[%s5743 + $0xa0] sm:$0xf]
      %v8271 = vld [vmem:[%s5743 + $0xa4] sm:$0xf]
      %v8272 = vld [vmem:[%s5743 + $0xa8] sm:$0xf]
      %v8273 = vld [vmem:[%s5743 + $0xac] sm:$0xf]
      %v8274 = vld [vmem:[%s5743 + $0xb0] sm:$0xf]
      %v8275 = vld [vmem:[%s5743 + $0xb4] sm:$0xf]
      %v8276 = vld [vmem:[%s5743 + $0xb8] sm:$0xf]
      %v8277 = vld [vmem:[%s5743 + $0xbc] sm:$0xf]
      %v8326 = vunpack.c.l.b16 %v8230
      %v8327 = vunpack.c.l.b16 %v8231
      %v8328 = vunpack.c.l.b16 %v8232
      %v8329 = vunpack.c.l.b16 %v8233
      %v8330 = vunpack.c.l.b16 %v8234
      %v8331 = vunpack.c.l.b16 %v8235
      %v8332 = vunpack.c.l.b16 %v8236
      %v8333 = vunpack.c.l.b16 %v8237
      %v8334 = vunpack.c.l.b16 %v8238
      %v8335 = vunpack.c.l.b16 %v8239
      %v8336 = vunpack.c.l.b16 %v8240
      %v8337 = vunpack.c.l.b16 %v8241
      %v8338 = vunpack.c.l.b16 %v8242
      %v8339 = vunpack.c.l.b16 %v8243
      %v8340 = vunpack.c.l.b16 %v8244
      %v8341 = vunpack.c.l.b16 %v8245
      %v8342 = vunpack.c.l.b16 %v8246
      %v8343 = vunpack.c.l.b16 %v8247
      %v8344 = vunpack.c.l.b16 %v8248
      %v8345 = vunpack.c.l.b16 %v8249
      %v8346 = vunpack.c.l.b16 %v8250
      %v8347 = vunpack.c.l.b16 %v8251
      %v8348 = vunpack.c.l.b16 %v8252
      %v8349 = vunpack.c.l.b16 %v8253
      %v8350 = vunpack.c.l.b16 %v8254
      %v8351 = vunpack.c.l.b16 %v8255
      %v8352 = vunpack.c.l.b16 %v8256
      %v8353 = vunpack.c.l.b16 %v8257
      %v8354 = vunpack.c.l.b16 %v8258
      %v8355 = vunpack.c.l.b16 %v8259
      %v8356 = vunpack.c.l.b16 %v8260
      %v8357 = vunpack.c.l.b16 %v8261
      %v8358 = vunpack.c.l.b16 %v8262
      %v8359 = vunpack.c.l.b16 %v8263
      %v8360 = vunpack.c.l.b16 %v8264
      %v8361 = vunpack.c.l.b16 %v8265
      %v8362 = vunpack.c.l.b16 %v8266
      %v8363 = vunpack.c.l.b16 %v8267
      %v8364 = vunpack.c.l.b16 %v8268
      %v8365 = vunpack.c.l.b16 %v8269
      %v8366 = vunpack.c.l.b16 %v8270
      %v8367 = vunpack.c.l.b16 %v8271
      %v8368 = vunpack.c.l.b16 %v8272
      %v8369 = vunpack.c.l.b16 %v8273
      %v8370 = vunpack.c.l.b16 %v8274
      %v8371 = vunpack.c.l.b16 %v8275
      %v8372 = vunpack.c.l.b16 %v8276
      %v8373 = vunpack.c.l.b16 %v8277
      %v8374 = vpack.c.b16 %v8327, %v8326
      %v8375 = vpack.c.b16 %v8329, %v8328
      %v8376 = vpack.c.b16 %v8331, %v8330
      %v8377 = vpack.c.b16 %v8333, %v8332
      %v8378 = vpack.c.b16 %v8335, %v8334
      %v8379 = vpack.c.b16 %v8337, %v8336
      %v8380 = vpack.c.b16 %v8339, %v8338
      %v8381 = vpack.c.b16 %v8341, %v8340
      %v8382 = vpack.c.b16 %v8343, %v8342
      %v8383 = vpack.c.b16 %v8345, %v8344
      %v8384 = vpack.c.b16 %v8347, %v8346
      %v8385 = vpack.c.b16 %v8349, %v8348
      %v8386 = vpack.c.b16 %v8351, %v8350
      %v8387 = vpack.c.b16 %v8353, %v8352
      %v8388 = vpack.c.b16 %v8355, %v8354
      %v8389 = vpack.c.b16 %v8357, %v8356
      %v8390 = vpack.c.b16 %v8359, %v8358
      %v8391 = vpack.c.b16 %v8361, %v8360
      %v8392 = vpack.c.b16 %v8363, %v8362
      %v8393 = vpack.c.b16 %v8365, %v8364
      %v8394 = vpack.c.b16 %v8367, %v8366
      %v8395 = vpack.c.b16 %v8369, %v8368
      %v8396 = vpack.c.b16 %v8371, %v8370
      %v8397 = vpack.c.b16 %v8373, %v8372
      %8422 = vmatprep.subr.bf16.mxu0 0
      %8423 = vmatpush1.bf16.msra.mxu0 %v8374
      %8424 = vmatprep.subr.bf16.mxu0 0
      %8425 = vmatpush1.bf16.msra.mxu0 %v8375
      %8426 = vmatprep.subr.bf16.mxu0 0
      %8427 = vmatpush1.bf16.msra.mxu0 %v8376
      %8428 = vmatprep.subr.bf16.mxu0 0
      %8429 = vmatpush1.bf16.msra.mxu0 %v8377
      %8430 = vmatprep.subr.bf16.mxu0 0
      %8431 = vmatpush1.bf16.msra.mxu0 %v8378
      %8432 = vmatprep.subr.bf16.mxu0 0
      %8433 = vmatpush1.bf16.msra.mxu0 %v8379
      %8434 = vmatprep.subr.bf16.mxu0 0
      %8435 = vmatpush1.bf16.msra.mxu0 %v8380
      %8436 = vmatprep.subr.bf16.mxu0 0
      %8437 = vmatpush1.bf16.msra.mxu0 %v8381
      %8438 = vmatprep.subr.bf16.mxu0 0
      %8439 = vmatpush1.bf16.msra.mxu0 %v8382
      %8440 = vmatprep.subr.bf16.mxu0 0
      %8441 = vmatpush1.bf16.msra.mxu0 %v8383
      %8442 = vmatprep.subr.bf16.mxu0 0
      %8443 = vmatpush1.bf16.msra.mxu0 %v8384
      %8444 = vmatprep.subr.bf16.mxu0 0
      %8445 = vmatpush1.bf16.msra.mxu0 %v8385
      %8446 = vmatprep.subr.bf16.mxu0 0
      %8447 = vmatpush1.bf16.msra.mxu0 %v8386
      %8448 = vmatprep.subr.bf16.mxu0 0
      %8449 = vmatpush1.bf16.msra.mxu0 %v8387
      %8450 = vmatprep.subr.bf16.mxu0 0
      %8451 = vmatpush1.bf16.msra.mxu0 %v8388
      %8452 = vmatprep.subr.bf16.mxu0 0
      %8453 = vmatpush1.bf16.msra.mxu0 %v8389
      %8454 = vmatprep.mubr.bf16.mxu0 %v8182
      %8455 = vmatmul.mubr.bf16.gmra.mrb[0].mxu0 %v8150
      %v8456 = vpop.f32.mrb[0].mxu0
      %v8457 = vadd.f32 0.0, %v8456
      %v8458 = vpop.f32.mrb[0].mxu0
      %v8459 = vpop.f32.mrb[0].mxu0
      %v8460 = vadd.f32 0.0, %v8459
      %v8461 = vpop.f32.mrb[0].mxu0
      %8462 = vmatprep.mubr.bf16.mxu0 %v8183
      %8463 = vmatmul.mubr.bf16.gmra.mrb[0].mxu0 %v8151
      %v8464 = vpop.f32.mrb[0].mxu0
      %v8465 = vadd.f32 0.0, %v8464
      %v8466 = vpop.f32.mrb[0].mxu0
      %v8467 = vpop.f32.mrb[0].mxu0
      %v8468 = vadd.f32 0.0, %v8467
      %v8469 = vpop.f32.mrb[0].mxu0
      %8470 = vmatprep.mubr.bf16.mxu0 %v8184
      %8471 = vmatmul.mubr.bf16.gmra.mrb[0].mxu0 %v8152
      %v8472 = vpop.f32.mrb[0].mxu0
      %v8473 = vadd.f32 0.0, %v8472
      %v8474 = vpop.f32.mrb[0].mxu0
      %v8475 = vpop.f32.mrb[0].mxu0
      %v8476 = vadd.f32 0.0, %v8475
      %v8477 = vpop.f32.mrb[0].mxu0
      %8478 = vmatprep.mubr.bf16.mxu0 %v8185
      %8479 = vmatmul.mubr.bf16.gmra.mrb[0].mxu0 %v8153
      %v8480 = vpop.f32.mrb[0].mxu0
      %v8481 = vadd.f32 0.0, %v8480
      %v8482 = vpop.f32.mrb[0].mxu0
      %v8483 = vpop.f32.mrb[0].mxu0
      %v8484 = vadd.f32 0.0, %v8483
      %v8485 = vpop.f32.mrb[0].mxu0
      %8486 = vmatprep.mubr.bf16.mxu0 %v8186
      %8487 = vmatmul.mubr.bf16.gmra.mrb[0].mxu0 %v8154
      %v8488 = vpop.f32.mrb[0].mxu0
      %v8489 = vadd.f32 0.0, %v8488
      %v8490 = vpop.f32.mrb[0].mxu0
      %v8491 = vpop.f32.mrb[0].mxu0
      %v8492 = vadd.f32 0.0, %v8491
      %v8493 = vpop.f32.mrb[0].mxu0
      %8494 = vmatprep.mubr.bf16.mxu0 %v8187
      %8495 = vmatmul.mubr.bf16.gmra.mrb[0].mxu0 %v8155
      %v8496 = vpop.f32.mrb[0].mxu0
      %v8497 = vadd.f32 0.0, %v8496
      %v8498 = vpop.f32.mrb[0].mxu0
      %v8499 = vpop.f32.mrb[0].mxu0
      %v8500 = vadd.f32 0.0, %v8499
      %v8501 = vpop.f32.mrb[0].mxu0
      %8502 = vmatprep.mubr.bf16.mxu0 %v8188
      %8503 = vmatmul.mubr.bf16.gmra.mrb[0].mxu0 %v8156
      %v8504 = vpop.f32.mrb[0].mxu0
      %v8505 = vadd.f32 0.0, %v8504
      %v8506 = vpop.f32.mrb[0].mxu0
      %v8507 = vpop.f32.mrb[0].mxu0
      %v8508 = vadd.f32 0.0, %v8507
      %v8509 = vpop.f32.mrb[0].mxu0
      %8510 = vmatprep.mubr.bf16.mxu0 %v8189
      %8511 = vmatmul.mubr.bf16.gmra.mrb[0].mxu0 %v8157
      %v8512 = vpop.f32.mrb[0].mxu0
      %v8513 = vadd.f32 0.0, %v8512
      %v8514 = vpop.f32.mrb[0].mxu0
      %v8515 = vpop.f32.mrb[0].mxu0
      %v8516 = vadd.f32 0.0, %v8515
      %v8517 = vpop.f32.mrb[0].mxu0
      %8518 = vdwg.mxu0
      %8519 = vmatprep.subr.bf16.mxu0 0
      %8520 = vmatpush1.bf16.msra.mxu0 %v8390
      %8521 = vmatprep.subr.bf16.mxu0 0
      %8522 = vmatpush1.bf16.msra.mxu0 %v8391
      %8523 = vmatprep.subr.bf16.mxu0 0
      %8524 = vmatpush1.bf16.msra.mxu0 %v8392
      %8525 = vmatprep.subr.bf16.mxu0 0
      %8526 = vmatpush1.bf16.msra.mxu0 %v8393
      %8527 = vmatprep.subr.bf16.mxu0 0
      %8528 = vmatpush1.bf16.msra.mxu0 %v8394
      %8529 = vmatprep.subr.bf16.mxu0 0
      %8530 = vmatpush1.bf16.msra.mxu0 %v8395
      %8531 = vmatprep.subr.bf16.mxu0 0
      %8532 = vmatpush1.bf16.msra.mxu0 %v8396
      %8533 = vmatprep.subr.bf16.mxu0 0
      %8534 = vmatpush1.bf16.msra.mxu0 %v8397
      %8535 = vmatprep.subr.bf16.mxu0 0
      %8536 = vmatpush1.bf16.msra.mxu0 0
      %8537 = vmatprep.subr.bf16.mxu0 0
      %8538 = vmatpush1.bf16.msra.mxu0 0
      %8539 = vmatprep.subr.bf16.mxu0 0
      %8540 = vmatpush1.bf16.msra.mxu0 0
      %8541 = vmatprep.subr.bf16.mxu0 0
      %8542 = vmatpush1.bf16.msra.mxu0 0
      %8543 = vmatprep.subr.bf16.mxu0 0
      %8544 = vmatpush1.bf16.msra.mxu0 0
      %8545 = vmatprep.subr.bf16.mxu0 0
      %8546 = vmatpush1.bf16.msra.mxu0 0
      %8547 = vmatprep.subr.bf16.mxu0 0
      %8548 = vmatpush1.bf16.msra.mxu0 0
      %8549 = vmatprep.subr.bf16.mxu0 0
      %8550 = vmatpush1.bf16.msra.mxu0 0
      %8551 = vmatprep.mubr.bf16.mxu0 0
      %8552 = vmatmul.mubr.bf16.gmra.mrb[0].mxu0 %v8214
      %v8553 = vpop.f32.mrb[0].mxu0
      %v8554 = vadd.f32 %v8457, %v8553
      %v8555 = vpop.f32.mrb[0].mxu0
      %v8556 = vpop.f32.mrb[0].mxu0
      %v8557 = vadd.f32 %v8460, %v8556
      %v8558 = vpop.f32.mrb[0].mxu0
      %8559 = vmatprep.mubr.bf16.mxu0 0
      %8560 = vmatmul.mubr.bf16.gmra.mrb[0].mxu0 %v8215
      %v8561 = vpop.f32.mrb[0].mxu0
      %v8562 = vadd.f32 %v8465, %v8561
      %v8563 = vpop.f32.mrb[0].mxu0
      %v8564 = vpop.f32.mrb[0].mxu0
      %v8565 = vadd.f32 %v8468, %v8564
      %v8566 = vpop.f32.mrb[0].mxu0
      %8567 = vmatprep.mubr.bf16.mxu0 0
      %8568 = vmatmul.mubr.bf16.gmra.mrb[0].mxu0 %v8216
      %v8569 = vpop.f32.mrb[0].mxu0
      %v8570 = vadd.f32 %v8473, %v8569
      %v8571 = vpop.f32.mrb[0].mxu0
      %v8572 = vpop.f32.mrb[0].mxu0
      %v8573 = vadd.f32 %v8476, %v8572
      %v8574 = vpop.f32.mrb[0].mxu0
      %8575 = vmatprep.mubr.bf16.mxu0 0
      %8576 = vmatmul.mubr.bf16.gmra.mrb[0].mxu0 %v8217
      %v8577 = vpop.f32.mrb[0].mxu0
      %v8578 = vadd.f32 %v8481, %v8577
      %v8579 = vpop.f32.mrb[0].mxu0
      %v8580 = vpop.f32.mrb[0].mxu0
      %v8581 = vadd.f32 %v8484, %v8580
      %v8582 = vpop.f32.mrb[0].mxu0
      %8583 = vmatprep.mubr.bf16.mxu0 0
      %8584 = vmatmul.mubr.bf16.gmra.mrb[0].mxu0 %v8218
      %v8585 = vpop.f32.mrb[0].mxu0
      %v8586 = vadd.f32 %v8489, %v8585
      %v8587 = vpop.f32.mrb[0].mxu0
      %v8588 = vpop.f32.mrb[0].mxu0
      %v8589 = vadd.f32 %v8492, %v8588
      %v8590 = vpop.f32.mrb[0].mxu0
      %8591 = vmatprep.mubr.bf16.mxu0 0
      %8592 = vmatmul.mubr.bf16.gmra.mrb[0].mxu0 %v8219
      %v8593 = vpop.f32.mrb[0].mxu0
      %v8594 = vadd.f32 %v8497, %v8593
      %v8595 = vpop.f32.mrb[0].mxu0
      %v8596 = vpop.f32.mrb[0].mxu0
      %v8597 = vadd.f32 %v8500, %v8596
      %v8598 = vpop.f32.mrb[0].mxu0
      %8599 = vmatprep.mubr.bf16.mxu0 0
      %8600 = vmatmul.mubr.bf16.gmra.mrb[0].mxu0 %v8220
      %v8601 = vpop.f32.mrb[0].mxu0
      %v8602 = vadd.f32 %v8505, %v8601
      %v8603 = vpop.f32.mrb[0].mxu0
      %v8604 = vpop.f32.mrb[0].mxu0
      %v8605 = vadd.f32 %v8508, %v8604
      %v8606 = vpop.f32.mrb[0].mxu0
      %8607 = vmatprep.mubr.bf16.mxu0 0
      %8608 = vmatmul.mubr.bf16.gmra.mrb[0].mxu0 %v8221
      %v8609 = vpop.f32.mrb[0].mxu0
      %v8610 = vadd.f32 %v8513, %v8609
      %v8611 = vpop.f32.mrb[0].mxu0
      %v8612 = vpop.f32.mrb[0].mxu0
      %v8613 = vadd.f32 %v8516, %v8612
      %v8614 = vpop.f32.mrb[0].mxu0
      %8615 = vdwg.mxu0
      %v8616 = vadd.f32 %v7759, %v8554
      %v8617 = vadd.f32 %v7762, %v8557
      %v8618 = vadd.f32 %v7767, %v8562
      %v8619 = vadd.f32 %v7770, %v8565
      %v8620 = vadd.f32 %v7775, %v8570
      %v8621 = vadd.f32 %v7778, %v8573
      %v8622 = vadd.f32 %v7783, %v8578
      %v8623 = vadd.f32 %v7786, %v8581
      %v8624 = vadd.f32 %v7791, %v8586
      %v8625 = vadd.f32 %v7794, %v8589
      %v8626 = vadd.f32 %v7799, %v8594
      %v8627 = vadd.f32 %v7802, %v8597
      %v8628 = vadd.f32 %v7807, %v8602
      %v8629 = vadd.f32 %v7810, %v8605
      %v8630 = vadd.f32 %v7815, %v8610
      %v8631 = vadd.f32 %v7818, %v8613
      %v8632 = vld [vmem:[%s2170 + $0x1] sm:$0xff]
      %v8633 = vld [vmem:[%s2170 + $0x9] sm:$0xff]
      %v8634 = vld [vmem:[%s2170 + $0x19] sm:$0xff]
      %v8635 = vld [vmem:[%s2170 + $0x21] sm:$0xff]
      %v8636 = vld [vmem:[%s2170 + $0x31] sm:$0xff]
      %v8637 = vld [vmem:[%s2170 + $0x39] sm:$0xff]
      %v8638 = vld [vmem:[%s2170 + $0x49] sm:$0xff]
      %v8639 = vld [vmem:[%s2170 + $0x51] sm:$0xff]
      %v8640 = vld [vmem:[%s2170 + $0x61] sm:$0xff]
      %v8641 = vld [vmem:[%s2170 + $0x69] sm:$0xff]
      %v8642 = vld [vmem:[%s2170 + $0x79] sm:$0xff]
      %v8643 = vld [vmem:[%s2170 + $0x81] sm:$0xff]
      %v8644 = vld [vmem:[%s2170 + $0x91] sm:$0xff]
      %v8645 = vld [vmem:[%s2170 + $0x99] sm:$0xff]
      %v8646 = vld [vmem:[%s2170 + $0xa9] sm:$0xff]
      %v8647 = vld [vmem:[%s2170 + $0xb1] sm:$0xff]
      %v8648 = vadd.f32 %v8616, %v6166
      %v8649 = vadd.f32 %v8617, %v6166
      %v8650 = vadd.f32 %v8618, %v6166
      %v8651 = vadd.f32 %v8619, %v6166
      %v8652 = vadd.f32 %v8620, %v6166
      %v8653 = vadd.f32 %v8621, %v6166
      %v8654 = vadd.f32 %v8622, %v6166
      %v8655 = vadd.f32 %v8623, %v6166
      %v8656 = vadd.f32 %v8624, %v6166
      %v8657 = vadd.f32 %v8625, %v6166
      %v8658 = vadd.f32 %v8626, %v6166
      %v8659 = vadd.f32 %v8627, %v6166
      %v8660 = vadd.f32 %v8628, %v6166
      %v8661 = vadd.f32 %v8629, %v6166
      %v8662 = vadd.f32 %v8630, %v6166
      %v8663 = vadd.f32 %v8631, %v6166
      %v8664 = vadd.f32 %v8648, %v8632
      %v8665 = vadd.f32 %v8649, %v8633
      %v8666 = vadd.f32 %v8650, %v8634
      %v8667 = vadd.f32 %v8651, %v8635
      %v8668 = vadd.f32 %v8652, %v8636
      %v8669 = vadd.f32 %v8653, %v8637
      %v8670 = vadd.f32 %v8654, %v8638
      %v8671 = vadd.f32 %v8655, %v8639
      %v8672 = vadd.f32 %v8656, %v8640
      %v8673 = vadd.f32 %v8657, %v8641
      %v8674 = vadd.f32 %v8658, %v8642
      %v8675 = vadd.f32 %v8659, %v8643
      %v8676 = vadd.f32 %v8660, %v8644
      %v8677 = vadd.f32 %v8661, %v8645
      %v8678 = vadd.f32 %v8662, %v8646
      %v8679 = vadd.f32 %v8663, %v8647
      %v8680 = vmax.f32 %v8664, 0.0
      %v8681 = vmax.f32 %v8665, 0.0
      %v8682 = vmax.f32 %v8666, 0.0
      %v8683 = vmax.f32 %v8667, 0.0
      %v8684 = vmax.f32 %v8668, 0.0
      %v8685 = vmax.f32 %v8669, 0.0
      %v8686 = vmax.f32 %v8670, 0.0
      %v8687 = vmax.f32 %v8671, 0.0
      %v8688 = vmax.f32 %v8672, 0.0
      %v8689 = vmax.f32 %v8673, 0.0
      %v8690 = vmax.f32 %v8674, 0.0
      %v8691 = vmax.f32 %v8675, 0.0
      %v8692 = vmax.f32 %v8676, 0.0
      %v8693 = vmax.f32 %v8677, 0.0
      %v8694 = vmax.f32 %v8678, 0.0
      %v8695 = vmax.f32 %v8679, 0.0
      %s8696 = scalar_lea.vmem %s224, 128
      %8697 = vst [vmem:[%s8696] sm:$0xff] %v8680
      %8698 = vst [vmem:[%s8696 + $0x8] sm:$0xff] %v8681
      %8699 = vst [vmem:[%s8696 + $0x10] sm:$0xff] %v8682
      %8700 = vst [vmem:[%s8696 + $0x18] sm:$0xff] %v8683
      %8701 = vst [vmem:[%s8696 + $0x20] sm:$0xff] %v8684
      %8702 = vst [vmem:[%s8696 + $0x28] sm:$0xff] %v8685
      %8703 = vst [vmem:[%s8696 + $0x30] sm:$0xff] %v8686
      %8704 = vst [vmem:[%s8696 + $0x38] sm:$0xff] %v8687
      %8705 = vst [vmem:[%s8696 + $0x40] sm:$0xff] %v8688
      %8706 = vst [vmem:[%s8696 + $0x48] sm:$0xff] %v8689
      %8707 = vst [vmem:[%s8696 + $0x50] sm:$0xff] %v8690
      %8708 = vst [vmem:[%s8696 + $0x58] sm:$0xff] %v8691
      %8709 = vst [vmem:[%s8696 + $0x60] sm:$0xff] %v8692
      %8710 = vst [vmem:[%s8696 + $0x68] sm:$0xff] %v8693
      %8711 = vst [vmem:[%s8696 + $0x70] sm:$0xff] %v8694
      %8712 = vst [vmem:[%s8696 + $0x78] sm:$0xff] %v8695
      %p8713 = scmp.lt.s32.totalorder %s16, 1
      %s8714 = scalar_select %p8713, %s16, 1
      %s8715 = smul.addr %s8714, 32
      %s8716 = smul.addr %s8715, 8
      %s8717 = scalar_lea.vmem %s5, %s8716
      // Predicated region
      $region41: #{basic_block_pallas.1} parent=39 // pred_check
        %p8718 = pneg %p144
      $region42: #{basic_block_pallas.1} parent=39 // pred_check_branch
        %8720 = sbr.rel (%p8718) target = $region44
      $region43: #{basic_block_pallas.1} parent=39 // pred_region
        _
      $region44: #{basic_block_pallas.1} parent=39 // pred_fallthru
        _
    $region40: #{basic_block_pallas.1} parent=5 // pred_fallthru
      _
    %p8721 = scmp.le.s32.totalorder 2, %s11
    // Predicated region
    $region45: #{basic_block_pallas.1} parent=5 // pred_check
      %p8722 = pneg %p8721
    $region46: #{basic_block_pallas.1} parent=5 // pred_check_branch
      %8724 = sbr.rel (%p8722) target = $region48
    $region47: #{basic_block_pallas.1} parent=5 // pred_region
      %s8725 = ssub.s32 %s11, 2
      // Predicated region
      $region49: #{basic_block_pallas.1} parent=47 // pred_check
        %p8726 = pneg %p150
      $region50: #{basic_block_pallas.1} parent=47 // pred_check_branch
        %8728 = sbr.rel (%p8726) target = $region52
      $region51: #{basic_block_pallas.1} parent=47 // pred_region
        %p8729 = scmp.lt.s32.totalorder %s17, 1
        %s8730 = scalar_select %p8729, %s17, 1
        %s8731 = smul.addr %s8730, 32
        %s8732 = smul.addr %s8731, 8
        %s8733 = scalar_lea.vmem %s5, %s8732
      $region52: #{basic_block_pallas.1} parent=47 // pred_fallthru
        _
    $region48: #{basic_block_pallas.1} parent=5 // pred_fallthru
      _
  $region6: #{basic_block_pallas.1} parent=0 // loop_footer
    %s15 = sadd.s32 1, %s11
  $region7: #{basic_block_pallas.1} parent=0 // loop_footer_branch
    %10 = sbr.rel target = $region3
  $region8: #{basic_block_pallas.1} parent=0 // loop_exit
    _

</llo_original>
